<compile_context>
chip_gen: v7x
topology: tpu7x:2x2x1
jax: 0.10.0
libtpu: 0.0.40
codegen_flags: <defaults>
</compile_context>

<pallas_src>
import math

import jax
import jax.numpy as jnp
from jax.experimental import pallas as pl
from jax.experimental.pallas import tpu as pltpu

# ---- model config (small, consistent with the module's forward) ----
SRC_VOCAB = 50
TRG_VOCAB = 50
TRG_VOCAB_PAD = 128          # lane-dense padded logits width (multiple of 128)
HID_DIM = 32
N_LAYERS = 2
N_HEADS = 4
PF_DIM = 64
MAX_LEN = 64
SRC_PAD_IDX = 0
TRG_PAD_IDX = 0
HEAD_DIM = HID_DIM // N_HEADS
INV_SCALE = 1.0 / math.sqrt(HEAD_DIM)
LN_EPS = 1e-5


# ---------------- in-kernel helper math (pure array fns, traced inside kernels) -------
def _layernorm(x, g, b):
    mu = jnp.mean(x, axis=-1, keepdims=True)
    var = jnp.mean((x - mu) ** 2, axis=-1, keepdims=True)
    return (x - mu) * jax.lax.rsqrt(var + LN_EPS) * g + b


def _attention_heads(q, k, v, mask):
    """q: [Lq, H], k/v: [Lk, H], mask: [Lq, Lk] float (non-zero = keep).
    Returns (context [Lq, H], list of per-head attn [Lq, Lk])."""
    ctx_heads = []
    attn_heads = []
    for h in range(N_HEADS):
        sl = slice(h * HEAD_DIM, (h + 1) * HEAD_DIM)
        qh, kh, vh = q[:, sl], k[:, sl], v[:, sl]
        energy = jax.lax.dot_general(
            qh, kh, (((1,), (1,)), ((), ())), preferred_element_type=jnp.float32
        ) * INV_SCALE
        energy = jnp.where(mask != 0.0, energy, -1e10)
        energy = energy - jnp.max(energy, axis=-1, keepdims=True)
        p = jnp.exp(energy)
        attn = p * pl.reciprocal(jnp.sum(p, axis=-1, keepdims=True), approx=True)
        ctx_heads.append(jnp.dot(attn, vh, preferred_element_type=jnp.float32))
        attn_heads.append(attn)
    return jnp.concatenate(ctx_heads, axis=-1), attn_heads


def _mha_self(x, mask, wqkv, bqkv, wo, bo):
    qkv = jnp.dot(x, wqkv, preferred_element_type=jnp.float32) + bqkv     # [L, 3H]
    q = qkv[:, :HID_DIM]
    k = qkv[:, HID_DIM:2 * HID_DIM]
    v = qkv[:, 2 * HID_DIM:]
    ctx, _ = _attention_heads(q, k, v, mask)
    return jnp.dot(ctx, wo, preferred_element_type=jnp.float32) + bo


def _mha_cross(x, enc, mask, wq, bq, wkv, bkv, wo, bo):
    q = jnp.dot(x, wq, preferred_element_type=jnp.float32) + bq           # [T, H]
    kv = jnp.dot(enc, wkv, preferred_element_type=jnp.float32) + bkv      # [S, 2H]
    k = kv[:, :HID_DIM]
    v = kv[:, HID_DIM:]
    ctx, attn_heads = _attention_heads(q, k, v, mask)
    out = jnp.dot(ctx, wo, preferred_element_type=jnp.float32) + bo
    return out, attn_heads


def _ffn(x, w1, b1, w2, b2):
    h = jnp.maximum(jnp.dot(x, w1, preferred_element_type=jnp.float32) + b1, 0.0)
    return jnp.dot(h, w2, preferred_element_type=jnp.float32) + b2


# ---------------- fused layer kernels (one grid step = one batch element) -------------
def _encoder_layer_kernel(x_ref, mask_ref, *rest):
    (wqkv, bqkv, wo, bo, ln1_g, ln1_b,
     w1, b1, w2, b2, ln2_g, ln2_b) = [r[...] for r in rest[:12]]
    o_ref = rest[12]

    x = x_ref[0]                   # [S, H]
    mask = mask_ref[0]             # [S, S]
    a = _mha_self(x, mask, wqkv, bqkv, wo, bo)
    x = _layernorm(x + a, ln1_g, ln1_b)           # dropout is identity at inference
    f = _ffn(x, w1, b1, w2, b2)
    x = _layernorm(x + f, ln2_g, ln2_b)
    o_ref[0] = x


def _decoder_layer_body(x, enc, tmask, smask, w_refs):
    (wqkv_s, bqkv_s, wo_s, bo_s, ln1_g, ln1_b,
     wq_c, bq_c, wkv_c, bkv_c, wo_c, bo_c, ln2_g, ln2_b,
     w1, b1, w2, b2, ln3_g, ln3_b) = [r[...] for r in w_refs]

    a = _mha_self(x, tmask, wqkv_s, bqkv_s, wo_s, bo_s)
    x = _layernorm(x + a, ln1_g, ln1_b)
    a, attn_heads = _mha_cross(x, enc, smask, wq_c, bq_c, wkv_c, bkv_c, wo_c, bo_c)
    x = _layernorm(x + a, ln2_g, ln2_b)
    f = _ffn(x, w1, b1, w2, b2)
    x = _layernorm(x + f, ln3_g, ln3_b)
    return x, attn_heads


def _decoder_layer_kernel(x_ref, enc_ref, tmask_ref, smask_ref, *rest):
    # Intermediate decoder layer: attention weights are computed (needed for the
    # context) but never stored -> no wasted [B, NH, T, S] writeback.
    w_refs = rest[:20]
    o_ref = rest[20]
    x, _ = _decoder_layer_body(x_ref[0], enc_ref[0], tmask_ref[0], smask_ref[0], w_refs)
    o_ref[0] = x


def _decoder_last_layer_kernel(x_ref, enc_ref, tmask_ref, smask_ref, *rest):
    # Last decoder layer: also emits the encoder-attention weights and the fused,
    # lane-dense (padded to 128) vocab projection.
    w_refs = rest[:20]
    wout_ref, bout_ref, logits_ref, attn_ref = rest[20:]
    x, attn_heads = _decoder_layer_body(
        x_ref[0], enc_ref[0], tmask_ref[0], smask_ref[0], w_refs)
    logits_ref[0] = (
        jnp.dot(x, wout_ref[...], preferred_element_type=jnp.float32) + bout_ref[...]
    )
    for h in range(N_HEADS):
        attn_ref[0, h, :, :] = attn_heads[h]


# ---------------- pallas_call wrappers ----------------
def _rep(shape):
    # Whole-array (replicated across the batch grid) BlockSpec.
    return pl.BlockSpec(tuple(shape), lambda b: (0,) * len(shape))


_CPARAMS = pltpu.CompilerParams(dimension_semantics=("arbitrary",))


def encoder_layer_call(lp, x, mask):
    B, S, H = x.shape
    weights = [lp["wqkv"], lp["bqkv"], lp["wo"], lp["bo"],
               lp["ln1_g"], lp["ln1_b"],
               lp["w1"], lp["b1"], lp["w2"], lp["b2"],
               lp["ln2_g"], lp["ln2_b"]]
    in_specs = ([pl.BlockSpec((1, S, H), lambda b: (b, 0, 0)),
                 pl.BlockSpec((1, S, S), lambda b: (b, 0, 0))]
                + [_rep(w.shape) for w in weights])
    return pl.pallas_call(
        _encoder_layer_kernel,
        grid=(B,),
        in_specs=in_specs,
        out_specs=pl.BlockSpec((1, S, H), lambda b: (b, 0, 0)),
        out_shape=jax.ShapeDtypeStruct((B, S, H), jnp.float32),
        compiler_params=_CPARAMS,
    )(x, mask, *weights)


def _decoder_weights(lp):
    return [lp["wqkv_s"], lp["bqkv_s"], lp["wo_s"], lp["bo_s"],
            lp["ln1_g"], lp["ln1_b"],
            lp["wq_c"], lp["bq_c"], lp["wkv_c"], lp["bkv_c"],
            lp["wo_c"], lp["bo_c"], lp["ln2_g"], lp["ln2_b"],
            lp["w1"], lp["b1"], lp["w2"], lp["b2"],
            lp["ln3_g"], lp["ln3_b"]]


def decoder_layer_call(lp, x, enc, tmask, smask):
    B, T, H = x.shape
    S = enc.shape[1]
    weights = _decoder_weights(lp)
    in_specs = ([pl.BlockSpec((1, T, H), lambda b: (b, 0, 0)),
                 pl.BlockSpec((1, S, H), lambda b: (b, 0, 0)),
                 pl.BlockSpec((1, T, T), lambda b: (b, 0, 0)),
                 pl.BlockSpec((1, T, S), lambda b: (b, 0, 0))]
                + [_rep(w.shape) for w in weights])
    return pl.pallas_call(
        _decoder_layer_kernel,
        grid=(B,),
        in_specs=in_specs,
        out_specs=pl.BlockSpec((1, T, H), lambda b: (b, 0, 0)),
        out_shape=jax.ShapeDtypeStruct((B, T, H), jnp.float32),
        compiler_params=_CPARAMS,
    )(x, enc, tmask, smask, *weights)


def decoder_last_layer_call(lp, fc_w, fc_b, x, enc, tmask, smask):
    B, T, H = x.shape
    S = enc.shape[1]
    NP = fc_w.shape[1]
    weights = _decoder_weights(lp)
    in_specs = ([pl.BlockSpec((1, T, H), lambda b: (b, 0, 0)),
                 pl.BlockSpec((1, S, H), lambda b: (b, 0, 0)),
                 pl.BlockSpec((1, T, T), lambda b: (b, 0, 0)),
                 pl.BlockSpec((1, T, S), lambda b: (b, 0, 0))]
                + [_rep(w.shape) for w in weights]
                + [_rep(fc_w.shape), _rep(fc_b.shape)])
    out_specs = (pl.BlockSpec((1, T, NP), lambda b: (b, 0, 0)),
                 pl.BlockSpec((1, N_HEADS, T, S), lambda b: (b, 0, 0, 0)))
    out_shape = (jax.ShapeDtypeStruct((B, T, NP), jnp.float32),
                 jax.ShapeDtypeStruct((B, N_HEADS, T, S), jnp.float32))
    logits_pad, attn = pl.pallas_call(
        _decoder_last_layer_kernel,
        grid=(B,),
        in_specs=in_specs,
        out_specs=out_specs,
        out_shape=out_shape,
        compiler_params=_CPARAMS,
    )(x, enc, tmask, smask, *weights, fc_w, fc_b)
    return logits_pad, attn


# ---------------- model forward (embedding gathers + masks are XLA glue) --------------
def encoder_forward(p, src, enc_mask):
    S = src.shape[1]
    pos = jnp.arange(S)
    x = p["tok_emb"][src] * math.sqrt(HID_DIM) + p["pos_emb"][pos][None, :, :]
    for layer in p["layers"]:
        x = encoder_layer_call(layer, x, enc_mask)
    return x


def decoder_forward(p, trg, enc_src, trg_mask, cross_mask):
    T = trg.shape[1]
    pos = jnp.arange(T)
    x = p["tok_emb"][trg] * math.sqrt(HID_DIM) + p["pos_emb"][pos][None, :, :]
    for layer in p["layers"][:-1]:
        x = decoder_layer_call(layer, x, enc_src, trg_mask, cross_mask)
    logits_pad, attention = decoder_last_layer_call(
        p["layers"][-1], p["fc_out_w"], p["fc_out_b"], x, enc_src, trg_mask, cross_mask)
    return logits_pad[:, :, :TRG_VOCAB], attention


def seq2seq_forward(params, src, trg):
    B, S = src.shape
    T = trg.shape[1]
    # src_mask: (src != pad) broadcast over query positions -> [B, Lq, S]
    src_keep = (src != SRC_PAD_IDX)
    enc_mask = jnp.broadcast_to(src_keep[:, None, :], (B, S, S)).astype(jnp.float32)
    cross_mask = jnp.broadcast_to(src_keep[:, None, :], (B, T, S)).astype(jnp.float32)
    # trg_mask: pad mask & causal mask -> [B, T, T]
    trg_keep = (trg != TRG_PAD_IDX)[:, None, :]
    sub = jnp.tril(jnp.ones((T, T), dtype=bool))[None]
    trg_mask = (trg_keep & sub).astype(jnp.float32)

    enc_src = encoder_forward(params["encoder"], src, enc_mask)
    output, attention = decoder_forward(
        params["decoder"], trg, enc_src, trg_mask, cross_mask)
    return output, attention


# ---------------- deterministic parameter init (fused weight layout) ------------------
def init_params(key):
    keys = iter(jax.random.split(key, 4096))

    def w(shape, scale=0.05):
        return (jax.random.normal(next(keys), shape) * scale).astype(jnp.float32)

    def b(n, scale=0.01):
        return (jax.random.normal(next(keys), (1, n)) * scale).astype(jnp.float32)

    def ln():
        return jnp.ones((1, HID_DIM), jnp.float32), jnp.zeros((1, HID_DIM), jnp.float32)

    def enc_layer():
        g1, b1_ = ln()
        g2, b2_ = ln()
        return {
            "wqkv": w((HID_DIM, 3 * HID_DIM)), "bqkv": b(3 * HID_DIM),
            "wo": w((HID_DIM, HID_DIM)), "bo": b(HID_DIM),
            "ln1_g": g1, "ln1_b": b1_,
            "w1": w((HID_DIM, PF_DIM)), "b1": b(PF_DIM),
            "w2": w((PF_DIM, HID_DIM)), "b2": b(HID_DIM),
            "ln2_g": g2, "ln2_b": b2_,
        }

    def dec_layer():
        g1, b1_ = ln()
        g2, b2_ = ln()
        g3, b3_ = ln()
        return {
            "wqkv_s": w((HID_DIM, 3 * HID_DIM)), "bqkv_s": b(3 * HID_DIM),
            "wo_s": w((HID_DIM, HID_DIM)), "bo_s": b(HID_DIM),
            "ln1_g": g1, "ln1_b": b1_,
            "wq_c": w((HID_DIM, HID_DIM)), "bq_c": b(HID_DIM),
            "wkv_c": w((HID_DIM, 2 * HID_DIM)), "bkv_c": b(2 * HID_DIM),
            "wo_c": w((HID_DIM, HID_DIM)), "bo_c": b(HID_DIM),
            "ln2_g": g2, "ln2_b": b2_,
            "w1": w((HID_DIM, PF_DIM)), "b1": b(PF_DIM),
            "w2": w((PF_DIM, HID_DIM)), "b2": b(HID_DIM),
            "ln3_g": g3, "ln3_b": b3_,
        }

    # fc_out padded to 128 output columns (lane-dense stores); sliced to 50 outside.
    fc_w = w((HID_DIM, TRG_VOCAB))
    fc_b = (jax.random.normal(next(keys), (TRG_VOCAB,)) * 0.01).astype(jnp.float32)
    fc_w_pad = jnp.zeros((HID_DIM, TRG_VOCAB_PAD), jnp.float32).at[:, :TRG_VOCAB].set(fc_w)
    fc_b_pad = jnp.zeros((1, TRG_VOCAB_PAD), jnp.float32).at[0, :TRG_VOCAB].set(fc_b)

    encoder = {
        "tok_emb": w((SRC_VOCAB, HID_DIM)),
        "pos_emb": w((MAX_LEN, HID_DIM)),
        "layers": [enc_layer() for _ in range(N_LAYERS)],
    }
    decoder = {
        "tok_emb": w((TRG_VOCAB, HID_DIM)),
        "pos_emb": w((MAX_LEN, HID_DIM)),
        "layers": [dec_layer() for _ in range(N_LAYERS)],
        "fc_out_w": fc_w_pad,
        "fc_out_b": fc_b_pad,
    }
    return {"encoder": encoder, "decoder": decoder}


if __name__ == "__main__":
    key = jax.random.PRNGKey(0)
    pkey, skey, tkey = jax.random.split(key, 3)
    params = init_params(pkey)

    B, S, T = 2, 8, 8
    src = jax.random.randint(skey, (B, S), 1, SRC_VOCAB, dtype=jnp.int32)
    trg = jax.random.randint(tkey, (B, T), 1, TRG_VOCAB, dtype=jnp.int32)
    # include some padding to exercise the masks
    src = src.at[1, -2:].set(SRC_PAD_IDX)
    trg = trg.at[1, -1:].set(TRG_PAD_IDX)

    fwd = jax.jit(seq2seq_forward)
    output, attention = fwd(params, src, trg)
    jax.block_until_ready((output, attention))

    assert output.shape == (B, T, TRG_VOCAB), output.shape
    assert attention.shape == (B, N_HEADS, T, S), attention.shape
    assert bool(jnp.all(jnp.isfinite(output)))
    assert bool(jnp.all(jnp.isfinite(attention)))
    print("KERNEL_OK")
</pallas_src>

<mosaic_0001>
module attributes {stable_mosaic.version = 11 : i64} {
  func.func @_encoder_layer_kernel(%arg0: i32, %arg1: memref<1x8x32xf32, #tpu.memory_space<vmem>>, %arg2: memref<1x8x8xf32, #tpu.memory_space<vmem>>, %arg3: memref<32x96xf32, #tpu.memory_space<vmem>>, %arg4: memref<1x96xf32, #tpu.memory_space<vmem>>, %arg5: memref<32x32xf32, #tpu.memory_space<vmem>>, %arg6: memref<1x32xf32, #tpu.memory_space<vmem>>, %arg7: memref<1x32xf32, #tpu.memory_space<vmem>>, %arg8: memref<1x32xf32, #tpu.memory_space<vmem>>, %arg9: memref<32x64xf32, #tpu.memory_space<vmem>>, %arg10: memref<1x64xf32, #tpu.memory_space<vmem>>, %arg11: memref<64x32xf32, #tpu.memory_space<vmem>>, %arg12: memref<1x32xf32, #tpu.memory_space<vmem>>, %arg13: memref<1x32xf32, #tpu.memory_space<vmem>>, %arg14: memref<1x32xf32, #tpu.memory_space<vmem>>, %arg15: memref<1x8x32xf32, #tpu.memory_space<vmem>>) attributes {dimension_semantics = [#tpu.dimension_semantics<arbitrary>], iteration_bounds = array<i64: 2>, scalar_prefetch = 0 : i64, scratch_operands = 0 : i64, tpu.core_type = #tpu.core_type<tc>, window_params = [{transform_indices = @transform_0, window_bounds = array<i64: 1, 8, 32>}, {transform_indices = @transform_1, window_bounds = array<i64: 1, 8, 8>}, {pipeline_mode = #tpu.pipeline_mode<synchronous>, transform_indices = @transform_2, window_bounds = array<i64: 32, 96>}, {pipeline_mode = #tpu.pipeline_mode<synchronous>, transform_indices = @transform_3, window_bounds = array<i64: 1, 96>}, {pipeline_mode = #tpu.pipeline_mode<synchronous>, transform_indices = @transform_4, window_bounds = array<i64: 32, 32>}, {pipeline_mode = #tpu.pipeline_mode<synchronous>, transform_indices = @transform_5, window_bounds = array<i64: 1, 32>}, {pipeline_mode = #tpu.pipeline_mode<synchronous>, transform_indices = @transform_6, window_bounds = array<i64: 1, 32>}, {pipeline_mode = #tpu.pipeline_mode<synchronous>, transform_indices = @transform_7, window_bounds = array<i64: 1, 32>}, {pipeline_mode = #tpu.pipeline_mode<synchronous>, transform_indices = @transform_8, window_bounds = array<i64: 32, 64>}, {pipeline_mode = #tpu.pipeline_mode<synchronous>, transform_indices = @transform_9, window_bounds = array<i64: 1, 64>}, {pipeline_mode = #tpu.pipeline_mode<synchronous>, transform_indices = @transform_10, window_bounds = array<i64: 64, 32>}, {pipeline_mode = #tpu.pipeline_mode<synchronous>, transform_indices = @transform_11, window_bounds = array<i64: 1, 32>}, {pipeline_mode = #tpu.pipeline_mode<synchronous>, transform_indices = @transform_12, window_bounds = array<i64: 1, 32>}, {pipeline_mode = #tpu.pipeline_mode<synchronous>, transform_indices = @transform_13, window_bounds = array<i64: 1, 32>}, {transform_indices = @transform_14, window_bounds = array<i64: 1, 8, 32>}]} {
    %c0 = arith.constant 0 : index
    %c0_0 = arith.constant 0 : index
    %0 = vector.load %arg3[%c0, %c0_0] : memref<32x96xf32, #tpu.memory_space<vmem>>, vector<32x96xf32>
    %c0_1 = arith.constant 0 : index
    %c0_2 = arith.constant 0 : index
    %1 = vector.load %arg4[%c0_1, %c0_2] : memref<1x96xf32, #tpu.memory_space<vmem>>, vector<1x96xf32>
    %c0_3 = arith.constant 0 : index
    %c0_4 = arith.constant 0 : index
    %2 = vector.load %arg5[%c0_3, %c0_4] : memref<32x32xf32, #tpu.memory_space<vmem>>, vector<32x32xf32>
    %c0_5 = arith.constant 0 : index
    %c0_6 = arith.constant 0 : index
    %3 = vector.load %arg6[%c0_5, %c0_6] : memref<1x32xf32, #tpu.memory_space<vmem>>, vector<1x32xf32>
    %c0_7 = arith.constant 0 : index
    %c0_8 = arith.constant 0 : index
    %4 = vector.load %arg7[%c0_7, %c0_8] : memref<1x32xf32, #tpu.memory_space<vmem>>, vector<1x32xf32>
    %c0_9 = arith.constant 0 : index
    %c0_10 = arith.constant 0 : index
    %5 = vector.load %arg8[%c0_9, %c0_10] : memref<1x32xf32, #tpu.memory_space<vmem>>, vector<1x32xf32>
    %c0_11 = arith.constant 0 : index
    %c0_12 = arith.constant 0 : index
    %6 = vector.load %arg9[%c0_11, %c0_12] : memref<32x64xf32, #tpu.memory_space<vmem>>, vector<32x64xf32>
    %c0_13 = arith.constant 0 : index
    %c0_14 = arith.constant 0 : index
    %7 = vector.load %arg10[%c0_13, %c0_14] : memref<1x64xf32, #tpu.memory_space<vmem>>, vector<1x64xf32>
    %c0_15 = arith.constant 0 : index
    %c0_16 = arith.constant 0 : index
    %8 = vector.load %arg11[%c0_15, %c0_16] : memref<64x32xf32, #tpu.memory_space<vmem>>, vector<64x32xf32>
    %c0_17 = arith.constant 0 : index
    %c0_18 = arith.constant 0 : index
    %9 = vector.load %arg12[%c0_17, %c0_18] : memref<1x32xf32, #tpu.memory_space<vmem>>, vector<1x32xf32>
    %c0_19 = arith.constant 0 : index
    %c0_20 = arith.constant 0 : index
    %10 = vector.load %arg13[%c0_19, %c0_20] : memref<1x32xf32, #tpu.memory_space<vmem>>, vector<1x32xf32>
    %c0_21 = arith.constant 0 : index
    %c0_22 = arith.constant 0 : index
    %11 = vector.load %arg14[%c0_21, %c0_22] : memref<1x32xf32, #tpu.memory_space<vmem>>, vector<1x32xf32>
    %c0_23 = arith.constant 0 : index
    %c0_24 = arith.constant 0 : index
    %c0_25 = arith.constant 0 : index
    %12 = vector.load %arg1[%c0_23, %c0_24, %c0_25] : memref<1x8x32xf32, #tpu.memory_space<vmem>>, vector<1x8x32xf32>
    %13 = vector.shape_cast %12 : vector<1x8x32xf32> to vector<8x32xf32>
    %c0_26 = arith.constant 0 : index
    %c0_27 = arith.constant 0 : index
    %c0_28 = arith.constant 0 : index
    %14 = vector.load %arg2[%c0_26, %c0_27, %c0_28] : memref<1x8x8xf32, #tpu.memory_space<vmem>>, vector<1x8x8xf32>
    %15 = vector.shape_cast %14 : vector<1x8x8xf32> to vector<8x8xf32>
    %cst = arith.constant dense<0.000000e+00> : vector<8x96xf32>
    %16 = tpu.matmul %13, %0, %cst {dimension_numbers = #tpu.dot_dimension_numbers<[1], [0], [0], [1], [0, 0, 1, 1], [], []>} : vector<8x32xf32>, vector<32x96xf32>, vector<8x96xf32> -> vector<8x96xf32>
    %17 = vector.broadcast %1 : vector<1x96xf32> to vector<8x96xf32>
    %18 = arith.addf %16, %17 : vector<8x96xf32>
    %19 = vector.extract_strided_slice %18 {offsets = [0, 0], sizes = [8, 32], strides = [1, 1]} : vector<8x96xf32> to vector<8x32xf32>
    %20 = vector.extract_strided_slice %18 {offsets = [0, 32], sizes = [8, 32], strides = [1, 1]} : vector<8x96xf32> to vector<8x32xf32>
    %21 = vector.extract_strided_slice %18 {offsets = [0, 64], sizes = [8, 32], strides = [1, 1]} : vector<8x96xf32> to vector<8x32xf32>
    %22 = vector.extract_strided_slice %19 {offsets = [0, 0], sizes = [8, 8], strides = [1, 1]} : vector<8x32xf32> to vector<8x8xf32>
    %23 = vector.extract_strided_slice %20 {offsets = [0, 0], sizes = [8, 8], strides = [1, 1]} : vector<8x32xf32> to vector<8x8xf32>
    %24 = vector.extract_strided_slice %21 {offsets = [0, 0], sizes = [8, 8], strides = [1, 1]} : vector<8x32xf32> to vector<8x8xf32>
    %cst_29 = arith.constant dense<0.000000e+00> : vector<8x8xf32>
    %25 = tpu.matmul %22, %23, %cst_29 {dimension_numbers = #tpu.dot_dimension_numbers<[1], [1], [0], [0], [0, 0, 1, 0], [], []>} : vector<8x8xf32>, vector<8x8xf32>, vector<8x8xf32> -> vector<8x8xf32>
    %cst_30 = arith.constant 0.353553385 : f32
    %26 = vector.broadcast %cst_30 : f32 to vector<8x8xf32>
    %27 = arith.mulf %25, %26 : vector<8x8xf32>
    %cst_31 = arith.constant 0.000000e+00 : f32
    %28 = vector.broadcast %cst_31 : f32 to vector<8x8xf32>
    %29 = arith.cmpf one, %15, %28 : vector<8x8xf32>
    %cst_32 = arith.constant -1.000000e+10 : f32
    %30 = vector.broadcast %cst_32 : f32 to vector<8x8xf32>
    %31 = arith.select %29, %27, %30 : vector<8x8xi1>, vector<8x8xf32>
    %cst_33 = arith.constant dense<0xFF800000> : vector<8xf32>
    %32 = vector.multi_reduction <maximumf>, %31, %cst_33 [1] : vector<8x8xf32> to vector<8xf32>
    %33 = vector.shape_cast %32 : vector<8xf32> to vector<8x1xf32>
    %34 = vector.broadcast %33 : vector<8x1xf32> to vector<8x8xf32>
    %35 = arith.subf %31, %34 : vector<8x8xf32>
    %36 = math.exp %35 : vector<8x8xf32>
    %cst_34 = arith.constant dense<0.000000e+00> : vector<8xf32>
    %37 = vector.multi_reduction <add>, %36, %cst_34 [1] : vector<8x8xf32> to vector<8xf32>
    %38 = vector.shape_cast %37 : vector<8xf32> to vector<8x1xf32>
    %39 = tpu.reciprocal %38 {approx = true} : vector<8x1xf32> -> vector<8x1xf32>
    %40 = vector.broadcast %39 : vector<8x1xf32> to vector<8x8xf32>
    %41 = arith.mulf %36, %40 : vector<8x8xf32>
    %cst_35 = arith.constant dense<0.000000e+00> : vector<8x8xf32>
    %42 = tpu.matmul %41, %24, %cst_35 {dimension_numbers = #tpu.dot_dimension_numbers<[1], [0], [0], [1], [0, 0, 1, 1], [], []>} : vector<8x8xf32>, vector<8x8xf32>, vector<8x8xf32> -> vector<8x8xf32>
    %43 = vector.extract_strided_slice %19 {offsets = [0, 8], sizes = [8, 8], strides = [1, 1]} : vector<8x32xf32> to vector<8x8xf32>
    %44 = vector.extract_strided_slice %20 {offsets = [0, 8], sizes = [8, 8], strides = [1, 1]} : vector<8x32xf32> to vector<8x8xf32>
    %45 = vector.extract_strided_slice %21 {offsets = [0, 8], sizes = [8, 8], strides = [1, 1]} : vector<8x32xf32> to vector<8x8xf32>
    %cst_36 = arith.constant dense<0.000000e+00> : vector<8x8xf32>
    %46 = tpu.matmul %43, %44, %cst_36 {dimension_numbers = #tpu.dot_dimension_numbers<[1], [1], [0], [0], [0, 0, 1, 0], [], []>} : vector<8x8xf32>, vector<8x8xf32>, vector<8x8xf32> -> vector<8x8xf32>
    %cst_37 = arith.constant 0.353553385 : f32
    %47 = vector.broadcast %cst_37 : f32 to vector<8x8xf32>
    %48 = arith.mulf %46, %47 : vector<8x8xf32>
    %cst_38 = arith.constant 0.000000e+00 : f32
    %49 = vector.broadcast %cst_38 : f32 to vector<8x8xf32>
    %50 = arith.cmpf one, %15, %49 : vector<8x8xf32>
    %cst_39 = arith.constant -1.000000e+10 : f32
    %51 = vector.broadcast %cst_39 : f32 to vector<8x8xf32>
    %52 = arith.select %50, %48, %51 : vector<8x8xi1>, vector<8x8xf32>
    %cst_40 = arith.constant dense<0xFF800000> : vector<8xf32>
    %53 = vector.multi_reduction <maximumf>, %52, %cst_40 [1] : vector<8x8xf32> to vector<8xf32>
    %54 = vector.shape_cast %53 : vector<8xf32> to vector<8x1xf32>
    %55 = vector.broadcast %54 : vector<8x1xf32> to vector<8x8xf32>
    %56 = arith.subf %52, %55 : vector<8x8xf32>
    %57 = math.exp %56 : vector<8x8xf32>
    %cst_41 = arith.constant dense<0.000000e+00> : vector<8xf32>
    %58 = vector.multi_reduction <add>, %57, %cst_41 [1] : vector<8x8xf32> to vector<8xf32>
    %59 = vector.shape_cast %58 : vector<8xf32> to vector<8x1xf32>
    %60 = tpu.reciprocal %59 {approx = true} : vector<8x1xf32> -> vector<8x1xf32>
    %61 = vector.broadcast %60 : vector<8x1xf32> to vector<8x8xf32>
    %62 = arith.mulf %57, %61 : vector<8x8xf32>
    %cst_42 = arith.constant dense<0.000000e+00> : vector<8x8xf32>
    %63 = tpu.matmul %62, %45, %cst_42 {dimension_numbers = #tpu.dot_dimension_numbers<[1], [0], [0], [1], [0, 0, 1, 1], [], []>} : vector<8x8xf32>, vector<8x8xf32>, vector<8x8xf32> -> vector<8x8xf32>
    %64 = vector.extract_strided_slice %19 {offsets = [0, 16], sizes = [8, 8], strides = [1, 1]} : vector<8x32xf32> to vector<8x8xf32>
    %65 = vector.extract_strided_slice %20 {offsets = [0, 16], sizes = [8, 8], strides = [1, 1]} : vector<8x32xf32> to vector<8x8xf32>
    %66 = vector.extract_strided_slice %21 {offsets = [0, 16], sizes = [8, 8], strides = [1, 1]} : vector<8x32xf32> to vector<8x8xf32>
    %cst_43 = arith.constant dense<0.000000e+00> : vector<8x8xf32>
    %67 = tpu.matmul %64, %65, %cst_43 {dimension_numbers = #tpu.dot_dimension_numbers<[1], [1], [0], [0], [0, 0, 1, 0], [], []>} : vector<8x8xf32>, vector<8x8xf32>, vector<8x8xf32> -> vector<8x8xf32>
    %cst_44 = arith.constant 0.353553385 : f32
    %68 = vector.broadcast %cst_44 : f32 to vector<8x8xf32>
    %69 = arith.mulf %67, %68 : vector<8x8xf32>
    %cst_45 = arith.constant 0.000000e+00 : f32
    %70 = vector.broadcast %cst_45 : f32 to vector<8x8xf32>
    %71 = arith.cmpf one, %15, %70 : vector<8x8xf32>
    %cst_46 = arith.constant -1.000000e+10 : f32
    %72 = vector.broadcast %cst_46 : f32 to vector<8x8xf32>
    %73 = arith.select %71, %69, %72 : vector<8x8xi1>, vector<8x8xf32>
    %cst_47 = arith.constant dense<0xFF800000> : vector<8xf32>
    %74 = vector.multi_reduction <maximumf>, %73, %cst_47 [1] : vector<8x8xf32> to vector<8xf32>
    %75 = vector.shape_cast %74 : vector<8xf32> to vector<8x1xf32>
    %76 = vector.broadcast %75 : vector<8x1xf32> to vector<8x8xf32>
    %77 = arith.subf %73, %76 : vector<8x8xf32>
    %78 = math.exp %77 : vector<8x8xf32>
    %cst_48 = arith.constant dense<0.000000e+00> : vector<8xf32>
    %79 = vector.multi_reduction <add>, %78, %cst_48 [1] : vector<8x8xf32> to vector<8xf32>
    %80 = vector.shape_cast %79 : vector<8xf32> to vector<8x1xf32>
    %81 = tpu.reciprocal %80 {approx = true} : vector<8x1xf32> -> vector<8x1xf32>
    %82 = vector.broadcast %81 : vector<8x1xf32> to vector<8x8xf32>
    %83 = arith.mulf %78, %82 : vector<8x8xf32>
    %cst_49 = arith.constant dense<0.000000e+00> : vector<8x8xf32>
    %84 = tpu.matmul %83, %66, %cst_49 {dimension_numbers = #tpu.dot_dimension_numbers<[1], [0], [0], [1], [0, 0, 1, 1], [], []>} : vector<8x8xf32>, vector<8x8xf32>, vector<8x8xf32> -> vector<8x8xf32>
    %85 = vector.extract_strided_slice %19 {offsets = [0, 24], sizes = [8, 8], strides = [1, 1]} : vector<8x32xf32> to vector<8x8xf32>
    %86 = vector.extract_strided_slice %20 {offsets = [0, 24], sizes = [8, 8], strides = [1, 1]} : vector<8x32xf32> to vector<8x8xf32>
    %87 = vector.extract_strided_slice %21 {offsets = [0, 24], sizes = [8, 8], strides = [1, 1]} : vector<8x32xf32> to vector<8x8xf32>
    %cst_50 = arith.constant dense<0.000000e+00> : vector<8x8xf32>
    %88 = tpu.matmul %85, %86, %cst_50 {dimension_numbers = #tpu.dot_dimension_numbers<[1], [1], [0], [0], [0, 0, 1, 0], [], []>} : vector<8x8xf32>, vector<8x8xf32>, vector<8x8xf32> -> vector<8x8xf32>
    %cst_51 = arith.constant 0.353553385 : f32
    %89 = vector.broadcast %cst_51 : f32 to vector<8x8xf32>
    %90 = arith.mulf %88, %89 : vector<8x8xf32>
    %cst_52 = arith.constant 0.000000e+00 : f32
    %91 = vector.broadcast %cst_52 : f32 to vector<8x8xf32>
    %92 = arith.cmpf one, %15, %91 : vector<8x8xf32>
    %cst_53 = arith.constant -1.000000e+10 : f32
    %93 = vector.broadcast %cst_53 : f32 to vector<8x8xf32>
    %94 = arith.select %92, %90, %93 : vector<8x8xi1>, vector<8x8xf32>
    %cst_54 = arith.constant dense<0xFF800000> : vector<8xf32>
    %95 = vector.multi_reduction <maximumf>, %94, %cst_54 [1] : vector<8x8xf32> to vector<8xf32>
    %96 = vector.shape_cast %95 : vector<8xf32> to vector<8x1xf32>
    %97 = vector.broadcast %96 : vector<8x1xf32> to vector<8x8xf32>
    %98 = arith.subf %94, %97 : vector<8x8xf32>
    %99 = math.exp %98 : vector<8x8xf32>
    %cst_55 = arith.constant dense<0.000000e+00> : vector<8xf32>
    %100 = vector.multi_reduction <add>, %99, %cst_55 [1] : vector<8x8xf32> to vector<8xf32>
    %101 = vector.shape_cast %100 : vector<8xf32> to vector<8x1xf32>
    %102 = tpu.reciprocal %101 {approx = true} : vector<8x1xf32> -> vector<8x1xf32>
    %103 = vector.broadcast %102 : vector<8x1xf32> to vector<8x8xf32>
    %104 = arith.mulf %99, %103 : vector<8x8xf32>
    %cst_56 = arith.constant dense<0.000000e+00> : vector<8x8xf32>
    %105 = tpu.matmul %104, %87, %cst_56 {dimension_numbers = #tpu.dot_dimension_numbers<[1], [0], [0], [1], [0, 0, 1, 1], [], []>} : vector<8x8xf32>, vector<8x8xf32>, vector<8x8xf32> -> vector<8x8xf32>
    %106 = tpu.concatenate %42, %63, %84, %105 in 1 : vector<8x8xf32>, vector<8x8xf32>, vector<8x8xf32>, vector<8x8xf32> -> vector<8x32xf32>
    %cst_57 = arith.constant dense<0.000000e+00> : vector<8x32xf32>
    %107 = tpu.matmul %106, %2, %cst_57 {dimension_numbers = #tpu.dot_dimension_numbers<[1], [0], [0], [1], [0, 0, 1, 1], [], []>} : vector<8x32xf32>, vector<32x32xf32>, vector<8x32xf32> -> vector<8x32xf32>
    %108 = vector.broadcast %3 : vector<1x32xf32> to vector<8x32xf32>
    %109 = arith.addf %107, %108 : vector<8x32xf32>
    %110 = arith.addf %13, %109 : vector<8x32xf32>
    %cst_58 = arith.constant dense<0.000000e+00> : vector<8xf32>
    %111 = vector.multi_reduction <add>, %110, %cst_58 [1] : vector<8x32xf32> to vector<8xf32>
    %112 = vector.shape_cast %111 : vector<8xf32> to vector<8x1xf32>
    %cst_59 = arith.constant 3.200000e+01 : f32
    %113 = vector.broadcast %cst_59 : f32 to vector<8x1xf32>
    %114 = arith.divf %112, %113 : vector<8x1xf32>
    %115 = vector.broadcast %114 : vector<8x1xf32> to vector<8x32xf32>
    %116 = arith.subf %110, %115 : vector<8x32xf32>
    %117 = arith.mulf %116, %116 : vector<8x32xf32>
    %cst_60 = arith.constant dense<0.000000e+00> : vector<8xf32>
    %118 = vector.multi_reduction <add>, %117, %cst_60 [1] : vector<8x32xf32> to vector<8xf32>
    %119 = vector.shape_cast %118 : vector<8xf32> to vector<8x1xf32>
    %cst_61 = arith.constant 3.200000e+01 : f32
    %120 = vector.broadcast %cst_61 : f32 to vector<8x1xf32>
    %121 = arith.divf %119, %120 : vector<8x1xf32>
    %122 = vector.broadcast %114 : vector<8x1xf32> to vector<8x32xf32>
    %123 = arith.subf %110, %122 : vector<8x32xf32>
    %cst_62 = arith.constant 9.99999974E-6 : f32
    %124 = vector.broadcast %cst_62 : f32 to vector<8x1xf32>
    %125 = arith.addf %121, %124 : vector<8x1xf32>
    %126 = math.rsqrt %125 : vector<8x1xf32>
    %127 = vector.broadcast %126 : vector<8x1xf32> to vector<8x32xf32>
    %128 = arith.mulf %123, %127 : vector<8x32xf32>
    %129 = vector.broadcast %4 : vector<1x32xf32> to vector<8x32xf32>
    %130 = arith.mulf %128, %129 : vector<8x32xf32>
    %131 = vector.broadcast %5 : vector<1x32xf32> to vector<8x32xf32>
    %132 = arith.addf %130, %131 : vector<8x32xf32>
    %cst_63 = arith.constant dense<0.000000e+00> : vector<8x64xf32>
    %133 = tpu.matmul %132, %6, %cst_63 {dimension_numbers = #tpu.dot_dimension_numbers<[1], [0], [0], [1], [0, 0, 1, 1], [], []>} : vector<8x32xf32>, vector<32x64xf32>, vector<8x64xf32> -> vector<8x64xf32>
    %134 = vector.broadcast %7 : vector<1x64xf32> to vector<8x64xf32>
    %135 = arith.addf %133, %134 : vector<8x64xf32>
    %cst_64 = arith.constant 0.000000e+00 : f32
    %136 = vector.broadcast %cst_64 : f32 to vector<8x64xf32>
    %137 = arith.maximumf %135, %136 : vector<8x64xf32>
    %cst_65 = arith.constant dense<0.000000e+00> : vector<8x32xf32>
    %138 = tpu.matmul %137, %8, %cst_65 {dimension_numbers = #tpu.dot_dimension_numbers<[1], [0], [0], [1], [0, 0, 1, 1], [], []>} : vector<8x64xf32>, vector<64x32xf32>, vector<8x32xf32> -> vector<8x32xf32>
    %139 = vector.broadcast %9 : vector<1x32xf32> to vector<8x32xf32>
    %140 = arith.addf %138, %139 : vector<8x32xf32>
    %141 = arith.addf %132, %140 : vector<8x32xf32>
    %cst_66 = arith.constant dense<0.000000e+00> : vector<8xf32>
    %142 = vector.multi_reduction <add>, %141, %cst_66 [1] : vector<8x32xf32> to vector<8xf32>
    %143 = vector.shape_cast %142 : vector<8xf32> to vector<8x1xf32>
    %cst_67 = arith.constant 3.200000e+01 : f32
    %144 = vector.broadcast %cst_67 : f32 to vector<8x1xf32>
    %145 = arith.divf %143, %144 : vector<8x1xf32>
    %146 = vector.broadcast %145 : vector<8x1xf32> to vector<8x32xf32>
    %147 = arith.subf %141, %146 : vector<8x32xf32>
    %148 = arith.mulf %147, %147 : vector<8x32xf32>
    %cst_68 = arith.constant dense<0.000000e+00> : vector<8xf32>
    %149 = vector.multi_reduction <add>, %148, %cst_68 [1] : vector<8x32xf32> to vector<8xf32>
    %150 = vector.shape_cast %149 : vector<8xf32> to vector<8x1xf32>
    %cst_69 = arith.constant 3.200000e+01 : f32
    %151 = vector.broadcast %cst_69 : f32 to vector<8x1xf32>
    %152 = arith.divf %150, %151 : vector<8x1xf32>
    %153 = vector.broadcast %145 : vector<8x1xf32> to vector<8x32xf32>
    %154 = arith.subf %141, %153 : vector<8x32xf32>
    %cst_70 = arith.constant 9.99999974E-6 : f32
    %155 = vector.broadcast %cst_70 : f32 to vector<8x1xf32>
    %156 = arith.addf %152, %155 : vector<8x1xf32>
    %157 = math.rsqrt %156 : vector<8x1xf32>
    %158 = vector.broadcast %157 : vector<8x1xf32> to vector<8x32xf32>
    %159 = arith.mulf %154, %158 : vector<8x32xf32>
    %160 = vector.broadcast %10 : vector<1x32xf32> to vector<8x32xf32>
    %161 = arith.mulf %159, %160 : vector<8x32xf32>
    %162 = vector.broadcast %11 : vector<1x32xf32> to vector<8x32xf32>
    %163 = arith.addf %161, %162 : vector<8x32xf32>
    %c0_71 = arith.constant 0 : index
    %c0_72 = arith.constant 0 : index
    %c0_73 = arith.constant 0 : index
    %164 = vector.load %arg15[%c0_71, %c0_72, %c0_73] : memref<1x8x32xf32, #tpu.memory_space<vmem>>, vector<1x8x32xf32>
    %165 = vector.shape_cast %164 : vector<1x8x32xf32> to vector<8x32xf32>
    %166 = vector.shape_cast %163 : vector<8x32xf32> to vector<1x8x32xf32>
    tpu.vector_store %arg15[%c0_71, %c0_72, %c0_73], %166 {strides = array<i32>} : memref<1x8x32xf32, #tpu.memory_space<vmem>>, vector<1x8x32xf32>,
    return
  }
  func.func @transform_0(%arg0: i32) -> (i32, i32, i32) {
    %c0_i32 = arith.constant 0 : i32
    %c0_i32_0 = arith.constant 0 : i32
    %c0_i32_1 = arith.constant 0 : i32
    return %arg0, %c0_i32, %c0_i32_0 : i32, i32, i32
  }
  func.func @transform_1(%arg0: i32) -> (i32, i32, i32) {
    %c0_i32 = arith.constant 0 : i32
    %c0_i32_0 = arith.constant 0 : i32
    %c0_i32_1 = arith.constant 0 : i32
    return %arg0, %c0_i32, %c0_i32_0 : i32, i32, i32
  }
  func.func @transform_2(%arg0: i32) -> (i32, i32) {
    %c0_i32 = arith.constant 0 : i32
    %c0_i32_0 = arith.constant 0 : i32
    %c0_i32_1 = arith.constant 0 : i32
    return %c0_i32, %c0_i32_0 : i32, i32
  }
  func.func @transform_3(%arg0: i32) -> (i32, i32) {
    %c0_i32 = arith.constant 0 : i32
    %c0_i32_0 = arith.constant 0 : i32
    %c0_i32_1 = arith.constant 0 : i32
    return %c0_i32, %c0_i32_0 : i32, i32
  }
  func.func @transform_4(%arg0: i32) -> (i32, i32) {
    %c0_i32 = arith.constant 0 : i32
    %c0_i32_0 = arith.constant 0 : i32
    %c0_i32_1 = arith.constant 0 : i32
    return %c0_i32, %c0_i32_0 : i32, i32
  }
  func.func @transform_5(%arg0: i32) -> (i32, i32) {
    %c0_i32 = arith.constant 0 : i32
    %c0_i32_0 = arith.constant 0 : i32
    %c0_i32_1 = arith.constant 0 : i32
    return %c0_i32, %c0_i32_0 : i32, i32
  }
  func.func @transform_6(%arg0: i32) -> (i32, i32) {
    %c0_i32 = arith.constant 0 : i32
    %c0_i32_0 = arith.constant 0 : i32
    %c0_i32_1 = arith.constant 0 : i32
    return %c0_i32, %c0_i32_0 : i32, i32
  }
  func.func @transform_7(%arg0: i32) -> (i32, i32) {
    %c0_i32 = arith.constant 0 : i32
    %c0_i32_0 = arith.constant 0 : i32
    %c0_i32_1 = arith.constant 0 : i32
    return %c0_i32, %c0_i32_0 : i32, i32
  }
  func.func @transform_8(%arg0: i32) -> (i32, i32) {
    %c0_i32 = arith.constant 0 : i32
    %c0_i32_0 = arith.constant 0 : i32
    %c0_i32_1 = arith.constant 0 : i32
    return %c0_i32, %c0_i32_0 : i32, i32
  }
  func.func @transform_9(%arg0: i32) -> (i32, i32) {
    %c0_i32 = arith.constant 0 : i32
    %c0_i32_0 = arith.constant 0 : i32
    %c0_i32_1 = arith.constant 0 : i32
    return %c0_i32, %c0_i32_0 : i32, i32
  }
  func.func @transform_10(%arg0: i32) -> (i32, i32) {
    %c0_i32 = arith.constant 0 : i32
    %c0_i32_0 = arith.constant 0 : i32
    %c0_i32_1 = arith.constant 0 : i32
    return %c0_i32, %c0_i32_0 : i32, i32
  }
  func.func @transform_11(%arg0: i32) -> (i32, i32) {
    %c0_i32 = arith.constant 0 : i32
    %c0_i32_0 = arith.constant 0 : i32
    %c0_i32_1 = arith.constant 0 : i32
    return %c0_i32, %c0_i32_0 : i32, i32
  }
  func.func @transform_12(%arg0: i32) -> (i32, i32) {
    %c0_i32 = arith.constant 0 : i32
    %c0_i32_0 = arith.constant 0 : i32
    %c0_i32_1 = arith.constant 0 : i32
    return %c0_i32, %c0_i32_0 : i32, i32
  }
  func.func @transform_13(%arg0: i32) -> (i32, i32) {
    %c0_i32 = arith.constant 0 : i32
    %c0_i32_0 = arith.constant 0 : i32
    %c0_i32_1 = arith.constant 0 : i32
    return %c0_i32, %c0_i32_0 : i32, i32
  }
  func.func @transform_14(%arg0: i32) -> (i32, i32, i32) {
    %c0_i32 = arith.constant 0 : i32
    %c0_i32_0 = arith.constant 0 : i32
    %c0_i32_1 = arith.constant 0 : i32
    return %arg0, %c0_i32, %c0_i32_0 : i32, i32, i32
  }
}

module attributes {stable_mosaic.version = 11 : i64} {
  func.func @_decoder_layer_kernel(%arg0: i32, %arg1: memref<1x8x32xf32, #tpu.memory_space<vmem>>, %arg2: memref<1x8x32xf32, #tpu.memory_space<vmem>>, %arg3: memref<1x8x8xf32, #tpu.memory_space<vmem>>, %arg4: memref<1x8x8xf32, #tpu.memory_space<vmem>>, %arg5: memref<32x96xf32, #tpu.memory_space<vmem>>, %arg6: memref<1x96xf32, #tpu.memory_space<vmem>>, %arg7: memref<32x32xf32, #tpu.memory_space<vmem>>, %arg8: memref<1x32xf32, #tpu.memory_space<vmem>>, %arg9: memref<1x32xf32, #tpu.memory_space<vmem>>, %arg10: memref<1x32xf32, #tpu.memory_space<vmem>>, %arg11: memref<32x32xf32, #tpu.memory_space<vmem>>, %arg12: memref<1x32xf32, #tpu.memory_space<vmem>>, %arg13: memref<32x64xf32, #tpu.memory_space<vmem>>, %arg14: memref<1x64xf32, #tpu.memory_space<vmem>>, %arg15: memref<32x32xf32, #tpu.memory_space<vmem>>, %arg16: memref<1x32xf32, #tpu.memory_space<vmem>>, %arg17: memref<1x32xf32, #tpu.memory_space<vmem>>, %arg18: memref<1x32xf32, #tpu.memory_space<vmem>>, %arg19: memref<32x64xf32, #tpu.memory_space<vmem>>, %arg20: memref<1x64xf32, #tpu.memory_space<vmem>>, %arg21: memref<64x32xf32, #tpu.memory_space<vmem>>, %arg22: memref<1x32xf32, #tpu.memory_space<vmem>>, %arg23: memref<1x32xf32, #tpu.memory_space<vmem>>, %arg24: memref<1x32xf32, #tpu.memory_space<vmem>>, %arg25: memref<1x8x32xf32, #tpu.memory_space<vmem>>) attributes {dimension_semantics = [#tpu.dimension_semantics<arbitrary>], iteration_bounds = array<i64: 2>, scalar_prefetch = 0 : i64, scratch_operands = 0 : i64, tpu.core_type = #tpu.core_type<tc>, window_params = [{transform_indices = @transform_0, window_bounds = array<i64: 1, 8, 32>}, {transform_indices = @transform_1, window_bounds = array<i64: 1, 8, 32>}, {transform_indices = @transform_2, window_bounds = array<i64: 1, 8, 8>}, {transform_indices = @transform_3, window_bounds = array<i64: 1, 8, 8>}, {pipeline_mode = #tpu.pipeline_mode<synchronous>, transform_indices = @transform_4, window_bounds = array<i64: 32, 96>}, {pipeline_mode = #tpu.pipeline_mode<synchronous>, transform_indices = @transform_5, window_bounds = array<i64: 1, 96>}, {pipeline_mode = #tpu.pipeline_mode<synchronous>, transform_indices = @transform_6, window_bounds = array<i64: 32, 32>}, {pipeline_mode = #tpu.pipeline_mode<synchronous>, transform_indices = @transform_7, window_bounds = array<i64: 1, 32>}, {pipeline_mode = #tpu.pipeline_mode<synchronous>, transform_indices = @transform_8, window_bounds = array<i64: 1, 32>}, {pipeline_mode = #tpu.pipeline_mode<synchronous>, transform_indices = @transform_9, window_bounds = array<i64: 1, 32>}, {pipeline_mode = #tpu.pipeline_mode<synchronous>, transform_indices = @transform_10, window_bounds = array<i64: 32, 32>}, {pipeline_mode = #tpu.pipeline_mode<synchronous>, transform_indices = @transform_11, window_bounds = array<i64: 1, 32>}, {pipeline_mode = #tpu.pipeline_mode<synchronous>, transform_indices = @transform_12, window_bounds = array<i64: 32, 64>}, {pipeline_mode = #tpu.pipeline_mode<synchronous>, transform_indices = @transform_13, window_bounds = array<i64: 1, 64>}, {pipeline_mode = #tpu.pipeline_mode<synchronous>, transform_indices = @transform_14, window_bounds = array<i64: 32, 32>}, {pipeline_mode = #tpu.pipeline_mode<synchronous>, transform_indices = @transform_15, window_bounds = array<i64: 1, 32>}, {pipeline_mode = #tpu.pipeline_mode<synchronous>, transform_indices = @transform_16, window_bounds = array<i64: 1, 32>}, {pipeline_mode = #tpu.pipeline_mode<synchronous>, transform_indices = @transform_17, window_bounds = array<i64: 1, 32>}, {pipeline_mode = #tpu.pipeline_mode<synchronous>, transform_indices = @transform_18, window_bounds = array<i64: 32, 64>}, {pipeline_mode = #tpu.pipeline_mode<synchronous>, transform_indices = @transform_19, window_bounds = array<i64: 1, 64>}, {pipeline_mode = #tpu.pipeline_mode<synchronous>, transform_indices = @transform_20, window_bounds = array<i64: 64, 32>}, {pipeline_mode = #tpu.pipeline_mode<synchronous>, transform_indices = @transform_21, window_bounds = array<i64: 1, 32>}, {pipeline_mode = #tpu.pipeline_mode<synchronous>, transform_indices = @transform_22, window_bounds = array<i64: 1, 32>}, {pipeline_mode = #tpu.pipeline_mode<synchronous>, transform_indices = @transform_23, window_bounds = array<i64: 1, 32>}, {transform_indices = @transform_24, window_bounds = array<i64: 1, 8, 32>}]} {
    %c0 = arith.constant 0 : index
    %c0_0 = arith.constant 0 : index
    %c0_1 = arith.constant 0 : index
    %0 = vector.load %arg1[%c0, %c0_0, %c0_1] : memref<1x8x32xf32, #tpu.memory_space<vmem>>, vector<1x8x32xf32>
    %1 = vector.shape_cast %0 : vector<1x8x32xf32> to vector<8x32xf32>
    %c0_2 = arith.constant 0 : index
    %c0_3 = arith.constant 0 : index
    %c0_4 = arith.constant 0 : index
    %2 = vector.load %arg2[%c0_2, %c0_3, %c0_4] : memref<1x8x32xf32, #tpu.memory_space<vmem>>, vector<1x8x32xf32>
    %3 = vector.shape_cast %2 : vector<1x8x32xf32> to vector<8x32xf32>
    %c0_5 = arith.constant 0 : index
    %c0_6 = arith.constant 0 : index
    %c0_7 = arith.constant 0 : index
    %4 = vector.load %arg3[%c0_5, %c0_6, %c0_7] : memref<1x8x8xf32, #tpu.memory_space<vmem>>, vector<1x8x8xf32>
    %5 = vector.shape_cast %4 : vector<1x8x8xf32> to vector<8x8xf32>
    %c0_8 = arith.constant 0 : index
    %c0_9 = arith.constant 0 : index
    %c0_10 = arith.constant 0 : index
    %6 = vector.load %arg4[%c0_8, %c0_9, %c0_10] : memref<1x8x8xf32, #tpu.memory_space<vmem>>, vector<1x8x8xf32>
    %7 = vector.shape_cast %6 : vector<1x8x8xf32> to vector<8x8xf32>
    %c0_11 = arith.constant 0 : index
    %c0_12 = arith.constant 0 : index
    %8 = vector.load %arg5[%c0_11, %c0_12] : memref<32x96xf32, #tpu.memory_space<vmem>>, vector<32x96xf32>
    %c0_13 = arith.constant 0 : index
    %c0_14 = arith.constant 0 : index
    %9 = vector.load %arg6[%c0_13, %c0_14] : memref<1x96xf32, #tpu.memory_space<vmem>>, vector<1x96xf32>
    %c0_15 = arith.constant 0 : index
    %c0_16 = arith.constant 0 : index
    %10 = vector.load %arg7[%c0_15, %c0_16] : memref<32x32xf32, #tpu.memory_space<vmem>>, vector<32x32xf32>
    %c0_17 = arith.constant 0 : index
    %c0_18 = arith.constant 0 : index
    %11 = vector.load %arg8[%c0_17, %c0_18] : memref<1x32xf32, #tpu.memory_space<vmem>>, vector<1x32xf32>
    %c0_19 = arith.constant 0 : index
    %c0_20 = arith.constant 0 : index
    %12 = vector.load %arg9[%c0_19, %c0_20] : memref<1x32xf32, #tpu.memory_space<vmem>>, vector<1x32xf32>
    %c0_21 = arith.constant 0 : index
    %c0_22 = arith.constant 0 : index
    %13 = vector.load %arg10[%c0_21, %c0_22] : memref<1x32xf32, #tpu.memory_space<vmem>>, vector<1x32xf32>
    %c0_23 = arith.constant 0 : index
    %c0_24 = arith.constant 0 : index
    %14 = vector.load %arg11[%c0_23, %c0_24] : memref<32x32xf32, #tpu.memory_space<vmem>>, vector<32x32xf32>
    %c0_25 = arith.constant 0 : index
    %c0_26 = arith.constant 0 : index
    %15 = vector.load %arg12[%c0_25, %c0_26] : memref<1x32xf32, #tpu.memory_space<vmem>>, vector<1x32xf32>
    %c0_27 = arith.constant 0 : index
    %c0_28 = arith.constant 0 : index
    %16 = vector.load %arg13[%c0_27, %c0_28] : memref<32x64xf32, #tpu.memory_space<vmem>>, vector<32x64xf32>
    %c0_29 = arith.constant 0 : index
    %c0_30 = arith.constant 0 : index
    %17 = vector.load %arg14[%c0_29, %c0_30] : memref<1x64xf32, #tpu.memory_space<vmem>>, vector<1x64xf32>
    %c0_31 = arith.constant 0 : index
    %c0_32 = arith.constant 0 : index
    %18 = vector.load %arg15[%c0_31, %c0_32] : memref<32x32xf32, #tpu.memory_space<vmem>>, vector<32x32xf32>
    %c0_33 = arith.constant 0 : index
    %c0_34 = arith.constant 0 : index
    %19 = vector.load %arg16[%c0_33, %c0_34] : memref<1x32xf32, #tpu.memory_space<vmem>>, vector<1x32xf32>
    %c0_35 = arith.constant 0 : index
    %c0_36 = arith.constant 0 : index
    %20 = vector.load %arg17[%c0_35, %c0_36] : memref<1x32xf32, #tpu.memory_space<vmem>>, vector<1x32xf32>
    %c0_37 = arith.constant 0 : index
    %c0_38 = arith.constant 0 : index
    %21 = vector.load %arg18[%c0_37, %c0_38] : memref<1x32xf32, #tpu.memory_space<vmem>>, vector<1x32xf32>
    %c0_39 = arith.constant 0 : index
    %c0_40 = arith.constant 0 : index
    %22 = vector.load %arg19[%c0_39, %c0_40] : memref<32x64xf32, #tpu.memory_space<vmem>>, vector<32x64xf32>
    %c0_41 = arith.constant 0 : index
    %c0_42 = arith.constant 0 : index
    %23 = vector.load %arg20[%c0_41, %c0_42] : memref<1x64xf32, #tpu.memory_space<vmem>>, vector<1x64xf32>
    %c0_43 = arith.constant 0 : index
    %c0_44 = arith.constant 0 : index
    %24 = vector.load %arg21[%c0_43, %c0_44] : memref<64x32xf32, #tpu.memory_space<vmem>>, vector<64x32xf32>
    %c0_45 = arith.constant 0 : index
    %c0_46 = arith.constant 0 : index
    %25 = vector.load %arg22[%c0_45, %c0_46] : memref<1x32xf32, #tpu.memory_space<vmem>>, vector<1x32xf32>
    %c0_47 = arith.constant 0 : index
    %c0_48 = arith.constant 0 : index
    %26 = vector.load %arg23[%c0_47, %c0_48] : memref<1x32xf32, #tpu.memory_space<vmem>>, vector<1x32xf32>
    %c0_49 = arith.constant 0 : index
    %c0_50 = arith.constant 0 : index
    %27 = vector.load %arg24[%c0_49, %c0_50] : memref<1x32xf32, #tpu.memory_space<vmem>>, vector<1x32xf32>
    %cst = arith.constant dense<0.000000e+00> : vector<8x96xf32>
    %28 = tpu.matmul %1, %8, %cst {dimension_numbers = #tpu.dot_dimension_numbers<[1], [0], [0], [1], [0, 0, 1, 1], [], []>} : vector<8x32xf32>, vector<32x96xf32>, vector<8x96xf32> -> vector<8x96xf32>
    %29 = vector.broadcast %9 : vector<1x96xf32> to vector<8x96xf32>
    %30 = arith.addf %28, %29 : vector<8x96xf32>
    %31 = vector.extract_strided_slice %30 {offsets = [0, 0], sizes = [8, 32], strides = [1, 1]} : vector<8x96xf32> to vector<8x32xf32>
    %32 = vector.extract_strided_slice %30 {offsets = [0, 32], sizes = [8, 32], strides = [1, 1]} : vector<8x96xf32> to vector<8x32xf32>
    %33 = vector.extract_strided_slice %30 {offsets = [0, 64], sizes = [8, 32], strides = [1, 1]} : vector<8x96xf32> to vector<8x32xf32>
    %34 = vector.extract_strided_slice %31 {offsets = [0, 0], sizes = [8, 8], strides = [1, 1]} : vector<8x32xf32> to vector<8x8xf32>
    %35 = vector.extract_strided_slice %32 {offsets = [0, 0], sizes = [8, 8], strides = [1, 1]} : vector<8x32xf32> to vector<8x8xf32>
    %36 = vector.extract_strided_slice %33 {offsets = [0, 0], sizes = [8, 8], strides = [1, 1]} : vector<8x32xf32> to vector<8x8xf32>
    %cst_51 = arith.constant dense<0.000000e+00> : vector<8x8xf32>
    %37 = tpu.matmul %34, %35, %cst_51 {dimension_numbers = #tpu.dot_dimension_numbers<[1], [1], [0], [0], [0, 0, 1, 0], [], []>} : vector<8x8xf32>, vector<8x8xf32>, vector<8x8xf32> -> vector<8x8xf32>
    %cst_52 = arith.constant 0.353553385 : f32
    %38 = vector.broadcast %cst_52 : f32 to vector<8x8xf32>
    %39 = arith.mulf %37, %38 : vector<8x8xf32>
    %cst_53 = arith.constant 0.000000e+00 : f32
    %40 = vector.broadcast %cst_53 : f32 to vector<8x8xf32>
    %41 = arith.cmpf one, %5, %40 : vector<8x8xf32>
    %cst_54 = arith.constant -1.000000e+10 : f32
    %42 = vector.broadcast %cst_54 : f32 to vector<8x8xf32>
    %43 = arith.select %41, %39, %42 : vector<8x8xi1>, vector<8x8xf32>
    %cst_55 = arith.constant dense<0xFF800000> : vector<8xf32>
    %44 = vector.multi_reduction <maximumf>, %43, %cst_55 [1] : vector<8x8xf32> to vector<8xf32>
    %45 = vector.shape_cast %44 : vector<8xf32> to vector<8x1xf32>
    %46 = vector.broadcast %45 : vector<8x1xf32> to vector<8x8xf32>
    %47 = arith.subf %43, %46 : vector<8x8xf32>
    %48 = math.exp %47 : vector<8x8xf32>
    %cst_56 = arith.constant dense<0.000000e+00> : vector<8xf32>
    %49 = vector.multi_reduction <add>, %48, %cst_56 [1] : vector<8x8xf32> to vector<8xf32>
    %50 = vector.shape_cast %49 : vector<8xf32> to vector<8x1xf32>
    %51 = tpu.reciprocal %50 {approx = true} : vector<8x1xf32> -> vector<8x1xf32>
    %52 = vector.broadcast %51 : vector<8x1xf32> to vector<8x8xf32>
    %53 = arith.mulf %48, %52 : vector<8x8xf32>
    %cst_57 = arith.constant dense<0.000000e+00> : vector<8x8xf32>
    %54 = tpu.matmul %53, %36, %cst_57 {dimension_numbers = #tpu.dot_dimension_numbers<[1], [0], [0], [1], [0, 0, 1, 1], [], []>} : vector<8x8xf32>, vector<8x8xf32>, vector<8x8xf32> -> vector<8x8xf32>
    %55 = vector.extract_strided_slice %31 {offsets = [0, 8], sizes = [8, 8], strides = [1, 1]} : vector<8x32xf32> to vector<8x8xf32>
    %56 = vector.extract_strided_slice %32 {offsets = [0, 8], sizes = [8, 8], strides = [1, 1]} : vector<8x32xf32> to vector<8x8xf32>
    %57 = vector.extract_strided_slice %33 {offsets = [0, 8], sizes = [8, 8], strides = [1, 1]} : vector<8x32xf32> to vector<8x8xf32>
    %cst_58 = arith.constant dense<0.000000e+00> : vector<8x8xf32>
    %58 = tpu.matmul %55, %56, %cst_58 {dimension_numbers = #tpu.dot_dimension_numbers<[1], [1], [0], [0], [0, 0, 1, 0], [], []>} : vector<8x8xf32>, vector<8x8xf32>, vector<8x8xf32> -> vector<8x8xf32>
    %cst_59 = arith.constant 0.353553385 : f32
    %59 = vector.broadcast %cst_59 : f32 to vector<8x8xf32>
    %60 = arith.mulf %58, %59 : vector<8x8xf32>
    %cst_60 = arith.constant 0.000000e+00 : f32
    %61 = vector.broadcast %cst_60 : f32 to vector<8x8xf32>
    %62 = arith.cmpf one, %5, %61 : vector<8x8xf32>
    %cst_61 = arith.constant -1.000000e+10 : f32
    %63 = vector.broadcast %cst_61 : f32 to vector<8x8xf32>
    %64 = arith.select %62, %60, %63 : vector<8x8xi1>, vector<8x8xf32>
    %cst_62 = arith.constant dense<0xFF800000> : vector<8xf32>
    %65 = vector.multi_reduction <maximumf>, %64, %cst_62 [1] : vector<8x8xf32> to vector<8xf32>
    %66 = vector.shape_cast %65 : vector<8xf32> to vector<8x1xf32>
    %67 = vector.broadcast %66 : vector<8x1xf32> to vector<8x8xf32>
    %68 = arith.subf %64, %67 : vector<8x8xf32>
    %69 = math.exp %68 : vector<8x8xf32>
    %cst_63 = arith.constant dense<0.000000e+00> : vector<8xf32>
    %70 = vector.multi_reduction <add>, %69, %cst_63 [1] : vector<8x8xf32> to vector<8xf32>
    %71 = vector.shape_cast %70 : vector<8xf32> to vector<8x1xf32>
    %72 = tpu.reciprocal %71 {approx = true} : vector<8x1xf32> -> vector<8x1xf32>
    %73 = vector.broadcast %72 : vector<8x1xf32> to vector<8x8xf32>
    %74 = arith.mulf %69, %73 : vector<8x8xf32>
    %cst_64 = arith.constant dense<0.000000e+00> : vector<8x8xf32>
    %75 = tpu.matmul %74, %57, %cst_64 {dimension_numbers = #tpu.dot_dimension_numbers<[1], [0], [0], [1], [0, 0, 1, 1], [], []>} : vector<8x8xf32>, vector<8x8xf32>, vector<8x8xf32> -> vector<8x8xf32>
    %76 = vector.extract_strided_slice %31 {offsets = [0, 16], sizes = [8, 8], strides = [1, 1]} : vector<8x32xf32> to vector<8x8xf32>
    %77 = vector.extract_strided_slice %32 {offsets = [0, 16], sizes = [8, 8], strides = [1, 1]} : vector<8x32xf32> to vector<8x8xf32>
    %78 = vector.extract_strided_slice %33 {offsets = [0, 16], sizes = [8, 8], strides = [1, 1]} : vector<8x32xf32> to vector<8x8xf32>
    %cst_65 = arith.constant dense<0.000000e+00> : vector<8x8xf32>
    %79 = tpu.matmul %76, %77, %cst_65 {dimension_numbers = #tpu.dot_dimension_numbers<[1], [1], [0], [0], [0, 0, 1, 0], [], []>} : vector<8x8xf32>, vector<8x8xf32>, vector<8x8xf32> -> vector<8x8xf32>
    %cst_66 = arith.constant 0.353553385 : f32
    %80 = vector.broadcast %cst_66 : f32 to vector<8x8xf32>
    %81 = arith.mulf %79, %80 : vector<8x8xf32>
    %cst_67 = arith.constant 0.000000e+00 : f32
    %82 = vector.broadcast %cst_67 : f32 to vector<8x8xf32>
    %83 = arith.cmpf one, %5, %82 : vector<8x8xf32>
    %cst_68 = arith.constant -1.000000e+10 : f32
    %84 = vector.broadcast %cst_68 : f32 to vector<8x8xf32>
    %85 = arith.select %83, %81, %84 : vector<8x8xi1>, vector<8x8xf32>
    %cst_69 = arith.constant dense<0xFF800000> : vector<8xf32>
    %86 = vector.multi_reduction <maximumf>, %85, %cst_69 [1] : vector<8x8xf32> to vector<8xf32>
    %87 = vector.shape_cast %86 : vector<8xf32> to vector<8x1xf32>
    %88 = vector.broadcast %87 : vector<8x1xf32> to vector<8x8xf32>
    %89 = arith.subf %85, %88 : vector<8x8xf32>
    %90 = math.exp %89 : vector<8x8xf32>
    %cst_70 = arith.constant dense<0.000000e+00> : vector<8xf32>
    %91 = vector.multi_reduction <add>, %90, %cst_70 [1] : vector<8x8xf32> to vector<8xf32>
    %92 = vector.shape_cast %91 : vector<8xf32> to vector<8x1xf32>
    %93 = tpu.reciprocal %92 {approx = true} : vector<8x1xf32> -> vector<8x1xf32>
    %94 = vector.broadcast %93 : vector<8x1xf32> to vector<8x8xf32>
    %95 = arith.mulf %90, %94 : vector<8x8xf32>
    %cst_71 = arith.constant dense<0.000000e+00> : vector<8x8xf32>
    %96 = tpu.matmul %95, %78, %cst_71 {dimension_numbers = #tpu.dot_dimension_numbers<[1], [0], [0], [1], [0, 0, 1, 1], [], []>} : vector<8x8xf32>, vector<8x8xf32>, vector<8x8xf32> -> vector<8x8xf32>
    %97 = vector.extract_strided_slice %31 {offsets = [0, 24], sizes = [8, 8], strides = [1, 1]} : vector<8x32xf32> to vector<8x8xf32>
    %98 = vector.extract_strided_slice %32 {offsets = [0, 24], sizes = [8, 8], strides = [1, 1]} : vector<8x32xf32> to vector<8x8xf32>
    %99 = vector.extract_strided_slice %33 {offsets = [0, 24], sizes = [8, 8], strides = [1, 1]} : vector<8x32xf32> to vector<8x8xf32>
    %cst_72 = arith.constant dense<0.000000e+00> : vector<8x8xf32>
    %100 = tpu.matmul %97, %98, %cst_72 {dimension_numbers = #tpu.dot_dimension_numbers<[1], [1], [0], [0], [0, 0, 1, 0], [], []>} : vector<8x8xf32>, vector<8x8xf32>, vector<8x8xf32> -> vector<8x8xf32>
    %cst_73 = arith.constant 0.353553385 : f32
    %101 = vector.broadcast %cst_73 : f32 to vector<8x8xf32>
    %102 = arith.mulf %100, %101 : vector<8x8xf32>
    %cst_74 = arith.constant 0.000000e+00 : f32
    %103 = vector.broadcast %cst_74 : f32 to vector<8x8xf32>
    %104 = arith.cmpf one, %5, %103 : vector<8x8xf32>
    %cst_75 = arith.constant -1.000000e+10 : f32
    %105 = vector.broadcast %cst_75 : f32 to vector<8x8xf32>
    %106 = arith.select %104, %102, %105 : vector<8x8xi1>, vector<8x8xf32>
    %cst_76 = arith.constant dense<0xFF800000> : vector<8xf32>
    %107 = vector.multi_reduction <maximumf>, %106, %cst_76 [1] : vector<8x8xf32> to vector<8xf32>
    %108 = vector.shape_cast %107 : vector<8xf32> to vector<8x1xf32>
    %109 = vector.broadcast %108 : vector<8x1xf32> to vector<8x8xf32>
    %110 = arith.subf %106, %109 : vector<8x8xf32>
    %111 = math.exp %110 : vector<8x8xf32>
    %cst_77 = arith.constant dense<0.000000e+00> : vector<8xf32>
    %112 = vector.multi_reduction <add>, %111, %cst_77 [1] : vector<8x8xf32> to vector<8xf32>
    %113 = vector.shape_cast %112 : vector<8xf32> to vector<8x1xf32>
    %114 = tpu.reciprocal %113 {approx = true} : vector<8x1xf32> -> vector<8x1xf32>
    %115 = vector.broadcast %114 : vector<8x1xf32> to vector<8x8xf32>
    %116 = arith.mulf %111, %115 : vector<8x8xf32>
    %cst_78 = arith.constant dense<0.000000e+00> : vector<8x8xf32>
    %117 = tpu.matmul %116, %99, %cst_78 {dimension_numbers = #tpu.dot_dimension_numbers<[1], [0], [0], [1], [0, 0, 1, 1], [], []>} : vector<8x8xf32>, vector<8x8xf32>, vector<8x8xf32> -> vector<8x8xf32>
    %118 = tpu.concatenate %54, %75, %96, %117 in 1 : vector<8x8xf32>, vector<8x8xf32>, vector<8x8xf32>, vector<8x8xf32> -> vector<8x32xf32>
    %cst_79 = arith.constant dense<0.000000e+00> : vector<8x32xf32>
    %119 = tpu.matmul %118, %10, %cst_79 {dimension_numbers = #tpu.dot_dimension_numbers<[1], [0], [0], [1], [0, 0, 1, 1], [], []>} : vector<8x32xf32>, vector<32x32xf32>, vector<8x32xf32> -> vector<8x32xf32>
    %120 = vector.broadcast %11 : vector<1x32xf32> to vector<8x32xf32>
    %121 = arith.addf %119, %120 : vector<8x32xf32>
    %122 = arith.addf %1, %121 : vector<8x32xf32>
    %cst_80 = arith.constant dense<0.000000e+00> : vector<8xf32>
    %123 = vector.multi_reduction <add>, %122, %cst_80 [1] : vector<8x32xf32> to vector<8xf32>
    %124 = vector.shape_cast %123 : vector<8xf32> to vector<8x1xf32>
    %cst_81 = arith.constant 3.200000e+01 : f32
    %125 = vector.broadcast %cst_81 : f32 to vector<8x1xf32>
    %126 = arith.divf %124, %125 : vector<8x1xf32>
    %127 = vector.broadcast %126 : vector<8x1xf32> to vector<8x32xf32>
    %128 = arith.subf %122, %127 : vector<8x32xf32>
    %129 = arith.mulf %128, %128 : vector<8x32xf32>
    %cst_82 = arith.constant dense<0.000000e+00> : vector<8xf32>
    %130 = vector.multi_reduction <add>, %129, %cst_82 [1] : vector<8x32xf32> to vector<8xf32>
    %131 = vector.shape_cast %130 : vector<8xf32> to vector<8x1xf32>
    %cst_83 = arith.constant 3.200000e+01 : f32
    %132 = vector.broadcast %cst_83 : f32 to vector<8x1xf32>
    %133 = arith.divf %131, %132 : vector<8x1xf32>
    %134 = vector.broadcast %126 : vector<8x1xf32> to vector<8x32xf32>
    %135 = arith.subf %122, %134 : vector<8x32xf32>
    %cst_84 = arith.constant 9.99999974E-6 : f32
    %136 = vector.broadcast %cst_84 : f32 to vector<8x1xf32>
    %137 = arith.addf %133, %136 : vector<8x1xf32>
    %138 = math.rsqrt %137 : vector<8x1xf32>
    %139 = vector.broadcast %138 : vector<8x1xf32> to vector<8x32xf32>
    %140 = arith.mulf %135, %139 : vector<8x32xf32>
    %141 = vector.broadcast %12 : vector<1x32xf32> to vector<8x32xf32>
    %142 = arith.mulf %140, %141 : vector<8x32xf32>
    %143 = vector.broadcast %13 : vector<1x32xf32> to vector<8x32xf32>
    %144 = arith.addf %142, %143 : vector<8x32xf32>
    %cst_85 = arith.constant dense<0.000000e+00> : vector<8x32xf32>
    %145 = tpu.matmul %144, %14, %cst_85 {dimension_numbers = #tpu.dot_dimension_numbers<[1], [0], [0], [1], [0, 0, 1, 1], [], []>} : vector<8x32xf32>, vector<32x32xf32>, vector<8x32xf32> -> vector<8x32xf32>
    %146 = vector.broadcast %15 : vector<1x32xf32> to vector<8x32xf32>
    %147 = arith.addf %145, %146 : vector<8x32xf32>
    %cst_86 = arith.constant dense<0.000000e+00> : vector<8x64xf32>
    %148 = tpu.matmul %3, %16, %cst_86 {dimension_numbers = #tpu.dot_dimension_numbers<[1], [0], [0], [1], [0, 0, 1, 1], [], []>} : vector<8x32xf32>, vector<32x64xf32>, vector<8x64xf32> -> vector<8x64xf32>
    %149 = vector.broadcast %17 : vector<1x64xf32> to vector<8x64xf32>
    %150 = arith.addf %148, %149 : vector<8x64xf32>
    %151 = vector.extract_strided_slice %150 {offsets = [0, 0], sizes = [8, 32], strides = [1, 1]} : vector<8x64xf32> to vector<8x32xf32>
    %152 = vector.extract_strided_slice %150 {offsets = [0, 32], sizes = [8, 32], strides = [1, 1]} : vector<8x64xf32> to vector<8x32xf32>
    %153 = vector.extract_strided_slice %147 {offsets = [0, 0], sizes = [8, 8], strides = [1, 1]} : vector<8x32xf32> to vector<8x8xf32>
    %154 = vector.extract_strided_slice %151 {offsets = [0, 0], sizes = [8, 8], strides = [1, 1]} : vector<8x32xf32> to vector<8x8xf32>
    %155 = vector.extract_strided_slice %152 {offsets = [0, 0], sizes = [8, 8], strides = [1, 1]} : vector<8x32xf32> to vector<8x8xf32>
    %cst_87 = arith.constant dense<0.000000e+00> : vector<8x8xf32>
    %156 = tpu.matmul %153, %154, %cst_87 {dimension_numbers = #tpu.dot_dimension_numbers<[1], [1], [0], [0], [0, 0, 1, 0], [], []>} : vector<8x8xf32>, vector<8x8xf32>, vector<8x8xf32> -> vector<8x8xf32>
    %cst_88 = arith.constant 0.353553385 : f32
    %157 = vector.broadcast %cst_88 : f32 to vector<8x8xf32>
    %158 = arith.mulf %156, %157 : vector<8x8xf32>
    %cst_89 = arith.constant 0.000000e+00 : f32
    %159 = vector.broadcast %cst_89 : f32 to vector<8x8xf32>
    %160 = arith.cmpf one, %7, %159 : vector<8x8xf32>
    %cst_90 = arith.constant -1.000000e+10 : f32
    %161 = vector.broadcast %cst_90 : f32 to vector<8x8xf32>
    %162 = arith.select %160, %158, %161 : vector<8x8xi1>, vector<8x8xf32>
    %cst_91 = arith.constant dense<0xFF800000> : vector<8xf32>
    %163 = vector.multi_reduction <maximumf>, %162, %cst_91 [1] : vector<8x8xf32> to vector<8xf32>
    %164 = vector.shape_cast %163 : vector<8xf32> to vector<8x1xf32>
    %165 = vector.broadcast %164 : vector<8x1xf32> to vector<8x8xf32>
    %166 = arith.subf %162, %165 : vector<8x8xf32>
    %167 = math.exp %166 : vector<8x8xf32>
    %cst_92 = arith.constant dense<0.000000e+00> : vector<8xf32>
    %168 = vector.multi_reduction <add>, %167, %cst_92 [1] : vector<8x8xf32> to vector<8xf32>
    %169 = vector.shape_cast %168 : vector<8xf32> to vector<8x1xf32>
    %170 = tpu.reciprocal %169 {approx = true} : vector<8x1xf32> -> vector<8x1xf32>
    %171 = vector.broadcast %170 : vector<8x1xf32> to vector<8x8xf32>
    %172 = arith.mulf %167, %171 : vector<8x8xf32>
    %cst_93 = arith.constant dense<0.000000e+00> : vector<8x8xf32>
    %173 = tpu.matmul %172, %155, %cst_93 {dimension_numbers = #tpu.dot_dimension_numbers<[1], [0], [0], [1], [0, 0, 1, 1], [], []>} : vector<8x8xf32>, vector<8x8xf32>, vector<8x8xf32> -> vector<8x8xf32>
    %174 = vector.extract_strided_slice %147 {offsets = [0, 8], sizes = [8, 8], strides = [1, 1]} : vector<8x32xf32> to vector<8x8xf32>
    %175 = vector.extract_strided_slice %151 {offsets = [0, 8], sizes = [8, 8], strides = [1, 1]} : vector<8x32xf32> to vector<8x8xf32>
    %176 = vector.extract_strided_slice %152 {offsets = [0, 8], sizes = [8, 8], strides = [1, 1]} : vector<8x32xf32> to vector<8x8xf32>
    %cst_94 = arith.constant dense<0.000000e+00> : vector<8x8xf32>
    %177 = tpu.matmul %174, %175, %cst_94 {dimension_numbers = #tpu.dot_dimension_numbers<[1], [1], [0], [0], [0, 0, 1, 0], [], []>} : vector<8x8xf32>, vector<8x8xf32>, vector<8x8xf32> -> vector<8x8xf32>
    %cst_95 = arith.constant 0.353553385 : f32
    %178 = vector.broadcast %cst_95 : f32 to vector<8x8xf32>
    %179 = arith.mulf %177, %178 : vector<8x8xf32>
    %cst_96 = arith.constant 0.000000e+00 : f32
    %180 = vector.broadcast %cst_96 : f32 to vector<8x8xf32>
    %181 = arith.cmpf one, %7, %180 : vector<8x8xf32>
    %cst_97 = arith.constant -1.000000e+10 : f32
    %182 = vector.broadcast %cst_97 : f32 to vector<8x8xf32>
    %183 = arith.select %181, %179, %182 : vector<8x8xi1>, vector<8x8xf32>
    %cst_98 = arith.constant dense<0xFF800000> : vector<8xf32>
    %184 = vector.multi_reduction <maximumf>, %183, %cst_98 [1] : vector<8x8xf32> to vector<8xf32>
    %185 = vector.shape_cast %184 : vector<8xf32> to vector<8x1xf32>
    %186 = vector.broadcast %185 : vector<8x1xf32> to vector<8x8xf32>
    %187 = arith.subf %183, %186 : vector<8x8xf32>
    %188 = math.exp %187 : vector<8x8xf32>
    %cst_99 = arith.constant dense<0.000000e+00> : vector<8xf32>
    %189 = vector.multi_reduction <add>, %188, %cst_99 [1] : vector<8x8xf32> to vector<8xf32>
    %190 = vector.shape_cast %189 : vector<8xf32> to vector<8x1xf32>
    %191 = tpu.reciprocal %190 {approx = true} : vector<8x1xf32> -> vector<8x1xf32>
    %192 = vector.broadcast %191 : vector<8x1xf32> to vector<8x8xf32>
    %193 = arith.mulf %188, %192 : vector<8x8xf32>
    %cst_100 = arith.constant dense<0.000000e+00> : vector<8x8xf32>
    %194 = tpu.matmul %193, %176, %cst_100 {dimension_numbers = #tpu.dot_dimension_numbers<[1], [0], [0], [1], [0, 0, 1, 1], [], []>} : vector<8x8xf32>, vector<8x8xf32>, vector<8x8xf32> -> vector<8x8xf32>
    %195 = vector.extract_strided_slice %147 {offsets = [0, 16], sizes = [8, 8], strides = [1, 1]} : vector<8x32xf32> to vector<8x8xf32>
    %196 = vector.extract_strided_slice %151 {offsets = [0, 16], sizes = [8, 8], strides = [1, 1]} : vector<8x32xf32> to vector<8x8xf32>
    %197 = vector.extract_strided_slice %152 {offsets = [0, 16], sizes = [8, 8], strides = [1, 1]} : vector<8x32xf32> to vector<8x8xf32>
    %cst_101 = arith.constant dense<0.000000e+00> : vector<8x8xf32>
    %198 = tpu.matmul %195, %196, %cst_101 {dimension_numbers = #tpu.dot_dimension_numbers<[1], [1], [0], [0], [0, 0, 1, 0], [], []>} : vector<8x8xf32>, vector<8x8xf32>, vector<8x8xf32> -> vector<8x8xf32>
    %cst_102 = arith.constant 0.353553385 : f32
    %199 = vector.broadcast %cst_102 : f32 to vector<8x8xf32>
    %200 = arith.mulf %198, %199 : vector<8x8xf32>
    %cst_103 = arith.constant 0.000000e+00 : f32
    %201 = vector.broadcast %cst_103 : f32 to vector<8x8xf32>
    %202 = arith.cmpf one, %7, %201 : vector<8x8xf32>
    %cst_104 = arith.constant -1.000000e+10 : f32
    %203 = vector.broadcast %cst_104 : f32 to vector<8x8xf32>
    %204 = arith.select %202, %200, %203 : vector<8x8xi1>, vector<8x8xf32>
    %cst_105 = arith.constant dense<0xFF800000> : vector<8xf32>
    %205 = vector.multi_reduction <maximumf>, %204, %cst_105 [1] : vector<8x8xf32> to vector<8xf32>
    %206 = vector.shape_cast %205 : vector<8xf32> to vector<8x1xf32>
    %207 = vector.broadcast %206 : vector<8x1xf32> to vector<8x8xf32>
    %208 = arith.subf %204, %207 : vector<8x8xf32>
    %209 = math.exp %208 : vector<8x8xf32>
    %cst_106 = arith.constant dense<0.000000e+00> : vector<8xf32>
    %210 = vector.multi_reduction <add>, %209, %cst_106 [1] : vector<8x8xf32> to vector<8xf32>
    %211 = vector.shape_cast %210 : vector<8xf32> to vector<8x1xf32>
    %212 = tpu.reciprocal %211 {approx = true} : vector<8x1xf32> -> vector<8x1xf32>
    %213 = vector.broadcast %212 : vector<8x1xf32> to vector<8x8xf32>
    %214 = arith.mulf %209, %213 : vector<8x8xf32>
    %cst_107 = arith.constant dense<0.000000e+00> : vector<8x8xf32>
    %215 = tpu.matmul %214, %197, %cst_107 {dimension_numbers = #tpu.dot_dimension_numbers<[1], [0], [0], [1], [0, 0, 1, 1], [], []>} : vector<8x8xf32>, vector<8x8xf32>, vector<8x8xf32> -> vector<8x8xf32>
    %216 = vector.extract_strided_slice %147 {offsets = [0, 24], sizes = [8, 8], strides = [1, 1]} : vector<8x32xf32> to vector<8x8xf32>
    %217 = vector.extract_strided_slice %151 {offsets = [0, 24], sizes = [8, 8], strides = [1, 1]} : vector<8x32xf32> to vector<8x8xf32>
    %218 = vector.extract_strided_slice %152 {offsets = [0, 24], sizes = [8, 8], strides = [1, 1]} : vector<8x32xf32> to vector<8x8xf32>
    %cst_108 = arith.constant dense<0.000000e+00> : vector<8x8xf32>
    %219 = tpu.matmul %216, %217, %cst_108 {dimension_numbers = #tpu.dot_dimension_numbers<[1], [1], [0], [0], [0, 0, 1, 0], [], []>} : vector<8x8xf32>, vector<8x8xf32>, vector<8x8xf32> -> vector<8x8xf32>
    %cst_109 = arith.constant 0.353553385 : f32
    %220 = vector.broadcast %cst_109 : f32 to vector<8x8xf32>
    %221 = arith.mulf %219, %220 : vector<8x8xf32>
    %cst_110 = arith.constant 0.000000e+00 : f32
    %222 = vector.broadcast %cst_110 : f32 to vector<8x8xf32>
    %223 = arith.cmpf one, %7, %222 : vector<8x8xf32>
    %cst_111 = arith.constant -1.000000e+10 : f32
    %224 = vector.broadcast %cst_111 : f32 to vector<8x8xf32>
    %225 = arith.select %223, %221, %224 : vector<8x8xi1>, vector<8x8xf32>
    %cst_112 = arith.constant dense<0xFF800000> : vector<8xf32>
    %226 = vector.multi_reduction <maximumf>, %225, %cst_112 [1] : vector<8x8xf32> to vector<8xf32>
    %227 = vector.shape_cast %226 : vector<8xf32> to vector<8x1xf32>
    %228 = vector.broadcast %227 : vector<8x1xf32> to vector<8x8xf32>
    %229 = arith.subf %225, %228 : vector<8x8xf32>
    %230 = math.exp %229 : vector<8x8xf32>
    %cst_113 = arith.constant dense<0.000000e+00> : vector<8xf32>
    %231 = vector.multi_reduction <add>, %230, %cst_113 [1] : vector<8x8xf32> to vector<8xf32>
    %232 = vector.shape_cast %231 : vector<8xf32> to vector<8x1xf32>
    %233 = tpu.reciprocal %232 {approx = true} : vector<8x1xf32> -> vector<8x1xf32>
    %234 = vector.broadcast %233 : vector<8x1xf32> to vector<8x8xf32>
    %235 = arith.mulf %230, %234 : vector<8x8xf32>
    %cst_114 = arith.constant dense<0.000000e+00> : vector<8x8xf32>
    %236 = tpu.matmul %235, %218, %cst_114 {dimension_numbers = #tpu.dot_dimension_numbers<[1], [0], [0], [1], [0, 0, 1, 1], [], []>} : vector<8x8xf32>, vector<8x8xf32>, vector<8x8xf32> -> vector<8x8xf32>
    %237 = tpu.concatenate %173, %194, %215, %236 in 1 : vector<8x8xf32>, vector<8x8xf32>, vector<8x8xf32>, vector<8x8xf32> -> vector<8x32xf32>
    %cst_115 = arith.constant dense<0.000000e+00> : vector<8x32xf32>
    %238 = tpu.matmul %237, %18, %cst_115 {dimension_numbers = #tpu.dot_dimension_numbers<[1], [0], [0], [1], [0, 0, 1, 1], [], []>} : vector<8x32xf32>, vector<32x32xf32>, vector<8x32xf32> -> vector<8x32xf32>
    %239 = vector.broadcast %19 : vector<1x32xf32> to vector<8x32xf32>
    %240 = arith.addf %238, %239 : vector<8x32xf32>
    %241 = arith.addf %144, %240 : vector<8x32xf32>
    %cst_116 = arith.constant dense<0.000000e+00> : vector<8xf32>
    %242 = vector.multi_reduction <add>, %241, %cst_116 [1] : vector<8x32xf32> to vector<8xf32>
    %243 = vector.shape_cast %242 : vector<8xf32> to vector<8x1xf32>
    %cst_117 = arith.constant 3.200000e+01 : f32
    %244 = vector.broadcast %cst_117 : f32 to vector<8x1xf32>
    %245 = arith.divf %243, %244 : vector<8x1xf32>
    %246 = vector.broadcast %245 : vector<8x1xf32> to vector<8x32xf32>
    %247 = arith.subf %241, %246 : vector<8x32xf32>
    %248 = arith.mulf %247, %247 : vector<8x32xf32>
    %cst_118 = arith.constant dense<0.000000e+00> : vector<8xf32>
    %249 = vector.multi_reduction <add>, %248, %cst_118 [1] : vector<8x32xf32> to vector<8xf32>
    %250 = vector.shape_cast %249 : vector<8xf32> to vector<8x1xf32>
    %cst_119 = arith.constant 3.200000e+01 : f32
    %251 = vector.broadcast %cst_119 : f32 to vector<8x1xf32>
    %252 = arith.divf %250, %251 : vector<8x1xf32>
    %253 = vector.broadcast %245 : vector<8x1xf32> to vector<8x32xf32>
    %254 = arith.subf %241, %253 : vector<8x32xf32>
    %cst_120 = arith.constant 9.99999974E-6 : f32
    %255 = vector.broadcast %cst_120 : f32 to vector<8x1xf32>
    %256 = arith.addf %252, %255 : vector<8x1xf32>
    %257 = math.rsqrt %256 : vector<8x1xf32>
    %258 = vector.broadcast %257 : vector<8x1xf32> to vector<8x32xf32>
    %259 = arith.mulf %254, %258 : vector<8x32xf32>
    %260 = vector.broadcast %20 : vector<1x32xf32> to vector<8x32xf32>
    %261 = arith.mulf %259, %260 : vector<8x32xf32>
    %262 = vector.broadcast %21 : vector<1x32xf32> to vector<8x32xf32>
    %263 = arith.addf %261, %262 : vector<8x32xf32>
    %cst_121 = arith.constant dense<0.000000e+00> : vector<8x64xf32>
    %264 = tpu.matmul %263, %22, %cst_121 {dimension_numbers = #tpu.dot_dimension_numbers<[1], [0], [0], [1], [0, 0, 1, 1], [], []>} : vector<8x32xf32>, vector<32x64xf32>, vector<8x64xf32> -> vector<8x64xf32>
    %265 = vector.broadcast %23 : vector<1x64xf32> to vector<8x64xf32>
    %266 = arith.addf %264, %265 : vector<8x64xf32>
    %cst_122 = arith.constant 0.000000e+00 : f32
    %267 = vector.broadcast %cst_122 : f32 to vector<8x64xf32>
    %268 = arith.maximumf %266, %267 : vector<8x64xf32>
    %cst_123 = arith.constant dense<0.000000e+00> : vector<8x32xf32>
    %269 = tpu.matmul %268, %24, %cst_123 {dimension_numbers = #tpu.dot_dimension_numbers<[1], [0], [0], [1], [0, 0, 1, 1], [], []>} : vector<8x64xf32>, vector<64x32xf32>, vector<8x32xf32> -> vector<8x32xf32>
    %270 = vector.broadcast %25 : vector<1x32xf32> to vector<8x32xf32>
    %271 = arith.addf %269, %270 : vector<8x32xf32>
    %272 = arith.addf %263, %271 : vector<8x32xf32>
    %cst_124 = arith.constant dense<0.000000e+00> : vector<8xf32>
    %273 = vector.multi_reduction <add>, %272, %cst_124 [1] : vector<8x32xf32> to vector<8xf32>
    %274 = vector.shape_cast %273 : vector<8xf32> to vector<8x1xf32>
    %cst_125 = arith.constant 3.200000e+01 : f32
    %275 = vector.broadcast %cst_125 : f32 to vector<8x1xf32>
    %276 = arith.divf %274, %275 : vector<8x1xf32>
    %277 = vector.broadcast %276 : vector<8x1xf32> to vector<8x32xf32>
    %278 = arith.subf %272, %277 : vector<8x32xf32>
    %279 = arith.mulf %278, %278 : vector<8x32xf32>
    %cst_126 = arith.constant dense<0.000000e+00> : vector<8xf32>
    %280 = vector.multi_reduction <add>, %279, %cst_126 [1] : vector<8x32xf32> to vector<8xf32>
    %281 = vector.shape_cast %280 : vector<8xf32> to vector<8x1xf32>
    %cst_127 = arith.constant 3.200000e+01 : f32
    %282 = vector.broadcast %cst_127 : f32 to vector<8x1xf32>
    %283 = arith.divf %281, %282 : vector<8x1xf32>
    %284 = vector.broadcast %276 : vector<8x1xf32> to vector<8x32xf32>
    %285 = arith.subf %272, %284 : vector<8x32xf32>
    %cst_128 = arith.constant 9.99999974E-6 : f32
    %286 = vector.broadcast %cst_128 : f32 to vector<8x1xf32>
    %287 = arith.addf %283, %286 : vector<8x1xf32>
    %288 = math.rsqrt %287 : vector<8x1xf32>
    %289 = vector.broadcast %288 : vector<8x1xf32> to vector<8x32xf32>
    %290 = arith.mulf %285, %289 : vector<8x32xf32>
    %291 = vector.broadcast %26 : vector<1x32xf32> to vector<8x32xf32>
    %292 = arith.mulf %290, %291 : vector<8x32xf32>
    %293 = vector.broadcast %27 : vector<1x32xf32> to vector<8x32xf32>
    %294 = arith.addf %292, %293 : vector<8x32xf32>
    %c0_129 = arith.constant 0 : index
    %c0_130 = arith.constant 0 : index
    %c0_131 = arith.constant 0 : index
    %295 = vector.load %arg25[%c0_129, %c0_130, %c0_131] : memref<1x8x32xf32, #tpu.memory_space<vmem>>, vector<1x8x32xf32>
    %296 = vector.shape_cast %295 : vector<1x8x32xf32> to vector<8x32xf32>
    %297 = vector.shape_cast %294 : vector<8x32xf32> to vector<1x8x32xf32>
    tpu.vector_store %arg25[%c0_129, %c0_130, %c0_131], %297 {strides = array<i32>} : memref<1x8x32xf32, #tpu.memory_space<vmem>>, vector<1x8x32xf32>,
    return
  }
  func.func @transform_0(%arg0: i32) -> (i32, i32, i32) {
    %c0_i32 = arith.constant 0 : i32
    %c0_i32_0 = arith.constant 0 : i32
    %c0_i32_1 = arith.constant 0 : i32
    return %arg0, %c0_i32, %c0_i32_0 : i32, i32, i32
  }
  func.func @transform_1(%arg0: i32) -> (i32, i32, i32) {
    %c0_i32 = arith.constant 0 : i32
    %c0_i32_0 = arith.constant 0 : i32
    %c0_i32_1 = arith.constant 0 : i32
    return %arg0, %c0_i32, %c0_i32_0 : i32, i32, i32
  }
  func.func @transform_2(%arg0: i32) -> (i32, i32, i32) {
    %c0_i32 = arith.constant 0 : i32
    %c0_i32_0 = arith.constant 0 : i32
    %c0_i32_1 = arith.constant 0 : i32
    return %arg0, %c0_i32, %c0_i32_0 : i32, i32, i32
  }
  func.func @transform_3(%arg0: i32) -> (i32, i32, i32) {
    %c0_i32 = arith.constant 0 : i32
    %c0_i32_0 = arith.constant 0 : i32
    %c0_i32_1 = arith.constant 0 : i32
    return %arg0, %c0_i32, %c0_i32_0 : i32, i32, i32
  }
  func.func @transform_4(%arg0: i32) -> (i32, i32) {
    %c0_i32 = arith.constant 0 : i32
    %c0_i32_0 = arith.constant 0 : i32
    %c0_i32_1 = arith.constant 0 : i32
    return %c0_i32, %c0_i32_0 : i32, i32
  }
  func.func @transform_5(%arg0: i32) -> (i32, i32) {
    %c0_i32 = arith.constant 0 : i32
    %c0_i32_0 = arith.constant 0 : i32
    %c0_i32_1 = arith.constant 0 : i32
    return %c0_i32, %c0_i32_0 : i32, i32
  }
  func.func @transform_6(%arg0: i32) -> (i32, i32) {
    %c0_i32 = arith.constant 0 : i32
    %c0_i32_0 = arith.constant 0 : i32
    %c0_i32_1 = arith.constant 0 : i32
    return %c0_i32, %c0_i32_0 : i32, i32
  }
  func.func @transform_7(%arg0: i32) -> (i32, i32) {
    %c0_i32 = arith.constant 0 : i32
    %c0_i32_0 = arith.constant 0 : i32
    %c0_i32_1 = arith.constant 0 : i32
    return %c0_i32, %c0_i32_0 : i32, i32
  }
  func.func @transform_8(%arg0: i32) -> (i32, i32) {
    %c0_i32 = arith.constant 0 : i32
    %c0_i32_0 = arith.constant 0 : i32
    %c0_i32_1 = arith.constant 0 : i32
    return %c0_i32, %c0_i32_0 : i32, i32
  }
  func.func @transform_9(%arg0: i32) -> (i32, i32) {
    %c0_i32 = arith.constant 0 : i32
    %c0_i32_0 = arith.constant 0 : i32
    %c0_i32_1 = arith.constant 0 : i32
    return %c0_i32, %c0_i32_0 : i32, i32
  }
  func.func @transform_10(%arg0: i32) -> (i32, i32) {
    %c0_i32 = arith.constant 0 : i32
    %c0_i32_0 = arith.constant 0 : i32
    %c0_i32_1 = arith.constant 0 : i32
    return %c0_i32, %c0_i32_0 : i32, i32
  }
  func.func @transform_11(%arg0: i32) -> (i32, i32) {
    %c0_i32 = arith.constant 0 : i32
    %c0_i32_0 = arith.constant 0 : i32
    %c0_i32_1 = arith.constant 0 : i32
    return %c0_i32, %c0_i32_0 : i32, i32
  }
  func.func @transform_12(%arg0: i32) -> (i32, i32) {
    %c0_i32 = arith.constant 0 : i32
    %c0_i32_0 = arith.constant 0 : i32
    %c0_i32_1 = arith.constant 0 : i32
    return %c0_i32, %c0_i32_0 : i32, i32
  }
  func.func @transform_13(%arg0: i32) -> (i32, i32) {
    %c0_i32 = arith.constant 0 : i32
    %c0_i32_0 = arith.constant 0 : i32
    %c0_i32_1 = arith.constant 0 : i32
    return %c0_i32, %c0_i32_0 : i32, i32
  }
  func.func @transform_14(%arg0: i32) -> (i32, i32) {
    %c0_i32 = arith.constant 0 : i32
    %c0_i32_0 = arith.constant 0 : i32
    %c0_i32_1 = arith.constant 0 : i32
    return %c0_i32, %c0_i32_0 : i32, i32
  }
  func.func @transform_15(%arg0: i32) -> (i32, i32) {
    %c0_i32 = arith.constant 0 : i32
    %c0_i32_0 = arith.constant 0 : i32
    %c0_i32_1 = arith.constant 0 : i32
    return %c0_i32, %c0_i32_0 : i32, i32
  }
  func.func @transform_16(%arg0: i32) -> (i32, i32) {
    %c0_i32 = arith.constant 0 : i32
    %c0_i32_0 = arith.constant 0 : i32
    %c0_i32_1 = arith.constant 0 : i32
    return %c0_i32, %c0_i32_0 : i32, i32
  }
  func.func @transform_17(%arg0: i32) -> (i32, i32) {
    %c0_i32 = arith.constant 0 : i32
    %c0_i32_0 = arith.constant 0 : i32
    %c0_i32_1 = arith.constant 0 : i32
    return %c0_i32, %c0_i32_0 : i32, i32
  }
  func.func @transform_18(%arg0: i32) -> (i32, i32) {
    %c0_i32 = arith.constant 0 : i32
    %c0_i32_0 = arith.constant 0 : i32
    %c0_i32_1 = arith.constant 0 : i32
    return %c0_i32, %c0_i32_0 : i32, i32
  }
  func.func @transform_19(%arg0: i32) -> (i32, i32) {
    %c0_i32 = arith.constant 0 : i32
    %c0_i32_0 = arith.constant 0 : i32
    %c0_i32_1 = arith.constant 0 : i32
    return %c0_i32, %c0_i32_0 : i32, i32
  }
  func.func @transform_20(%arg0: i32) -> (i32, i32) {
    %c0_i32 = arith.constant 0 : i32
    %c0_i32_0 = arith.constant 0 : i32
    %c0_i32_1 = arith.constant 0 : i32
    return %c0_i32, %c0_i32_0 : i32, i32
  }
  func.func @transform_21(%arg0: i32) -> (i32, i32) {
    %c0_i32 = arith.constant 0 : i32
    %c0_i32_0 = arith.constant 0 : i32
    %c0_i32_1 = arith.constant 0 : i32
    return %c0_i32, %c0_i32_0 : i32, i32
  }
  func.func @transform_22(%arg0: i32) -> (i32, i32) {
    %c0_i32 = arith.constant 0 : i32
    %c0_i32_0 = arith.constant 0 : i32
    %c0_i32_1 = arith.constant 0 : i32
    return %c0_i32, %c0_i32_0 : i32, i32
  }
  func.func @transform_23(%arg0: i32) -> (i32, i32) {
    %c0_i32 = arith.constant 0 : i32
    %c0_i32_0 = arith.constant 0 : i32
    %c0_i32_1 = arith.constant 0 : i32
    return %c0_i32, %c0_i32_0 : i32, i32
  }
  func.func @transform_24(%arg0: i32) -> (i32, i32, i32) {
    %c0_i32 = arith.constant 0 : i32
    %c0_i32_0 = arith.constant 0 : i32
    %c0_i32_1 = arith.constant 0 : i32
    return %arg0, %c0_i32, %c0_i32_0 : i32, i32, i32
  }
}

module attributes {stable_mosaic.version = 11 : i64} {
  func.func @_decoder_last_layer_kernel(%arg0: i32, %arg1: memref<1x8x32xf32, #tpu.memory_space<vmem>>, %arg2: memref<1x8x32xf32, #tpu.memory_space<vmem>>, %arg3: memref<1x8x8xf32, #tpu.memory_space<vmem>>, %arg4: memref<1x8x8xf32, #tpu.memory_space<vmem>>, %arg5: memref<32x96xf32, #tpu.memory_space<vmem>>, %arg6: memref<1x96xf32, #tpu.memory_space<vmem>>, %arg7: memref<32x32xf32, #tpu.memory_space<vmem>>, %arg8: memref<1x32xf32, #tpu.memory_space<vmem>>, %arg9: memref<1x32xf32, #tpu.memory_space<vmem>>, %arg10: memref<1x32xf32, #tpu.memory_space<vmem>>, %arg11: memref<32x32xf32, #tpu.memory_space<vmem>>, %arg12: memref<1x32xf32, #tpu.memory_space<vmem>>, %arg13: memref<32x64xf32, #tpu.memory_space<vmem>>, %arg14: memref<1x64xf32, #tpu.memory_space<vmem>>, %arg15: memref<32x32xf32, #tpu.memory_space<vmem>>, %arg16: memref<1x32xf32, #tpu.memory_space<vmem>>, %arg17: memref<1x32xf32, #tpu.memory_space<vmem>>, %arg18: memref<1x32xf32, #tpu.memory_space<vmem>>, %arg19: memref<32x64xf32, #tpu.memory_space<vmem>>, %arg20: memref<1x64xf32, #tpu.memory_space<vmem>>, %arg21: memref<64x32xf32, #tpu.memory_space<vmem>>, %arg22: memref<1x32xf32, #tpu.memory_space<vmem>>, %arg23: memref<1x32xf32, #tpu.memory_space<vmem>>, %arg24: memref<1x32xf32, #tpu.memory_space<vmem>>, %arg25: memref<32x128xf32, #tpu.memory_space<vmem>>, %arg26: memref<1x128xf32, #tpu.memory_space<vmem>>, %arg27: memref<1x8x128xf32, #tpu.memory_space<vmem>>, %arg28: memref<1x4x8x8xf32, #tpu.memory_space<vmem>>) attributes {dimension_semantics = [#tpu.dimension_semantics<arbitrary>], iteration_bounds = array<i64: 2>, scalar_prefetch = 0 : i64, scratch_operands = 0 : i64, tpu.core_type = #tpu.core_type<tc>, window_params = [{transform_indices = @transform_0, window_bounds = array<i64: 1, 8, 32>}, {transform_indices = @transform_1, window_bounds = array<i64: 1, 8, 32>}, {transform_indices = @transform_2, window_bounds = array<i64: 1, 8, 8>}, {transform_indices = @transform_3, window_bounds = array<i64: 1, 8, 8>}, {pipeline_mode = #tpu.pipeline_mode<synchronous>, transform_indices = @transform_4, window_bounds = array<i64: 32, 96>}, {pipeline_mode = #tpu.pipeline_mode<synchronous>, transform_indices = @transform_5, window_bounds = array<i64: 1, 96>}, {pipeline_mode = #tpu.pipeline_mode<synchronous>, transform_indices = @transform_6, window_bounds = array<i64: 32, 32>}, {pipeline_mode = #tpu.pipeline_mode<synchronous>, transform_indices = @transform_7, window_bounds = array<i64: 1, 32>}, {pipeline_mode = #tpu.pipeline_mode<synchronous>, transform_indices = @transform_8, window_bounds = array<i64: 1, 32>}, {pipeline_mode = #tpu.pipeline_mode<synchronous>, transform_indices = @transform_9, window_bounds = array<i64: 1, 32>}, {pipeline_mode = #tpu.pipeline_mode<synchronous>, transform_indices = @transform_10, window_bounds = array<i64: 32, 32>}, {pipeline_mode = #tpu.pipeline_mode<synchronous>, transform_indices = @transform_11, window_bounds = array<i64: 1, 32>}, {pipeline_mode = #tpu.pipeline_mode<synchronous>, transform_indices = @transform_12, window_bounds = array<i64: 32, 64>}, {pipeline_mode = #tpu.pipeline_mode<synchronous>, transform_indices = @transform_13, window_bounds = array<i64: 1, 64>}, {pipeline_mode = #tpu.pipeline_mode<synchronous>, transform_indices = @transform_14, window_bounds = array<i64: 32, 32>}, {pipeline_mode = #tpu.pipeline_mode<synchronous>, transform_indices = @transform_15, window_bounds = array<i64: 1, 32>}, {pipeline_mode = #tpu.pipeline_mode<synchronous>, transform_indices = @transform_16, window_bounds = array<i64: 1, 32>}, {pipeline_mode = #tpu.pipeline_mode<synchronous>, transform_indices = @transform_17, window_bounds = array<i64: 1, 32>}, {pipeline_mode = #tpu.pipeline_mode<synchronous>, transform_indices = @transform_18, window_bounds = array<i64: 32, 64>}, {pipeline_mode = #tpu.pipeline_mode<synchronous>, transform_indices = @transform_19, window_bounds = array<i64: 1, 64>}, {pipeline_mode = #tpu.pipeline_mode<synchronous>, transform_indices = @transform_20, window_bounds = array<i64: 64, 32>}, {pipeline_mode = #tpu.pipeline_mode<synchronous>, transform_indices = @transform_21, window_bounds = array<i64: 1, 32>}, {pipeline_mode = #tpu.pipeline_mode<synchronous>, transform_indices = @transform_22, window_bounds = array<i64: 1, 32>}, {pipeline_mode = #tpu.pipeline_mode<synchronous>, transform_indices = @transform_23, window_bounds = array<i64: 1, 32>}, {pipeline_mode = #tpu.pipeline_mode<synchronous>, transform_indices = @transform_24, window_bounds = array<i64: 32, 128>}, {pipeline_mode = #tpu.pipeline_mode<synchronous>, transform_indices = @transform_25, window_bounds = array<i64: 1, 128>}, {transform_indices = @transform_26, window_bounds = array<i64: 1, 8, 128>}, {transform_indices = @transform_27, window_bounds = array<i64: 1, 4, 8, 8>}]} {
    %c0 = arith.constant 0 : index
    %c0_0 = arith.constant 0 : index
    %c0_1 = arith.constant 0 : index
    %0 = vector.load %arg1[%c0, %c0_0, %c0_1] : memref<1x8x32xf32, #tpu.memory_space<vmem>>, vector<1x8x32xf32>
    %1 = vector.shape_cast %0 : vector<1x8x32xf32> to vector<8x32xf32>
    %c0_2 = arith.constant 0 : index
    %c0_3 = arith.constant 0 : index
    %c0_4 = arith.constant 0 : index
    %2 = vector.load %arg2[%c0_2, %c0_3, %c0_4] : memref<1x8x32xf32, #tpu.memory_space<vmem>>, vector<1x8x32xf32>
    %3 = vector.shape_cast %2 : vector<1x8x32xf32> to vector<8x32xf32>
    %c0_5 = arith.constant 0 : index
    %c0_6 = arith.constant 0 : index
    %c0_7 = arith.constant 0 : index
    %4 = vector.load %arg3[%c0_5, %c0_6, %c0_7] : memref<1x8x8xf32, #tpu.memory_space<vmem>>, vector<1x8x8xf32>
    %5 = vector.shape_cast %4 : vector<1x8x8xf32> to vector<8x8xf32>
    %c0_8 = arith.constant 0 : index
    %c0_9 = arith.constant 0 : index
    %c0_10 = arith.constant 0 : index
    %6 = vector.load %arg4[%c0_8, %c0_9, %c0_10] : memref<1x8x8xf32, #tpu.memory_space<vmem>>, vector<1x8x8xf32>
    %7 = vector.shape_cast %6 : vector<1x8x8xf32> to vector<8x8xf32>
    %c0_11 = arith.constant 0 : index
    %c0_12 = arith.constant 0 : index
    %8 = vector.load %arg5[%c0_11, %c0_12] : memref<32x96xf32, #tpu.memory_space<vmem>>, vector<32x96xf32>
    %c0_13 = arith.constant 0 : index
    %c0_14 = arith.constant 0 : index
    %9 = vector.load %arg6[%c0_13, %c0_14] : memref<1x96xf32, #tpu.memory_space<vmem>>, vector<1x96xf32>
    %c0_15 = arith.constant 0 : index
    %c0_16 = arith.constant 0 : index
    %10 = vector.load %arg7[%c0_15, %c0_16] : memref<32x32xf32, #tpu.memory_space<vmem>>, vector<32x32xf32>
    %c0_17 = arith.constant 0 : index
    %c0_18 = arith.constant 0 : index
    %11 = vector.load %arg8[%c0_17, %c0_18] : memref<1x32xf32, #tpu.memory_space<vmem>>, vector<1x32xf32>
    %c0_19 = arith.constant 0 : index
    %c0_20 = arith.constant 0 : index
    %12 = vector.load %arg9[%c0_19, %c0_20] : memref<1x32xf32, #tpu.memory_space<vmem>>, vector<1x32xf32>
    %c0_21 = arith.constant 0 : index
    %c0_22 = arith.constant 0 : index
    %13 = vector.load %arg10[%c0_21, %c0_22] : memref<1x32xf32, #tpu.memory_space<vmem>>, vector<1x32xf32>
    %c0_23 = arith.constant 0 : index
    %c0_24 = arith.constant 0 : index
    %14 = vector.load %arg11[%c0_23, %c0_24] : memref<32x32xf32, #tpu.memory_space<vmem>>, vector<32x32xf32>
    %c0_25 = arith.constant 0 : index
    %c0_26 = arith.constant 0 : index
    %15 = vector.load %arg12[%c0_25, %c0_26] : memref<1x32xf32, #tpu.memory_space<vmem>>, vector<1x32xf32>
    %c0_27 = arith.constant 0 : index
    %c0_28 = arith.constant 0 : index
    %16 = vector.load %arg13[%c0_27, %c0_28] : memref<32x64xf32, #tpu.memory_space<vmem>>, vector<32x64xf32>
    %c0_29 = arith.constant 0 : index
    %c0_30 = arith.constant 0 : index
    %17 = vector.load %arg14[%c0_29, %c0_30] : memref<1x64xf32, #tpu.memory_space<vmem>>, vector<1x64xf32>
    %c0_31 = arith.constant 0 : index
    %c0_32 = arith.constant 0 : index
    %18 = vector.load %arg15[%c0_31, %c0_32] : memref<32x32xf32, #tpu.memory_space<vmem>>, vector<32x32xf32>
    %c0_33 = arith.constant 0 : index
    %c0_34 = arith.constant 0 : index
    %19 = vector.load %arg16[%c0_33, %c0_34] : memref<1x32xf32, #tpu.memory_space<vmem>>, vector<1x32xf32>
    %c0_35 = arith.constant 0 : index
    %c0_36 = arith.constant 0 : index
    %20 = vector.load %arg17[%c0_35, %c0_36] : memref<1x32xf32, #tpu.memory_space<vmem>>, vector<1x32xf32>
    %c0_37 = arith.constant 0 : index
    %c0_38 = arith.constant 0 : index
    %21 = vector.load %arg18[%c0_37, %c0_38] : memref<1x32xf32, #tpu.memory_space<vmem>>, vector<1x32xf32>
    %c0_39 = arith.constant 0 : index
    %c0_40 = arith.constant 0 : index
    %22 = vector.load %arg19[%c0_39, %c0_40] : memref<32x64xf32, #tpu.memory_space<vmem>>, vector<32x64xf32>
    %c0_41 = arith.constant 0 : index
    %c0_42 = arith.constant 0 : index
    %23 = vector.load %arg20[%c0_41, %c0_42] : memref<1x64xf32, #tpu.memory_space<vmem>>, vector<1x64xf32>
    %c0_43 = arith.constant 0 : index
    %c0_44 = arith.constant 0 : index
    %24 = vector.load %arg21[%c0_43, %c0_44] : memref<64x32xf32, #tpu.memory_space<vmem>>, vector<64x32xf32>
    %c0_45 = arith.constant 0 : index
    %c0_46 = arith.constant 0 : index
    %25 = vector.load %arg22[%c0_45, %c0_46] : memref<1x32xf32, #tpu.memory_space<vmem>>, vector<1x32xf32>
    %c0_47 = arith.constant 0 : index
    %c0_48 = arith.constant 0 : index
    %26 = vector.load %arg23[%c0_47, %c0_48] : memref<1x32xf32, #tpu.memory_space<vmem>>, vector<1x32xf32>
    %c0_49 = arith.constant 0 : index
    %c0_50 = arith.constant 0 : index
    %27 = vector.load %arg24[%c0_49, %c0_50] : memref<1x32xf32, #tpu.memory_space<vmem>>, vector<1x32xf32>
    %cst = arith.constant dense<0.000000e+00> : vector<8x96xf32>
    %28 = tpu.matmul %1, %8, %cst {dimension_numbers = #tpu.dot_dimension_numbers<[1], [0], [0], [1], [0, 0, 1, 1], [], []>} : vector<8x32xf32>, vector<32x96xf32>, vector<8x96xf32> -> vector<8x96xf32>
    %29 = vector.broadcast %9 : vector<1x96xf32> to vector<8x96xf32>
    %30 = arith.addf %28, %29 : vector<8x96xf32>
    %31 = vector.extract_strided_slice %30 {offsets = [0, 0], sizes = [8, 32], strides = [1, 1]} : vector<8x96xf32> to vector<8x32xf32>
    %32 = vector.extract_strided_slice %30 {offsets = [0, 32], sizes = [8, 32], strides = [1, 1]} : vector<8x96xf32> to vector<8x32xf32>
    %33 = vector.extract_strided_slice %30 {offsets = [0, 64], sizes = [8, 32], strides = [1, 1]} : vector<8x96xf32> to vector<8x32xf32>
    %34 = vector.extract_strided_slice %31 {offsets = [0, 0], sizes = [8, 8], strides = [1, 1]} : vector<8x32xf32> to vector<8x8xf32>
    %35 = vector.extract_strided_slice %32 {offsets = [0, 0], sizes = [8, 8], strides = [1, 1]} : vector<8x32xf32> to vector<8x8xf32>
    %36 = vector.extract_strided_slice %33 {offsets = [0, 0], sizes = [8, 8], strides = [1, 1]} : vector<8x32xf32> to vector<8x8xf32>
    %cst_51 = arith.constant dense<0.000000e+00> : vector<8x8xf32>
    %37 = tpu.matmul %34, %35, %cst_51 {dimension_numbers = #tpu.dot_dimension_numbers<[1], [1], [0], [0], [0, 0, 1, 0], [], []>} : vector<8x8xf32>, vector<8x8xf32>, vector<8x8xf32> -> vector<8x8xf32>
    %cst_52 = arith.constant 0.353553385 : f32
    %38 = vector.broadcast %cst_52 : f32 to vector<8x8xf32>
    %39 = arith.mulf %37, %38 : vector<8x8xf32>
    %cst_53 = arith.constant 0.000000e+00 : f32
    %40 = vector.broadcast %cst_53 : f32 to vector<8x8xf32>
    %41 = arith.cmpf one, %5, %40 : vector<8x8xf32>
    %cst_54 = arith.constant -1.000000e+10 : f32
    %42 = vector.broadcast %cst_54 : f32 to vector<8x8xf32>
    %43 = arith.select %41, %39, %42 : vector<8x8xi1>, vector<8x8xf32>
    %cst_55 = arith.constant dense<0xFF800000> : vector<8xf32>
    %44 = vector.multi_reduction <maximumf>, %43, %cst_55 [1] : vector<8x8xf32> to vector<8xf32>
    %45 = vector.shape_cast %44 : vector<8xf32> to vector<8x1xf32>
    %46 = vector.broadcast %45 : vector<8x1xf32> to vector<8x8xf32>
    %47 = arith.subf %43, %46 : vector<8x8xf32>
    %48 = math.exp %47 : vector<8x8xf32>
    %cst_56 = arith.constant dense<0.000000e+00> : vector<8xf32>
    %49 = vector.multi_reduction <add>, %48, %cst_56 [1] : vector<8x8xf32> to vector<8xf32>
    %50 = vector.shape_cast %49 : vector<8xf32> to vector<8x1xf32>
    %51 = tpu.reciprocal %50 {approx = true} : vector<8x1xf32> -> vector<8x1xf32>
    %52 = vector.broadcast %51 : vector<8x1xf32> to vector<8x8xf32>
    %53 = arith.mulf %48, %52 : vector<8x8xf32>
    %cst_57 = arith.constant dense<0.000000e+00> : vector<8x8xf32>
    %54 = tpu.matmul %53, %36, %cst_57 {dimension_numbers = #tpu.dot_dimension_numbers<[1], [0], [0], [1], [0, 0, 1, 1], [], []>} : vector<8x8xf32>, vector<8x8xf32>, vector<8x8xf32> -> vector<8x8xf32>
    %55 = vector.extract_strided_slice %31 {offsets = [0, 8], sizes = [8, 8], strides = [1, 1]} : vector<8x32xf32> to vector<8x8xf32>
    %56 = vector.extract_strided_slice %32 {offsets = [0, 8], sizes = [8, 8], strides = [1, 1]} : vector<8x32xf32> to vector<8x8xf32>
    %57 = vector.extract_strided_slice %33 {offsets = [0, 8], sizes = [8, 8], strides = [1, 1]} : vector<8x32xf32> to vector<8x8xf32>
    %cst_58 = arith.constant dense<0.000000e+00> : vector<8x8xf32>
    %58 = tpu.matmul %55, %56, %cst_58 {dimension_numbers = #tpu.dot_dimension_numbers<[1], [1], [0], [0], [0, 0, 1, 0], [], []>} : vector<8x8xf32>, vector<8x8xf32>, vector<8x8xf32> -> vector<8x8xf32>
    %cst_59 = arith.constant 0.353553385 : f32
    %59 = vector.broadcast %cst_59 : f32 to vector<8x8xf32>
    %60 = arith.mulf %58, %59 : vector<8x8xf32>
    %cst_60 = arith.constant 0.000000e+00 : f32
    %61 = vector.broadcast %cst_60 : f32 to vector<8x8xf32>
    %62 = arith.cmpf one, %5, %61 : vector<8x8xf32>
    %cst_61 = arith.constant -1.000000e+10 : f32
    %63 = vector.broadcast %cst_61 : f32 to vector<8x8xf32>
    %64 = arith.select %62, %60, %63 : vector<8x8xi1>, vector<8x8xf32>
    %cst_62 = arith.constant dense<0xFF800000> : vector<8xf32>
    %65 = vector.multi_reduction <maximumf>, %64, %cst_62 [1] : vector<8x8xf32> to vector<8xf32>
    %66 = vector.shape_cast %65 : vector<8xf32> to vector<8x1xf32>
    %67 = vector.broadcast %66 : vector<8x1xf32> to vector<8x8xf32>
    %68 = arith.subf %64, %67 : vector<8x8xf32>
    %69 = math.exp %68 : vector<8x8xf32>
    %cst_63 = arith.constant dense<0.000000e+00> : vector<8xf32>
    %70 = vector.multi_reduction <add>, %69, %cst_63 [1] : vector<8x8xf32> to vector<8xf32>
    %71 = vector.shape_cast %70 : vector<8xf32> to vector<8x1xf32>
    %72 = tpu.reciprocal %71 {approx = true} : vector<8x1xf32> -> vector<8x1xf32>
    %73 = vector.broadcast %72 : vector<8x1xf32> to vector<8x8xf32>
    %74 = arith.mulf %69, %73 : vector<8x8xf32>
    %cst_64 = arith.constant dense<0.000000e+00> : vector<8x8xf32>
    %75 = tpu.matmul %74, %57, %cst_64 {dimension_numbers = #tpu.dot_dimension_numbers<[1], [0], [0], [1], [0, 0, 1, 1], [], []>} : vector<8x8xf32>, vector<8x8xf32>, vector<8x8xf32> -> vector<8x8xf32>
    %76 = vector.extract_strided_slice %31 {offsets = [0, 16], sizes = [8, 8], strides = [1, 1]} : vector<8x32xf32> to vector<8x8xf32>
    %77 = vector.extract_strided_slice %32 {offsets = [0, 16], sizes = [8, 8], strides = [1, 1]} : vector<8x32xf32> to vector<8x8xf32>
    %78 = vector.extract_strided_slice %33 {offsets = [0, 16], sizes = [8, 8], strides = [1, 1]} : vector<8x32xf32> to vector<8x8xf32>
    %cst_65 = arith.constant dense<0.000000e+00> : vector<8x8xf32>
    %79 = tpu.matmul %76, %77, %cst_65 {dimension_numbers = #tpu.dot_dimension_numbers<[1], [1], [0], [0], [0, 0, 1, 0], [], []>} : vector<8x8xf32>, vector<8x8xf32>, vector<8x8xf32> -> vector<8x8xf32>
    %cst_66 = arith.constant 0.353553385 : f32
    %80 = vector.broadcast %cst_66 : f32 to vector<8x8xf32>
    %81 = arith.mulf %79, %80 : vector<8x8xf32>
    %cst_67 = arith.constant 0.000000e+00 : f32
    %82 = vector.broadcast %cst_67 : f32 to vector<8x8xf32>
    %83 = arith.cmpf one, %5, %82 : vector<8x8xf32>
    %cst_68 = arith.constant -1.000000e+10 : f32
    %84 = vector.broadcast %cst_68 : f32 to vector<8x8xf32>
    %85 = arith.select %83, %81, %84 : vector<8x8xi1>, vector<8x8xf32>
    %cst_69 = arith.constant dense<0xFF800000> : vector<8xf32>
    %86 = vector.multi_reduction <maximumf>, %85, %cst_69 [1] : vector<8x8xf32> to vector<8xf32>
    %87 = vector.shape_cast %86 : vector<8xf32> to vector<8x1xf32>
    %88 = vector.broadcast %87 : vector<8x1xf32> to vector<8x8xf32>
    %89 = arith.subf %85, %88 : vector<8x8xf32>
    %90 = math.exp %89 : vector<8x8xf32>
    %cst_70 = arith.constant dense<0.000000e+00> : vector<8xf32>
    %91 = vector.multi_reduction <add>, %90, %cst_70 [1] : vector<8x8xf32> to vector<8xf32>
    %92 = vector.shape_cast %91 : vector<8xf32> to vector<8x1xf32>
    %93 = tpu.reciprocal %92 {approx = true} : vector<8x1xf32> -> vector<8x1xf32>
    %94 = vector.broadcast %93 : vector<8x1xf32> to vector<8x8xf32>
    %95 = arith.mulf %90, %94 : vector<8x8xf32>
    %cst_71 = arith.constant dense<0.000000e+00> : vector<8x8xf32>
    %96 = tpu.matmul %95, %78, %cst_71 {dimension_numbers = #tpu.dot_dimension_numbers<[1], [0], [0], [1], [0, 0, 1, 1], [], []>} : vector<8x8xf32>, vector<8x8xf32>, vector<8x8xf32> -> vector<8x8xf32>
    %97 = vector.extract_strided_slice %31 {offsets = [0, 24], sizes = [8, 8], strides = [1, 1]} : vector<8x32xf32> to vector<8x8xf32>
    %98 = vector.extract_strided_slice %32 {offsets = [0, 24], sizes = [8, 8], strides = [1, 1]} : vector<8x32xf32> to vector<8x8xf32>
    %99 = vector.extract_strided_slice %33 {offsets = [0, 24], sizes = [8, 8], strides = [1, 1]} : vector<8x32xf32> to vector<8x8xf32>
    %cst_72 = arith.constant dense<0.000000e+00> : vector<8x8xf32>
    %100 = tpu.matmul %97, %98, %cst_72 {dimension_numbers = #tpu.dot_dimension_numbers<[1], [1], [0], [0], [0, 0, 1, 0], [], []>} : vector<8x8xf32>, vector<8x8xf32>, vector<8x8xf32> -> vector<8x8xf32>
    %cst_73 = arith.constant 0.353553385 : f32
    %101 = vector.broadcast %cst_73 : f32 to vector<8x8xf32>
    %102 = arith.mulf %100, %101 : vector<8x8xf32>
    %cst_74 = arith.constant 0.000000e+00 : f32
    %103 = vector.broadcast %cst_74 : f32 to vector<8x8xf32>
    %104 = arith.cmpf one, %5, %103 : vector<8x8xf32>
    %cst_75 = arith.constant -1.000000e+10 : f32
    %105 = vector.broadcast %cst_75 : f32 to vector<8x8xf32>
    %106 = arith.select %104, %102, %105 : vector<8x8xi1>, vector<8x8xf32>
    %cst_76 = arith.constant dense<0xFF800000> : vector<8xf32>
    %107 = vector.multi_reduction <maximumf>, %106, %cst_76 [1] : vector<8x8xf32> to vector<8xf32>
    %108 = vector.shape_cast %107 : vector<8xf32> to vector<8x1xf32>
    %109 = vector.broadcast %108 : vector<8x1xf32> to vector<8x8xf32>
    %110 = arith.subf %106, %109 : vector<8x8xf32>
    %111 = math.exp %110 : vector<8x8xf32>
    %cst_77 = arith.constant dense<0.000000e+00> : vector<8xf32>
    %112 = vector.multi_reduction <add>, %111, %cst_77 [1] : vector<8x8xf32> to vector<8xf32>
    %113 = vector.shape_cast %112 : vector<8xf32> to vector<8x1xf32>
    %114 = tpu.reciprocal %113 {approx = true} : vector<8x1xf32> -> vector<8x1xf32>
    %115 = vector.broadcast %114 : vector<8x1xf32> to vector<8x8xf32>
    %116 = arith.mulf %111, %115 : vector<8x8xf32>
    %cst_78 = arith.constant dense<0.000000e+00> : vector<8x8xf32>
    %117 = tpu.matmul %116, %99, %cst_78 {dimension_numbers = #tpu.dot_dimension_numbers<[1], [0], [0], [1], [0, 0, 1, 1], [], []>} : vector<8x8xf32>, vector<8x8xf32>, vector<8x8xf32> -> vector<8x8xf32>
    %118 = tpu.concatenate %54, %75, %96, %117 in 1 : vector<8x8xf32>, vector<8x8xf32>, vector<8x8xf32>, vector<8x8xf32> -> vector<8x32xf32>
    %cst_79 = arith.constant dense<0.000000e+00> : vector<8x32xf32>
    %119 = tpu.matmul %118, %10, %cst_79 {dimension_numbers = #tpu.dot_dimension_numbers<[1], [0], [0], [1], [0, 0, 1, 1], [], []>} : vector<8x32xf32>, vector<32x32xf32>, vector<8x32xf32> -> vector<8x32xf32>
    %120 = vector.broadcast %11 : vector<1x32xf32> to vector<8x32xf32>
    %121 = arith.addf %119, %120 : vector<8x32xf32>
    %122 = arith.addf %1, %121 : vector<8x32xf32>
    %cst_80 = arith.constant dense<0.000000e+00> : vector<8xf32>
    %123 = vector.multi_reduction <add>, %122, %cst_80 [1] : vector<8x32xf32> to vector<8xf32>
    %124 = vector.shape_cast %123 : vector<8xf32> to vector<8x1xf32>
    %cst_81 = arith.constant 3.200000e+01 : f32
    %125 = vector.broadcast %cst_81 : f32 to vector<8x1xf32>
    %126 = arith.divf %124, %125 : vector<8x1xf32>
    %127 = vector.broadcast %126 : vector<8x1xf32> to vector<8x32xf32>
    %128 = arith.subf %122, %127 : vector<8x32xf32>
    %129 = arith.mulf %128, %128 : vector<8x32xf32>
    %cst_82 = arith.constant dense<0.000000e+00> : vector<8xf32>
    %130 = vector.multi_reduction <add>, %129, %cst_82 [1] : vector<8x32xf32> to vector<8xf32>
    %131 = vector.shape_cast %130 : vector<8xf32> to vector<8x1xf32>
    %cst_83 = arith.constant 3.200000e+01 : f32
    %132 = vector.broadcast %cst_83 : f32 to vector<8x1xf32>
    %133 = arith.divf %131, %132 : vector<8x1xf32>
    %134 = vector.broadcast %126 : vector<8x1xf32> to vector<8x32xf32>
    %135 = arith.subf %122, %134 : vector<8x32xf32>
    %cst_84 = arith.constant 9.99999974E-6 : f32
    %136 = vector.broadcast %cst_84 : f32 to vector<8x1xf32>
    %137 = arith.addf %133, %136 : vector<8x1xf32>
    %138 = math.rsqrt %137 : vector<8x1xf32>
    %139 = vector.broadcast %138 : vector<8x1xf32> to vector<8x32xf32>
    %140 = arith.mulf %135, %139 : vector<8x32xf32>
    %141 = vector.broadcast %12 : vector<1x32xf32> to vector<8x32xf32>
    %142 = arith.mulf %140, %141 : vector<8x32xf32>
    %143 = vector.broadcast %13 : vector<1x32xf32> to vector<8x32xf32>
    %144 = arith.addf %142, %143 : vector<8x32xf32>
    %cst_85 = arith.constant dense<0.000000e+00> : vector<8x32xf32>
    %145 = tpu.matmul %144, %14, %cst_85 {dimension_numbers = #tpu.dot_dimension_numbers<[1], [0], [0], [1], [0, 0, 1, 1], [], []>} : vector<8x32xf32>, vector<32x32xf32>, vector<8x32xf32> -> vector<8x32xf32>
    %146 = vector.broadcast %15 : vector<1x32xf32> to vector<8x32xf32>
    %147 = arith.addf %145, %146 : vector<8x32xf32>
    %cst_86 = arith.constant dense<0.000000e+00> : vector<8x64xf32>
    %148 = tpu.matmul %3, %16, %cst_86 {dimension_numbers = #tpu.dot_dimension_numbers<[1], [0], [0], [1], [0, 0, 1, 1], [], []>} : vector<8x32xf32>, vector<32x64xf32>, vector<8x64xf32> -> vector<8x64xf32>
    %149 = vector.broadcast %17 : vector<1x64xf32> to vector<8x64xf32>
    %150 = arith.addf %148, %149 : vector<8x64xf32>
    %151 = vector.extract_strided_slice %150 {offsets = [0, 0], sizes = [8, 32], strides = [1, 1]} : vector<8x64xf32> to vector<8x32xf32>
    %152 = vector.extract_strided_slice %150 {offsets = [0, 32], sizes = [8, 32], strides = [1, 1]} : vector<8x64xf32> to vector<8x32xf32>
    %153 = vector.extract_strided_slice %147 {offsets = [0, 0], sizes = [8, 8], strides = [1, 1]} : vector<8x32xf32> to vector<8x8xf32>
    %154 = vector.extract_strided_slice %151 {offsets = [0, 0], sizes = [8, 8], strides = [1, 1]} : vector<8x32xf32> to vector<8x8xf32>
    %155 = vector.extract_strided_slice %152 {offsets = [0, 0], sizes = [8, 8], strides = [1, 1]} : vector<8x32xf32> to vector<8x8xf32>
    %cst_87 = arith.constant dense<0.000000e+00> : vector<8x8xf32>
    %156 = tpu.matmul %153, %154, %cst_87 {dimension_numbers = #tpu.dot_dimension_numbers<[1], [1], [0], [0], [0, 0, 1, 0], [], []>} : vector<8x8xf32>, vector<8x8xf32>, vector<8x8xf32> -> vector<8x8xf32>
    %cst_88 = arith.constant 0.353553385 : f32
    %157 = vector.broadcast %cst_88 : f32 to vector<8x8xf32>
    %158 = arith.mulf %156, %157 : vector<8x8xf32>
    %cst_89 = arith.constant 0.000000e+00 : f32
    %159 = vector.broadcast %cst_89 : f32 to vector<8x8xf32>
    %160 = arith.cmpf one, %7, %159 : vector<8x8xf32>
    %cst_90 = arith.constant -1.000000e+10 : f32
    %161 = vector.broadcast %cst_90 : f32 to vector<8x8xf32>
    %162 = arith.select %160, %158, %161 : vector<8x8xi1>, vector<8x8xf32>
    %cst_91 = arith.constant dense<0xFF800000> : vector<8xf32>
    %163 = vector.multi_reduction <maximumf>, %162, %cst_91 [1] : vector<8x8xf32> to vector<8xf32>
    %164 = vector.shape_cast %163 : vector<8xf32> to vector<8x1xf32>
    %165 = vector.broadcast %164 : vector<8x1xf32> to vector<8x8xf32>
    %166 = arith.subf %162, %165 : vector<8x8xf32>
    %167 = math.exp %166 : vector<8x8xf32>
    %cst_92 = arith.constant dense<0.000000e+00> : vector<8xf32>
    %168 = vector.multi_reduction <add>, %167, %cst_92 [1] : vector<8x8xf32> to vector<8xf32>
    %169 = vector.shape_cast %168 : vector<8xf32> to vector<8x1xf32>
    %170 = tpu.reciprocal %169 {approx = true} : vector<8x1xf32> -> vector<8x1xf32>
    %171 = vector.broadcast %170 : vector<8x1xf32> to vector<8x8xf32>
    %172 = arith.mulf %167, %171 : vector<8x8xf32>
    %cst_93 = arith.constant dense<0.000000e+00> : vector<8x8xf32>
    %173 = tpu.matmul %172, %155, %cst_93 {dimension_numbers = #tpu.dot_dimension_numbers<[1], [0], [0], [1], [0, 0, 1, 1], [], []>} : vector<8x8xf32>, vector<8x8xf32>, vector<8x8xf32> -> vector<8x8xf32>
    %174 = vector.extract_strided_slice %147 {offsets = [0, 8], sizes = [8, 8], strides = [1, 1]} : vector<8x32xf32> to vector<8x8xf32>
    %175 = vector.extract_strided_slice %151 {offsets = [0, 8], sizes = [8, 8], strides = [1, 1]} : vector<8x32xf32> to vector<8x8xf32>
    %176 = vector.extract_strided_slice %152 {offsets = [0, 8], sizes = [8, 8], strides = [1, 1]} : vector<8x32xf32> to vector<8x8xf32>
    %cst_94 = arith.constant dense<0.000000e+00> : vector<8x8xf32>
    %177 = tpu.matmul %174, %175, %cst_94 {dimension_numbers = #tpu.dot_dimension_numbers<[1], [1], [0], [0], [0, 0, 1, 0], [], []>} : vector<8x8xf32>, vector<8x8xf32>, vector<8x8xf32> -> vector<8x8xf32>
    %cst_95 = arith.constant 0.353553385 : f32
    %178 = vector.broadcast %cst_95 : f32 to vector<8x8xf32>
    %179 = arith.mulf %177, %178 : vector<8x8xf32>
    %cst_96 = arith.constant 0.000000e+00 : f32
    %180 = vector.broadcast %cst_96 : f32 to vector<8x8xf32>
    %181 = arith.cmpf one, %7, %180 : vector<8x8xf32>
    %cst_97 = arith.constant -1.000000e+10 : f32
    %182 = vector.broadcast %cst_97 : f32 to vector<8x8xf32>
    %183 = arith.select %181, %179, %182 : vector<8x8xi1>, vector<8x8xf32>
    %cst_98 = arith.constant dense<0xFF800000> : vector<8xf32>
    %184 = vector.multi_reduction <maximumf>, %183, %cst_98 [1] : vector<8x8xf32> to vector<8xf32>
    %185 = vector.shape_cast %184 : vector<8xf32> to vector<8x1xf32>
    %186 = vector.broadcast %185 : vector<8x1xf32> to vector<8x8xf32>
    %187 = arith.subf %183, %186 : vector<8x8xf32>
    %188 = math.exp %187 : vector<8x8xf32>
    %cst_99 = arith.constant dense<0.000000e+00> : vector<8xf32>
    %189 = vector.multi_reduction <add>, %188, %cst_99 [1] : vector<8x8xf32> to vector<8xf32>
    %190 = vector.shape_cast %189 : vector<8xf32> to vector<8x1xf32>
    %191 = tpu.reciprocal %190 {approx = true} : vector<8x1xf32> -> vector<8x1xf32>
    %192 = vector.broadcast %191 : vector<8x1xf32> to vector<8x8xf32>
    %193 = arith.mulf %188, %192 : vector<8x8xf32>
    %cst_100 = arith.constant dense<0.000000e+00> : vector<8x8xf32>
    %194 = tpu.matmul %193, %176, %cst_100 {dimension_numbers = #tpu.dot_dimension_numbers<[1], [0], [0], [1], [0, 0, 1, 1], [], []>} : vector<8x8xf32>, vector<8x8xf32>, vector<8x8xf32> -> vector<8x8xf32>
    %195 = vector.extract_strided_slice %147 {offsets = [0, 16], sizes = [8, 8], strides = [1, 1]} : vector<8x32xf32> to vector<8x8xf32>
    %196 = vector.extract_strided_slice %151 {offsets = [0, 16], sizes = [8, 8], strides = [1, 1]} : vector<8x32xf32> to vector<8x8xf32>
    %197 = vector.extract_strided_slice %152 {offsets = [0, 16], sizes = [8, 8], strides = [1, 1]} : vector<8x32xf32> to vector<8x8xf32>
    %cst_101 = arith.constant dense<0.000000e+00> : vector<8x8xf32>
    %198 = tpu.matmul %195, %196, %cst_101 {dimension_numbers = #tpu.dot_dimension_numbers<[1], [1], [0], [0], [0, 0, 1, 0], [], []>} : vector<8x8xf32>, vector<8x8xf32>, vector<8x8xf32> -> vector<8x8xf32>
    %cst_102 = arith.constant 0.353553385 : f32
    %199 = vector.broadcast %cst_102 : f32 to vector<8x8xf32>
    %200 = arith.mulf %198, %199 : vector<8x8xf32>
    %cst_103 = arith.constant 0.000000e+00 : f32
    %201 = vector.broadcast %cst_103 : f32 to vector<8x8xf32>
    %202 = arith.cmpf one, %7, %201 : vector<8x8xf32>
    %cst_104 = arith.constant -1.000000e+10 : f32
    %203 = vector.broadcast %cst_104 : f32 to vector<8x8xf32>
    %204 = arith.select %202, %200, %203 : vector<8x8xi1>, vector<8x8xf32>
    %cst_105 = arith.constant dense<0xFF800000> : vector<8xf32>
    %205 = vector.multi_reduction <maximumf>, %204, %cst_105 [1] : vector<8x8xf32> to vector<8xf32>
    %206 = vector.shape_cast %205 : vector<8xf32> to vector<8x1xf32>
    %207 = vector.broadcast %206 : vector<8x1xf32> to vector<8x8xf32>
    %208 = arith.subf %204, %207 : vector<8x8xf32>
    %209 = math.exp %208 : vector<8x8xf32>
    %cst_106 = arith.constant dense<0.000000e+00> : vector<8xf32>
    %210 = vector.multi_reduction <add>, %209, %cst_106 [1] : vector<8x8xf32> to vector<8xf32>
    %211 = vector.shape_cast %210 : vector<8xf32> to vector<8x1xf32>
    %212 = tpu.reciprocal %211 {approx = true} : vector<8x1xf32> -> vector<8x1xf32>
    %213 = vector.broadcast %212 : vector<8x1xf32> to vector<8x8xf32>
    %214 = arith.mulf %209, %213 : vector<8x8xf32>
    %cst_107 = arith.constant dense<0.000000e+00> : vector<8x8xf32>
    %215 = tpu.matmul %214, %197, %cst_107 {dimension_numbers = #tpu.dot_dimension_numbers<[1], [0], [0], [1], [0, 0, 1, 1], [], []>} : vector<8x8xf32>, vector<8x8xf32>, vector<8x8xf32> -> vector<8x8xf32>
    %216 = vector.extract_strided_slice %147 {offsets = [0, 24], sizes = [8, 8], strides = [1, 1]} : vector<8x32xf32> to vector<8x8xf32>
    %217 = vector.extract_strided_slice %151 {offsets = [0, 24], sizes = [8, 8], strides = [1, 1]} : vector<8x32xf32> to vector<8x8xf32>
    %218 = vector.extract_strided_slice %152 {offsets = [0, 24], sizes = [8, 8], strides = [1, 1]} : vector<8x32xf32> to vector<8x8xf32>
    %cst_108 = arith.constant dense<0.000000e+00> : vector<8x8xf32>
    %219 = tpu.matmul %216, %217, %cst_108 {dimension_numbers = #tpu.dot_dimension_numbers<[1], [1], [0], [0], [0, 0, 1, 0], [], []>} : vector<8x8xf32>, vector<8x8xf32>, vector<8x8xf32> -> vector<8x8xf32>
    %cst_109 = arith.constant 0.353553385 : f32
    %220 = vector.broadcast %cst_109 : f32 to vector<8x8xf32>
    %221 = arith.mulf %219, %220 : vector<8x8xf32>
    %cst_110 = arith.constant 0.000000e+00 : f32
    %222 = vector.broadcast %cst_110 : f32 to vector<8x8xf32>
    %223 = arith.cmpf one, %7, %222 : vector<8x8xf32>
    %cst_111 = arith.constant -1.000000e+10 : f32
    %224 = vector.broadcast %cst_111 : f32 to vector<8x8xf32>
    %225 = arith.select %223, %221, %224 : vector<8x8xi1>, vector<8x8xf32>
    %cst_112 = arith.constant dense<0xFF800000> : vector<8xf32>
    %226 = vector.multi_reduction <maximumf>, %225, %cst_112 [1] : vector<8x8xf32> to vector<8xf32>
    %227 = vector.shape_cast %226 : vector<8xf32> to vector<8x1xf32>
    %228 = vector.broadcast %227 : vector<8x1xf32> to vector<8x8xf32>
    %229 = arith.subf %225, %228 : vector<8x8xf32>
    %230 = math.exp %229 : vector<8x8xf32>
    %cst_113 = arith.constant dense<0.000000e+00> : vector<8xf32>
    %231 = vector.multi_reduction <add>, %230, %cst_113 [1] : vector<8x8xf32> to vector<8xf32>
    %232 = vector.shape_cast %231 : vector<8xf32> to vector<8x1xf32>
    %233 = tpu.reciprocal %232 {approx = true} : vector<8x1xf32> -> vector<8x1xf32>
    %234 = vector.broadcast %233 : vector<8x1xf32> to vector<8x8xf32>
    %235 = arith.mulf %230, %234 : vector<8x8xf32>
    %cst_114 = arith.constant dense<0.000000e+00> : vector<8x8xf32>
    %236 = tpu.matmul %235, %218, %cst_114 {dimension_numbers = #tpu.dot_dimension_numbers<[1], [0], [0], [1], [0, 0, 1, 1], [], []>} : vector<8x8xf32>, vector<8x8xf32>, vector<8x8xf32> -> vector<8x8xf32>
    %237 = tpu.concatenate %173, %194, %215, %236 in 1 : vector<8x8xf32>, vector<8x8xf32>, vector<8x8xf32>, vector<8x8xf32> -> vector<8x32xf32>
    %cst_115 = arith.constant dense<0.000000e+00> : vector<8x32xf32>
    %238 = tpu.matmul %237, %18, %cst_115 {dimension_numbers = #tpu.dot_dimension_numbers<[1], [0], [0], [1], [0, 0, 1, 1], [], []>} : vector<8x32xf32>, vector<32x32xf32>, vector<8x32xf32> -> vector<8x32xf32>
    %239 = vector.broadcast %19 : vector<1x32xf32> to vector<8x32xf32>
    %240 = arith.addf %238, %239 : vector<8x32xf32>
    %241 = arith.addf %144, %240 : vector<8x32xf32>
    %cst_116 = arith.constant dense<0.000000e+00> : vector<8xf32>
    %242 = vector.multi_reduction <add>, %241, %cst_116 [1] : vector<8x32xf32> to vector<8xf32>
    %243 = vector.shape_cast %242 : vector<8xf32> to vector<8x1xf32>
    %cst_117 = arith.constant 3.200000e+01 : f32
    %244 = vector.broadcast %cst_117 : f32 to vector<8x1xf32>
    %245 = arith.divf %243, %244 : vector<8x1xf32>
    %246 = vector.broadcast %245 : vector<8x1xf32> to vector<8x32xf32>
    %247 = arith.subf %241, %246 : vector<8x32xf32>
    %248 = arith.mulf %247, %247 : vector<8x32xf32>
    %cst_118 = arith.constant dense<0.000000e+00> : vector<8xf32>
    %249 = vector.multi_reduction <add>, %248, %cst_118 [1] : vector<8x32xf32> to vector<8xf32>
    %250 = vector.shape_cast %249 : vector<8xf32> to vector<8x1xf32>
    %cst_119 = arith.constant 3.200000e+01 : f32
    %251 = vector.broadcast %cst_119 : f32 to vector<8x1xf32>
    %252 = arith.divf %250, %251 : vector<8x1xf32>
    %253 = vector.broadcast %245 : vector<8x1xf32> to vector<8x32xf32>
    %254 = arith.subf %241, %253 : vector<8x32xf32>
    %cst_120 = arith.constant 9.99999974E-6 : f32
    %255 = vector.broadcast %cst_120 : f32 to vector<8x1xf32>
    %256 = arith.addf %252, %255 : vector<8x1xf32>
    %257 = math.rsqrt %256 : vector<8x1xf32>
    %258 = vector.broadcast %257 : vector<8x1xf32> to vector<8x32xf32>
    %259 = arith.mulf %254, %258 : vector<8x32xf32>
    %260 = vector.broadcast %20 : vector<1x32xf32> to vector<8x32xf32>
    %261 = arith.mulf %259, %260 : vector<8x32xf32>
    %262 = vector.broadcast %21 : vector<1x32xf32> to vector<8x32xf32>
    %263 = arith.addf %261, %262 : vector<8x32xf32>
    %cst_121 = arith.constant dense<0.000000e+00> : vector<8x64xf32>
    %264 = tpu.matmul %263, %22, %cst_121 {dimension_numbers = #tpu.dot_dimension_numbers<[1], [0], [0], [1], [0, 0, 1, 1], [], []>} : vector<8x32xf32>, vector<32x64xf32>, vector<8x64xf32> -> vector<8x64xf32>
    %265 = vector.broadcast %23 : vector<1x64xf32> to vector<8x64xf32>
    %266 = arith.addf %264, %265 : vector<8x64xf32>
    %cst_122 = arith.constant 0.000000e+00 : f32
    %267 = vector.broadcast %cst_122 : f32 to vector<8x64xf32>
    %268 = arith.maximumf %266, %267 : vector<8x64xf32>
    %cst_123 = arith.constant dense<0.000000e+00> : vector<8x32xf32>
    %269 = tpu.matmul %268, %24, %cst_123 {dimension_numbers = #tpu.dot_dimension_numbers<[1], [0], [0], [1], [0, 0, 1, 1], [], []>} : vector<8x64xf32>, vector<64x32xf32>, vector<8x32xf32> -> vector<8x32xf32>
    %270 = vector.broadcast %25 : vector<1x32xf32> to vector<8x32xf32>
    %271 = arith.addf %269, %270 : vector<8x32xf32>
    %272 = arith.addf %263, %271 : vector<8x32xf32>
    %cst_124 = arith.constant dense<0.000000e+00> : vector<8xf32>
    %273 = vector.multi_reduction <add>, %272, %cst_124 [1] : vector<8x32xf32> to vector<8xf32>
    %274 = vector.shape_cast %273 : vector<8xf32> to vector<8x1xf32>
    %cst_125 = arith.constant 3.200000e+01 : f32
    %275 = vector.broadcast %cst_125 : f32 to vector<8x1xf32>
    %276 = arith.divf %274, %275 : vector<8x1xf32>
    %277 = vector.broadcast %276 : vector<8x1xf32> to vector<8x32xf32>
    %278 = arith.subf %272, %277 : vector<8x32xf32>
    %279 = arith.mulf %278, %278 : vector<8x32xf32>
    %cst_126 = arith.constant dense<0.000000e+00> : vector<8xf32>
    %280 = vector.multi_reduction <add>, %279, %cst_126 [1] : vector<8x32xf32> to vector<8xf32>
    %281 = vector.shape_cast %280 : vector<8xf32> to vector<8x1xf32>
    %cst_127 = arith.constant 3.200000e+01 : f32
    %282 = vector.broadcast %cst_127 : f32 to vector<8x1xf32>
    %283 = arith.divf %281, %282 : vector<8x1xf32>
    %284 = vector.broadcast %276 : vector<8x1xf32> to vector<8x32xf32>
    %285 = arith.subf %272, %284 : vector<8x32xf32>
    %cst_128 = arith.constant 9.99999974E-6 : f32
    %286 = vector.broadcast %cst_128 : f32 to vector<8x1xf32>
    %287 = arith.addf %283, %286 : vector<8x1xf32>
    %288 = math.rsqrt %287 : vector<8x1xf32>
    %289 = vector.broadcast %288 : vector<8x1xf32> to vector<8x32xf32>
    %290 = arith.mulf %285, %289 : vector<8x32xf32>
    %291 = vector.broadcast %26 : vector<1x32xf32> to vector<8x32xf32>
    %292 = arith.mulf %290, %291 : vector<8x32xf32>
    %293 = vector.broadcast %27 : vector<1x32xf32> to vector<8x32xf32>
    %294 = arith.addf %292, %293 : vector<8x32xf32>
    %c0_129 = arith.constant 0 : index
    %c0_130 = arith.constant 0 : index
    %295 = vector.load %arg25[%c0_129, %c0_130] : memref<32x128xf32, #tpu.memory_space<vmem>>, vector<32x128xf32>
    %cst_131 = arith.constant dense<0.000000e+00> : vector<8x128xf32>
    %296 = tpu.matmul %294, %295, %cst_131 {dimension_numbers = #tpu.dot_dimension_numbers<[1], [0], [0], [1], [0, 0, 1, 1], [], []>} : vector<8x32xf32>, vector<32x128xf32>, vector<8x128xf32> -> vector<8x128xf32>
    %c0_132 = arith.constant 0 : index
    %c0_133 = arith.constant 0 : index
    %297 = vector.load %arg26[%c0_132, %c0_133] : memref<1x128xf32, #tpu.memory_space<vmem>>, vector<1x128xf32>
    %298 = vector.broadcast %297 : vector<1x128xf32> to vector<8x128xf32>
    %299 = arith.addf %296, %298 : vector<8x128xf32>
    %c0_134 = arith.constant 0 : index
    %c0_135 = arith.constant 0 : index
    %c0_136 = arith.constant 0 : index
    %300 = vector.load %arg27[%c0_134, %c0_135, %c0_136] : memref<1x8x128xf32, #tpu.memory_space<vmem>>, vector<1x8x128xf32>
    %301 = vector.shape_cast %300 : vector<1x8x128xf32> to vector<8x128xf32>
    %302 = vector.shape_cast %299 : vector<8x128xf32> to vector<1x8x128xf32>
    tpu.vector_store %arg27[%c0_134, %c0_135, %c0_136], %302 {strides = array<i32>} : memref<1x8x128xf32, #tpu.memory_space<vmem>>, vector<1x8x128xf32>,
    %c0_137 = arith.constant 0 : index
    %c0_138 = arith.constant 0 : index
    %c0_139 = arith.constant 0 : index
    %c0_140 = arith.constant 0 : index
    %303 = vector.load %arg28[%c0_137, %c0_138, %c0_139, %c0_140] : memref<1x4x8x8xf32, #tpu.memory_space<vmem>>, vector<1x1x8x8xf32>
    %304 = vector.shape_cast %303 : vector<1x1x8x8xf32> to vector<8x8xf32>
    %305 = vector.shape_cast %172 : vector<8x8xf32> to vector<1x1x8x8xf32>
    tpu.vector_store %arg28[%c0_137, %c0_138, %c0_139, %c0_140], %305 {strides = array<i32>} : memref<1x4x8x8xf32, #tpu.memory_space<vmem>>, vector<1x1x8x8xf32>,
    %c0_141 = arith.constant 0 : index
    %c1 = arith.constant 1 : index
    %c0_142 = arith.constant 0 : index
    %c0_143 = arith.constant 0 : index
    %306 = vector.load %arg28[%c0_141, %c1, %c0_142, %c0_143] : memref<1x4x8x8xf32, #tpu.memory_space<vmem>>, vector<1x1x8x8xf32>
    %307 = vector.shape_cast %306 : vector<1x1x8x8xf32> to vector<8x8xf32>
    %308 = vector.shape_cast %193 : vector<8x8xf32> to vector<1x1x8x8xf32>
    tpu.vector_store %arg28[%c0_141, %c1, %c0_142, %c0_143], %308 {strides = array<i32>} : memref<1x4x8x8xf32, #tpu.memory_space<vmem>>, vector<1x1x8x8xf32>,
    %c0_144 = arith.constant 0 : index
    %c2 = arith.constant 2 : index
    %c0_145 = arith.constant 0 : index
    %c0_146 = arith.constant 0 : index
    %309 = vector.load %arg28[%c0_144, %c2, %c0_145, %c0_146] : memref<1x4x8x8xf32, #tpu.memory_space<vmem>>, vector<1x1x8x8xf32>
    %310 = vector.shape_cast %309 : vector<1x1x8x8xf32> to vector<8x8xf32>
    %311 = vector.shape_cast %214 : vector<8x8xf32> to vector<1x1x8x8xf32>
    tpu.vector_store %arg28[%c0_144, %c2, %c0_145, %c0_146], %311 {strides = array<i32>} : memref<1x4x8x8xf32, #tpu.memory_space<vmem>>, vector<1x1x8x8xf32>,
    %c0_147 = arith.constant 0 : index
    %c3 = arith.constant 3 : index
    %c0_148 = arith.constant 0 : index
    %c0_149 = arith.constant 0 : index
    %312 = vector.load %arg28[%c0_147, %c3, %c0_148, %c0_149] : memref<1x4x8x8xf32, #tpu.memory_space<vmem>>, vector<1x1x8x8xf32>
    %313 = vector.shape_cast %312 : vector<1x1x8x8xf32> to vector<8x8xf32>
    %314 = vector.shape_cast %235 : vector<8x8xf32> to vector<1x1x8x8xf32>
    tpu.vector_store %arg28[%c0_147, %c3, %c0_148, %c0_149], %314 {strides = array<i32>} : memref<1x4x8x8xf32, #tpu.memory_space<vmem>>, vector<1x1x8x8xf32>,
    return
  }
  func.func @transform_0(%arg0: i32) -> (i32, i32, i32) {
    %c0_i32 = arith.constant 0 : i32
    %c0_i32_0 = arith.constant 0 : i32
    %c0_i32_1 = arith.constant 0 : i32
    return %arg0, %c0_i32, %c0_i32_0 : i32, i32, i32
  }
  func.func @transform_1(%arg0: i32) -> (i32, i32, i32) {
    %c0_i32 = arith.constant 0 : i32
    %c0_i32_0 = arith.constant 0 : i32
    %c0_i32_1 = arith.constant 0 : i32
    return %arg0, %c0_i32, %c0_i32_0 : i32, i32, i32
  }
  func.func @transform_2(%arg0: i32) -> (i32, i32, i32) {
    %c0_i32 = arith.constant 0 : i32
    %c0_i32_0 = arith.constant 0 : i32
    %c0_i32_1 = arith.constant 0 : i32
    return %arg0, %c0_i32, %c0_i32_0 : i32, i32, i32
  }
  func.func @transform_3(%arg0: i32) -> (i32, i32, i32) {
    %c0_i32 = arith.constant 0 : i32
    %c0_i32_0 = arith.constant 0 : i32
    %c0_i32_1 = arith.constant 0 : i32
    return %arg0, %c0_i32, %c0_i32_0 : i32, i32, i32
  }
  func.func @transform_4(%arg0: i32) -> (i32, i32) {
    %c0_i32 = arith.constant 0 : i32
    %c0_i32_0 = arith.constant 0 : i32
    %c0_i32_1 = arith.constant 0 : i32
    return %c0_i32, %c0_i32_0 : i32, i32
  }
  func.func @transform_5(%arg0: i32) -> (i32, i32) {
    %c0_i32 = arith.constant 0 : i32
    %c0_i32_0 = arith.constant 0 : i32
    %c0_i32_1 = arith.constant 0 : i32
    return %c0_i32, %c0_i32_0 : i32, i32
  }
  func.func @transform_6(%arg0: i32) -> (i32, i32) {
    %c0_i32 = arith.constant 0 : i32
    %c0_i32_0 = arith.constant 0 : i32
    %c0_i32_1 = arith.constant 0 : i32
    return %c0_i32, %c0_i32_0 : i32, i32
  }
  func.func @transform_7(%arg0: i32) -> (i32, i32) {
    %c0_i32 = arith.constant 0 : i32
    %c0_i32_0 = arith.constant 0 : i32
    %c0_i32_1 = arith.constant 0 : i32
    return %c0_i32, %c0_i32_0 : i32, i32
  }
  func.func @transform_8(%arg0: i32) -> (i32, i32) {
    %c0_i32 = arith.constant 0 : i32
    %c0_i32_0 = arith.constant 0 : i32
    %c0_i32_1 = arith.constant 0 : i32
    return %c0_i32, %c0_i32_0 : i32, i32
  }
  func.func @transform_9(%arg0: i32) -> (i32, i32) {
    %c0_i32 = arith.constant 0 : i32
    %c0_i32_0 = arith.constant 0 : i32
    %c0_i32_1 = arith.constant 0 : i32
    return %c0_i32, %c0_i32_0 : i32, i32
  }
  func.func @transform_10(%arg0: i32) -> (i32, i32) {
    %c0_i32 = arith.constant 0 : i32
    %c0_i32_0 = arith.constant 0 : i32
    %c0_i32_1 = arith.constant 0 : i32
    return %c0_i32, %c0_i32_0 : i32, i32
  }
  func.func @transform_11(%arg0: i32) -> (i32, i32) {
    %c0_i32 = arith.constant 0 : i32
    %c0_i32_0 = arith.constant 0 : i32
    %c0_i32_1 = arith.constant 0 : i32
    return %c0_i32, %c0_i32_0 : i32, i32
  }
  func.func @transform_12(%arg0: i32) -> (i32, i32) {
    %c0_i32 = arith.constant 0 : i32
    %c0_i32_0 = arith.constant 0 : i32
    %c0_i32_1 = arith.constant 0 : i32
    return %c0_i32, %c0_i32_0 : i32, i32
  }
  func.func @transform_13(%arg0: i32) -> (i32, i32) {
    %c0_i32 = arith.constant 0 : i32
    %c0_i32_0 = arith.constant 0 : i32
    %c0_i32_1 = arith.constant 0 : i32
    return %c0_i32, %c0_i32_0 : i32, i32
  }
  func.func @transform_14(%arg0: i32) -> (i32, i32) {
    %c0_i32 = arith.constant 0 : i32
    %c0_i32_0 = arith.constant 0 : i32
    %c0_i32_1 = arith.constant 0 : i32
    return %c0_i32, %c0_i32_0 : i32, i32
  }
  func.func @transform_15(%arg0: i32) -> (i32, i32) {
    %c0_i32 = arith.constant 0 : i32
    %c0_i32_0 = arith.constant 0 : i32
    %c0_i32_1 = arith.constant 0 : i32
    return %c0_i32, %c0_i32_0 : i32, i32
  }
  func.func @transform_16(%arg0: i32) -> (i32, i32) {
    %c0_i32 = arith.constant 0 : i32
    %c0_i32_0 = arith.constant 0 : i32
    %c0_i32_1 = arith.constant 0 : i32
    return %c0_i32, %c0_i32_0 : i32, i32
  }
  func.func @transform_17(%arg0: i32) -> (i32, i32) {
    %c0_i32 = arith.constant 0 : i32
    %c0_i32_0 = arith.constant 0 : i32
    %c0_i32_1 = arith.constant 0 : i32
    return %c0_i32, %c0_i32_0 : i32, i32
  }
  func.func @transform_18(%arg0: i32) -> (i32, i32) {
    %c0_i32 = arith.constant 0 : i32
    %c0_i32_0 = arith.constant 0 : i32
    %c0_i32_1 = arith.constant 0 : i32
    return %c0_i32, %c0_i32_0 : i32, i32
  }
  func.func @transform_19(%arg0: i32) -> (i32, i32) {
    %c0_i32 = arith.constant 0 : i32
    %c0_i32_0 = arith.constant 0 : i32
    %c0_i32_1 = arith.constant 0 : i32
    return %c0_i32, %c0_i32_0 : i32, i32
  }
  func.func @transform_20(%arg0: i32) -> (i32, i32) {
    %c0_i32 = arith.constant 0 : i32
    %c0_i32_0 = arith.constant 0 : i32
    %c0_i32_1 = arith.constant 0 : i32
    return %c0_i32, %c0_i32_0 : i32, i32
  }
  func.func @transform_21(%arg0: i32) -> (i32, i32) {
    %c0_i32 = arith.constant 0 : i32
    %c0_i32_0 = arith.constant 0 : i32
    %c0_i32_1 = arith.constant 0 : i32
    return %c0_i32, %c0_i32_0 : i32, i32
  }
  func.func @transform_22(%arg0: i32) -> (i32, i32) {
    %c0_i32 = arith.constant 0 : i32
    %c0_i32_0 = arith.constant 0 : i32
    %c0_i32_1 = arith.constant 0 : i32
    return %c0_i32, %c0_i32_0 : i32, i32
  }
  func.func @transform_23(%arg0: i32) -> (i32, i32) {
    %c0_i32 = arith.constant 0 : i32
    %c0_i32_0 = arith.constant 0 : i32
    %c0_i32_1 = arith.constant 0 : i32
    return %c0_i32, %c0_i32_0 : i32, i32
  }
  func.func @transform_24(%arg0: i32) -> (i32, i32) {
    %c0_i32 = arith.constant 0 : i32
    %c0_i32_0 = arith.constant 0 : i32
    %c0_i32_1 = arith.constant 0 : i32
    return %c0_i32, %c0_i32_0 : i32, i32
  }
  func.func @transform_25(%arg0: i32) -> (i32, i32) {
    %c0_i32 = arith.constant 0 : i32
    %c0_i32_0 = arith.constant 0 : i32
    %c0_i32_1 = arith.constant 0 : i32
    return %c0_i32, %c0_i32_0 : i32, i32
  }
  func.func @transform_26(%arg0: i32) -> (i32, i32, i32) {
    %c0_i32 = arith.constant 0 : i32
    %c0_i32_0 = arith.constant 0 : i32
    %c0_i32_1 = arith.constant 0 : i32
    return %arg0, %c0_i32, %c0_i32_0 : i32, i32, i32
  }
  func.func @transform_27(%arg0: i32) -> (i32, i32, i32, i32) {
    %c0_i32 = arith.constant 0 : i32
    %c0_i32_0 = arith.constant 0 : i32
    %c0_i32_1 = arith.constant 0 : i32
    %c0_i32_2 = arith.constant 0 : i32
    return %arg0, %c0_i32, %c0_i32_0, %c0_i32_1 : i32, i32, i32, i32
  }
}

</mosaic_0001>

<llo_original>
// kernel: seq2seq_forward.4
$region0: #{seq2seq_forward.4}
  #allocation0 [shape = 'u32[]', space=smem, size = 0x4, offset = 0x4, fixed_abs, tag = 'smem constant byte address 0x4 - core index']
  #allocation1 [shape = 'u32[144,128]{1,0:T(1,128)}', space=vmem, size = 0x12000, scoped, tag = 'internal scratch']
  %s0 = inlined_call_operand.vmem [shape: f32[2,8,32], index: 0, kind: input, shape index: {}]
  %s1 = inlined_call_operand.vmem [shape: f32[2,8,8], index: 1, kind: input, shape index: {}]
  %s2 = inlined_call_operand.vmem [shape: f32[32,96], index: 2, kind: input, shape index: {}]
  %s3 = inlined_call_operand.vmem [shape: f32[1,96], index: 3, kind: input, shape index: {}]
  %s4 = inlined_call_operand.vmem [shape: f32[32,32], index: 4, kind: input, shape index: {}]
  %s5 = inlined_call_operand.vmem [shape: f32[1,32], index: 5, kind: input, shape index: {}]
  %s6 = inlined_call_operand.vmem [shape: f32[1,32], index: 6, kind: input, shape index: {}]
  %s7 = inlined_call_operand.vmem [shape: f32[1,32], index: 7, kind: input, shape index: {}]
  %s8 = inlined_call_operand.vmem [shape: f32[32,64], index: 8, kind: input, shape index: {}]
  %s9 = inlined_call_operand.vmem [shape: f32[1,64], index: 9, kind: input, shape index: {}]
  %s10 = inlined_call_operand.vmem [shape: f32[64,32], index: 10, kind: input, shape index: {}]
  %s11 = inlined_call_operand.vmem [shape: f32[1,32], index: 11, kind: input, shape index: {}]
  %s12 = inlined_call_operand.vmem [shape: f32[1,32], index: 12, kind: input, shape index: {}]
  %s13 = inlined_call_operand.vmem [shape: f32[1,32], index: 13, kind: input, shape index: {}]
  %s14 = inlined_call_operand.vmem [shape: f32[2,8,32], index: 14, kind: output, shape index: {}]
  %s15 = sld [smem:[#allocation0]]
  $region89: #{seq2seq_forward.4} parent=0
    _
  %s17 = ssub.s32 1, %s15
  %s18 = scalar_select 0, %s17, %s15
  loop: start=0, step=1, limit=4
  $region2: #{seq2seq_forward.4} parent=0 // loop_pre_header
    _
  $region3: #{seq2seq_forward.4} parent=0 // loop_header
    %s20 = sphi 0, %s24
    %p21 = scmp.ge.s32.totalorder %s20, 4
    %s30 = sphi 0, %s32
    %s33 = sphi 0, %s30
    %s34 = sphi 0, %s33
    %s50 = sphi 0, %s34
    %s56 = sphi 0, %s58
    %s59 = sphi 0, %s56
    %s60 = sphi 0, %s59
    %s76 = sphi 0, %s60
    %s80 = sphi 0, %s80
    %s82 = sphi 0, %s80
    %s83 = sphi 0, %s82
    %s97 = sphi 0, %s83
    %s101 = sphi 0, %s101
    %s103 = sphi 0, %s101
    %s104 = sphi 0, %s103
    %s118 = sphi 0, %s104
    %s122 = sphi 0, %s122
    %s124 = sphi 0, %s122
    %s125 = sphi 0, %s124
    %s139 = sphi 0, %s125
    %s143 = sphi 0, %s143
    %s145 = sphi 0, %s143
    %s146 = sphi 0, %s145
    %s160 = sphi 0, %s146
    %s164 = sphi 0, %s164
    %s166 = sphi 0, %s164
    %s167 = sphi 0, %s166
    %s181 = sphi 0, %s167
    %s185 = sphi 0, %s185
    %s187 = sphi 0, %s185
    %s188 = sphi 0, %s187
    %s202 = sphi 0, %s188
    %s206 = sphi 0, %s206
    %s208 = sphi 0, %s206
    %s209 = sphi 0, %s208
    %s223 = sphi 0, %s209
    %s227 = sphi 0, %s227
    %s229 = sphi 0, %s227
    %s230 = sphi 0, %s229
    %s244 = sphi 0, %s230
    %s248 = sphi 0, %s248
    %s250 = sphi 0, %s248
    %s251 = sphi 0, %s250
    %s265 = sphi 0, %s251
    %s269 = sphi 0, %s269
    %s271 = sphi 0, %s269
    %s272 = sphi 0, %s271
    %s286 = sphi 0, %s272
    %s290 = sphi 0, %s290
    %s292 = sphi 0, %s290
    %s293 = sphi 0, %s292
    %s307 = sphi 0, %s293
    %s311 = sphi 0, %s311
    %s313 = sphi 0, %s311
    %s314 = sphi 0, %s313
    %s328 = sphi 0, %s314
    %s334 = sphi 0, %s336
    %s337 = sphi 0, %s334
    %s338 = sphi 0, %s337
    %s354 = sphi 0, %s338
  $region4: #{seq2seq_forward.4} parent=0 // loop_header_branch
    %23 = sbr.rel (%p21) target = $region8
  $region5: #{seq2seq_forward.4} parent=0 // loop_body
    %s25 = ssub.s32 %s20, 1
    %s26 = ssub.s32 %s20, 2
    %s27 = sadd.s32 %s20, 1
    %s28 = ssub.s32 %s20, %s27
    %p29 = scmp.eq.s32.totalorder %s28, 0
    %s31 = sadd.s32 %s30, 1
    %s32 = scalar_select %p29, %s30, %s31
    %p35 = pneg %p29
    %p36 = scmp.eq.s32.totalorder %s20, 1
    %p37 = por %p35, %p36
    %p38 = scmp.ne.s32.totalorder %s30, %s33
    %p39 = scmp.eq.s32.totalorder %s20, 0
    %p40 = por %p38, %p39
    %p41 = scmp.ne.s32.totalorder %s30, %s33
    %p42 = scmp.eq.s32.totalorder %s25, 1
    %p43 = por %p41, %p42
    %p44 = scmp.ne.s32.totalorder %s33, %s34
    %p45 = scmp.eq.s32.totalorder %s25, 0
    %p46 = por %p44, %p45
    %p47 = scmp.ne.s32.totalorder %s33, %s34
    %p48 = scmp.eq.s32.totalorder %s26, 1
    %p49 = por %p47, %p48
    %p51 = scmp.ne.s32.totalorder %s34, %s50
    %p52 = scmp.eq.s32.totalorder %s26, 0
    %p53 = por %p51, %p52
    %s54 = ssub.s32 %s20, %s27
    %p55 = scmp.eq.s32.totalorder %s54, 0
    %s57 = sadd.s32 %s56, 1
    %s58 = scalar_select %p55, %s56, %s57
    %p61 = pneg %p55
    %p62 = scmp.eq.s32.totalorder %s20, 1
    %p63 = por %p61, %p62
    %p64 = scmp.ne.s32.totalorder %s56, %s59
    %p65 = scmp.eq.s32.totalorder %s20, 0
    %p66 = por %p64, %p65
    %p67 = scmp.ne.s32.totalorder %s56, %s59
    %p68 = scmp.eq.s32.totalorder %s25, 1
    %p69 = por %p67, %p68
    %p70 = scmp.ne.s32.totalorder %s59, %s60
    %p71 = scmp.eq.s32.totalorder %s25, 0
    %p72 = por %p70, %p71
    %p73 = scmp.ne.s32.totalorder %s59, %s60
    %p74 = scmp.eq.s32.totalorder %s26, 1
    %p75 = por %p73, %p74
    %p77 = scmp.ne.s32.totalorder %s60, %s76
    %p78 = scmp.eq.s32.totalorder %s26, 0
    %p79 = por %p77, %p78
    %s81 = sadd.s32 %s80, 1
    %p84 = scmp.eq.s32.totalorder %s20, 1
    %p85 = scmp.ne.s32.totalorder %s80, %s82
    %p86 = scmp.eq.s32.totalorder %s20, 0
    %p87 = por %p85, %p86
    %p88 = scmp.ne.s32.totalorder %s80, %s82
    %p89 = scmp.eq.s32.totalorder %s25, 1
    %p90 = por %p88, %p89
    %p91 = scmp.ne.s32.totalorder %s82, %s83
    %p92 = scmp.eq.s32.totalorder %s25, 0
    %p93 = por %p91, %p92
    %p94 = scmp.ne.s32.totalorder %s82, %s83
    %p95 = scmp.eq.s32.totalorder %s26, 1
    %p96 = por %p94, %p95
    %p98 = scmp.ne.s32.totalorder %s83, %s97
    %p99 = scmp.eq.s32.totalorder %s26, 0
    %p100 = por %p98, %p99
    %s102 = sadd.s32 %s101, 1
    %p105 = scmp.eq.s32.totalorder %s20, 1
    %p106 = scmp.ne.s32.totalorder %s101, %s103
    %p107 = scmp.eq.s32.totalorder %s20, 0
    %p108 = por %p106, %p107
    %p109 = scmp.ne.s32.totalorder %s101, %s103
    %p110 = scmp.eq.s32.totalorder %s25, 1
    %p111 = por %p109, %p110
    %p112 = scmp.ne.s32.totalorder %s103, %s104
    %p113 = scmp.eq.s32.totalorder %s25, 0
    %p114 = por %p112, %p113
    %p115 = scmp.ne.s32.totalorder %s103, %s104
    %p116 = scmp.eq.s32.totalorder %s26, 1
    %p117 = por %p115, %p116
    %p119 = scmp.ne.s32.totalorder %s104, %s118
    %p120 = scmp.eq.s32.totalorder %s26, 0
    %p121 = por %p119, %p120
    %s123 = sadd.s32 %s122, 1
    %p126 = scmp.eq.s32.totalorder %s20, 1
    %p127 = scmp.ne.s32.totalorder %s122, %s124
    %p128 = scmp.eq.s32.totalorder %s20, 0
    %p129 = por %p127, %p128
    %p130 = scmp.ne.s32.totalorder %s122, %s124
    %p131 = scmp.eq.s32.totalorder %s25, 1
    %p132 = por %p130, %p131
    %p133 = scmp.ne.s32.totalorder %s124, %s125
    %p134 = scmp.eq.s32.totalorder %s25, 0
    %p135 = por %p133, %p134
    %p136 = scmp.ne.s32.totalorder %s124, %s125
    %p137 = scmp.eq.s32.totalorder %s26, 1
    %p138 = por %p136, %p137
    %p140 = scmp.ne.s32.totalorder %s125, %s139
    %p141 = scmp.eq.s32.totalorder %s26, 0
    %p142 = por %p140, %p141
    %s144 = sadd.s32 %s143, 1
    %p147 = scmp.eq.s32.totalorder %s20, 1
    %p148 = scmp.ne.s32.totalorder %s143, %s145
    %p149 = scmp.eq.s32.totalorder %s20, 0
    %p150 = por %p148, %p149
    %p151 = scmp.ne.s32.totalorder %s143, %s145
    %p152 = scmp.eq.s32.totalorder %s25, 1
    %p153 = por %p151, %p152
    %p154 = scmp.ne.s32.totalorder %s145, %s146
    %p155 = scmp.eq.s32.totalorder %s25, 0
    %p156 = por %p154, %p155
    %p157 = scmp.ne.s32.totalorder %s145, %s146
    %p158 = scmp.eq.s32.totalorder %s26, 1
    %p159 = por %p157, %p158
    %p161 = scmp.ne.s32.totalorder %s146, %s160
    %p162 = scmp.eq.s32.totalorder %s26, 0
    %p163 = por %p161, %p162
    %s165 = sadd.s32 %s164, 1
    %p168 = scmp.eq.s32.totalorder %s20, 1
    %p169 = scmp.ne.s32.totalorder %s164, %s166
    %p170 = scmp.eq.s32.totalorder %s20, 0
    %p171 = por %p169, %p170
    %p172 = scmp.ne.s32.totalorder %s164, %s166
    %p173 = scmp.eq.s32.totalorder %s25, 1
    %p174 = por %p172, %p173
    %p175 = scmp.ne.s32.totalorder %s166, %s167
    %p176 = scmp.eq.s32.totalorder %s25, 0
    %p177 = por %p175, %p176
    %p178 = scmp.ne.s32.totalorder %s166, %s167
    %p179 = scmp.eq.s32.totalorder %s26, 1
    %p180 = por %p178, %p179
    %p182 = scmp.ne.s32.totalorder %s167, %s181
    %p183 = scmp.eq.s32.totalorder %s26, 0
    %p184 = por %p182, %p183
    %s186 = sadd.s32 %s185, 1
    %p189 = scmp.eq.s32.totalorder %s20, 1
    %p190 = scmp.ne.s32.totalorder %s185, %s187
    %p191 = scmp.eq.s32.totalorder %s20, 0
    %p192 = por %p190, %p191
    %p193 = scmp.ne.s32.totalorder %s185, %s187
    %p194 = scmp.eq.s32.totalorder %s25, 1
    %p195 = por %p193, %p194
    %p196 = scmp.ne.s32.totalorder %s187, %s188
    %p197 = scmp.eq.s32.totalorder %s25, 0
    %p198 = por %p196, %p197
    %p199 = scmp.ne.s32.totalorder %s187, %s188
    %p200 = scmp.eq.s32.totalorder %s26, 1
    %p201 = por %p199, %p200
    %p203 = scmp.ne.s32.totalorder %s188, %s202
    %p204 = scmp.eq.s32.totalorder %s26, 0
    %p205 = por %p203, %p204
    %s207 = sadd.s32 %s206, 1
    %p210 = scmp.eq.s32.totalorder %s20, 1
    %p211 = scmp.ne.s32.totalorder %s206, %s208
    %p212 = scmp.eq.s32.totalorder %s20, 0
    %p213 = por %p211, %p212
    %p214 = scmp.ne.s32.totalorder %s206, %s208
    %p215 = scmp.eq.s32.totalorder %s25, 1
    %p216 = por %p214, %p215
    %p217 = scmp.ne.s32.totalorder %s208, %s209
    %p218 = scmp.eq.s32.totalorder %s25, 0
    %p219 = por %p217, %p218
    %p220 = scmp.ne.s32.totalorder %s208, %s209
    %p221 = scmp.eq.s32.totalorder %s26, 1
    %p222 = por %p220, %p221
    %p224 = scmp.ne.s32.totalorder %s209, %s223
    %p225 = scmp.eq.s32.totalorder %s26, 0
    %p226 = por %p224, %p225
    %s228 = sadd.s32 %s227, 1
    %p231 = scmp.eq.s32.totalorder %s20, 1
    %p232 = scmp.ne.s32.totalorder %s227, %s229
    %p233 = scmp.eq.s32.totalorder %s20, 0
    %p234 = por %p232, %p233
    %p235 = scmp.ne.s32.totalorder %s227, %s229
    %p236 = scmp.eq.s32.totalorder %s25, 1
    %p237 = por %p235, %p236
    %p238 = scmp.ne.s32.totalorder %s229, %s230
    %p239 = scmp.eq.s32.totalorder %s25, 0
    %p240 = por %p238, %p239
    %p241 = scmp.ne.s32.totalorder %s229, %s230
    %p242 = scmp.eq.s32.totalorder %s26, 1
    %p243 = por %p241, %p242
    %p245 = scmp.ne.s32.totalorder %s230, %s244
    %p246 = scmp.eq.s32.totalorder %s26, 0
    %p247 = por %p245, %p246
    %s249 = sadd.s32 %s248, 1
    %p252 = scmp.eq.s32.totalorder %s20, 1
    %p253 = scmp.ne.s32.totalorder %s248, %s250
    %p254 = scmp.eq.s32.totalorder %s20, 0
    %p255 = por %p253, %p254
    %p256 = scmp.ne.s32.totalorder %s248, %s250
    %p257 = scmp.eq.s32.totalorder %s25, 1
    %p258 = por %p256, %p257
    %p259 = scmp.ne.s32.totalorder %s250, %s251
    %p260 = scmp.eq.s32.totalorder %s25, 0
    %p261 = por %p259, %p260
    %p262 = scmp.ne.s32.totalorder %s250, %s251
    %p263 = scmp.eq.s32.totalorder %s26, 1
    %p264 = por %p262, %p263
    %p266 = scmp.ne.s32.totalorder %s251, %s265
    %p267 = scmp.eq.s32.totalorder %s26, 0
    %p268 = por %p266, %p267
    %s270 = sadd.s32 %s269, 1
    %p273 = scmp.eq.s32.totalorder %s20, 1
    %p274 = scmp.ne.s32.totalorder %s269, %s271
    %p275 = scmp.eq.s32.totalorder %s20, 0
    %p276 = por %p274, %p275
    %p277 = scmp.ne.s32.totalorder %s269, %s271
    %p278 = scmp.eq.s32.totalorder %s25, 1
    %p279 = por %p277, %p278
    %p280 = scmp.ne.s32.totalorder %s271, %s272
    %p281 = scmp.eq.s32.totalorder %s25, 0
    %p282 = por %p280, %p281
    %p283 = scmp.ne.s32.totalorder %s271, %s272
    %p284 = scmp.eq.s32.totalorder %s26, 1
    %p285 = por %p283, %p284
    %p287 = scmp.ne.s32.totalorder %s272, %s286
    %p288 = scmp.eq.s32.totalorder %s26, 0
    %p289 = por %p287, %p288
    %s291 = sadd.s32 %s290, 1
    %p294 = scmp.eq.s32.totalorder %s20, 1
    %p295 = scmp.ne.s32.totalorder %s290, %s292
    %p296 = scmp.eq.s32.totalorder %s20, 0
    %p297 = por %p295, %p296
    %p298 = scmp.ne.s32.totalorder %s290, %s292
    %p299 = scmp.eq.s32.totalorder %s25, 1
    %p300 = por %p298, %p299
    %p301 = scmp.ne.s32.totalorder %s292, %s293
    %p302 = scmp.eq.s32.totalorder %s25, 0
    %p303 = por %p301, %p302
    %p304 = scmp.ne.s32.totalorder %s292, %s293
    %p305 = scmp.eq.s32.totalorder %s26, 1
    %p306 = por %p304, %p305
    %p308 = scmp.ne.s32.totalorder %s293, %s307
    %p309 = scmp.eq.s32.totalorder %s26, 0
    %p310 = por %p308, %p309
    %s312 = sadd.s32 %s311, 1
    %p315 = scmp.eq.s32.totalorder %s20, 1
    %p316 = scmp.ne.s32.totalorder %s311, %s313
    %p317 = scmp.eq.s32.totalorder %s20, 0
    %p318 = por %p316, %p317
    %p319 = scmp.ne.s32.totalorder %s311, %s313
    %p320 = scmp.eq.s32.totalorder %s25, 1
    %p321 = por %p319, %p320
    %p322 = scmp.ne.s32.totalorder %s313, %s314
    %p323 = scmp.eq.s32.totalorder %s25, 0
    %p324 = por %p322, %p323
    %p325 = scmp.ne.s32.totalorder %s313, %s314
    %p326 = scmp.eq.s32.totalorder %s26, 1
    %p327 = por %p325, %p326
    %p329 = scmp.ne.s32.totalorder %s314, %s328
    %p330 = scmp.eq.s32.totalorder %s26, 0
    %p331 = por %p329, %p330
    %s332 = ssub.s32 %s20, %s27
    %p333 = scmp.eq.s32.totalorder %s332, 0
    %s335 = sadd.s32 %s334, 1
    %s336 = scalar_select %p333, %s334, %s335
    %p339 = pneg %p333
    %p340 = scmp.eq.s32.totalorder %s20, 1
    %p341 = por %p339, %p340
    %p342 = scmp.ne.s32.totalorder %s334, %s337
    %p343 = scmp.eq.s32.totalorder %s20, 0
    %p344 = por %p342, %p343
    %p345 = scmp.ne.s32.totalorder %s334, %s337
    %p346 = scmp.eq.s32.totalorder %s25, 1
    %p347 = por %p345, %p346
    %p348 = scmp.ne.s32.totalorder %s337, %s338
    %p349 = scmp.eq.s32.totalorder %s25, 0
    %p350 = por %p348, %p349
    %p351 = scmp.ne.s32.totalorder %s337, %s338
    %p352 = scmp.eq.s32.totalorder %s26, 1
    %p353 = por %p351, %p352
    %p355 = scmp.ne.s32.totalorder %s338, %s354
    %p356 = scmp.eq.s32.totalorder %s26, 0
    %p357 = por %p355, %p356
    %p358 = scmp.le.s32.totalorder 1, %s20
    %p359 = scmp.lt.s32.totalorder %s20, 3
    %p360 = pnand %p358, %p359
    %p361 = pneg %p360
    // Predicated region
    $region9: #{seq2seq_forward.4} parent=5 // pred_check
      _
    $region10: #{seq2seq_forward.4} parent=5 // pred_check_branch
      %363 = sbr.rel (%p360) target = $region12
    $region11: #{seq2seq_forward.4} parent=5 // pred_region
      %s364 = ssub.s32 %s20, 1
      // Predicated region
      $region13: #{seq2seq_forward.4} parent=11 // pred_check
        %p365 = pneg %p93
      $region14: #{seq2seq_forward.4} parent=11 // pred_check_branch
        %367 = sbr.rel (%p365) target = $region16
      $region15: #{seq2seq_forward.4} parent=11 // pred_region
        _
      $region16: #{seq2seq_forward.4} parent=11 // pred_fallthru
        _
      // Predicated region
      $region17: #{seq2seq_forward.4} parent=11 // pred_check
        %p368 = pneg %p114
      $region18: #{seq2seq_forward.4} parent=11 // pred_check_branch
        %370 = sbr.rel (%p368) target = $region20
      $region19: #{seq2seq_forward.4} parent=11 // pred_region
        _
      $region20: #{seq2seq_forward.4} parent=11 // pred_fallthru
        _
      // Predicated region
      $region21: #{seq2seq_forward.4} parent=11 // pred_check
        %p371 = pneg %p135
      $region22: #{seq2seq_forward.4} parent=11 // pred_check_branch
        %373 = sbr.rel (%p371) target = $region24
      $region23: #{seq2seq_forward.4} parent=11 // pred_region
        _
      $region24: #{seq2seq_forward.4} parent=11 // pred_fallthru
        _
      // Predicated region
      $region25: #{seq2seq_forward.4} parent=11 // pred_check
        %p374 = pneg %p156
      $region26: #{seq2seq_forward.4} parent=11 // pred_check_branch
        %376 = sbr.rel (%p374) target = $region28
      $region27: #{seq2seq_forward.4} parent=11 // pred_region
        _
      $region28: #{seq2seq_forward.4} parent=11 // pred_fallthru
        _
      // Predicated region
      $region29: #{seq2seq_forward.4} parent=11 // pred_check
        %p377 = pneg %p177
      $region30: #{seq2seq_forward.4} parent=11 // pred_check_branch
        %379 = sbr.rel (%p377) target = $region32
      $region31: #{seq2seq_forward.4} parent=11 // pred_region
        _
      $region32: #{seq2seq_forward.4} parent=11 // pred_fallthru
        _
      // Predicated region
      $region33: #{seq2seq_forward.4} parent=11 // pred_check
        %p380 = pneg %p198
      $region34: #{seq2seq_forward.4} parent=11 // pred_check_branch
        %382 = sbr.rel (%p380) target = $region36
      $region35: #{seq2seq_forward.4} parent=11 // pred_region
        _
      $region36: #{seq2seq_forward.4} parent=11 // pred_fallthru
        _
      // Predicated region
      $region37: #{seq2seq_forward.4} parent=11 // pred_check
        %p383 = pneg %p219
      $region38: #{seq2seq_forward.4} parent=11 // pred_check_branch
        %385 = sbr.rel (%p383) target = $region40
      $region39: #{seq2seq_forward.4} parent=11 // pred_region
        _
      $region40: #{seq2seq_forward.4} parent=11 // pred_fallthru
        _
      // Predicated region
      $region41: #{seq2seq_forward.4} parent=11 // pred_check
        %p386 = pneg %p240
      $region42: #{seq2seq_forward.4} parent=11 // pred_check_branch
        %388 = sbr.rel (%p386) target = $region44
      $region43: #{seq2seq_forward.4} parent=11 // pred_region
        _
      $region44: #{seq2seq_forward.4} parent=11 // pred_fallthru
        _
      // Predicated region
      $region45: #{seq2seq_forward.4} parent=11 // pred_check
        %p389 = pneg %p261
      $region46: #{seq2seq_forward.4} parent=11 // pred_check_branch
        %391 = sbr.rel (%p389) target = $region48
      $region47: #{seq2seq_forward.4} parent=11 // pred_region
        _
      $region48: #{seq2seq_forward.4} parent=11 // pred_fallthru
        _
      // Predicated region
      $region49: #{seq2seq_forward.4} parent=11 // pred_check
        %p392 = pneg %p282
      $region50: #{seq2seq_forward.4} parent=11 // pred_check_branch
        %394 = sbr.rel (%p392) target = $region52
      $region51: #{seq2seq_forward.4} parent=11 // pred_region
        _
      $region52: #{seq2seq_forward.4} parent=11 // pred_fallthru
        _
      // Predicated region
      $region53: #{seq2seq_forward.4} parent=11 // pred_check
        %p395 = pneg %p303
      $region54: #{seq2seq_forward.4} parent=11 // pred_check_branch
        %397 = sbr.rel (%p395) target = $region56
      $region55: #{seq2seq_forward.4} parent=11 // pred_region
        _
      $region56: #{seq2seq_forward.4} parent=11 // pred_fallthru
        _
      // Predicated region
      $region57: #{seq2seq_forward.4} parent=11 // pred_check
        %p398 = pneg %p324
      $region58: #{seq2seq_forward.4} parent=11 // pred_check_branch
        %400 = sbr.rel (%p398) target = $region60
      $region59: #{seq2seq_forward.4} parent=11 // pred_region
        _
      $region60: #{seq2seq_forward.4} parent=11 // pred_fallthru
        _
    $region12: #{seq2seq_forward.4} parent=5 // pred_fallthru
      _
    %p401 = scmp.lt.s32.totalorder %s20, 2
    // Predicated region
    $region61: #{seq2seq_forward.4} parent=5 // pred_check
      %p402 = pneg %p401
    $region62: #{seq2seq_forward.4} parent=5 // pred_check_branch
      %404 = sbr.rel (%p402) target = $region64
    $region63: #{seq2seq_forward.4} parent=5 // pred_region
      // Predicated region
      $region65: #{seq2seq_forward.4} parent=63 // pred_check
        %p405 = pneg %p40
      $region66: #{seq2seq_forward.4} parent=63 // pred_check_branch
        %407 = sbr.rel (%p405) target = $region68
      $region67: #{seq2seq_forward.4} parent=63 // pred_region
        %p408 = scmp.lt.s32.totalorder %s20, 1
        %s409 = scalar_select %p408, %s20, 1
        %s410 = smul.addr %s409, 8
        %s411 = scalar_lea.vmem %s0, %s410
      $region68: #{seq2seq_forward.4} parent=63 // pred_fallthru
        _
      // Predicated region
      $region69: #{seq2seq_forward.4} parent=63 // pred_check
        %p412 = pneg %p66
      $region70: #{seq2seq_forward.4} parent=63 // pred_check_branch
        %414 = sbr.rel (%p412) target = $region72
      $region71: #{seq2seq_forward.4} parent=63 // pred_region
        %p415 = scmp.lt.s32.totalorder %s20, 1
        %s416 = scalar_select %p415, %s20, 1
        %s417 = smul.addr %s416, 8
        %s418 = scalar_lea.vmem %s1, %s417
      $region72: #{seq2seq_forward.4} parent=63 // pred_fallthru
        _
    $region64: #{seq2seq_forward.4} parent=5 // pred_fallthru
      _
    %p419 = scmp.le.s32.totalorder 1, %s20
    %p420 = scmp.lt.s32.totalorder %s20, 3
    %p421 = pnand %p419, %p420
    %p422 = pneg %p421
    // Predicated region
    $region73: #{seq2seq_forward.4} parent=5 // pred_check
      _
    $region74: #{seq2seq_forward.4} parent=5 // pred_check_branch
      %424 = sbr.rel (%p421) target = $region76
    $region75: #{seq2seq_forward.4} parent=5 // pred_region
      %s425 = ssub.s32 %s20, 1
      %p426 = scmp.lt.s32.totalorder %s25, 1
      %s427 = scalar_select %p426, %s25, 1
      %s428 = smul.addr %s427, 8
      %s429 = scalar_lea.vmem %s0, %s428
      %p430 = pneg %p46
      %p431 = pneg %p43
      %p432 = scmp.lt.s32.totalorder %s25, 1
      %s433 = scalar_select %p432, %s25, 1
      %s434 = smul.addr %s433, 8
      %s435 = scalar_lea.vmem %s1, %s434
      %p436 = pneg %p72
      %p437 = pneg %p69
      %p438 = pneg %p93
      %p439 = pneg %p90
      %p440 = pneg %p114
      %p441 = pneg %p111
      %p442 = pneg %p135
      %p443 = pneg %p132
      %p444 = pneg %p156
      %p445 = pneg %p153
      %p446 = pneg %p177
      %p447 = pneg %p174
      %p448 = pneg %p198
      %p449 = pneg %p195
      %p450 = pneg %p219
      %p451 = pneg %p216
      %p452 = pneg %p240
      %p453 = pneg %p237
      %p454 = pneg %p261
      %p455 = pneg %p258
      %p456 = pneg %p282
      %p457 = pneg %p279
      %p458 = pneg %p303
      %p459 = pneg %p300
      %p460 = pneg %p324
      %p461 = pneg %p321
      %p462 = pneg %p350
      %p463 = pneg %p347
      %p464 = scmp.lt.s32.totalorder %s25, 1
      %s465 = scalar_select %p464, %s25, 1
      %s466 = smul.addr %s465, 8
      %s467 = scalar_lea.vmem %s14, %s466
      %p468 = scmp.lt.s32.totalorder %s25, 1
      %s469 = scalar_select %p468, %s25, 1
      %s470 = smul.addr %s469, 8
      %s471 = scalar_lea.vmem %s0, %s470
      %p472 = scmp.lt.s32.totalorder %s25, 1
      %s473 = scalar_select %p472, %s25, 1
      %s474 = smul.addr %s473, 8
      %s475 = scalar_lea.vmem %s1, %s474
      %p476 = scmp.lt.s32.totalorder %s25, 1
      %s477 = scalar_select %p476, %s25, 1
      %s478 = smul.addr %s477, 8
      %s479 = scalar_lea.vmem %s14, %s478
      %v480 = vld [vmem:[%s2] sm:$0xff]
      %v481 = vld [vmem:[%s2 + $0x8] sm:$0xff]
      %v482 = vld [vmem:[%s2 + $0x10] sm:$0xff]
      %v483 = vld [vmem:[%s2 + $0x18] sm:$0xff]
      %v484 = vld [vmem:[%s3] sm:$0x1]
      %v485 = vld [vmem:[%s4] sm:$0xff]
      %v486 = vld [vmem:[%s4 + $0x8] sm:$0xff]
      %v487 = vld [vmem:[%s4 + $0x10] sm:$0xff]
      %v488 = vld [vmem:[%s4 + $0x18] sm:$0xff]
      %v489 = vld [vmem:[%s5] sm:$0x1]
      %v490 = vld [vmem:[%s6] sm:$0x1]
      %v491 = vld [vmem:[%s7] sm:$0x1]
      %v492 = vld [vmem:[%s8] sm:$0xff]
      %v493 = vld [vmem:[%s8 + $0x8] sm:$0xff]
      %v494 = vld [vmem:[%s8 + $0x10] sm:$0xff]
      %v495 = vld [vmem:[%s8 + $0x18] sm:$0xff]
      %v496 = vld [vmem:[%s9] sm:$0x1]
      %v497 = vld [vmem:[%s10] sm:$0xff]
      %v498 = vld [vmem:[%s10 + $0x8] sm:$0xff]
      %v499 = vld [vmem:[%s10 + $0x10] sm:$0xff]
      %v500 = vld [vmem:[%s10 + $0x18] sm:$0xff]
      %v501 = vld [vmem:[%s10 + $0x20] sm:$0xff]
      %v502 = vld [vmem:[%s10 + $0x28] sm:$0xff]
      %v503 = vld [vmem:[%s10 + $0x30] sm:$0xff]
      %v504 = vld [vmem:[%s10 + $0x38] sm:$0xff]
      %v505 = vld [vmem:[%s11] sm:$0x1]
      %v506 = vld [vmem:[%s12] sm:$0x1]
      %v507 = vld [vmem:[%s13] sm:$0x1]
      %v508 = vld [vmem:[%s471] sm:$0xff]
      %v509 = vld [vmem:[%s475] sm:$0xff]
      %v511 = vlaneseq
      %v512 = vshrl.u32 %v511, 7
      %v513 = vsub.s32 0, %v512
      %v514 = vrot.slane %v484, %v513
      %vm516 = vcmask 261120
      %v518 = vsel %vm516, %v508, 0
      %520 = vmatprep.subr.mxu0 0.0
      %521 = vmatpush1.msra.mxu0 %v480
      %522 = vmatprep.subr.mxu0 0.0
      %523 = vmatpush1.msra.mxu0 %v481
      %524 = vmatprep.subr.mxu0 0.0
      %525 = vmatpush1.msra.mxu0 %v482
      %526 = vmatprep.subr.mxu0 0.0
      %527 = vmatpush1.msra.mxu0 %v483
      %528 = vmatprep.subr.mxu0 0.0
      %529 = vmatpush1.msra.mxu0 0.0
      %530 = vmatprep.subr.mxu0 0.0
      %531 = vmatpush1.msra.mxu0 0.0
      %532 = vmatprep.subr.mxu0 0.0
      %533 = vmatpush1.msra.mxu0 0.0
      %534 = vmatprep.subr.mxu0 0.0
      %535 = vmatpush1.msra.mxu0 0.0
      %536 = vmatprep.subr.mxu0 0.0
      %537 = vmatpush1.msra.mxu0 0.0
      %538 = vmatprep.subr.mxu0 0.0
      %539 = vmatpush1.msra.mxu0 0.0
      %540 = vmatprep.subr.mxu0 0.0
      %541 = vmatpush1.msra.mxu0 0.0
      %542 = vmatprep.subr.mxu0 0.0
      %543 = vmatpush1.msra.mxu0 0.0
      %544 = vmatprep.subr.mxu0 0.0
      %545 = vmatpush1.msra.mxu0 0.0
      %546 = vmatprep.subr.mxu0 0.0
      %547 = vmatpush1.msra.mxu0 0.0
      %548 = vmatprep.subr.mxu0 0.0
      %549 = vmatpush1.msra.mxu0 0.0
      %550 = vmatprep.subr.mxu0 0.0
      %551 = vmatpush1.msra.mxu0 0.0
      %552 = vmatprep.subr.mxu0 0.0
      %553 = vmatpush1.msra.mxu0 0.0
      %554 = vmatprep.subr.mxu0 0.0
      %555 = vmatpush1.msra.mxu0 0.0
      %556 = vmatprep.subr.mxu0 0.0
      %557 = vmatpush1.msra.mxu0 0.0
      %558 = vmatprep.subr.mxu0 0.0
      %559 = vmatpush1.msra.mxu0 0.0
      %560 = vmatprep.subr.mxu0 0.0
      %561 = vmatpush1.msra.mxu0 0.0
      %562 = vmatprep.subr.mxu0 0.0
      %563 = vmatpush1.msra.mxu0 0.0
      %564 = vmatprep.subr.mxu0 0.0
      %565 = vmatpush1.msra.mxu0 0.0
      %566 = vmatprep.subr.mxu0 0.0
      %567 = vmatpush1.msra.mxu0 0.0
      %568 = vmatprep.subr.mxu0 0.0
      %569 = vmatpush1.msra.mxu0 0.0
      %570 = vmatprep.subr.mxu0 0.0
      %571 = vmatpush1.msra.mxu0 0.0
      %572 = vmatprep.subr.mxu0 0.0
      %573 = vmatpush1.msra.mxu0 0.0
      %574 = vmatprep.subr.mxu0 0.0
      %575 = vmatpush1.msra.mxu0 0.0
      %576 = vmatprep.subr.mxu0 0.0
      %577 = vmatpush1.msra.mxu0 0.0
      %578 = vmatprep.subr.mxu0 0.0
      %579 = vmatpush1.msra.mxu0 0.0
      %580 = vmatprep.subr.mxu0 0.0
      %581 = vmatpush1.msra.mxu0 0.0
      %582 = vmatprep.subr.mxu0 0.0
      %583 = vmatpush1.msra.mxu0 0.0
      %584 = vmatprep.mubr.f32.mxu0 0.0
      %585 = vmatmul.mubr.f32.gmra.mrb[0].mxu0 %v518
      %v586 = vpop.f32.mrb[0].mxu0
      %v587 = vadd.f32 %v514, %v586
      %v588 = vpop.f32.mrb[0].mxu0
      %589 = vdwg.mxu0
      %591 = vrot.lane.b32.xlu0 %v587, 96
      %v592 = vpop.permute.xlu0 %591
      %vm593 = vcmask 64512
      %v594 = vsel %vm593, %v587, 0
      %v596 = vsel %vm593, %v592, 0
      %598 = vmatprep.subr.mxu0 0.0
      %599 = vmatpush1.xpose.msra.mxu0 %v596
      %600 = vmatprep.subr.mxu0 0.0
      %601 = vmatpush1.xpose.msra.mxu0 0.0
      %602 = vmatprep.subr.mxu0 0.0
      %603 = vmatpush1.xpose.msra.mxu0 0.0
      %604 = vmatprep.subr.mxu0 0.0
      %605 = vmatpush1.xpose.msra.mxu0 0.0
      %606 = vmatprep.subr.mxu0 0.0
      %607 = vmatpush1.xpose.msra.mxu0 0.0
      %608 = vmatprep.subr.mxu0 0.0
      %609 = vmatpush1.xpose.msra.mxu0 0.0
      %610 = vmatprep.subr.mxu0 0.0
      %611 = vmatpush1.xpose.msra.mxu0 0.0
      %612 = vmatprep.subr.mxu0 0.0
      %613 = vmatpush1.xpose.msra.mxu0 0.0
      %614 = vmatprep.subr.mxu0 0.0
      %615 = vmatpush1.xpose.msra.mxu0 0.0
      %616 = vmatprep.subr.mxu0 0.0
      %617 = vmatpush1.xpose.msra.mxu0 0.0
      %618 = vmatprep.subr.mxu0 0.0
      %619 = vmatpush1.xpose.msra.mxu0 0.0
      %620 = vmatprep.subr.mxu0 0.0
      %621 = vmatpush1.xpose.msra.mxu0 0.0
      %622 = vmatprep.subr.mxu0 0.0
      %623 = vmatpush1.xpose.msra.mxu0 0.0
      %624 = vmatprep.subr.mxu0 0.0
      %625 = vmatpush1.xpose.msra.mxu0 0.0
      %626 = vmatprep.subr.mxu0 0.0
      %627 = vmatpush1.xpose.msra.mxu0 0.0
      %628 = vmatprep.subr.mxu0 0.0
      %629 = vmatpush1.xpose.msra.mxu0 0.0
      %630 = vmatprep.subr.mxu0 0.0
      %631 = vmatpush1.xpose.msra.mxu0 0.0
      %632 = vmatprep.subr.mxu0 0.0
      %633 = vmatpush1.xpose.msra.mxu0 0.0
      %634 = vmatprep.subr.mxu0 0.0
      %635 = vmatpush1.xpose.msra.mxu0 0.0
      %636 = vmatprep.subr.mxu0 0.0
      %637 = vmatpush1.xpose.msra.mxu0 0.0
      %638 = vmatprep.subr.mxu0 0.0
      %639 = vmatpush1.xpose.msra.mxu0 0.0
      %640 = vmatprep.subr.mxu0 0.0
      %641 = vmatpush1.xpose.msra.mxu0 0.0
      %642 = vmatprep.subr.mxu0 0.0
      %643 = vmatpush1.xpose.msra.mxu0 0.0
      %644 = vmatprep.subr.mxu0 0.0
      %645 = vmatpush1.xpose.msra.mxu0 0.0
      %646 = vmatprep.subr.mxu0 0.0
      %647 = vmatpush1.xpose.msra.mxu0 0.0
      %648 = vmatprep.subr.mxu0 0.0
      %649 = vmatpush1.xpose.msra.mxu0 0.0
      %650 = vmatprep.subr.mxu0 0.0
      %651 = vmatpush1.xpose.msra.mxu0 0.0
      %652 = vmatprep.subr.mxu0 0.0
      %653 = vmatpush1.xpose.msra.mxu0 0.0
      %654 = vmatprep.subr.mxu0 0.0
      %655 = vmatpush1.xpose.msra.mxu0 0.0
      %656 = vmatprep.subr.mxu0 0.0
      %657 = vmatpush1.xpose.msra.mxu0 0.0
      %658 = vmatprep.subr.mxu0 0.0
      %659 = vmatpush1.xpose.msra.mxu0 0.0
      %660 = vmatprep.subr.mxu0 0.0
      %661 = vmatpush1.xpose.msra.mxu0 0.0
      %662 = vmatprep.mubr.f32.mxu0 0.0
      %663 = vmatmul.mubr.f32.gmra.mrb[0].mxu0 %v594
      %v664 = vpop.f32.mrb[0].mxu0
      %v665 = vadd.f32 0.0, %v664
      %v666 = vpop.f32.mrb[0].mxu0
      %667 = vdwg.mxu0
      %v668 = vmul.f32 %v665, 0.35355338
      %vm669 = vcmp.ne.f32.partialorder %v509, 0.0
      %v670 = vsel %vm669, %v668, -1e+10
      %v671 = vsel %vm593, %v670, -inf
      %672 = vmax.xlane.f32.xlu0 %v671
      %v673 = vpop.xlane.xlu0 %672
      %v674 = vsub.f32 %v670, %v673
      %v675 = vmul.f32 %v674, 1.442695
      %v676 = vpow.pop %v675
      %v677 = vsel %vm593, %v676, 0.0
      %678 = vadd.xlane.f32.xlu0 %v677
      %v679 = vpop.xlane.xlu0 %678
      %v680 = vrcp.pop %v679
      %v681 = vmul.f32 %v676, %v680
      %682 = vrot.lane.b32.xlu0 %v587, 64
      %v683 = vpop.permute.xlu0 %682
      %v686 = vsel %vm593, %v681, 0
      %688 = vmatprep.subr.mxu0 0.0
      %689 = vmatpush1.msra.mxu0 %v683
      %690 = vmatprep.subr.mxu0 0.0
      %691 = vmatpush1.msra.mxu0 0.0
      %692 = vmatprep.subr.mxu0 0.0
      %693 = vmatpush1.msra.mxu0 0.0
      %694 = vmatprep.subr.mxu0 0.0
      %695 = vmatpush1.msra.mxu0 0.0
      %696 = vmatprep.subr.mxu0 0.0
      %697 = vmatpush1.msra.mxu0 0.0
      %698 = vmatprep.subr.mxu0 0.0
      %699 = vmatpush1.msra.mxu0 0.0
      %700 = vmatprep.subr.mxu0 0.0
      %701 = vmatpush1.msra.mxu0 0.0
      %702 = vmatprep.subr.mxu0 0.0
      %703 = vmatpush1.msra.mxu0 0.0
      %704 = vmatprep.subr.mxu0 0.0
      %705 = vmatpush1.msra.mxu0 0.0
      %706 = vmatprep.subr.mxu0 0.0
      %707 = vmatpush1.msra.mxu0 0.0
      %708 = vmatprep.subr.mxu0 0.0
      %709 = vmatpush1.msra.mxu0 0.0
      %710 = vmatprep.subr.mxu0 0.0
      %711 = vmatpush1.msra.mxu0 0.0
      %712 = vmatprep.subr.mxu0 0.0
      %713 = vmatpush1.msra.mxu0 0.0
      %714 = vmatprep.subr.mxu0 0.0
      %715 = vmatpush1.msra.mxu0 0.0
      %716 = vmatprep.subr.mxu0 0.0
      %717 = vmatpush1.msra.mxu0 0.0
      %718 = vmatprep.subr.mxu0 0.0
      %719 = vmatpush1.msra.mxu0 0.0
      %720 = vmatprep.subr.mxu0 0.0
      %721 = vmatpush1.msra.mxu0 0.0
      %722 = vmatprep.subr.mxu0 0.0
      %723 = vmatpush1.msra.mxu0 0.0
      %724 = vmatprep.subr.mxu0 0.0
      %725 = vmatpush1.msra.mxu0 0.0
      %726 = vmatprep.subr.mxu0 0.0
      %727 = vmatpush1.msra.mxu0 0.0
      %728 = vmatprep.subr.mxu0 0.0
      %729 = vmatpush1.msra.mxu0 0.0
      %730 = vmatprep.subr.mxu0 0.0
      %731 = vmatpush1.msra.mxu0 0.0
      %732 = vmatprep.subr.mxu0 0.0
      %733 = vmatpush1.msra.mxu0 0.0
      %734 = vmatprep.subr.mxu0 0.0
      %735 = vmatpush1.msra.mxu0 0.0
      %736 = vmatprep.subr.mxu0 0.0
      %737 = vmatpush1.msra.mxu0 0.0
      %738 = vmatprep.subr.mxu0 0.0
      %739 = vmatpush1.msra.mxu0 0.0
      %740 = vmatprep.subr.mxu0 0.0
      %741 = vmatpush1.msra.mxu0 0.0
      %742 = vmatprep.subr.mxu0 0.0
      %743 = vmatpush1.msra.mxu0 0.0
      %744 = vmatprep.subr.mxu0 0.0
      %745 = vmatpush1.msra.mxu0 0.0
      %746 = vmatprep.subr.mxu0 0.0
      %747 = vmatpush1.msra.mxu0 0.0
      %748 = vmatprep.subr.mxu0 0.0
      %749 = vmatpush1.msra.mxu0 0.0
      %750 = vmatprep.subr.mxu0 0.0
      %751 = vmatpush1.msra.mxu0 0.0
      %752 = vmatprep.mubr.f32.mxu0 0.0
      %753 = vmatmul.mubr.f32.gmra.mrb[0].mxu0 %v686
      %v754 = vpop.f32.mrb[0].mxu0
      %v755 = vadd.f32 0.0, %v754
      %v756 = vpop.f32.mrb[0].mxu0
      %757 = vdwg.mxu0
      %758 = vrot.lane.b32.xlu0 %v587, 120
      %v759 = vpop.permute.xlu0 %758
      %760 = vrot.lane.b32.xlu0 %v587, 88
      %v761 = vpop.permute.xlu0 %760
      %v762 = vsel %vm593, %v759, 0
      %v764 = vsel %vm593, %v761, 0
      %766 = vmatprep.subr.mxu0 0.0
      %767 = vmatpush1.xpose.msra.mxu0 %v764
      %768 = vmatprep.subr.mxu0 0.0
      %769 = vmatpush1.xpose.msra.mxu0 0.0
      %770 = vmatprep.subr.mxu0 0.0
      %771 = vmatpush1.xpose.msra.mxu0 0.0
      %772 = vmatprep.subr.mxu0 0.0
      %773 = vmatpush1.xpose.msra.mxu0 0.0
      %774 = vmatprep.subr.mxu0 0.0
      %775 = vmatpush1.xpose.msra.mxu0 0.0
      %776 = vmatprep.subr.mxu0 0.0
      %777 = vmatpush1.xpose.msra.mxu0 0.0
      %778 = vmatprep.subr.mxu0 0.0
      %779 = vmatpush1.xpose.msra.mxu0 0.0
      %780 = vmatprep.subr.mxu0 0.0
      %781 = vmatpush1.xpose.msra.mxu0 0.0
      %782 = vmatprep.subr.mxu0 0.0
      %783 = vmatpush1.xpose.msra.mxu0 0.0
      %784 = vmatprep.subr.mxu0 0.0
      %785 = vmatpush1.xpose.msra.mxu0 0.0
      %786 = vmatprep.subr.mxu0 0.0
      %787 = vmatpush1.xpose.msra.mxu0 0.0
      %788 = vmatprep.subr.mxu0 0.0
      %789 = vmatpush1.xpose.msra.mxu0 0.0
      %790 = vmatprep.subr.mxu0 0.0
      %791 = vmatpush1.xpose.msra.mxu0 0.0
      %792 = vmatprep.subr.mxu0 0.0
      %793 = vmatpush1.xpose.msra.mxu0 0.0
      %794 = vmatprep.subr.mxu0 0.0
      %795 = vmatpush1.xpose.msra.mxu0 0.0
      %796 = vmatprep.subr.mxu0 0.0
      %797 = vmatpush1.xpose.msra.mxu0 0.0
      %798 = vmatprep.subr.mxu0 0.0
      %799 = vmatpush1.xpose.msra.mxu0 0.0
      %800 = vmatprep.subr.mxu0 0.0
      %801 = vmatpush1.xpose.msra.mxu0 0.0
      %802 = vmatprep.subr.mxu0 0.0
      %803 = vmatpush1.xpose.msra.mxu0 0.0
      %804 = vmatprep.subr.mxu0 0.0
      %805 = vmatpush1.xpose.msra.mxu0 0.0
      %806 = vmatprep.subr.mxu0 0.0
      %807 = vmatpush1.xpose.msra.mxu0 0.0
      %808 = vmatprep.subr.mxu0 0.0
      %809 = vmatpush1.xpose.msra.mxu0 0.0
      %810 = vmatprep.subr.mxu0 0.0
      %811 = vmatpush1.xpose.msra.mxu0 0.0
      %812 = vmatprep.subr.mxu0 0.0
      %813 = vmatpush1.xpose.msra.mxu0 0.0
      %814 = vmatprep.subr.mxu0 0.0
      %815 = vmatpush1.xpose.msra.mxu0 0.0
      %816 = vmatprep.subr.mxu0 0.0
      %817 = vmatpush1.xpose.msra.mxu0 0.0
      %818 = vmatprep.subr.mxu0 0.0
      %819 = vmatpush1.xpose.msra.mxu0 0.0
      %820 = vmatprep.subr.mxu0 0.0
      %821 = vmatpush1.xpose.msra.mxu0 0.0
      %822 = vmatprep.subr.mxu0 0.0
      %823 = vmatpush1.xpose.msra.mxu0 0.0
      %824 = vmatprep.subr.mxu0 0.0
      %825 = vmatpush1.xpose.msra.mxu0 0.0
      %826 = vmatprep.subr.mxu0 0.0
      %827 = vmatpush1.xpose.msra.mxu0 0.0
      %828 = vmatprep.subr.mxu0 0.0
      %829 = vmatpush1.xpose.msra.mxu0 0.0
      %830 = vmatprep.mubr.f32.mxu0 0.0
      %831 = vmatmul.mubr.f32.gmra.mrb[0].mxu0 %v762
      %v832 = vpop.f32.mrb[0].mxu0
      %v833 = vadd.f32 0.0, %v832
      %v834 = vpop.f32.mrb[0].mxu0
      %835 = vdwg.mxu0
      %v836 = vmul.f32 %v833, 0.35355338
      %v837 = vsel %vm669, %v836, -1e+10
      %v838 = vsel %vm593, %v837, -inf
      %839 = vmax.xlane.f32.xlu0 %v838
      %v840 = vpop.xlane.xlu0 %839
      %v841 = vsub.f32 %v837, %v840
      %v842 = vmul.f32 %v841, 1.442695
      %v843 = vpow.pop %v842
      %v844 = vsel %vm593, %v843, 0.0
      %845 = vadd.xlane.f32.xlu0 %v844
      %v846 = vpop.xlane.xlu0 %845
      %v847 = vrcp.pop %v846
      %v848 = vmul.f32 %v843, %v847
      %849 = vrot.lane.b32.xlu0 %v587, 56
      %v850 = vpop.permute.xlu0 %849
      %v853 = vsel %vm593, %v848, 0
      %855 = vmatprep.subr.mxu0 0.0
      %856 = vmatpush1.msra.mxu0 %v850
      %857 = vmatprep.subr.mxu0 0.0
      %858 = vmatpush1.msra.mxu0 0.0
      %859 = vmatprep.subr.mxu0 0.0
      %860 = vmatpush1.msra.mxu0 0.0
      %861 = vmatprep.subr.mxu0 0.0
      %862 = vmatpush1.msra.mxu0 0.0
      %863 = vmatprep.subr.mxu0 0.0
      %864 = vmatpush1.msra.mxu0 0.0
      %865 = vmatprep.subr.mxu0 0.0
      %866 = vmatpush1.msra.mxu0 0.0
      %867 = vmatprep.subr.mxu0 0.0
      %868 = vmatpush1.msra.mxu0 0.0
      %869 = vmatprep.subr.mxu0 0.0
      %870 = vmatpush1.msra.mxu0 0.0
      %871 = vmatprep.subr.mxu0 0.0
      %872 = vmatpush1.msra.mxu0 0.0
      %873 = vmatprep.subr.mxu0 0.0
      %874 = vmatpush1.msra.mxu0 0.0
      %875 = vmatprep.subr.mxu0 0.0
      %876 = vmatpush1.msra.mxu0 0.0
      %877 = vmatprep.subr.mxu0 0.0
      %878 = vmatpush1.msra.mxu0 0.0
      %879 = vmatprep.subr.mxu0 0.0
      %880 = vmatpush1.msra.mxu0 0.0
      %881 = vmatprep.subr.mxu0 0.0
      %882 = vmatpush1.msra.mxu0 0.0
      %883 = vmatprep.subr.mxu0 0.0
      %884 = vmatpush1.msra.mxu0 0.0
      %885 = vmatprep.subr.mxu0 0.0
      %886 = vmatpush1.msra.mxu0 0.0
      %887 = vmatprep.subr.mxu0 0.0
      %888 = vmatpush1.msra.mxu0 0.0
      %889 = vmatprep.subr.mxu0 0.0
      %890 = vmatpush1.msra.mxu0 0.0
      %891 = vmatprep.subr.mxu0 0.0
      %892 = vmatpush1.msra.mxu0 0.0
      %893 = vmatprep.subr.mxu0 0.0
      %894 = vmatpush1.msra.mxu0 0.0
      %895 = vmatprep.subr.mxu0 0.0
      %896 = vmatpush1.msra.mxu0 0.0
      %897 = vmatprep.subr.mxu0 0.0
      %898 = vmatpush1.msra.mxu0 0.0
      %899 = vmatprep.subr.mxu0 0.0
      %900 = vmatpush1.msra.mxu0 0.0
      %901 = vmatprep.subr.mxu0 0.0
      %902 = vmatpush1.msra.mxu0 0.0
      %903 = vmatprep.subr.mxu0 0.0
      %904 = vmatpush1.msra.mxu0 0.0
      %905 = vmatprep.subr.mxu0 0.0
      %906 = vmatpush1.msra.mxu0 0.0
      %907 = vmatprep.subr.mxu0 0.0
      %908 = vmatpush1.msra.mxu0 0.0
      %909 = vmatprep.subr.mxu0 0.0
      %910 = vmatpush1.msra.mxu0 0.0
      %911 = vmatprep.subr.mxu0 0.0
      %912 = vmatpush1.msra.mxu0 0.0
      %913 = vmatprep.subr.mxu0 0.0
      %914 = vmatpush1.msra.mxu0 0.0
      %915 = vmatprep.subr.mxu0 0.0
      %916 = vmatpush1.msra.mxu0 0.0
      %917 = vmatprep.subr.mxu0 0.0
      %918 = vmatpush1.msra.mxu0 0.0
      %919 = vmatprep.mubr.f32.mxu0 0.0
      %920 = vmatmul.mubr.f32.gmra.mrb[0].mxu0 %v853
      %v921 = vpop.f32.mrb[0].mxu0
      %v922 = vadd.f32 0.0, %v921
      %v923 = vpop.f32.mrb[0].mxu0
      %924 = vdwg.mxu0
      %925 = vrot.lane.b32.xlu0 %v587, 112
      %v926 = vpop.permute.xlu0 %925
      %927 = vrot.lane.b32.xlu0 %v587, 80
      %v928 = vpop.permute.xlu0 %927
      %v929 = vsel %vm593, %v926, 0
      %v931 = vsel %vm593, %v928, 0
      %933 = vmatprep.subr.mxu0 0.0
      %934 = vmatpush1.xpose.msra.mxu0 %v931
      %935 = vmatprep.subr.mxu0 0.0
      %936 = vmatpush1.xpose.msra.mxu0 0.0
      %937 = vmatprep.subr.mxu0 0.0
      %938 = vmatpush1.xpose.msra.mxu0 0.0
      %939 = vmatprep.subr.mxu0 0.0
      %940 = vmatpush1.xpose.msra.mxu0 0.0
      %941 = vmatprep.subr.mxu0 0.0
      %942 = vmatpush1.xpose.msra.mxu0 0.0
      %943 = vmatprep.subr.mxu0 0.0
      %944 = vmatpush1.xpose.msra.mxu0 0.0
      %945 = vmatprep.subr.mxu0 0.0
      %946 = vmatpush1.xpose.msra.mxu0 0.0
      %947 = vmatprep.subr.mxu0 0.0
      %948 = vmatpush1.xpose.msra.mxu0 0.0
      %949 = vmatprep.subr.mxu0 0.0
      %950 = vmatpush1.xpose.msra.mxu0 0.0
      %951 = vmatprep.subr.mxu0 0.0
      %952 = vmatpush1.xpose.msra.mxu0 0.0
      %953 = vmatprep.subr.mxu0 0.0
      %954 = vmatpush1.xpose.msra.mxu0 0.0
      %955 = vmatprep.subr.mxu0 0.0
      %956 = vmatpush1.xpose.msra.mxu0 0.0
      %957 = vmatprep.subr.mxu0 0.0
      %958 = vmatpush1.xpose.msra.mxu0 0.0
      %959 = vmatprep.subr.mxu0 0.0
      %960 = vmatpush1.xpose.msra.mxu0 0.0
      %961 = vmatprep.subr.mxu0 0.0
      %962 = vmatpush1.xpose.msra.mxu0 0.0
      %963 = vmatprep.subr.mxu0 0.0
      %964 = vmatpush1.xpose.msra.mxu0 0.0
      %965 = vmatprep.subr.mxu0 0.0
      %966 = vmatpush1.xpose.msra.mxu0 0.0
      %967 = vmatprep.subr.mxu0 0.0
      %968 = vmatpush1.xpose.msra.mxu0 0.0
      %969 = vmatprep.subr.mxu0 0.0
      %970 = vmatpush1.xpose.msra.mxu0 0.0
      %971 = vmatprep.subr.mxu0 0.0
      %972 = vmatpush1.xpose.msra.mxu0 0.0
      %973 = vmatprep.subr.mxu0 0.0
      %974 = vmatpush1.xpose.msra.mxu0 0.0
      %975 = vmatprep.subr.mxu0 0.0
      %976 = vmatpush1.xpose.msra.mxu0 0.0
      %977 = vmatprep.subr.mxu0 0.0
      %978 = vmatpush1.xpose.msra.mxu0 0.0
      %979 = vmatprep.subr.mxu0 0.0
      %980 = vmatpush1.xpose.msra.mxu0 0.0
      %981 = vmatprep.subr.mxu0 0.0
      %982 = vmatpush1.xpose.msra.mxu0 0.0
      %983 = vmatprep.subr.mxu0 0.0
      %984 = vmatpush1.xpose.msra.mxu0 0.0
      %985 = vmatprep.subr.mxu0 0.0
      %986 = vmatpush1.xpose.msra.mxu0 0.0
      %987 = vmatprep.subr.mxu0 0.0
      %988 = vmatpush1.xpose.msra.mxu0 0.0
      %989 = vmatprep.subr.mxu0 0.0
      %990 = vmatpush1.xpose.msra.mxu0 0.0
      %991 = vmatprep.subr.mxu0 0.0
      %992 = vmatpush1.xpose.msra.mxu0 0.0
      %993 = vmatprep.subr.mxu0 0.0
      %994 = vmatpush1.xpose.msra.mxu0 0.0
      %995 = vmatprep.subr.mxu0 0.0
      %996 = vmatpush1.xpose.msra.mxu0 0.0
      %997 = vmatprep.mubr.f32.mxu0 0.0
      %998 = vmatmul.mubr.f32.gmra.mrb[0].mxu0 %v929
      %v999 = vpop.f32.mrb[0].mxu0
      %v1000 = vadd.f32 0.0, %v999
      %v1001 = vpop.f32.mrb[0].mxu0
      %1002 = vdwg.mxu0
      %v1003 = vmul.f32 %v1000, 0.35355338
      %v1004 = vsel %vm669, %v1003, -1e+10
      %v1005 = vsel %vm593, %v1004, -inf
      %1006 = vmax.xlane.f32.xlu0 %v1005
      %v1007 = vpop.xlane.xlu0 %1006
      %v1008 = vsub.f32 %v1004, %v1007
      %v1009 = vmul.f32 %v1008, 1.442695
      %v1010 = vpow.pop %v1009
      %v1011 = vsel %vm593, %v1010, 0.0
      %1012 = vadd.xlane.f32.xlu0 %v1011
      %v1013 = vpop.xlane.xlu0 %1012
      %v1014 = vrcp.pop %v1013
      %v1015 = vmul.f32 %v1010, %v1014
      %1016 = vrot.lane.b32.xlu0 %v587, 48
      %v1017 = vpop.permute.xlu0 %1016
      %v1020 = vsel %vm593, %v1015, 0
      %1022 = vmatprep.subr.mxu0 0.0
      %1023 = vmatpush1.msra.mxu0 %v1017
      %1024 = vmatprep.subr.mxu0 0.0
      %1025 = vmatpush1.msra.mxu0 0.0
      %1026 = vmatprep.subr.mxu0 0.0
      %1027 = vmatpush1.msra.mxu0 0.0
      %1028 = vmatprep.subr.mxu0 0.0
      %1029 = vmatpush1.msra.mxu0 0.0
      %1030 = vmatprep.subr.mxu0 0.0
      %1031 = vmatpush1.msra.mxu0 0.0
      %1032 = vmatprep.subr.mxu0 0.0
      %1033 = vmatpush1.msra.mxu0 0.0
      %1034 = vmatprep.subr.mxu0 0.0
      %1035 = vmatpush1.msra.mxu0 0.0
      %1036 = vmatprep.subr.mxu0 0.0
      %1037 = vmatpush1.msra.mxu0 0.0
      %1038 = vmatprep.subr.mxu0 0.0
      %1039 = vmatpush1.msra.mxu0 0.0
      %1040 = vmatprep.subr.mxu0 0.0
      %1041 = vmatpush1.msra.mxu0 0.0
      %1042 = vmatprep.subr.mxu0 0.0
      %1043 = vmatpush1.msra.mxu0 0.0
      %1044 = vmatprep.subr.mxu0 0.0
      %1045 = vmatpush1.msra.mxu0 0.0
      %1046 = vmatprep.subr.mxu0 0.0
      %1047 = vmatpush1.msra.mxu0 0.0
      %1048 = vmatprep.subr.mxu0 0.0
      %1049 = vmatpush1.msra.mxu0 0.0
      %1050 = vmatprep.subr.mxu0 0.0
      %1051 = vmatpush1.msra.mxu0 0.0
      %1052 = vmatprep.subr.mxu0 0.0
      %1053 = vmatpush1.msra.mxu0 0.0
      %1054 = vmatprep.subr.mxu0 0.0
      %1055 = vmatpush1.msra.mxu0 0.0
      %1056 = vmatprep.subr.mxu0 0.0
      %1057 = vmatpush1.msra.mxu0 0.0
      %1058 = vmatprep.subr.mxu0 0.0
      %1059 = vmatpush1.msra.mxu0 0.0
      %1060 = vmatprep.subr.mxu0 0.0
      %1061 = vmatpush1.msra.mxu0 0.0
      %1062 = vmatprep.subr.mxu0 0.0
      %1063 = vmatpush1.msra.mxu0 0.0
      %1064 = vmatprep.subr.mxu0 0.0
      %1065 = vmatpush1.msra.mxu0 0.0
      %1066 = vmatprep.subr.mxu0 0.0
      %1067 = vmatpush1.msra.mxu0 0.0
      %1068 = vmatprep.subr.mxu0 0.0
      %1069 = vmatpush1.msra.mxu0 0.0
      %1070 = vmatprep.subr.mxu0 0.0
      %1071 = vmatpush1.msra.mxu0 0.0
      %1072 = vmatprep.subr.mxu0 0.0
      %1073 = vmatpush1.msra.mxu0 0.0
      %1074 = vmatprep.subr.mxu0 0.0
      %1075 = vmatpush1.msra.mxu0 0.0
      %1076 = vmatprep.subr.mxu0 0.0
      %1077 = vmatpush1.msra.mxu0 0.0
      %1078 = vmatprep.subr.mxu0 0.0
      %1079 = vmatpush1.msra.mxu0 0.0
      %1080 = vmatprep.subr.mxu0 0.0
      %1081 = vmatpush1.msra.mxu0 0.0
      %1082 = vmatprep.subr.mxu0 0.0
      %1083 = vmatpush1.msra.mxu0 0.0
      %1084 = vmatprep.subr.mxu0 0.0
      %1085 = vmatpush1.msra.mxu0 0.0
      %1086 = vmatprep.mubr.f32.mxu0 0.0
      %1087 = vmatmul.mubr.f32.gmra.mrb[0].mxu0 %v1020
      %v1088 = vpop.f32.mrb[0].mxu0
      %v1089 = vadd.f32 0.0, %v1088
      %v1090 = vpop.f32.mrb[0].mxu0
      %1091 = vdwg.mxu0
      %1092 = vrot.lane.b32.xlu0 %v587, 104
      %v1093 = vpop.permute.xlu0 %1092
      %1094 = vrot.lane.b32.xlu0 %v587, 72
      %v1095 = vpop.permute.xlu0 %1094
      %v1096 = vsel %vm593, %v1093, 0
      %v1098 = vsel %vm593, %v1095, 0
      %1100 = vmatprep.subr.mxu0 0.0
      %1101 = vmatpush1.xpose.msra.mxu0 %v1098
      %1102 = vmatprep.subr.mxu0 0.0
      %1103 = vmatpush1.xpose.msra.mxu0 0.0
      %1104 = vmatprep.subr.mxu0 0.0
      %1105 = vmatpush1.xpose.msra.mxu0 0.0
      %1106 = vmatprep.subr.mxu0 0.0
      %1107 = vmatpush1.xpose.msra.mxu0 0.0
      %1108 = vmatprep.subr.mxu0 0.0
      %1109 = vmatpush1.xpose.msra.mxu0 0.0
      %1110 = vmatprep.subr.mxu0 0.0
      %1111 = vmatpush1.xpose.msra.mxu0 0.0
      %1112 = vmatprep.subr.mxu0 0.0
      %1113 = vmatpush1.xpose.msra.mxu0 0.0
      %1114 = vmatprep.subr.mxu0 0.0
      %1115 = vmatpush1.xpose.msra.mxu0 0.0
      %1116 = vmatprep.subr.mxu0 0.0
      %1117 = vmatpush1.xpose.msra.mxu0 0.0
      %1118 = vmatprep.subr.mxu0 0.0
      %1119 = vmatpush1.xpose.msra.mxu0 0.0
      %1120 = vmatprep.subr.mxu0 0.0
      %1121 = vmatpush1.xpose.msra.mxu0 0.0
      %1122 = vmatprep.subr.mxu0 0.0
      %1123 = vmatpush1.xpose.msra.mxu0 0.0
      %1124 = vmatprep.subr.mxu0 0.0
      %1125 = vmatpush1.xpose.msra.mxu0 0.0
      %1126 = vmatprep.subr.mxu0 0.0
      %1127 = vmatpush1.xpose.msra.mxu0 0.0
      %1128 = vmatprep.subr.mxu0 0.0
      %1129 = vmatpush1.xpose.msra.mxu0 0.0
      %1130 = vmatprep.subr.mxu0 0.0
      %1131 = vmatpush1.xpose.msra.mxu0 0.0
      %1132 = vmatprep.subr.mxu0 0.0
      %1133 = vmatpush1.xpose.msra.mxu0 0.0
      %1134 = vmatprep.subr.mxu0 0.0
      %1135 = vmatpush1.xpose.msra.mxu0 0.0
      %1136 = vmatprep.subr.mxu0 0.0
      %1137 = vmatpush1.xpose.msra.mxu0 0.0
      %1138 = vmatprep.subr.mxu0 0.0
      %1139 = vmatpush1.xpose.msra.mxu0 0.0
      %1140 = vmatprep.subr.mxu0 0.0
      %1141 = vmatpush1.xpose.msra.mxu0 0.0
      %1142 = vmatprep.subr.mxu0 0.0
      %1143 = vmatpush1.xpose.msra.mxu0 0.0
      %1144 = vmatprep.subr.mxu0 0.0
      %1145 = vmatpush1.xpose.msra.mxu0 0.0
      %1146 = vmatprep.subr.mxu0 0.0
      %1147 = vmatpush1.xpose.msra.mxu0 0.0
      %1148 = vmatprep.subr.mxu0 0.0
      %1149 = vmatpush1.xpose.msra.mxu0 0.0
      %1150 = vmatprep.subr.mxu0 0.0
      %1151 = vmatpush1.xpose.msra.mxu0 0.0
      %1152 = vmatprep.subr.mxu0 0.0
      %1153 = vmatpush1.xpose.msra.mxu0 0.0
      %1154 = vmatprep.subr.mxu0 0.0
      %1155 = vmatpush1.xpose.msra.mxu0 0.0
      %1156 = vmatprep.subr.mxu0 0.0
      %1157 = vmatpush1.xpose.msra.mxu0 0.0
      %1158 = vmatprep.subr.mxu0 0.0
      %1159 = vmatpush1.xpose.msra.mxu0 0.0
      %1160 = vmatprep.subr.mxu0 0.0
      %1161 = vmatpush1.xpose.msra.mxu0 0.0
      %1162 = vmatprep.subr.mxu0 0.0
      %1163 = vmatpush1.xpose.msra.mxu0 0.0
      %1164 = vmatprep.mubr.f32.mxu0 0.0
      %1165 = vmatmul.mubr.f32.gmra.mrb[0].mxu0 %v1096
      %v1166 = vpop.f32.mrb[0].mxu0
      %v1167 = vadd.f32 0.0, %v1166
      %v1168 = vpop.f32.mrb[0].mxu0
      %1169 = vdwg.mxu0
      %v1170 = vmul.f32 %v1167, 0.35355338
      %v1171 = vsel %vm669, %v1170, -1e+10
      %v1172 = vsel %vm593, %v1171, -inf
      %1173 = vmax.xlane.f32.xlu0 %v1172
      %v1174 = vpop.xlane.xlu0 %1173
      %v1175 = vsub.f32 %v1171, %v1174
      %v1176 = vmul.f32 %v1175, 1.442695
      %v1177 = vpow.pop %v1176
      %v1178 = vsel %vm593, %v1177, 0.0
      %1179 = vadd.xlane.f32.xlu0 %v1178
      %v1180 = vpop.xlane.xlu0 %1179
      %v1181 = vrcp.pop %v1180
      %v1182 = vmul.f32 %v1177, %v1181
      %1183 = vrot.lane.b32.xlu0 %v587, 40
      %v1184 = vpop.permute.xlu0 %1183
      %v1187 = vsel %vm593, %v1182, 0
      %1189 = vmatprep.subr.mxu0 0.0
      %1190 = vmatpush1.msra.mxu0 %v1184
      %1191 = vmatprep.subr.mxu0 0.0
      %1192 = vmatpush1.msra.mxu0 0.0
      %1193 = vmatprep.subr.mxu0 0.0
      %1194 = vmatpush1.msra.mxu0 0.0
      %1195 = vmatprep.subr.mxu0 0.0
      %1196 = vmatpush1.msra.mxu0 0.0
      %1197 = vmatprep.subr.mxu0 0.0
      %1198 = vmatpush1.msra.mxu0 0.0
      %1199 = vmatprep.subr.mxu0 0.0
      %1200 = vmatpush1.msra.mxu0 0.0
      %1201 = vmatprep.subr.mxu0 0.0
      %1202 = vmatpush1.msra.mxu0 0.0
      %1203 = vmatprep.subr.mxu0 0.0
      %1204 = vmatpush1.msra.mxu0 0.0
      %1205 = vmatprep.subr.mxu0 0.0
      %1206 = vmatpush1.msra.mxu0 0.0
      %1207 = vmatprep.subr.mxu0 0.0
      %1208 = vmatpush1.msra.mxu0 0.0
      %1209 = vmatprep.subr.mxu0 0.0
      %1210 = vmatpush1.msra.mxu0 0.0
      %1211 = vmatprep.subr.mxu0 0.0
      %1212 = vmatpush1.msra.mxu0 0.0
      %1213 = vmatprep.subr.mxu0 0.0
      %1214 = vmatpush1.msra.mxu0 0.0
      %1215 = vmatprep.subr.mxu0 0.0
      %1216 = vmatpush1.msra.mxu0 0.0
      %1217 = vmatprep.subr.mxu0 0.0
      %1218 = vmatpush1.msra.mxu0 0.0
      %1219 = vmatprep.subr.mxu0 0.0
      %1220 = vmatpush1.msra.mxu0 0.0
      %1221 = vmatprep.subr.mxu0 0.0
      %1222 = vmatpush1.msra.mxu0 0.0
      %1223 = vmatprep.subr.mxu0 0.0
      %1224 = vmatpush1.msra.mxu0 0.0
      %1225 = vmatprep.subr.mxu0 0.0
      %1226 = vmatpush1.msra.mxu0 0.0
      %1227 = vmatprep.subr.mxu0 0.0
      %1228 = vmatpush1.msra.mxu0 0.0
      %1229 = vmatprep.subr.mxu0 0.0
      %1230 = vmatpush1.msra.mxu0 0.0
      %1231 = vmatprep.subr.mxu0 0.0
      %1232 = vmatpush1.msra.mxu0 0.0
      %1233 = vmatprep.subr.mxu0 0.0
      %1234 = vmatpush1.msra.mxu0 0.0
      %1235 = vmatprep.subr.mxu0 0.0
      %1236 = vmatpush1.msra.mxu0 0.0
      %1237 = vmatprep.subr.mxu0 0.0
      %1238 = vmatpush1.msra.mxu0 0.0
      %1239 = vmatprep.subr.mxu0 0.0
      %1240 = vmatpush1.msra.mxu0 0.0
      %1241 = vmatprep.subr.mxu0 0.0
      %1242 = vmatpush1.msra.mxu0 0.0
      %1243 = vmatprep.subr.mxu0 0.0
      %1244 = vmatpush1.msra.mxu0 0.0
      %1245 = vmatprep.subr.mxu0 0.0
      %1246 = vmatpush1.msra.mxu0 0.0
      %1247 = vmatprep.subr.mxu0 0.0
      %1248 = vmatpush1.msra.mxu0 0.0
      %1249 = vmatprep.subr.mxu0 0.0
      %1250 = vmatpush1.msra.mxu0 0.0
      %1251 = vmatprep.subr.mxu0 0.0
      %1252 = vmatpush1.msra.mxu0 0.0
      %1253 = vmatprep.mubr.f32.mxu0 0.0
      %1254 = vmatmul.mubr.f32.gmra.mrb[0].mxu0 %v1187
      %v1255 = vpop.f32.mrb[0].mxu0
      %v1256 = vadd.f32 0.0, %v1255
      %v1257 = vpop.f32.mrb[0].mxu0
      %1258 = vdwg.mxu0
      %1260 = vrot.lane.b32.xlu0 %v922, 8
      %v1261 = vpop.permute.xlu0 %1260
      %1264 = vrot.lane.b32.xlu0 %v1089, 16
      %v1265 = vpop.permute.xlu0 %1264
      %1268 = vrot.lane.b32.xlu0 %v1256, 24
      %v1269 = vpop.permute.xlu0 %1268
      %v1271 = vsel %vm593, %v755, %v1261
      %vm1272 = vcmask 130048
      %v1273 = vsel %vm1272, %v1271, %v1265
      %vm1274 = vcmask 195584
      %v1275 = vsel %vm1274, %v1273, %v1269
      %v1277 = vlaneseq
      %v1278 = vshrl.u32 %v1277, 7
      %v1279 = vsub.s32 0, %v1278
      %v1280 = vrot.slane %v489, %v1279
      %v1283 = vsel %vm516, %v1275, 0
      %1285 = vmatprep.subr.mxu0 0.0
      %1286 = vmatpush1.msra.mxu0 %v485
      %1287 = vmatprep.subr.mxu0 0.0
      %1288 = vmatpush1.msra.mxu0 %v486
      %1289 = vmatprep.subr.mxu0 0.0
      %1290 = vmatpush1.msra.mxu0 %v487
      %1291 = vmatprep.subr.mxu0 0.0
      %1292 = vmatpush1.msra.mxu0 %v488
      %1293 = vmatprep.subr.mxu0 0.0
      %1294 = vmatpush1.msra.mxu0 0.0
      %1295 = vmatprep.subr.mxu0 0.0
      %1296 = vmatpush1.msra.mxu0 0.0
      %1297 = vmatprep.subr.mxu0 0.0
      %1298 = vmatpush1.msra.mxu0 0.0
      %1299 = vmatprep.subr.mxu0 0.0
      %1300 = vmatpush1.msra.mxu0 0.0
      %1301 = vmatprep.subr.mxu0 0.0
      %1302 = vmatpush1.msra.mxu0 0.0
      %1303 = vmatprep.subr.mxu0 0.0
      %1304 = vmatpush1.msra.mxu0 0.0
      %1305 = vmatprep.subr.mxu0 0.0
      %1306 = vmatpush1.msra.mxu0 0.0
      %1307 = vmatprep.subr.mxu0 0.0
      %1308 = vmatpush1.msra.mxu0 0.0
      %1309 = vmatprep.subr.mxu0 0.0
      %1310 = vmatpush1.msra.mxu0 0.0
      %1311 = vmatprep.subr.mxu0 0.0
      %1312 = vmatpush1.msra.mxu0 0.0
      %1313 = vmatprep.subr.mxu0 0.0
      %1314 = vmatpush1.msra.mxu0 0.0
      %1315 = vmatprep.subr.mxu0 0.0
      %1316 = vmatpush1.msra.mxu0 0.0
      %1317 = vmatprep.subr.mxu0 0.0
      %1318 = vmatpush1.msra.mxu0 0.0
      %1319 = vmatprep.subr.mxu0 0.0
      %1320 = vmatpush1.msra.mxu0 0.0
      %1321 = vmatprep.subr.mxu0 0.0
      %1322 = vmatpush1.msra.mxu0 0.0
      %1323 = vmatprep.subr.mxu0 0.0
      %1324 = vmatpush1.msra.mxu0 0.0
      %1325 = vmatprep.subr.mxu0 0.0
      %1326 = vmatpush1.msra.mxu0 0.0
      %1327 = vmatprep.subr.mxu0 0.0
      %1328 = vmatpush1.msra.mxu0 0.0
      %1329 = vmatprep.subr.mxu0 0.0
      %1330 = vmatpush1.msra.mxu0 0.0
      %1331 = vmatprep.subr.mxu0 0.0
      %1332 = vmatpush1.msra.mxu0 0.0
      %1333 = vmatprep.subr.mxu0 0.0
      %1334 = vmatpush1.msra.mxu0 0.0
      %1335 = vmatprep.subr.mxu0 0.0
      %1336 = vmatpush1.msra.mxu0 0.0
      %1337 = vmatprep.subr.mxu0 0.0
      %1338 = vmatpush1.msra.mxu0 0.0
      %1339 = vmatprep.subr.mxu0 0.0
      %1340 = vmatpush1.msra.mxu0 0.0
      %1341 = vmatprep.subr.mxu0 0.0
      %1342 = vmatpush1.msra.mxu0 0.0
      %1343 = vmatprep.subr.mxu0 0.0
      %1344 = vmatpush1.msra.mxu0 0.0
      %1345 = vmatprep.subr.mxu0 0.0
      %1346 = vmatpush1.msra.mxu0 0.0
      %1347 = vmatprep.subr.mxu0 0.0
      %1348 = vmatpush1.msra.mxu0 0.0
      %1349 = vmatprep.mubr.f32.mxu0 0.0
      %1350 = vmatmul.mubr.f32.gmra.mrb[0].mxu0 %v1283
      %v1351 = vpop.f32.mrb[0].mxu0
      %v1352 = vadd.f32 %v1280, %v1351
      %v1353 = vpop.f32.mrb[0].mxu0
      %1354 = vdwg.mxu0
      %v1355 = vadd.f32 %v508, %v1352
      %v1356 = vsel %vm516, %v1355, 0.0
      %1357 = vadd.xlane.f32.xlu0 %v1356
      %v1358 = vpop.xlane.xlu0 %1357
      %v1359 = vrcp.pop 32.0
      %v1360 = vmul.f32 %v1358, %v1359
      %v1361 = vsub.f32 %v1355, %v1360
      %v1362 = vmul.f32 %v1361, %v1361
      %v1363 = vsel %vm516, %v1362, 0.0
      %1364 = vadd.xlane.f32.xlu0 %v1363
      %v1365 = vpop.xlane.xlu0 %1364
      %v1366 = vmul.f32 %v1365, %v1359
      %v1367 = vadd.f32 %v1366, 1e-05
      %v1368 = vrsqrt.pop %v1367
      %v1369 = vmul.f32 %v1361, %v1368
      %v1371 = vlaneseq
      %v1372 = vshrl.u32 %v1371, 7
      %v1373 = vsub.s32 0, %v1372
      %v1374 = vrot.slane %v490, %v1373
      %v1376 = vmul.f32 %v1369, %v1374
      %v1378 = vlaneseq
      %v1379 = vshrl.u32 %v1378, 7
      %v1380 = vsub.s32 0, %v1379
      %v1381 = vrot.slane %v491, %v1380
      %v1383 = vadd.f32 %v1376, %v1381
      %v1385 = vlaneseq
      %v1386 = vshrl.u32 %v1385, 7
      %v1387 = vsub.s32 0, %v1386
      %v1388 = vrot.slane %v496, %v1387
      %v1391 = vsel %vm516, %v1383, 0
      %1393 = vmatprep.subr.mxu0 0.0
      %1394 = vmatpush1.msra.mxu0 %v492
      %1395 = vmatprep.subr.mxu0 0.0
      %1396 = vmatpush1.msra.mxu0 %v493
      %1397 = vmatprep.subr.mxu0 0.0
      %1398 = vmatpush1.msra.mxu0 %v494
      %1399 = vmatprep.subr.mxu0 0.0
      %1400 = vmatpush1.msra.mxu0 %v495
      %1401 = vmatprep.subr.mxu0 0.0
      %1402 = vmatpush1.msra.mxu0 0.0
      %1403 = vmatprep.subr.mxu0 0.0
      %1404 = vmatpush1.msra.mxu0 0.0
      %1405 = vmatprep.subr.mxu0 0.0
      %1406 = vmatpush1.msra.mxu0 0.0
      %1407 = vmatprep.subr.mxu0 0.0
      %1408 = vmatpush1.msra.mxu0 0.0
      %1409 = vmatprep.subr.mxu0 0.0
      %1410 = vmatpush1.msra.mxu0 0.0
      %1411 = vmatprep.subr.mxu0 0.0
      %1412 = vmatpush1.msra.mxu0 0.0
      %1413 = vmatprep.subr.mxu0 0.0
      %1414 = vmatpush1.msra.mxu0 0.0
      %1415 = vmatprep.subr.mxu0 0.0
      %1416 = vmatpush1.msra.mxu0 0.0
      %1417 = vmatprep.subr.mxu0 0.0
      %1418 = vmatpush1.msra.mxu0 0.0
      %1419 = vmatprep.subr.mxu0 0.0
      %1420 = vmatpush1.msra.mxu0 0.0
      %1421 = vmatprep.subr.mxu0 0.0
      %1422 = vmatpush1.msra.mxu0 0.0
      %1423 = vmatprep.subr.mxu0 0.0
      %1424 = vmatpush1.msra.mxu0 0.0
      %1425 = vmatprep.subr.mxu0 0.0
      %1426 = vmatpush1.msra.mxu0 0.0
      %1427 = vmatprep.subr.mxu0 0.0
      %1428 = vmatpush1.msra.mxu0 0.0
      %1429 = vmatprep.subr.mxu0 0.0
      %1430 = vmatpush1.msra.mxu0 0.0
      %1431 = vmatprep.subr.mxu0 0.0
      %1432 = vmatpush1.msra.mxu0 0.0
      %1433 = vmatprep.subr.mxu0 0.0
      %1434 = vmatpush1.msra.mxu0 0.0
      %1435 = vmatprep.subr.mxu0 0.0
      %1436 = vmatpush1.msra.mxu0 0.0
      %1437 = vmatprep.subr.mxu0 0.0
      %1438 = vmatpush1.msra.mxu0 0.0
      %1439 = vmatprep.subr.mxu0 0.0
      %1440 = vmatpush1.msra.mxu0 0.0
      %1441 = vmatprep.subr.mxu0 0.0
      %1442 = vmatpush1.msra.mxu0 0.0
      %1443 = vmatprep.subr.mxu0 0.0
      %1444 = vmatpush1.msra.mxu0 0.0
      %1445 = vmatprep.subr.mxu0 0.0
      %1446 = vmatpush1.msra.mxu0 0.0
      %1447 = vmatprep.subr.mxu0 0.0
      %1448 = vmatpush1.msra.mxu0 0.0
      %1449 = vmatprep.subr.mxu0 0.0
      %1450 = vmatpush1.msra.mxu0 0.0
      %1451 = vmatprep.subr.mxu0 0.0
      %1452 = vmatpush1.msra.mxu0 0.0
      %1453 = vmatprep.subr.mxu0 0.0
      %1454 = vmatpush1.msra.mxu0 0.0
      %1455 = vmatprep.subr.mxu0 0.0
      %1456 = vmatpush1.msra.mxu0 0.0
      %1457 = vmatprep.mubr.f32.mxu0 0.0
      %1458 = vmatmul.mubr.f32.gmra.mrb[0].mxu0 %v1391
      %v1459 = vpop.f32.mrb[0].mxu0
      %v1460 = vadd.f32 %v1388, %v1459
      %v1461 = vpop.f32.mrb[0].mxu0
      %1462 = vdwg.mxu0
      %v1463 = vmax.f32 %v1460, 0.0
      %v1465 = vlaneseq
      %v1466 = vshrl.u32 %v1465, 7
      %v1467 = vsub.s32 0, %v1466
      %v1468 = vrot.slane %v505, %v1467
      %vm1470 = vcmask 523264
      %v1472 = vsel %vm1470, %v1463, 0
      %1474 = vmatprep.subr.mxu0 0.0
      %1475 = vmatpush1.msra.mxu0 %v497
      %1476 = vmatprep.subr.mxu0 0.0
      %1477 = vmatpush1.msra.mxu0 %v498
      %1478 = vmatprep.subr.mxu0 0.0
      %1479 = vmatpush1.msra.mxu0 %v499
      %1480 = vmatprep.subr.mxu0 0.0
      %1481 = vmatpush1.msra.mxu0 %v500
      %1482 = vmatprep.subr.mxu0 0.0
      %1483 = vmatpush1.msra.mxu0 %v501
      %1484 = vmatprep.subr.mxu0 0.0
      %1485 = vmatpush1.msra.mxu0 %v502
      %1486 = vmatprep.subr.mxu0 0.0
      %1487 = vmatpush1.msra.mxu0 %v503
      %1488 = vmatprep.subr.mxu0 0.0
      %1489 = vmatpush1.msra.mxu0 %v504
      %1490 = vmatprep.subr.mxu0 0.0
      %1491 = vmatpush1.msra.mxu0 0.0
      %1492 = vmatprep.subr.mxu0 0.0
      %1493 = vmatpush1.msra.mxu0 0.0
      %1494 = vmatprep.subr.mxu0 0.0
      %1495 = vmatpush1.msra.mxu0 0.0
      %1496 = vmatprep.subr.mxu0 0.0
      %1497 = vmatpush1.msra.mxu0 0.0
      %1498 = vmatprep.subr.mxu0 0.0
      %1499 = vmatpush1.msra.mxu0 0.0
      %1500 = vmatprep.subr.mxu0 0.0
      %1501 = vmatpush1.msra.mxu0 0.0
      %1502 = vmatprep.subr.mxu0 0.0
      %1503 = vmatpush1.msra.mxu0 0.0
      %1504 = vmatprep.subr.mxu0 0.0
      %1505 = vmatpush1.msra.mxu0 0.0
      %1506 = vmatprep.subr.mxu0 0.0
      %1507 = vmatpush1.msra.mxu0 0.0
      %1508 = vmatprep.subr.mxu0 0.0
      %1509 = vmatpush1.msra.mxu0 0.0
      %1510 = vmatprep.subr.mxu0 0.0
      %1511 = vmatpush1.msra.mxu0 0.0
      %1512 = vmatprep.subr.mxu0 0.0
      %1513 = vmatpush1.msra.mxu0 0.0
      %1514 = vmatprep.subr.mxu0 0.0
      %1515 = vmatpush1.msra.mxu0 0.0
      %1516 = vmatprep.subr.mxu0 0.0
      %1517 = vmatpush1.msra.mxu0 0.0
      %1518 = vmatprep.subr.mxu0 0.0
      %1519 = vmatpush1.msra.mxu0 0.0
      %1520 = vmatprep.subr.mxu0 0.0
      %1521 = vmatpush1.msra.mxu0 0.0
      %1522 = vmatprep.subr.mxu0 0.0
      %1523 = vmatpush1.msra.mxu0 0.0
      %1524 = vmatprep.subr.mxu0 0.0
      %1525 = vmatpush1.msra.mxu0 0.0
      %1526 = vmatprep.subr.mxu0 0.0
      %1527 = vmatpush1.msra.mxu0 0.0
      %1528 = vmatprep.subr.mxu0 0.0
      %1529 = vmatpush1.msra.mxu0 0.0
      %1530 = vmatprep.subr.mxu0 0.0
      %1531 = vmatpush1.msra.mxu0 0.0
      %1532 = vmatprep.subr.mxu0 0.0
      %1533 = vmatpush1.msra.mxu0 0.0
      %1534 = vmatprep.subr.mxu0 0.0
      %1535 = vmatpush1.msra.mxu0 0.0
      %1536 = vmatprep.subr.mxu0 0.0
      %1537 = vmatpush1.msra.mxu0 0.0
      %1538 = vmatprep.mubr.f32.mxu0 0.0
      %1539 = vmatmul.mubr.f32.gmra.mrb[0].mxu0 %v1472
      %v1540 = vpop.f32.mrb[0].mxu0
      %v1541 = vadd.f32 %v1468, %v1540
      %v1542 = vpop.f32.mrb[0].mxu0
      %1543 = vdwg.mxu0
      %v1544 = vadd.f32 %v1383, %v1541
      %v1545 = vsel %vm516, %v1544, 0.0
      %1546 = vadd.xlane.f32.xlu0 %v1545
      %v1547 = vpop.xlane.xlu0 %1546
      %v1548 = vmul.f32 %v1547, %v1359
      %v1549 = vsub.f32 %v1544, %v1548
      %v1550 = vmul.f32 %v1549, %v1549
      %v1551 = vsel %vm516, %v1550, 0.0
      %1552 = vadd.xlane.f32.xlu0 %v1551
      %v1553 = vpop.xlane.xlu0 %1552
      %v1554 = vmul.f32 %v1553, %v1359
      %v1555 = vadd.f32 %v1554, 1e-05
      %v1556 = vrsqrt.pop %v1555
      %v1557 = vmul.f32 %v1549, %v1556
      %v1559 = vlaneseq
      %v1560 = vshrl.u32 %v1559, 7
      %v1561 = vsub.s32 0, %v1560
      %v1562 = vrot.slane %v506, %v1561
      %v1564 = vmul.f32 %v1557, %v1562
      %v1566 = vlaneseq
      %v1567 = vshrl.u32 %v1566, 7
      %v1568 = vsub.s32 0, %v1567
      %v1569 = vrot.slane %v507, %v1568
      %v1571 = vadd.f32 %v1564, %v1569
      %1572 = vst.msk [vmem:[%s479] sm:$0xff] %vm516, %v1571
      %p1573 = scmp.lt.s32.totalorder %s25, 1
      %s1574 = scalar_select %p1573, %s25, 1
      %s1575 = smul.addr %s1574, 8
      %s1576 = scalar_lea.vmem %s14, %s1575
      // Predicated region
      $region77: #{seq2seq_forward.4} parent=75 // pred_check
        %p1577 = pneg %p347
      $region78: #{seq2seq_forward.4} parent=75 // pred_check_branch
        %1579 = sbr.rel (%p1577) target = $region80
      $region79: #{seq2seq_forward.4} parent=75 // pred_region
        _
      $region80: #{seq2seq_forward.4} parent=75 // pred_fallthru
        _
    $region76: #{seq2seq_forward.4} parent=5 // pred_fallthru
      _
    %p1580 = scmp.le.s32.totalorder 2, %s20
    // Predicated region
    $region81: #{seq2seq_forward.4} parent=5 // pred_check
      %p1581 = pneg %p1580
    $region82: #{seq2seq_forward.4} parent=5 // pred_check_branch
      %1583 = sbr.rel (%p1581) target = $region84
    $region83: #{seq2seq_forward.4} parent=5 // pred_region
      %s1584 = ssub.s32 %s20, 2
      // Predicated region
      $region85: #{seq2seq_forward.4} parent=83 // pred_check
        %p1585 = pneg %p353
      $region86: #{seq2seq_forward.4} parent=83 // pred_check_branch
        %1587 = sbr.rel (%p1585) target = $region88
      $region87: #{seq2seq_forward.4} parent=83 // pred_region
        %p1588 = scmp.lt.s32.totalorder %s26, 1
        %s1589 = scalar_select %p1588, %s26, 1
        %s1590 = smul.addr %s1589, 8
        %s1591 = scalar_lea.vmem %s14, %s1590
      $region88: #{seq2seq_forward.4} parent=83 // pred_fallthru
        _
    $region84: #{seq2seq_forward.4} parent=5 // pred_fallthru
      _
  $region6: #{seq2seq_forward.4} parent=0 // loop_footer
    %s24 = sadd.s32 1, %s20
  $region7: #{seq2seq_forward.4} parent=0 // loop_footer_branch
    %19 = sbr.rel target = $region3
  $region8: #{seq2seq_forward.4} parent=0 // loop_exit
    _

// kernel: seq2seq_forward.6
$region0: #{seq2seq_forward.6}
  #allocation0 [shape = 'u32[]', space=smem, size = 0x4, offset = 0x4, fixed_abs, tag = 'smem constant byte address 0x4 - core index']
  #allocation1 [shape = 'u32[144,128]{1,0:T(1,128)}', space=vmem, size = 0x12000, scoped, tag = 'internal scratch']
  %s0 = inlined_call_operand.vmem [shape: f32[2,8,32], index: 0, kind: input, shape index: {}]
  %s1 = inlined_call_operand.vmem [shape: f32[2,8,32], index: 1, kind: input, shape index: {}]
  %s2 = inlined_call_operand.vmem [shape: f32[2,8,8], index: 2, kind: input, shape index: {}]
  %s3 = inlined_call_operand.vmem [shape: f32[2,8,8], index: 3, kind: input, shape index: {}]
  %s4 = inlined_call_operand.vmem [shape: f32[32,96], index: 4, kind: input, shape index: {}]
  %s5 = inlined_call_operand.vmem [shape: f32[1,96], index: 5, kind: input, shape index: {}]
  %s6 = inlined_call_operand.vmem [shape: f32[32,32], index: 6, kind: input, shape index: {}]
  %s7 = inlined_call_operand.vmem [shape: f32[1,32], index: 7, kind: input, shape index: {}]
  %s8 = inlined_call_operand.vmem [shape: f32[1,32], index: 8, kind: input, shape index: {}]
  %s9 = inlined_call_operand.vmem [shape: f32[1,32], index: 9, kind: input, shape index: {}]
  %s10 = inlined_call_operand.vmem [shape: f32[32,32], index: 10, kind: input, shape index: {}]
  %s11 = inlined_call_operand.vmem [shape: f32[1,32], index: 11, kind: input, shape index: {}]
  %s12 = inlined_call_operand.vmem [shape: f32[32,64], index: 12, kind: input, shape index: {}]
  %s13 = inlined_call_operand.vmem [shape: f32[1,64], index: 13, kind: input, shape index: {}]
  %s14 = inlined_call_operand.vmem [shape: f32[32,32], index: 14, kind: input, shape index: {}]
  %s15 = inlined_call_operand.vmem [shape: f32[1,32], index: 15, kind: input, shape index: {}]
  %s16 = inlined_call_operand.vmem [shape: f32[1,32], index: 16, kind: input, shape index: {}]
  %s17 = inlined_call_operand.vmem [shape: f32[1,32], index: 17, kind: input, shape index: {}]
  %s18 = inlined_call_operand.vmem [shape: f32[32,64], index: 18, kind: input, shape index: {}]
  %s19 = inlined_call_operand.vmem [shape: f32[1,64], index: 19, kind: input, shape index: {}]
  %s20 = inlined_call_operand.vmem [shape: f32[64,32], index: 20, kind: input, shape index: {}]
  %s21 = inlined_call_operand.vmem [shape: f32[1,32], index: 21, kind: input, shape index: {}]
  %s22 = inlined_call_operand.vmem [shape: f32[1,32], index: 22, kind: input, shape index: {}]
  %s23 = inlined_call_operand.vmem [shape: f32[1,32], index: 23, kind: input, shape index: {}]
  %s24 = inlined_call_operand.vmem [shape: f32[2,8,32], index: 24, kind: output, shape index: {}]
  %s25 = sld [smem:[#allocation0]]
  $region129: #{seq2seq_forward.6} parent=0
    _
  %s27 = ssub.s32 1, %s25
  %s28 = scalar_select 0, %s27, %s25
  loop: start=0, step=1, limit=4
  $region2: #{seq2seq_forward.6} parent=0 // loop_pre_header
    _
  $region3: #{seq2seq_forward.6} parent=0 // loop_header
    %s30 = sphi 0, %s34
    %p31 = scmp.ge.s32.totalorder %s30, 4
    %s40 = sphi 0, %s42
    %s43 = sphi 0, %s40
    %s44 = sphi 0, %s43
    %s60 = sphi 0, %s44
    %s66 = sphi 0, %s68
    %s69 = sphi 0, %s66
    %s70 = sphi 0, %s69
    %s86 = sphi 0, %s70
    %s92 = sphi 0, %s94
    %s95 = sphi 0, %s92
    %s96 = sphi 0, %s95
    %s112 = sphi 0, %s96
    %s118 = sphi 0, %s120
    %s121 = sphi 0, %s118
    %s122 = sphi 0, %s121
    %s138 = sphi 0, %s122
    %s142 = sphi 0, %s142
    %s144 = sphi 0, %s142
    %s145 = sphi 0, %s144
    %s159 = sphi 0, %s145
    %s163 = sphi 0, %s163
    %s165 = sphi 0, %s163
    %s166 = sphi 0, %s165
    %s180 = sphi 0, %s166
    %s184 = sphi 0, %s184
    %s186 = sphi 0, %s184
    %s187 = sphi 0, %s186
    %s201 = sphi 0, %s187
    %s205 = sphi 0, %s205
    %s207 = sphi 0, %s205
    %s208 = sphi 0, %s207
    %s222 = sphi 0, %s208
    %s226 = sphi 0, %s226
    %s228 = sphi 0, %s226
    %s229 = sphi 0, %s228
    %s243 = sphi 0, %s229
    %s247 = sphi 0, %s247
    %s249 = sphi 0, %s247
    %s250 = sphi 0, %s249
    %s264 = sphi 0, %s250
    %s268 = sphi 0, %s268
    %s270 = sphi 0, %s268
    %s271 = sphi 0, %s270
    %s285 = sphi 0, %s271
    %s289 = sphi 0, %s289
    %s291 = sphi 0, %s289
    %s292 = sphi 0, %s291
    %s306 = sphi 0, %s292
    %s310 = sphi 0, %s310
    %s312 = sphi 0, %s310
    %s313 = sphi 0, %s312
    %s327 = sphi 0, %s313
    %s331 = sphi 0, %s331
    %s333 = sphi 0, %s331
    %s334 = sphi 0, %s333
    %s348 = sphi 0, %s334
    %s352 = sphi 0, %s352
    %s354 = sphi 0, %s352
    %s355 = sphi 0, %s354
    %s369 = sphi 0, %s355
    %s373 = sphi 0, %s373
    %s375 = sphi 0, %s373
    %s376 = sphi 0, %s375
    %s390 = sphi 0, %s376
    %s394 = sphi 0, %s394
    %s396 = sphi 0, %s394
    %s397 = sphi 0, %s396
    %s411 = sphi 0, %s397
    %s415 = sphi 0, %s415
    %s417 = sphi 0, %s415
    %s418 = sphi 0, %s417
    %s432 = sphi 0, %s418
    %s436 = sphi 0, %s436
    %s438 = sphi 0, %s436
    %s439 = sphi 0, %s438
    %s453 = sphi 0, %s439
    %s457 = sphi 0, %s457
    %s459 = sphi 0, %s457
    %s460 = sphi 0, %s459
    %s474 = sphi 0, %s460
    %s478 = sphi 0, %s478
    %s480 = sphi 0, %s478
    %s481 = sphi 0, %s480
    %s495 = sphi 0, %s481
    %s499 = sphi 0, %s499
    %s501 = sphi 0, %s499
    %s502 = sphi 0, %s501
    %s516 = sphi 0, %s502
    %s520 = sphi 0, %s520
    %s522 = sphi 0, %s520
    %s523 = sphi 0, %s522
    %s537 = sphi 0, %s523
    %s541 = sphi 0, %s541
    %s543 = sphi 0, %s541
    %s544 = sphi 0, %s543
    %s558 = sphi 0, %s544
    %s564 = sphi 0, %s566
    %s567 = sphi 0, %s564
    %s568 = sphi 0, %s567
    %s584 = sphi 0, %s568
  $region4: #{seq2seq_forward.6} parent=0 // loop_header_branch
    %33 = sbr.rel (%p31) target = $region8
  $region5: #{seq2seq_forward.6} parent=0 // loop_body
    %s35 = ssub.s32 %s30, 1
    %s36 = ssub.s32 %s30, 2
    %s37 = sadd.s32 %s30, 1
    %s38 = ssub.s32 %s30, %s37
    %p39 = scmp.eq.s32.totalorder %s38, 0
    %s41 = sadd.s32 %s40, 1
    %s42 = scalar_select %p39, %s40, %s41
    %p45 = pneg %p39
    %p46 = scmp.eq.s32.totalorder %s30, 1
    %p47 = por %p45, %p46
    %p48 = scmp.ne.s32.totalorder %s40, %s43
    %p49 = scmp.eq.s32.totalorder %s30, 0
    %p50 = por %p48, %p49
    %p51 = scmp.ne.s32.totalorder %s40, %s43
    %p52 = scmp.eq.s32.totalorder %s35, 1
    %p53 = por %p51, %p52
    %p54 = scmp.ne.s32.totalorder %s43, %s44
    %p55 = scmp.eq.s32.totalorder %s35, 0
    %p56 = por %p54, %p55
    %p57 = scmp.ne.s32.totalorder %s43, %s44
    %p58 = scmp.eq.s32.totalorder %s36, 1
    %p59 = por %p57, %p58
    %p61 = scmp.ne.s32.totalorder %s44, %s60
    %p62 = scmp.eq.s32.totalorder %s36, 0
    %p63 = por %p61, %p62
    %s64 = ssub.s32 %s30, %s37
    %p65 = scmp.eq.s32.totalorder %s64, 0
    %s67 = sadd.s32 %s66, 1
    %s68 = scalar_select %p65, %s66, %s67
    %p71 = pneg %p65
    %p72 = scmp.eq.s32.totalorder %s30, 1
    %p73 = por %p71, %p72
    %p74 = scmp.ne.s32.totalorder %s66, %s69
    %p75 = scmp.eq.s32.totalorder %s30, 0
    %p76 = por %p74, %p75
    %p77 = scmp.ne.s32.totalorder %s66, %s69
    %p78 = scmp.eq.s32.totalorder %s35, 1
    %p79 = por %p77, %p78
    %p80 = scmp.ne.s32.totalorder %s69, %s70
    %p81 = scmp.eq.s32.totalorder %s35, 0
    %p82 = por %p80, %p81
    %p83 = scmp.ne.s32.totalorder %s69, %s70
    %p84 = scmp.eq.s32.totalorder %s36, 1
    %p85 = por %p83, %p84
    %p87 = scmp.ne.s32.totalorder %s70, %s86
    %p88 = scmp.eq.s32.totalorder %s36, 0
    %p89 = por %p87, %p88
    %s90 = ssub.s32 %s30, %s37
    %p91 = scmp.eq.s32.totalorder %s90, 0
    %s93 = sadd.s32 %s92, 1
    %s94 = scalar_select %p91, %s92, %s93
    %p97 = pneg %p91
    %p98 = scmp.eq.s32.totalorder %s30, 1
    %p99 = por %p97, %p98
    %p100 = scmp.ne.s32.totalorder %s92, %s95
    %p101 = scmp.eq.s32.totalorder %s30, 0
    %p102 = por %p100, %p101
    %p103 = scmp.ne.s32.totalorder %s92, %s95
    %p104 = scmp.eq.s32.totalorder %s35, 1
    %p105 = por %p103, %p104
    %p106 = scmp.ne.s32.totalorder %s95, %s96
    %p107 = scmp.eq.s32.totalorder %s35, 0
    %p108 = por %p106, %p107
    %p109 = scmp.ne.s32.totalorder %s95, %s96
    %p110 = scmp.eq.s32.totalorder %s36, 1
    %p111 = por %p109, %p110
    %p113 = scmp.ne.s32.totalorder %s96, %s112
    %p114 = scmp.eq.s32.totalorder %s36, 0
    %p115 = por %p113, %p114
    %s116 = ssub.s32 %s30, %s37
    %p117 = scmp.eq.s32.totalorder %s116, 0
    %s119 = sadd.s32 %s118, 1
    %s120 = scalar_select %p117, %s118, %s119
    %p123 = pneg %p117
    %p124 = scmp.eq.s32.totalorder %s30, 1
    %p125 = por %p123, %p124
    %p126 = scmp.ne.s32.totalorder %s118, %s121
    %p127 = scmp.eq.s32.totalorder %s30, 0
    %p128 = por %p126, %p127
    %p129 = scmp.ne.s32.totalorder %s118, %s121
    %p130 = scmp.eq.s32.totalorder %s35, 1
    %p131 = por %p129, %p130
    %p132 = scmp.ne.s32.totalorder %s121, %s122
    %p133 = scmp.eq.s32.totalorder %s35, 0
    %p134 = por %p132, %p133
    %p135 = scmp.ne.s32.totalorder %s121, %s122
    %p136 = scmp.eq.s32.totalorder %s36, 1
    %p137 = por %p135, %p136
    %p139 = scmp.ne.s32.totalorder %s122, %s138
    %p140 = scmp.eq.s32.totalorder %s36, 0
    %p141 = por %p139, %p140
    %s143 = sadd.s32 %s142, 1
    %p146 = scmp.eq.s32.totalorder %s30, 1
    %p147 = scmp.ne.s32.totalorder %s142, %s144
    %p148 = scmp.eq.s32.totalorder %s30, 0
    %p149 = por %p147, %p148
    %p150 = scmp.ne.s32.totalorder %s142, %s144
    %p151 = scmp.eq.s32.totalorder %s35, 1
    %p152 = por %p150, %p151
    %p153 = scmp.ne.s32.totalorder %s144, %s145
    %p154 = scmp.eq.s32.totalorder %s35, 0
    %p155 = por %p153, %p154
    %p156 = scmp.ne.s32.totalorder %s144, %s145
    %p157 = scmp.eq.s32.totalorder %s36, 1
    %p158 = por %p156, %p157
    %p160 = scmp.ne.s32.totalorder %s145, %s159
    %p161 = scmp.eq.s32.totalorder %s36, 0
    %p162 = por %p160, %p161
    %s164 = sadd.s32 %s163, 1
    %p167 = scmp.eq.s32.totalorder %s30, 1
    %p168 = scmp.ne.s32.totalorder %s163, %s165
    %p169 = scmp.eq.s32.totalorder %s30, 0
    %p170 = por %p168, %p169
    %p171 = scmp.ne.s32.totalorder %s163, %s165
    %p172 = scmp.eq.s32.totalorder %s35, 1
    %p173 = por %p171, %p172
    %p174 = scmp.ne.s32.totalorder %s165, %s166
    %p175 = scmp.eq.s32.totalorder %s35, 0
    %p176 = por %p174, %p175
    %p177 = scmp.ne.s32.totalorder %s165, %s166
    %p178 = scmp.eq.s32.totalorder %s36, 1
    %p179 = por %p177, %p178
    %p181 = scmp.ne.s32.totalorder %s166, %s180
    %p182 = scmp.eq.s32.totalorder %s36, 0
    %p183 = por %p181, %p182
    %s185 = sadd.s32 %s184, 1
    %p188 = scmp.eq.s32.totalorder %s30, 1
    %p189 = scmp.ne.s32.totalorder %s184, %s186
    %p190 = scmp.eq.s32.totalorder %s30, 0
    %p191 = por %p189, %p190
    %p192 = scmp.ne.s32.totalorder %s184, %s186
    %p193 = scmp.eq.s32.totalorder %s35, 1
    %p194 = por %p192, %p193
    %p195 = scmp.ne.s32.totalorder %s186, %s187
    %p196 = scmp.eq.s32.totalorder %s35, 0
    %p197 = por %p195, %p196
    %p198 = scmp.ne.s32.totalorder %s186, %s187
    %p199 = scmp.eq.s32.totalorder %s36, 1
    %p200 = por %p198, %p199
    %p202 = scmp.ne.s32.totalorder %s187, %s201
    %p203 = scmp.eq.s32.totalorder %s36, 0
    %p204 = por %p202, %p203
    %s206 = sadd.s32 %s205, 1
    %p209 = scmp.eq.s32.totalorder %s30, 1
    %p210 = scmp.ne.s32.totalorder %s205, %s207
    %p211 = scmp.eq.s32.totalorder %s30, 0
    %p212 = por %p210, %p211
    %p213 = scmp.ne.s32.totalorder %s205, %s207
    %p214 = scmp.eq.s32.totalorder %s35, 1
    %p215 = por %p213, %p214
    %p216 = scmp.ne.s32.totalorder %s207, %s208
    %p217 = scmp.eq.s32.totalorder %s35, 0
    %p218 = por %p216, %p217
    %p219 = scmp.ne.s32.totalorder %s207, %s208
    %p220 = scmp.eq.s32.totalorder %s36, 1
    %p221 = por %p219, %p220
    %p223 = scmp.ne.s32.totalorder %s208, %s222
    %p224 = scmp.eq.s32.totalorder %s36, 0
    %p225 = por %p223, %p224
    %s227 = sadd.s32 %s226, 1
    %p230 = scmp.eq.s32.totalorder %s30, 1
    %p231 = scmp.ne.s32.totalorder %s226, %s228
    %p232 = scmp.eq.s32.totalorder %s30, 0
    %p233 = por %p231, %p232
    %p234 = scmp.ne.s32.totalorder %s226, %s228
    %p235 = scmp.eq.s32.totalorder %s35, 1
    %p236 = por %p234, %p235
    %p237 = scmp.ne.s32.totalorder %s228, %s229
    %p238 = scmp.eq.s32.totalorder %s35, 0
    %p239 = por %p237, %p238
    %p240 = scmp.ne.s32.totalorder %s228, %s229
    %p241 = scmp.eq.s32.totalorder %s36, 1
    %p242 = por %p240, %p241
    %p244 = scmp.ne.s32.totalorder %s229, %s243
    %p245 = scmp.eq.s32.totalorder %s36, 0
    %p246 = por %p244, %p245
    %s248 = sadd.s32 %s247, 1
    %p251 = scmp.eq.s32.totalorder %s30, 1
    %p252 = scmp.ne.s32.totalorder %s247, %s249
    %p253 = scmp.eq.s32.totalorder %s30, 0
    %p254 = por %p252, %p253
    %p255 = scmp.ne.s32.totalorder %s247, %s249
    %p256 = scmp.eq.s32.totalorder %s35, 1
    %p257 = por %p255, %p256
    %p258 = scmp.ne.s32.totalorder %s249, %s250
    %p259 = scmp.eq.s32.totalorder %s35, 0
    %p260 = por %p258, %p259
    %p261 = scmp.ne.s32.totalorder %s249, %s250
    %p262 = scmp.eq.s32.totalorder %s36, 1
    %p263 = por %p261, %p262
    %p265 = scmp.ne.s32.totalorder %s250, %s264
    %p266 = scmp.eq.s32.totalorder %s36, 0
    %p267 = por %p265, %p266
    %s269 = sadd.s32 %s268, 1
    %p272 = scmp.eq.s32.totalorder %s30, 1
    %p273 = scmp.ne.s32.totalorder %s268, %s270
    %p274 = scmp.eq.s32.totalorder %s30, 0
    %p275 = por %p273, %p274
    %p276 = scmp.ne.s32.totalorder %s268, %s270
    %p277 = scmp.eq.s32.totalorder %s35, 1
    %p278 = por %p276, %p277
    %p279 = scmp.ne.s32.totalorder %s270, %s271
    %p280 = scmp.eq.s32.totalorder %s35, 0
    %p281 = por %p279, %p280
    %p282 = scmp.ne.s32.totalorder %s270, %s271
    %p283 = scmp.eq.s32.totalorder %s36, 1
    %p284 = por %p282, %p283
    %p286 = scmp.ne.s32.totalorder %s271, %s285
    %p287 = scmp.eq.s32.totalorder %s36, 0
    %p288 = por %p286, %p287
    %s290 = sadd.s32 %s289, 1
    %p293 = scmp.eq.s32.totalorder %s30, 1
    %p294 = scmp.ne.s32.totalorder %s289, %s291
    %p295 = scmp.eq.s32.totalorder %s30, 0
    %p296 = por %p294, %p295
    %p297 = scmp.ne.s32.totalorder %s289, %s291
    %p298 = scmp.eq.s32.totalorder %s35, 1
    %p299 = por %p297, %p298
    %p300 = scmp.ne.s32.totalorder %s291, %s292
    %p301 = scmp.eq.s32.totalorder %s35, 0
    %p302 = por %p300, %p301
    %p303 = scmp.ne.s32.totalorder %s291, %s292
    %p304 = scmp.eq.s32.totalorder %s36, 1
    %p305 = por %p303, %p304
    %p307 = scmp.ne.s32.totalorder %s292, %s306
    %p308 = scmp.eq.s32.totalorder %s36, 0
    %p309 = por %p307, %p308
    %s311 = sadd.s32 %s310, 1
    %p314 = scmp.eq.s32.totalorder %s30, 1
    %p315 = scmp.ne.s32.totalorder %s310, %s312
    %p316 = scmp.eq.s32.totalorder %s30, 0
    %p317 = por %p315, %p316
    %p318 = scmp.ne.s32.totalorder %s310, %s312
    %p319 = scmp.eq.s32.totalorder %s35, 1
    %p320 = por %p318, %p319
    %p321 = scmp.ne.s32.totalorder %s312, %s313
    %p322 = scmp.eq.s32.totalorder %s35, 0
    %p323 = por %p321, %p322
    %p324 = scmp.ne.s32.totalorder %s312, %s313
    %p325 = scmp.eq.s32.totalorder %s36, 1
    %p326 = por %p324, %p325
    %p328 = scmp.ne.s32.totalorder %s313, %s327
    %p329 = scmp.eq.s32.totalorder %s36, 0
    %p330 = por %p328, %p329
    %s332 = sadd.s32 %s331, 1
    %p335 = scmp.eq.s32.totalorder %s30, 1
    %p336 = scmp.ne.s32.totalorder %s331, %s333
    %p337 = scmp.eq.s32.totalorder %s30, 0
    %p338 = por %p336, %p337
    %p339 = scmp.ne.s32.totalorder %s331, %s333
    %p340 = scmp.eq.s32.totalorder %s35, 1
    %p341 = por %p339, %p340
    %p342 = scmp.ne.s32.totalorder %s333, %s334
    %p343 = scmp.eq.s32.totalorder %s35, 0
    %p344 = por %p342, %p343
    %p345 = scmp.ne.s32.totalorder %s333, %s334
    %p346 = scmp.eq.s32.totalorder %s36, 1
    %p347 = por %p345, %p346
    %p349 = scmp.ne.s32.totalorder %s334, %s348
    %p350 = scmp.eq.s32.totalorder %s36, 0
    %p351 = por %p349, %p350
    %s353 = sadd.s32 %s352, 1
    %p356 = scmp.eq.s32.totalorder %s30, 1
    %p357 = scmp.ne.s32.totalorder %s352, %s354
    %p358 = scmp.eq.s32.totalorder %s30, 0
    %p359 = por %p357, %p358
    %p360 = scmp.ne.s32.totalorder %s352, %s354
    %p361 = scmp.eq.s32.totalorder %s35, 1
    %p362 = por %p360, %p361
    %p363 = scmp.ne.s32.totalorder %s354, %s355
    %p364 = scmp.eq.s32.totalorder %s35, 0
    %p365 = por %p363, %p364
    %p366 = scmp.ne.s32.totalorder %s354, %s355
    %p367 = scmp.eq.s32.totalorder %s36, 1
    %p368 = por %p366, %p367
    %p370 = scmp.ne.s32.totalorder %s355, %s369
    %p371 = scmp.eq.s32.totalorder %s36, 0
    %p372 = por %p370, %p371
    %s374 = sadd.s32 %s373, 1
    %p377 = scmp.eq.s32.totalorder %s30, 1
    %p378 = scmp.ne.s32.totalorder %s373, %s375
    %p379 = scmp.eq.s32.totalorder %s30, 0
    %p380 = por %p378, %p379
    %p381 = scmp.ne.s32.totalorder %s373, %s375
    %p382 = scmp.eq.s32.totalorder %s35, 1
    %p383 = por %p381, %p382
    %p384 = scmp.ne.s32.totalorder %s375, %s376
    %p385 = scmp.eq.s32.totalorder %s35, 0
    %p386 = por %p384, %p385
    %p387 = scmp.ne.s32.totalorder %s375, %s376
    %p388 = scmp.eq.s32.totalorder %s36, 1
    %p389 = por %p387, %p388
    %p391 = scmp.ne.s32.totalorder %s376, %s390
    %p392 = scmp.eq.s32.totalorder %s36, 0
    %p393 = por %p391, %p392
    %s395 = sadd.s32 %s394, 1
    %p398 = scmp.eq.s32.totalorder %s30, 1
    %p399 = scmp.ne.s32.totalorder %s394, %s396
    %p400 = scmp.eq.s32.totalorder %s30, 0
    %p401 = por %p399, %p400
    %p402 = scmp.ne.s32.totalorder %s394, %s396
    %p403 = scmp.eq.s32.totalorder %s35, 1
    %p404 = por %p402, %p403
    %p405 = scmp.ne.s32.totalorder %s396, %s397
    %p406 = scmp.eq.s32.totalorder %s35, 0
    %p407 = por %p405, %p406
    %p408 = scmp.ne.s32.totalorder %s396, %s397
    %p409 = scmp.eq.s32.totalorder %s36, 1
    %p410 = por %p408, %p409
    %p412 = scmp.ne.s32.totalorder %s397, %s411
    %p413 = scmp.eq.s32.totalorder %s36, 0
    %p414 = por %p412, %p413
    %s416 = sadd.s32 %s415, 1
    %p419 = scmp.eq.s32.totalorder %s30, 1
    %p420 = scmp.ne.s32.totalorder %s415, %s417
    %p421 = scmp.eq.s32.totalorder %s30, 0
    %p422 = por %p420, %p421
    %p423 = scmp.ne.s32.totalorder %s415, %s417
    %p424 = scmp.eq.s32.totalorder %s35, 1
    %p425 = por %p423, %p424
    %p426 = scmp.ne.s32.totalorder %s417, %s418
    %p427 = scmp.eq.s32.totalorder %s35, 0
    %p428 = por %p426, %p427
    %p429 = scmp.ne.s32.totalorder %s417, %s418
    %p430 = scmp.eq.s32.totalorder %s36, 1
    %p431 = por %p429, %p430
    %p433 = scmp.ne.s32.totalorder %s418, %s432
    %p434 = scmp.eq.s32.totalorder %s36, 0
    %p435 = por %p433, %p434
    %s437 = sadd.s32 %s436, 1
    %p440 = scmp.eq.s32.totalorder %s30, 1
    %p441 = scmp.ne.s32.totalorder %s436, %s438
    %p442 = scmp.eq.s32.totalorder %s30, 0
    %p443 = por %p441, %p442
    %p444 = scmp.ne.s32.totalorder %s436, %s438
    %p445 = scmp.eq.s32.totalorder %s35, 1
    %p446 = por %p444, %p445
    %p447 = scmp.ne.s32.totalorder %s438, %s439
    %p448 = scmp.eq.s32.totalorder %s35, 0
    %p449 = por %p447, %p448
    %p450 = scmp.ne.s32.totalorder %s438, %s439
    %p451 = scmp.eq.s32.totalorder %s36, 1
    %p452 = por %p450, %p451
    %p454 = scmp.ne.s32.totalorder %s439, %s453
    %p455 = scmp.eq.s32.totalorder %s36, 0
    %p456 = por %p454, %p455
    %s458 = sadd.s32 %s457, 1
    %p461 = scmp.eq.s32.totalorder %s30, 1
    %p462 = scmp.ne.s32.totalorder %s457, %s459
    %p463 = scmp.eq.s32.totalorder %s30, 0
    %p464 = por %p462, %p463
    %p465 = scmp.ne.s32.totalorder %s457, %s459
    %p466 = scmp.eq.s32.totalorder %s35, 1
    %p467 = por %p465, %p466
    %p468 = scmp.ne.s32.totalorder %s459, %s460
    %p469 = scmp.eq.s32.totalorder %s35, 0
    %p470 = por %p468, %p469
    %p471 = scmp.ne.s32.totalorder %s459, %s460
    %p472 = scmp.eq.s32.totalorder %s36, 1
    %p473 = por %p471, %p472
    %p475 = scmp.ne.s32.totalorder %s460, %s474
    %p476 = scmp.eq.s32.totalorder %s36, 0
    %p477 = por %p475, %p476
    %s479 = sadd.s32 %s478, 1
    %p482 = scmp.eq.s32.totalorder %s30, 1
    %p483 = scmp.ne.s32.totalorder %s478, %s480
    %p484 = scmp.eq.s32.totalorder %s30, 0
    %p485 = por %p483, %p484
    %p486 = scmp.ne.s32.totalorder %s478, %s480
    %p487 = scmp.eq.s32.totalorder %s35, 1
    %p488 = por %p486, %p487
    %p489 = scmp.ne.s32.totalorder %s480, %s481
    %p490 = scmp.eq.s32.totalorder %s35, 0
    %p491 = por %p489, %p490
    %p492 = scmp.ne.s32.totalorder %s480, %s481
    %p493 = scmp.eq.s32.totalorder %s36, 1
    %p494 = por %p492, %p493
    %p496 = scmp.ne.s32.totalorder %s481, %s495
    %p497 = scmp.eq.s32.totalorder %s36, 0
    %p498 = por %p496, %p497
    %s500 = sadd.s32 %s499, 1
    %p503 = scmp.eq.s32.totalorder %s30, 1
    %p504 = scmp.ne.s32.totalorder %s499, %s501
    %p505 = scmp.eq.s32.totalorder %s30, 0
    %p506 = por %p504, %p505
    %p507 = scmp.ne.s32.totalorder %s499, %s501
    %p508 = scmp.eq.s32.totalorder %s35, 1
    %p509 = por %p507, %p508
    %p510 = scmp.ne.s32.totalorder %s501, %s502
    %p511 = scmp.eq.s32.totalorder %s35, 0
    %p512 = por %p510, %p511
    %p513 = scmp.ne.s32.totalorder %s501, %s502
    %p514 = scmp.eq.s32.totalorder %s36, 1
    %p515 = por %p513, %p514
    %p517 = scmp.ne.s32.totalorder %s502, %s516
    %p518 = scmp.eq.s32.totalorder %s36, 0
    %p519 = por %p517, %p518
    %s521 = sadd.s32 %s520, 1
    %p524 = scmp.eq.s32.totalorder %s30, 1
    %p525 = scmp.ne.s32.totalorder %s520, %s522
    %p526 = scmp.eq.s32.totalorder %s30, 0
    %p527 = por %p525, %p526
    %p528 = scmp.ne.s32.totalorder %s520, %s522
    %p529 = scmp.eq.s32.totalorder %s35, 1
    %p530 = por %p528, %p529
    %p531 = scmp.ne.s32.totalorder %s522, %s523
    %p532 = scmp.eq.s32.totalorder %s35, 0
    %p533 = por %p531, %p532
    %p534 = scmp.ne.s32.totalorder %s522, %s523
    %p535 = scmp.eq.s32.totalorder %s36, 1
    %p536 = por %p534, %p535
    %p538 = scmp.ne.s32.totalorder %s523, %s537
    %p539 = scmp.eq.s32.totalorder %s36, 0
    %p540 = por %p538, %p539
    %s542 = sadd.s32 %s541, 1
    %p545 = scmp.eq.s32.totalorder %s30, 1
    %p546 = scmp.ne.s32.totalorder %s541, %s543
    %p547 = scmp.eq.s32.totalorder %s30, 0
    %p548 = por %p546, %p547
    %p549 = scmp.ne.s32.totalorder %s541, %s543
    %p550 = scmp.eq.s32.totalorder %s35, 1
    %p551 = por %p549, %p550
    %p552 = scmp.ne.s32.totalorder %s543, %s544
    %p553 = scmp.eq.s32.totalorder %s35, 0
    %p554 = por %p552, %p553
    %p555 = scmp.ne.s32.totalorder %s543, %s544
    %p556 = scmp.eq.s32.totalorder %s36, 1
    %p557 = por %p555, %p556
    %p559 = scmp.ne.s32.totalorder %s544, %s558
    %p560 = scmp.eq.s32.totalorder %s36, 0
    %p561 = por %p559, %p560
    %s562 = ssub.s32 %s30, %s37
    %p563 = scmp.eq.s32.totalorder %s562, 0
    %s565 = sadd.s32 %s564, 1
    %s566 = scalar_select %p563, %s564, %s565
    %p569 = pneg %p563
    %p570 = scmp.eq.s32.totalorder %s30, 1
    %p571 = por %p569, %p570
    %p572 = scmp.ne.s32.totalorder %s564, %s567
    %p573 = scmp.eq.s32.totalorder %s30, 0
    %p574 = por %p572, %p573
    %p575 = scmp.ne.s32.totalorder %s564, %s567
    %p576 = scmp.eq.s32.totalorder %s35, 1
    %p577 = por %p575, %p576
    %p578 = scmp.ne.s32.totalorder %s567, %s568
    %p579 = scmp.eq.s32.totalorder %s35, 0
    %p580 = por %p578, %p579
    %p581 = scmp.ne.s32.totalorder %s567, %s568
    %p582 = scmp.eq.s32.totalorder %s36, 1
    %p583 = por %p581, %p582
    %p585 = scmp.ne.s32.totalorder %s568, %s584
    %p586 = scmp.eq.s32.totalorder %s36, 0
    %p587 = por %p585, %p586
    %p588 = scmp.le.s32.totalorder 1, %s30
    %p589 = scmp.lt.s32.totalorder %s30, 3
    %p590 = pnand %p588, %p589
    %p591 = pneg %p590
    // Predicated region
    $region9: #{seq2seq_forward.6} parent=5 // pred_check
      _
    $region10: #{seq2seq_forward.6} parent=5 // pred_check_branch
      %593 = sbr.rel (%p590) target = $region12
    $region11: #{seq2seq_forward.6} parent=5 // pred_region
      %s594 = ssub.s32 %s30, 1
      // Predicated region
      $region13: #{seq2seq_forward.6} parent=11 // pred_check
        %p595 = pneg %p155
      $region14: #{seq2seq_forward.6} parent=11 // pred_check_branch
        %597 = sbr.rel (%p595) target = $region16
      $region15: #{seq2seq_forward.6} parent=11 // pred_region
        _
      $region16: #{seq2seq_forward.6} parent=11 // pred_fallthru
        _
      // Predicated region
      $region17: #{seq2seq_forward.6} parent=11 // pred_check
        %p598 = pneg %p176
      $region18: #{seq2seq_forward.6} parent=11 // pred_check_branch
        %600 = sbr.rel (%p598) target = $region20
      $region19: #{seq2seq_forward.6} parent=11 // pred_region
        _
      $region20: #{seq2seq_forward.6} parent=11 // pred_fallthru
        _
      // Predicated region
      $region21: #{seq2seq_forward.6} parent=11 // pred_check
        %p601 = pneg %p197
      $region22: #{seq2seq_forward.6} parent=11 // pred_check_branch
        %603 = sbr.rel (%p601) target = $region24
      $region23: #{seq2seq_forward.6} parent=11 // pred_region
        _
      $region24: #{seq2seq_forward.6} parent=11 // pred_fallthru
        _
      // Predicated region
      $region25: #{seq2seq_forward.6} parent=11 // pred_check
        %p604 = pneg %p218
      $region26: #{seq2seq_forward.6} parent=11 // pred_check_branch
        %606 = sbr.rel (%p604) target = $region28
      $region27: #{seq2seq_forward.6} parent=11 // pred_region
        _
      $region28: #{seq2seq_forward.6} parent=11 // pred_fallthru
        _
      // Predicated region
      $region29: #{seq2seq_forward.6} parent=11 // pred_check
        %p607 = pneg %p239
      $region30: #{seq2seq_forward.6} parent=11 // pred_check_branch
        %609 = sbr.rel (%p607) target = $region32
      $region31: #{seq2seq_forward.6} parent=11 // pred_region
        _
      $region32: #{seq2seq_forward.6} parent=11 // pred_fallthru
        _
      // Predicated region
      $region33: #{seq2seq_forward.6} parent=11 // pred_check
        %p610 = pneg %p260
      $region34: #{seq2seq_forward.6} parent=11 // pred_check_branch
        %612 = sbr.rel (%p610) target = $region36
      $region35: #{seq2seq_forward.6} parent=11 // pred_region
        _
      $region36: #{seq2seq_forward.6} parent=11 // pred_fallthru
        _
      // Predicated region
      $region37: #{seq2seq_forward.6} parent=11 // pred_check
        %p613 = pneg %p281
      $region38: #{seq2seq_forward.6} parent=11 // pred_check_branch
        %615 = sbr.rel (%p613) target = $region40
      $region39: #{seq2seq_forward.6} parent=11 // pred_region
        _
      $region40: #{seq2seq_forward.6} parent=11 // pred_fallthru
        _
      // Predicated region
      $region41: #{seq2seq_forward.6} parent=11 // pred_check
        %p616 = pneg %p302
      $region42: #{seq2seq_forward.6} parent=11 // pred_check_branch
        %618 = sbr.rel (%p616) target = $region44
      $region43: #{seq2seq_forward.6} parent=11 // pred_region
        _
      $region44: #{seq2seq_forward.6} parent=11 // pred_fallthru
        _
      // Predicated region
      $region45: #{seq2seq_forward.6} parent=11 // pred_check
        %p619 = pneg %p323
      $region46: #{seq2seq_forward.6} parent=11 // pred_check_branch
        %621 = sbr.rel (%p619) target = $region48
      $region47: #{seq2seq_forward.6} parent=11 // pred_region
        _
      $region48: #{seq2seq_forward.6} parent=11 // pred_fallthru
        _
      // Predicated region
      $region49: #{seq2seq_forward.6} parent=11 // pred_check
        %p622 = pneg %p344
      $region50: #{seq2seq_forward.6} parent=11 // pred_check_branch
        %624 = sbr.rel (%p622) target = $region52
      $region51: #{seq2seq_forward.6} parent=11 // pred_region
        _
      $region52: #{seq2seq_forward.6} parent=11 // pred_fallthru
        _
      // Predicated region
      $region53: #{seq2seq_forward.6} parent=11 // pred_check
        %p625 = pneg %p365
      $region54: #{seq2seq_forward.6} parent=11 // pred_check_branch
        %627 = sbr.rel (%p625) target = $region56
      $region55: #{seq2seq_forward.6} parent=11 // pred_region
        _
      $region56: #{seq2seq_forward.6} parent=11 // pred_fallthru
        _
      // Predicated region
      $region57: #{seq2seq_forward.6} parent=11 // pred_check
        %p628 = pneg %p386
      $region58: #{seq2seq_forward.6} parent=11 // pred_check_branch
        %630 = sbr.rel (%p628) target = $region60
      $region59: #{seq2seq_forward.6} parent=11 // pred_region
        _
      $region60: #{seq2seq_forward.6} parent=11 // pred_fallthru
        _
      // Predicated region
      $region61: #{seq2seq_forward.6} parent=11 // pred_check
        %p631 = pneg %p407
      $region62: #{seq2seq_forward.6} parent=11 // pred_check_branch
        %633 = sbr.rel (%p631) target = $region64
      $region63: #{seq2seq_forward.6} parent=11 // pred_region
        _
      $region64: #{seq2seq_forward.6} parent=11 // pred_fallthru
        _
      // Predicated region
      $region65: #{seq2seq_forward.6} parent=11 // pred_check
        %p634 = pneg %p428
      $region66: #{seq2seq_forward.6} parent=11 // pred_check_branch
        %636 = sbr.rel (%p634) target = $region68
      $region67: #{seq2seq_forward.6} parent=11 // pred_region
        _
      $region68: #{seq2seq_forward.6} parent=11 // pred_fallthru
        _
      // Predicated region
      $region69: #{seq2seq_forward.6} parent=11 // pred_check
        %p637 = pneg %p449
      $region70: #{seq2seq_forward.6} parent=11 // pred_check_branch
        %639 = sbr.rel (%p637) target = $region72
      $region71: #{seq2seq_forward.6} parent=11 // pred_region
        _
      $region72: #{seq2seq_forward.6} parent=11 // pred_fallthru
        _
      // Predicated region
      $region73: #{seq2seq_forward.6} parent=11 // pred_check
        %p640 = pneg %p470
      $region74: #{seq2seq_forward.6} parent=11 // pred_check_branch
        %642 = sbr.rel (%p640) target = $region76
      $region75: #{seq2seq_forward.6} parent=11 // pred_region
        _
      $region76: #{seq2seq_forward.6} parent=11 // pred_fallthru
        _
      // Predicated region
      $region77: #{seq2seq_forward.6} parent=11 // pred_check
        %p643 = pneg %p491
      $region78: #{seq2seq_forward.6} parent=11 // pred_check_branch
        %645 = sbr.rel (%p643) target = $region80
      $region79: #{seq2seq_forward.6} parent=11 // pred_region
        _
      $region80: #{seq2seq_forward.6} parent=11 // pred_fallthru
        _
      // Predicated region
      $region81: #{seq2seq_forward.6} parent=11 // pred_check
        %p646 = pneg %p512
      $region82: #{seq2seq_forward.6} parent=11 // pred_check_branch
        %648 = sbr.rel (%p646) target = $region84
      $region83: #{seq2seq_forward.6} parent=11 // pred_region
        _
      $region84: #{seq2seq_forward.6} parent=11 // pred_fallthru
        _
      // Predicated region
      $region85: #{seq2seq_forward.6} parent=11 // pred_check
        %p649 = pneg %p533
      $region86: #{seq2seq_forward.6} parent=11 // pred_check_branch
        %651 = sbr.rel (%p649) target = $region88
      $region87: #{seq2seq_forward.6} parent=11 // pred_region
        _
      $region88: #{seq2seq_forward.6} parent=11 // pred_fallthru
        _
      // Predicated region
      $region89: #{seq2seq_forward.6} parent=11 // pred_check
        %p652 = pneg %p554
      $region90: #{seq2seq_forward.6} parent=11 // pred_check_branch
        %654 = sbr.rel (%p652) target = $region92
      $region91: #{seq2seq_forward.6} parent=11 // pred_region
        _
      $region92: #{seq2seq_forward.6} parent=11 // pred_fallthru
        _
    $region12: #{seq2seq_forward.6} parent=5 // pred_fallthru
      _
    %p655 = scmp.lt.s32.totalorder %s30, 2
    // Predicated region
    $region93: #{seq2seq_forward.6} parent=5 // pred_check
      %p656 = pneg %p655
    $region94: #{seq2seq_forward.6} parent=5 // pred_check_branch
      %658 = sbr.rel (%p656) target = $region96
    $region95: #{seq2seq_forward.6} parent=5 // pred_region
      // Predicated region
      $region97: #{seq2seq_forward.6} parent=95 // pred_check
        %p659 = pneg %p50
      $region98: #{seq2seq_forward.6} parent=95 // pred_check_branch
        %661 = sbr.rel (%p659) target = $region100
      $region99: #{seq2seq_forward.6} parent=95 // pred_region
        %p662 = scmp.lt.s32.totalorder %s30, 1
        %s663 = scalar_select %p662, %s30, 1
        %s664 = smul.addr %s663, 8
        %s665 = scalar_lea.vmem %s0, %s664
      $region100: #{seq2seq_forward.6} parent=95 // pred_fallthru
        _
      // Predicated region
      $region101: #{seq2seq_forward.6} parent=95 // pred_check
        %p666 = pneg %p76
      $region102: #{seq2seq_forward.6} parent=95 // pred_check_branch
        %668 = sbr.rel (%p666) target = $region104
      $region103: #{seq2seq_forward.6} parent=95 // pred_region
        %p669 = scmp.lt.s32.totalorder %s30, 1
        %s670 = scalar_select %p669, %s30, 1
        %s671 = smul.addr %s670, 8
        %s672 = scalar_lea.vmem %s1, %s671
      $region104: #{seq2seq_forward.6} parent=95 // pred_fallthru
        _
      // Predicated region
      $region105: #{seq2seq_forward.6} parent=95 // pred_check
        %p673 = pneg %p102
      $region106: #{seq2seq_forward.6} parent=95 // pred_check_branch
        %675 = sbr.rel (%p673) target = $region108
      $region107: #{seq2seq_forward.6} parent=95 // pred_region
        %p676 = scmp.lt.s32.totalorder %s30, 1
        %s677 = scalar_select %p676, %s30, 1
        %s678 = smul.addr %s677, 8
        %s679 = scalar_lea.vmem %s2, %s678
      $region108: #{seq2seq_forward.6} parent=95 // pred_fallthru
        _
      // Predicated region
      $region109: #{seq2seq_forward.6} parent=95 // pred_check
        %p680 = pneg %p128
      $region110: #{seq2seq_forward.6} parent=95 // pred_check_branch
        %682 = sbr.rel (%p680) target = $region112
      $region111: #{seq2seq_forward.6} parent=95 // pred_region
        %p683 = scmp.lt.s32.totalorder %s30, 1
        %s684 = scalar_select %p683, %s30, 1
        %s685 = smul.addr %s684, 8
        %s686 = scalar_lea.vmem %s3, %s685
      $region112: #{seq2seq_forward.6} parent=95 // pred_fallthru
        _
    $region96: #{seq2seq_forward.6} parent=5 // pred_fallthru
      _
    %p687 = scmp.le.s32.totalorder 1, %s30
    %p688 = scmp.lt.s32.totalorder %s30, 3
    %p689 = pnand %p687, %p688
    %p690 = pneg %p689
    // Predicated region
    $region113: #{seq2seq_forward.6} parent=5 // pred_check
      _
    $region114: #{seq2seq_forward.6} parent=5 // pred_check_branch
      %692 = sbr.rel (%p689) target = $region116
    $region115: #{seq2seq_forward.6} parent=5 // pred_region
      %s693 = ssub.s32 %s30, 1
      %p694 = scmp.lt.s32.totalorder %s35, 1
      %s695 = scalar_select %p694, %s35, 1
      %s696 = smul.addr %s695, 8
      %s697 = scalar_lea.vmem %s0, %s696
      %p698 = pneg %p56
      %p699 = pneg %p53
      %p700 = scmp.lt.s32.totalorder %s35, 1
      %s701 = scalar_select %p700, %s35, 1
      %s702 = smul.addr %s701, 8
      %s703 = scalar_lea.vmem %s1, %s702
      %p704 = pneg %p82
      %p705 = pneg %p79
      %p706 = scmp.lt.s32.totalorder %s35, 1
      %s707 = scalar_select %p706, %s35, 1
      %s708 = smul.addr %s707, 8
      %s709 = scalar_lea.vmem %s2, %s708
      %p710 = pneg %p108
      %p711 = pneg %p105
      %p712 = scmp.lt.s32.totalorder %s35, 1
      %s713 = scalar_select %p712, %s35, 1
      %s714 = smul.addr %s713, 8
      %s715 = scalar_lea.vmem %s3, %s714
      %p716 = pneg %p134
      %p717 = pneg %p131
      %p718 = pneg %p155
      %p719 = pneg %p152
      %p720 = pneg %p176
      %p721 = pneg %p173
      %p722 = pneg %p197
      %p723 = pneg %p194
      %p724 = pneg %p218
      %p725 = pneg %p215
      %p726 = pneg %p239
      %p727 = pneg %p236
      %p728 = pneg %p260
      %p729 = pneg %p257
      %p730 = pneg %p281
      %p731 = pneg %p278
      %p732 = pneg %p302
      %p733 = pneg %p299
      %p734 = pneg %p323
      %p735 = pneg %p320
      %p736 = pneg %p344
      %p737 = pneg %p341
      %p738 = pneg %p365
      %p739 = pneg %p362
      %p740 = pneg %p386
      %p741 = pneg %p383
      %p742 = pneg %p407
      %p743 = pneg %p404
      %p744 = pneg %p428
      %p745 = pneg %p425
      %p746 = pneg %p449
      %p747 = pneg %p446
      %p748 = pneg %p470
      %p749 = pneg %p467
      %p750 = pneg %p491
      %p751 = pneg %p488
      %p752 = pneg %p512
      %p753 = pneg %p509
      %p754 = pneg %p533
      %p755 = pneg %p530
      %p756 = pneg %p554
      %p757 = pneg %p551
      %p758 = pneg %p580
      %p759 = pneg %p577
      %p760 = scmp.lt.s32.totalorder %s35, 1
      %s761 = scalar_select %p760, %s35, 1
      %s762 = smul.addr %s761, 8
      %s763 = scalar_lea.vmem %s24, %s762
      %p764 = scmp.lt.s32.totalorder %s35, 1
      %s765 = scalar_select %p764, %s35, 1
      %s766 = smul.addr %s765, 8
      %s767 = scalar_lea.vmem %s0, %s766
      %p768 = scmp.lt.s32.totalorder %s35, 1
      %s769 = scalar_select %p768, %s35, 1
      %s770 = smul.addr %s769, 8
      %s771 = scalar_lea.vmem %s1, %s770
      %p772 = scmp.lt.s32.totalorder %s35, 1
      %s773 = scalar_select %p772, %s35, 1
      %s774 = smul.addr %s773, 8
      %s775 = scalar_lea.vmem %s2, %s774
      %p776 = scmp.lt.s32.totalorder %s35, 1
      %s777 = scalar_select %p776, %s35, 1
      %s778 = smul.addr %s777, 8
      %s779 = scalar_lea.vmem %s3, %s778
      %p780 = scmp.lt.s32.totalorder %s35, 1
      %s781 = scalar_select %p780, %s35, 1
      %s782 = smul.addr %s781, 8
      %s783 = scalar_lea.vmem %s24, %s782
      %v784 = vld [vmem:[%s767] sm:$0xff]
      %v785 = vld [vmem:[%s771] sm:$0xff]
      %v786 = vld [vmem:[%s775] sm:$0xff]
      %v787 = vld [vmem:[%s779] sm:$0xff]
      %v788 = vld [vmem:[%s4] sm:$0xff]
      %v789 = vld [vmem:[%s4 + $0x8] sm:$0xff]
      %v790 = vld [vmem:[%s4 + $0x10] sm:$0xff]
      %v791 = vld [vmem:[%s4 + $0x18] sm:$0xff]
      %v792 = vld [vmem:[%s5] sm:$0x1]
      %v793 = vld [vmem:[%s6] sm:$0xff]
      %v794 = vld [vmem:[%s6 + $0x8] sm:$0xff]
      %v795 = vld [vmem:[%s6 + $0x10] sm:$0xff]
      %v796 = vld [vmem:[%s6 + $0x18] sm:$0xff]
      %v797 = vld [vmem:[%s7] sm:$0x1]
      %v798 = vld [vmem:[%s8] sm:$0x1]
      %v799 = vld [vmem:[%s9] sm:$0x1]
      %v800 = vld [vmem:[%s10] sm:$0xff]
      %v801 = vld [vmem:[%s10 + $0x8] sm:$0xff]
      %v802 = vld [vmem:[%s10 + $0x10] sm:$0xff]
      %v803 = vld [vmem:[%s10 + $0x18] sm:$0xff]
      %v804 = vld [vmem:[%s11] sm:$0x1]
      %v805 = vld [vmem:[%s12] sm:$0xff]
      %v806 = vld [vmem:[%s12 + $0x8] sm:$0xff]
      %v807 = vld [vmem:[%s12 + $0x10] sm:$0xff]
      %v808 = vld [vmem:[%s12 + $0x18] sm:$0xff]
      %v809 = vld [vmem:[%s13] sm:$0x1]
      %v810 = vld [vmem:[%s14] sm:$0xff]
      %v811 = vld [vmem:[%s14 + $0x8] sm:$0xff]
      %v812 = vld [vmem:[%s14 + $0x10] sm:$0xff]
      %v813 = vld [vmem:[%s14 + $0x18] sm:$0xff]
      %v814 = vld [vmem:[%s15] sm:$0x1]
      %v815 = vld [vmem:[%s16] sm:$0x1]
      %v816 = vld [vmem:[%s17] sm:$0x1]
      %v817 = vld [vmem:[%s18] sm:$0xff]
      %v818 = vld [vmem:[%s18 + $0x8] sm:$0xff]
      %v819 = vld [vmem:[%s18 + $0x10] sm:$0xff]
      %v820 = vld [vmem:[%s18 + $0x18] sm:$0xff]
      %v821 = vld [vmem:[%s19] sm:$0x1]
      %v822 = vld [vmem:[%s20] sm:$0xff]
      %v823 = vld [vmem:[%s20 + $0x8] sm:$0xff]
      %v824 = vld [vmem:[%s20 + $0x10] sm:$0xff]
      %v825 = vld [vmem:[%s20 + $0x18] sm:$0xff]
      %v826 = vld [vmem:[%s20 + $0x20] sm:$0xff]
      %v827 = vld [vmem:[%s20 + $0x28] sm:$0xff]
      %v828 = vld [vmem:[%s20 + $0x30] sm:$0xff]
      %v829 = vld [vmem:[%s20 + $0x38] sm:$0xff]
      %v830 = vld [vmem:[%s21] sm:$0x1]
      %v831 = vld [vmem:[%s22] sm:$0x1]
      %v832 = vld [vmem:[%s23] sm:$0x1]
      %v834 = vlaneseq
      %v835 = vshrl.u32 %v834, 7
      %v836 = vsub.s32 0, %v835
      %v837 = vrot.slane %v792, %v836
      %vm839 = vcmask 261120
      %v841 = vsel %vm839, %v784, 0
      %843 = vmatprep.subr.mxu0 0.0
      %844 = vmatpush1.msra.mxu0 %v788
      %845 = vmatprep.subr.mxu0 0.0
      %846 = vmatpush1.msra.mxu0 %v789
      %847 = vmatprep.subr.mxu0 0.0
      %848 = vmatpush1.msra.mxu0 %v790
      %849 = vmatprep.subr.mxu0 0.0
      %850 = vmatpush1.msra.mxu0 %v791
      %851 = vmatprep.subr.mxu0 0.0
      %852 = vmatpush1.msra.mxu0 0.0
      %853 = vmatprep.subr.mxu0 0.0
      %854 = vmatpush1.msra.mxu0 0.0
      %855 = vmatprep.subr.mxu0 0.0
      %856 = vmatpush1.msra.mxu0 0.0
      %857 = vmatprep.subr.mxu0 0.0
      %858 = vmatpush1.msra.mxu0 0.0
      %859 = vmatprep.subr.mxu0 0.0
      %860 = vmatpush1.msra.mxu0 0.0
      %861 = vmatprep.subr.mxu0 0.0
      %862 = vmatpush1.msra.mxu0 0.0
      %863 = vmatprep.subr.mxu0 0.0
      %864 = vmatpush1.msra.mxu0 0.0
      %865 = vmatprep.subr.mxu0 0.0
      %866 = vmatpush1.msra.mxu0 0.0
      %867 = vmatprep.subr.mxu0 0.0
      %868 = vmatpush1.msra.mxu0 0.0
      %869 = vmatprep.subr.mxu0 0.0
      %870 = vmatpush1.msra.mxu0 0.0
      %871 = vmatprep.subr.mxu0 0.0
      %872 = vmatpush1.msra.mxu0 0.0
      %873 = vmatprep.subr.mxu0 0.0
      %874 = vmatpush1.msra.mxu0 0.0
      %875 = vmatprep.subr.mxu0 0.0
      %876 = vmatpush1.msra.mxu0 0.0
      %877 = vmatprep.subr.mxu0 0.0
      %878 = vmatpush1.msra.mxu0 0.0
      %879 = vmatprep.subr.mxu0 0.0
      %880 = vmatpush1.msra.mxu0 0.0
      %881 = vmatprep.subr.mxu0 0.0
      %882 = vmatpush1.msra.mxu0 0.0
      %883 = vmatprep.subr.mxu0 0.0
      %884 = vmatpush1.msra.mxu0 0.0
      %885 = vmatprep.subr.mxu0 0.0
      %886 = vmatpush1.msra.mxu0 0.0
      %887 = vmatprep.subr.mxu0 0.0
      %888 = vmatpush1.msra.mxu0 0.0
      %889 = vmatprep.subr.mxu0 0.0
      %890 = vmatpush1.msra.mxu0 0.0
      %891 = vmatprep.subr.mxu0 0.0
      %892 = vmatpush1.msra.mxu0 0.0
      %893 = vmatprep.subr.mxu0 0.0
      %894 = vmatpush1.msra.mxu0 0.0
      %895 = vmatprep.subr.mxu0 0.0
      %896 = vmatpush1.msra.mxu0 0.0
      %897 = vmatprep.subr.mxu0 0.0
      %898 = vmatpush1.msra.mxu0 0.0
      %899 = vmatprep.subr.mxu0 0.0
      %900 = vmatpush1.msra.mxu0 0.0
      %901 = vmatprep.subr.mxu0 0.0
      %902 = vmatpush1.msra.mxu0 0.0
      %903 = vmatprep.subr.mxu0 0.0
      %904 = vmatpush1.msra.mxu0 0.0
      %905 = vmatprep.subr.mxu0 0.0
      %906 = vmatpush1.msra.mxu0 0.0
      %907 = vmatprep.mubr.f32.mxu0 0.0
      %908 = vmatmul.mubr.f32.gmra.mrb[0].mxu0 %v841
      %v909 = vpop.f32.mrb[0].mxu0
      %v910 = vadd.f32 %v837, %v909
      %v911 = vpop.f32.mrb[0].mxu0
      %912 = vdwg.mxu0
      %914 = vrot.lane.b32.xlu0 %v910, 96
      %v915 = vpop.permute.xlu0 %914
      %vm916 = vcmask 64512
      %v917 = vsel %vm916, %v910, 0
      %v919 = vsel %vm916, %v915, 0
      %921 = vmatprep.subr.mxu0 0.0
      %922 = vmatpush1.xpose.msra.mxu0 %v919
      %923 = vmatprep.subr.mxu0 0.0
      %924 = vmatpush1.xpose.msra.mxu0 0.0
      %925 = vmatprep.subr.mxu0 0.0
      %926 = vmatpush1.xpose.msra.mxu0 0.0
      %927 = vmatprep.subr.mxu0 0.0
      %928 = vmatpush1.xpose.msra.mxu0 0.0
      %929 = vmatprep.subr.mxu0 0.0
      %930 = vmatpush1.xpose.msra.mxu0 0.0
      %931 = vmatprep.subr.mxu0 0.0
      %932 = vmatpush1.xpose.msra.mxu0 0.0
      %933 = vmatprep.subr.mxu0 0.0
      %934 = vmatpush1.xpose.msra.mxu0 0.0
      %935 = vmatprep.subr.mxu0 0.0
      %936 = vmatpush1.xpose.msra.mxu0 0.0
      %937 = vmatprep.subr.mxu0 0.0
      %938 = vmatpush1.xpose.msra.mxu0 0.0
      %939 = vmatprep.subr.mxu0 0.0
      %940 = vmatpush1.xpose.msra.mxu0 0.0
      %941 = vmatprep.subr.mxu0 0.0
      %942 = vmatpush1.xpose.msra.mxu0 0.0
      %943 = vmatprep.subr.mxu0 0.0
      %944 = vmatpush1.xpose.msra.mxu0 0.0
      %945 = vmatprep.subr.mxu0 0.0
      %946 = vmatpush1.xpose.msra.mxu0 0.0
      %947 = vmatprep.subr.mxu0 0.0
      %948 = vmatpush1.xpose.msra.mxu0 0.0
      %949 = vmatprep.subr.mxu0 0.0
      %950 = vmatpush1.xpose.msra.mxu0 0.0
      %951 = vmatprep.subr.mxu0 0.0
      %952 = vmatpush1.xpose.msra.mxu0 0.0
      %953 = vmatprep.subr.mxu0 0.0
      %954 = vmatpush1.xpose.msra.mxu0 0.0
      %955 = vmatprep.subr.mxu0 0.0
      %956 = vmatpush1.xpose.msra.mxu0 0.0
      %957 = vmatprep.subr.mxu0 0.0
      %958 = vmatpush1.xpose.msra.mxu0 0.0
      %959 = vmatprep.subr.mxu0 0.0
      %960 = vmatpush1.xpose.msra.mxu0 0.0
      %961 = vmatprep.subr.mxu0 0.0
      %962 = vmatpush1.xpose.msra.mxu0 0.0
      %963 = vmatprep.subr.mxu0 0.0
      %964 = vmatpush1.xpose.msra.mxu0 0.0
      %965 = vmatprep.subr.mxu0 0.0
      %966 = vmatpush1.xpose.msra.mxu0 0.0
      %967 = vmatprep.subr.mxu0 0.0
      %968 = vmatpush1.xpose.msra.mxu0 0.0
      %969 = vmatprep.subr.mxu0 0.0
      %970 = vmatpush1.xpose.msra.mxu0 0.0
      %971 = vmatprep.subr.mxu0 0.0
      %972 = vmatpush1.xpose.msra.mxu0 0.0
      %973 = vmatprep.subr.mxu0 0.0
      %974 = vmatpush1.xpose.msra.mxu0 0.0
      %975 = vmatprep.subr.mxu0 0.0
      %976 = vmatpush1.xpose.msra.mxu0 0.0
      %977 = vmatprep.subr.mxu0 0.0
      %978 = vmatpush1.xpose.msra.mxu0 0.0
      %979 = vmatprep.subr.mxu0 0.0
      %980 = vmatpush1.xpose.msra.mxu0 0.0
      %981 = vmatprep.subr.mxu0 0.0
      %982 = vmatpush1.xpose.msra.mxu0 0.0
      %983 = vmatprep.subr.mxu0 0.0
      %984 = vmatpush1.xpose.msra.mxu0 0.0
      %985 = vmatprep.mubr.f32.mxu0 0.0
      %986 = vmatmul.mubr.f32.gmra.mrb[0].mxu0 %v917
      %v987 = vpop.f32.mrb[0].mxu0
      %v988 = vadd.f32 0.0, %v987
      %v989 = vpop.f32.mrb[0].mxu0
      %990 = vdwg.mxu0
      %v991 = vmul.f32 %v988, 0.35355338
      %vm992 = vcmp.ne.f32.partialorder %v786, 0.0
      %v993 = vsel %vm992, %v991, -1e+10
      %v994 = vsel %vm916, %v993, -inf
      %995 = vmax.xlane.f32.xlu0 %v994
      %v996 = vpop.xlane.xlu0 %995
      %v997 = vsub.f32 %v993, %v996
      %v998 = vmul.f32 %v997, 1.442695
      %v999 = vpow.pop %v998
      %v1000 = vsel %vm916, %v999, 0.0
      %1001 = vadd.xlane.f32.xlu0 %v1000
      %v1002 = vpop.xlane.xlu0 %1001
      %v1003 = vrcp.pop %v1002
      %v1004 = vmul.f32 %v999, %v1003
      %1005 = vrot.lane.b32.xlu0 %v910, 64
      %v1006 = vpop.permute.xlu0 %1005
      %v1009 = vsel %vm916, %v1004, 0
      %1011 = vmatprep.subr.mxu0 0.0
      %1012 = vmatpush1.msra.mxu0 %v1006
      %1013 = vmatprep.subr.mxu0 0.0
      %1014 = vmatpush1.msra.mxu0 0.0
      %1015 = vmatprep.subr.mxu0 0.0
      %1016 = vmatpush1.msra.mxu0 0.0
      %1017 = vmatprep.subr.mxu0 0.0
      %1018 = vmatpush1.msra.mxu0 0.0
      %1019 = vmatprep.subr.mxu0 0.0
      %1020 = vmatpush1.msra.mxu0 0.0
      %1021 = vmatprep.subr.mxu0 0.0
      %1022 = vmatpush1.msra.mxu0 0.0
      %1023 = vmatprep.subr.mxu0 0.0
      %1024 = vmatpush1.msra.mxu0 0.0
      %1025 = vmatprep.subr.mxu0 0.0
      %1026 = vmatpush1.msra.mxu0 0.0
      %1027 = vmatprep.subr.mxu0 0.0
      %1028 = vmatpush1.msra.mxu0 0.0
      %1029 = vmatprep.subr.mxu0 0.0
      %1030 = vmatpush1.msra.mxu0 0.0
      %1031 = vmatprep.subr.mxu0 0.0
      %1032 = vmatpush1.msra.mxu0 0.0
      %1033 = vmatprep.subr.mxu0 0.0
      %1034 = vmatpush1.msra.mxu0 0.0
      %1035 = vmatprep.subr.mxu0 0.0
      %1036 = vmatpush1.msra.mxu0 0.0
      %1037 = vmatprep.subr.mxu0 0.0
      %1038 = vmatpush1.msra.mxu0 0.0
      %1039 = vmatprep.subr.mxu0 0.0
      %1040 = vmatpush1.msra.mxu0 0.0
      %1041 = vmatprep.subr.mxu0 0.0
      %1042 = vmatpush1.msra.mxu0 0.0
      %1043 = vmatprep.subr.mxu0 0.0
      %1044 = vmatpush1.msra.mxu0 0.0
      %1045 = vmatprep.subr.mxu0 0.0
      %1046 = vmatpush1.msra.mxu0 0.0
      %1047 = vmatprep.subr.mxu0 0.0
      %1048 = vmatpush1.msra.mxu0 0.0
      %1049 = vmatprep.subr.mxu0 0.0
      %1050 = vmatpush1.msra.mxu0 0.0
      %1051 = vmatprep.subr.mxu0 0.0
      %1052 = vmatpush1.msra.mxu0 0.0
      %1053 = vmatprep.subr.mxu0 0.0
      %1054 = vmatpush1.msra.mxu0 0.0
      %1055 = vmatprep.subr.mxu0 0.0
      %1056 = vmatpush1.msra.mxu0 0.0
      %1057 = vmatprep.subr.mxu0 0.0
      %1058 = vmatpush1.msra.mxu0 0.0
      %1059 = vmatprep.subr.mxu0 0.0
      %1060 = vmatpush1.msra.mxu0 0.0
      %1061 = vmatprep.subr.mxu0 0.0
      %1062 = vmatpush1.msra.mxu0 0.0
      %1063 = vmatprep.subr.mxu0 0.0
      %1064 = vmatpush1.msra.mxu0 0.0
      %1065 = vmatprep.subr.mxu0 0.0
      %1066 = vmatpush1.msra.mxu0 0.0
      %1067 = vmatprep.subr.mxu0 0.0
      %1068 = vmatpush1.msra.mxu0 0.0
      %1069 = vmatprep.subr.mxu0 0.0
      %1070 = vmatpush1.msra.mxu0 0.0
      %1071 = vmatprep.subr.mxu0 0.0
      %1072 = vmatpush1.msra.mxu0 0.0
      %1073 = vmatprep.subr.mxu0 0.0
      %1074 = vmatpush1.msra.mxu0 0.0
      %1075 = vmatprep.mubr.f32.mxu0 0.0
      %1076 = vmatmul.mubr.f32.gmra.mrb[0].mxu0 %v1009
      %v1077 = vpop.f32.mrb[0].mxu0
      %v1078 = vadd.f32 0.0, %v1077
      %v1079 = vpop.f32.mrb[0].mxu0
      %1080 = vdwg.mxu0
      %1081 = vrot.lane.b32.xlu0 %v910, 120
      %v1082 = vpop.permute.xlu0 %1081
      %1083 = vrot.lane.b32.xlu0 %v910, 88
      %v1084 = vpop.permute.xlu0 %1083
      %v1085 = vsel %vm916, %v1082, 0
      %v1087 = vsel %vm916, %v1084, 0
      %1089 = vmatprep.subr.mxu0 0.0
      %1090 = vmatpush1.xpose.msra.mxu0 %v1087
      %1091 = vmatprep.subr.mxu0 0.0
      %1092 = vmatpush1.xpose.msra.mxu0 0.0
      %1093 = vmatprep.subr.mxu0 0.0
      %1094 = vmatpush1.xpose.msra.mxu0 0.0
      %1095 = vmatprep.subr.mxu0 0.0
      %1096 = vmatpush1.xpose.msra.mxu0 0.0
      %1097 = vmatprep.subr.mxu0 0.0
      %1098 = vmatpush1.xpose.msra.mxu0 0.0
      %1099 = vmatprep.subr.mxu0 0.0
      %1100 = vmatpush1.xpose.msra.mxu0 0.0
      %1101 = vmatprep.subr.mxu0 0.0
      %1102 = vmatpush1.xpose.msra.mxu0 0.0
      %1103 = vmatprep.subr.mxu0 0.0
      %1104 = vmatpush1.xpose.msra.mxu0 0.0
      %1105 = vmatprep.subr.mxu0 0.0
      %1106 = vmatpush1.xpose.msra.mxu0 0.0
      %1107 = vmatprep.subr.mxu0 0.0
      %1108 = vmatpush1.xpose.msra.mxu0 0.0
      %1109 = vmatprep.subr.mxu0 0.0
      %1110 = vmatpush1.xpose.msra.mxu0 0.0
      %1111 = vmatprep.subr.mxu0 0.0
      %1112 = vmatpush1.xpose.msra.mxu0 0.0
      %1113 = vmatprep.subr.mxu0 0.0
      %1114 = vmatpush1.xpose.msra.mxu0 0.0
      %1115 = vmatprep.subr.mxu0 0.0
      %1116 = vmatpush1.xpose.msra.mxu0 0.0
      %1117 = vmatprep.subr.mxu0 0.0
      %1118 = vmatpush1.xpose.msra.mxu0 0.0
      %1119 = vmatprep.subr.mxu0 0.0
      %1120 = vmatpush1.xpose.msra.mxu0 0.0
      %1121 = vmatprep.subr.mxu0 0.0
      %1122 = vmatpush1.xpose.msra.mxu0 0.0
      %1123 = vmatprep.subr.mxu0 0.0
      %1124 = vmatpush1.xpose.msra.mxu0 0.0
      %1125 = vmatprep.subr.mxu0 0.0
      %1126 = vmatpush1.xpose.msra.mxu0 0.0
      %1127 = vmatprep.subr.mxu0 0.0
      %1128 = vmatpush1.xpose.msra.mxu0 0.0
      %1129 = vmatprep.subr.mxu0 0.0
      %1130 = vmatpush1.xpose.msra.mxu0 0.0
      %1131 = vmatprep.subr.mxu0 0.0
      %1132 = vmatpush1.xpose.msra.mxu0 0.0
      %1133 = vmatprep.subr.mxu0 0.0
      %1134 = vmatpush1.xpose.msra.mxu0 0.0
      %1135 = vmatprep.subr.mxu0 0.0
      %1136 = vmatpush1.xpose.msra.mxu0 0.0
      %1137 = vmatprep.subr.mxu0 0.0
      %1138 = vmatpush1.xpose.msra.mxu0 0.0
      %1139 = vmatprep.subr.mxu0 0.0
      %1140 = vmatpush1.xpose.msra.mxu0 0.0
      %1141 = vmatprep.subr.mxu0 0.0
      %1142 = vmatpush1.xpose.msra.mxu0 0.0
      %1143 = vmatprep.subr.mxu0 0.0
      %1144 = vmatpush1.xpose.msra.mxu0 0.0
      %1145 = vmatprep.subr.mxu0 0.0
      %1146 = vmatpush1.xpose.msra.mxu0 0.0
      %1147 = vmatprep.subr.mxu0 0.0
      %1148 = vmatpush1.xpose.msra.mxu0 0.0
      %1149 = vmatprep.subr.mxu0 0.0
      %1150 = vmatpush1.xpose.msra.mxu0 0.0
      %1151 = vmatprep.subr.mxu0 0.0
      %1152 = vmatpush1.xpose.msra.mxu0 0.0
      %1153 = vmatprep.mubr.f32.mxu0 0.0
      %1154 = vmatmul.mubr.f32.gmra.mrb[0].mxu0 %v1085
      %v1155 = vpop.f32.mrb[0].mxu0
      %v1156 = vadd.f32 0.0, %v1155
      %v1157 = vpop.f32.mrb[0].mxu0
      %1158 = vdwg.mxu0
      %v1159 = vmul.f32 %v1156, 0.35355338
      %v1160 = vsel %vm992, %v1159, -1e+10
      %v1161 = vsel %vm916, %v1160, -inf
      %1162 = vmax.xlane.f32.xlu0 %v1161
      %v1163 = vpop.xlane.xlu0 %1162
      %v1164 = vsub.f32 %v1160, %v1163
      %v1165 = vmul.f32 %v1164, 1.442695
      %v1166 = vpow.pop %v1165
      %v1167 = vsel %vm916, %v1166, 0.0
      %1168 = vadd.xlane.f32.xlu0 %v1167
      %v1169 = vpop.xlane.xlu0 %1168
      %v1170 = vrcp.pop %v1169
      %v1171 = vmul.f32 %v1166, %v1170
      %1172 = vrot.lane.b32.xlu0 %v910, 56
      %v1173 = vpop.permute.xlu0 %1172
      %v1176 = vsel %vm916, %v1171, 0
      %1178 = vmatprep.subr.mxu0 0.0
      %1179 = vmatpush1.msra.mxu0 %v1173
      %1180 = vmatprep.subr.mxu0 0.0
      %1181 = vmatpush1.msra.mxu0 0.0
      %1182 = vmatprep.subr.mxu0 0.0
      %1183 = vmatpush1.msra.mxu0 0.0
      %1184 = vmatprep.subr.mxu0 0.0
      %1185 = vmatpush1.msra.mxu0 0.0
      %1186 = vmatprep.subr.mxu0 0.0
      %1187 = vmatpush1.msra.mxu0 0.0
      %1188 = vmatprep.subr.mxu0 0.0
      %1189 = vmatpush1.msra.mxu0 0.0
      %1190 = vmatprep.subr.mxu0 0.0
      %1191 = vmatpush1.msra.mxu0 0.0
      %1192 = vmatprep.subr.mxu0 0.0
      %1193 = vmatpush1.msra.mxu0 0.0
      %1194 = vmatprep.subr.mxu0 0.0
      %1195 = vmatpush1.msra.mxu0 0.0
      %1196 = vmatprep.subr.mxu0 0.0
      %1197 = vmatpush1.msra.mxu0 0.0
      %1198 = vmatprep.subr.mxu0 0.0
      %1199 = vmatpush1.msra.mxu0 0.0
      %1200 = vmatprep.subr.mxu0 0.0
      %1201 = vmatpush1.msra.mxu0 0.0
      %1202 = vmatprep.subr.mxu0 0.0
      %1203 = vmatpush1.msra.mxu0 0.0
      %1204 = vmatprep.subr.mxu0 0.0
      %1205 = vmatpush1.msra.mxu0 0.0
      %1206 = vmatprep.subr.mxu0 0.0
      %1207 = vmatpush1.msra.mxu0 0.0
      %1208 = vmatprep.subr.mxu0 0.0
      %1209 = vmatpush1.msra.mxu0 0.0
      %1210 = vmatprep.subr.mxu0 0.0
      %1211 = vmatpush1.msra.mxu0 0.0
      %1212 = vmatprep.subr.mxu0 0.0
      %1213 = vmatpush1.msra.mxu0 0.0
      %1214 = vmatprep.subr.mxu0 0.0
      %1215 = vmatpush1.msra.mxu0 0.0
      %1216 = vmatprep.subr.mxu0 0.0
      %1217 = vmatpush1.msra.mxu0 0.0
      %1218 = vmatprep.subr.mxu0 0.0
      %1219 = vmatpush1.msra.mxu0 0.0
      %1220 = vmatprep.subr.mxu0 0.0
      %1221 = vmatpush1.msra.mxu0 0.0
      %1222 = vmatprep.subr.mxu0 0.0
      %1223 = vmatpush1.msra.mxu0 0.0
      %1224 = vmatprep.subr.mxu0 0.0
      %1225 = vmatpush1.msra.mxu0 0.0
      %1226 = vmatprep.subr.mxu0 0.0
      %1227 = vmatpush1.msra.mxu0 0.0
      %1228 = vmatprep.subr.mxu0 0.0
      %1229 = vmatpush1.msra.mxu0 0.0
      %1230 = vmatprep.subr.mxu0 0.0
      %1231 = vmatpush1.msra.mxu0 0.0
      %1232 = vmatprep.subr.mxu0 0.0
      %1233 = vmatpush1.msra.mxu0 0.0
      %1234 = vmatprep.subr.mxu0 0.0
      %1235 = vmatpush1.msra.mxu0 0.0
      %1236 = vmatprep.subr.mxu0 0.0
      %1237 = vmatpush1.msra.mxu0 0.0
      %1238 = vmatprep.subr.mxu0 0.0
      %1239 = vmatpush1.msra.mxu0 0.0
      %1240 = vmatprep.subr.mxu0 0.0
      %1241 = vmatpush1.msra.mxu0 0.0
      %1242 = vmatprep.mubr.f32.mxu0 0.0
      %1243 = vmatmul.mubr.f32.gmra.mrb[0].mxu0 %v1176
      %v1244 = vpop.f32.mrb[0].mxu0
      %v1245 = vadd.f32 0.0, %v1244
      %v1246 = vpop.f32.mrb[0].mxu0
      %1247 = vdwg.mxu0
      %1248 = vrot.lane.b32.xlu0 %v910, 112
      %v1249 = vpop.permute.xlu0 %1248
      %1250 = vrot.lane.b32.xlu0 %v910, 80
      %v1251 = vpop.permute.xlu0 %1250
      %v1252 = vsel %vm916, %v1249, 0
      %v1254 = vsel %vm916, %v1251, 0
      %1256 = vmatprep.subr.mxu0 0.0
      %1257 = vmatpush1.xpose.msra.mxu0 %v1254
      %1258 = vmatprep.subr.mxu0 0.0
      %1259 = vmatpush1.xpose.msra.mxu0 0.0
      %1260 = vmatprep.subr.mxu0 0.0
      %1261 = vmatpush1.xpose.msra.mxu0 0.0
      %1262 = vmatprep.subr.mxu0 0.0
      %1263 = vmatpush1.xpose.msra.mxu0 0.0
      %1264 = vmatprep.subr.mxu0 0.0
      %1265 = vmatpush1.xpose.msra.mxu0 0.0
      %1266 = vmatprep.subr.mxu0 0.0
      %1267 = vmatpush1.xpose.msra.mxu0 0.0
      %1268 = vmatprep.subr.mxu0 0.0
      %1269 = vmatpush1.xpose.msra.mxu0 0.0
      %1270 = vmatprep.subr.mxu0 0.0
      %1271 = vmatpush1.xpose.msra.mxu0 0.0
      %1272 = vmatprep.subr.mxu0 0.0
      %1273 = vmatpush1.xpose.msra.mxu0 0.0
      %1274 = vmatprep.subr.mxu0 0.0
      %1275 = vmatpush1.xpose.msra.mxu0 0.0
      %1276 = vmatprep.subr.mxu0 0.0
      %1277 = vmatpush1.xpose.msra.mxu0 0.0
      %1278 = vmatprep.subr.mxu0 0.0
      %1279 = vmatpush1.xpose.msra.mxu0 0.0
      %1280 = vmatprep.subr.mxu0 0.0
      %1281 = vmatpush1.xpose.msra.mxu0 0.0
      %1282 = vmatprep.subr.mxu0 0.0
      %1283 = vmatpush1.xpose.msra.mxu0 0.0
      %1284 = vmatprep.subr.mxu0 0.0
      %1285 = vmatpush1.xpose.msra.mxu0 0.0
      %1286 = vmatprep.subr.mxu0 0.0
      %1287 = vmatpush1.xpose.msra.mxu0 0.0
      %1288 = vmatprep.subr.mxu0 0.0
      %1289 = vmatpush1.xpose.msra.mxu0 0.0
      %1290 = vmatprep.subr.mxu0 0.0
      %1291 = vmatpush1.xpose.msra.mxu0 0.0
      %1292 = vmatprep.subr.mxu0 0.0
      %1293 = vmatpush1.xpose.msra.mxu0 0.0
      %1294 = vmatprep.subr.mxu0 0.0
      %1295 = vmatpush1.xpose.msra.mxu0 0.0
      %1296 = vmatprep.subr.mxu0 0.0
      %1297 = vmatpush1.xpose.msra.mxu0 0.0
      %1298 = vmatprep.subr.mxu0 0.0
      %1299 = vmatpush1.xpose.msra.mxu0 0.0
      %1300 = vmatprep.subr.mxu0 0.0
      %1301 = vmatpush1.xpose.msra.mxu0 0.0
      %1302 = vmatprep.subr.mxu0 0.0
      %1303 = vmatpush1.xpose.msra.mxu0 0.0
      %1304 = vmatprep.subr.mxu0 0.0
      %1305 = vmatpush1.xpose.msra.mxu0 0.0
      %1306 = vmatprep.subr.mxu0 0.0
      %1307 = vmatpush1.xpose.msra.mxu0 0.0
      %1308 = vmatprep.subr.mxu0 0.0
      %1309 = vmatpush1.xpose.msra.mxu0 0.0
      %1310 = vmatprep.subr.mxu0 0.0
      %1311 = vmatpush1.xpose.msra.mxu0 0.0
      %1312 = vmatprep.subr.mxu0 0.0
      %1313 = vmatpush1.xpose.msra.mxu0 0.0
      %1314 = vmatprep.subr.mxu0 0.0
      %1315 = vmatpush1.xpose.msra.mxu0 0.0
      %1316 = vmatprep.subr.mxu0 0.0
      %1317 = vmatpush1.xpose.msra.mxu0 0.0
      %1318 = vmatprep.subr.mxu0 0.0
      %1319 = vmatpush1.xpose.msra.mxu0 0.0
      %1320 = vmatprep.mubr.f32.mxu0 0.0
      %1321 = vmatmul.mubr.f32.gmra.mrb[0].mxu0 %v1252
      %v1322 = vpop.f32.mrb[0].mxu0
      %v1323 = vadd.f32 0.0, %v1322
      %v1324 = vpop.f32.mrb[0].mxu0
      %1325 = vdwg.mxu0
      %v1326 = vmul.f32 %v1323, 0.35355338
      %v1327 = vsel %vm992, %v1326, -1e+10
      %v1328 = vsel %vm916, %v1327, -inf
      %1329 = vmax.xlane.f32.xlu0 %v1328
      %v1330 = vpop.xlane.xlu0 %1329
      %v1331 = vsub.f32 %v1327, %v1330
      %v1332 = vmul.f32 %v1331, 1.442695
      %v1333 = vpow.pop %v1332
      %v1334 = vsel %vm916, %v1333, 0.0
      %1335 = vadd.xlane.f32.xlu0 %v1334
      %v1336 = vpop.xlane.xlu0 %1335
      %v1337 = vrcp.pop %v1336
      %v1338 = vmul.f32 %v1333, %v1337
      %1339 = vrot.lane.b32.xlu0 %v910, 48
      %v1340 = vpop.permute.xlu0 %1339
      %v1343 = vsel %vm916, %v1338, 0
      %1345 = vmatprep.subr.mxu0 0.0
      %1346 = vmatpush1.msra.mxu0 %v1340
      %1347 = vmatprep.subr.mxu0 0.0
      %1348 = vmatpush1.msra.mxu0 0.0
      %1349 = vmatprep.subr.mxu0 0.0
      %1350 = vmatpush1.msra.mxu0 0.0
      %1351 = vmatprep.subr.mxu0 0.0
      %1352 = vmatpush1.msra.mxu0 0.0
      %1353 = vmatprep.subr.mxu0 0.0
      %1354 = vmatpush1.msra.mxu0 0.0
      %1355 = vmatprep.subr.mxu0 0.0
      %1356 = vmatpush1.msra.mxu0 0.0
      %1357 = vmatprep.subr.mxu0 0.0
      %1358 = vmatpush1.msra.mxu0 0.0
      %1359 = vmatprep.subr.mxu0 0.0
      %1360 = vmatpush1.msra.mxu0 0.0
      %1361 = vmatprep.subr.mxu0 0.0
      %1362 = vmatpush1.msra.mxu0 0.0
      %1363 = vmatprep.subr.mxu0 0.0
      %1364 = vmatpush1.msra.mxu0 0.0
      %1365 = vmatprep.subr.mxu0 0.0
      %1366 = vmatpush1.msra.mxu0 0.0
      %1367 = vmatprep.subr.mxu0 0.0
      %1368 = vmatpush1.msra.mxu0 0.0
      %1369 = vmatprep.subr.mxu0 0.0
      %1370 = vmatpush1.msra.mxu0 0.0
      %1371 = vmatprep.subr.mxu0 0.0
      %1372 = vmatpush1.msra.mxu0 0.0
      %1373 = vmatprep.subr.mxu0 0.0
      %1374 = vmatpush1.msra.mxu0 0.0
      %1375 = vmatprep.subr.mxu0 0.0
      %1376 = vmatpush1.msra.mxu0 0.0
      %1377 = vmatprep.subr.mxu0 0.0
      %1378 = vmatpush1.msra.mxu0 0.0
      %1379 = vmatprep.subr.mxu0 0.0
      %1380 = vmatpush1.msra.mxu0 0.0
      %1381 = vmatprep.subr.mxu0 0.0
      %1382 = vmatpush1.msra.mxu0 0.0
      %1383 = vmatprep.subr.mxu0 0.0
      %1384 = vmatpush1.msra.mxu0 0.0
      %1385 = vmatprep.subr.mxu0 0.0
      %1386 = vmatpush1.msra.mxu0 0.0
      %1387 = vmatprep.subr.mxu0 0.0
      %1388 = vmatpush1.msra.mxu0 0.0
      %1389 = vmatprep.subr.mxu0 0.0
      %1390 = vmatpush1.msra.mxu0 0.0
      %1391 = vmatprep.subr.mxu0 0.0
      %1392 = vmatpush1.msra.mxu0 0.0
      %1393 = vmatprep.subr.mxu0 0.0
      %1394 = vmatpush1.msra.mxu0 0.0
      %1395 = vmatprep.subr.mxu0 0.0
      %1396 = vmatpush1.msra.mxu0 0.0
      %1397 = vmatprep.subr.mxu0 0.0
      %1398 = vmatpush1.msra.mxu0 0.0
      %1399 = vmatprep.subr.mxu0 0.0
      %1400 = vmatpush1.msra.mxu0 0.0
      %1401 = vmatprep.subr.mxu0 0.0
      %1402 = vmatpush1.msra.mxu0 0.0
      %1403 = vmatprep.subr.mxu0 0.0
      %1404 = vmatpush1.msra.mxu0 0.0
      %1405 = vmatprep.subr.mxu0 0.0
      %1406 = vmatpush1.msra.mxu0 0.0
      %1407 = vmatprep.subr.mxu0 0.0
      %1408 = vmatpush1.msra.mxu0 0.0
      %1409 = vmatprep.mubr.f32.mxu0 0.0
      %1410 = vmatmul.mubr.f32.gmra.mrb[0].mxu0 %v1343
      %v1411 = vpop.f32.mrb[0].mxu0
      %v1412 = vadd.f32 0.0, %v1411
      %v1413 = vpop.f32.mrb[0].mxu0
      %1414 = vdwg.mxu0
      %1415 = vrot.lane.b32.xlu0 %v910, 104
      %v1416 = vpop.permute.xlu0 %1415
      %1417 = vrot.lane.b32.xlu0 %v910, 72
      %v1418 = vpop.permute.xlu0 %1417
      %v1419 = vsel %vm916, %v1416, 0
      %v1421 = vsel %vm916, %v1418, 0
      %1423 = vmatprep.subr.mxu0 0.0
      %1424 = vmatpush1.xpose.msra.mxu0 %v1421
      %1425 = vmatprep.subr.mxu0 0.0
      %1426 = vmatpush1.xpose.msra.mxu0 0.0
      %1427 = vmatprep.subr.mxu0 0.0
      %1428 = vmatpush1.xpose.msra.mxu0 0.0
      %1429 = vmatprep.subr.mxu0 0.0
      %1430 = vmatpush1.xpose.msra.mxu0 0.0
      %1431 = vmatprep.subr.mxu0 0.0
      %1432 = vmatpush1.xpose.msra.mxu0 0.0
      %1433 = vmatprep.subr.mxu0 0.0
      %1434 = vmatpush1.xpose.msra.mxu0 0.0
      %1435 = vmatprep.subr.mxu0 0.0
      %1436 = vmatpush1.xpose.msra.mxu0 0.0
      %1437 = vmatprep.subr.mxu0 0.0
      %1438 = vmatpush1.xpose.msra.mxu0 0.0
      %1439 = vmatprep.subr.mxu0 0.0
      %1440 = vmatpush1.xpose.msra.mxu0 0.0
      %1441 = vmatprep.subr.mxu0 0.0
      %1442 = vmatpush1.xpose.msra.mxu0 0.0
      %1443 = vmatprep.subr.mxu0 0.0
      %1444 = vmatpush1.xpose.msra.mxu0 0.0
      %1445 = vmatprep.subr.mxu0 0.0
      %1446 = vmatpush1.xpose.msra.mxu0 0.0
      %1447 = vmatprep.subr.mxu0 0.0
      %1448 = vmatpush1.xpose.msra.mxu0 0.0
      %1449 = vmatprep.subr.mxu0 0.0
      %1450 = vmatpush1.xpose.msra.mxu0 0.0
      %1451 = vmatprep.subr.mxu0 0.0
      %1452 = vmatpush1.xpose.msra.mxu0 0.0
      %1453 = vmatprep.subr.mxu0 0.0
      %1454 = vmatpush1.xpose.msra.mxu0 0.0
      %1455 = vmatprep.subr.mxu0 0.0
      %1456 = vmatpush1.xpose.msra.mxu0 0.0
      %1457 = vmatprep.subr.mxu0 0.0
      %1458 = vmatpush1.xpose.msra.mxu0 0.0
      %1459 = vmatprep.subr.mxu0 0.0
      %1460 = vmatpush1.xpose.msra.mxu0 0.0
      %1461 = vmatprep.subr.mxu0 0.0
      %1462 = vmatpush1.xpose.msra.mxu0 0.0
      %1463 = vmatprep.subr.mxu0 0.0
      %1464 = vmatpush1.xpose.msra.mxu0 0.0
      %1465 = vmatprep.subr.mxu0 0.0
      %1466 = vmatpush1.xpose.msra.mxu0 0.0
      %1467 = vmatprep.subr.mxu0 0.0
      %1468 = vmatpush1.xpose.msra.mxu0 0.0
      %1469 = vmatprep.subr.mxu0 0.0
      %1470 = vmatpush1.xpose.msra.mxu0 0.0
      %1471 = vmatprep.subr.mxu0 0.0
      %1472 = vmatpush1.xpose.msra.mxu0 0.0
      %1473 = vmatprep.subr.mxu0 0.0
      %1474 = vmatpush1.xpose.msra.mxu0 0.0
      %1475 = vmatprep.subr.mxu0 0.0
      %1476 = vmatpush1.xpose.msra.mxu0 0.0
      %1477 = vmatprep.subr.mxu0 0.0
      %1478 = vmatpush1.xpose.msra.mxu0 0.0
      %1479 = vmatprep.subr.mxu0 0.0
      %1480 = vmatpush1.xpose.msra.mxu0 0.0
      %1481 = vmatprep.subr.mxu0 0.0
      %1482 = vmatpush1.xpose.msra.mxu0 0.0
      %1483 = vmatprep.subr.mxu0 0.0
      %1484 = vmatpush1.xpose.msra.mxu0 0.0
      %1485 = vmatprep.subr.mxu0 0.0
      %1486 = vmatpush1.xpose.msra.mxu0 0.0
      %1487 = vmatprep.mubr.f32.mxu0 0.0
      %1488 = vmatmul.mubr.f32.gmra.mrb[0].mxu0 %v1419
      %v1489 = vpop.f32.mrb[0].mxu0
      %v1490 = vadd.f32 0.0, %v1489
      %v1491 = vpop.f32.mrb[0].mxu0
      %1492 = vdwg.mxu0
      %v1493 = vmul.f32 %v1490, 0.35355338
      %v1494 = vsel %vm992, %v1493, -1e+10
      %v1495 = vsel %vm916, %v1494, -inf
      %1496 = vmax.xlane.f32.xlu0 %v1495
      %v1497 = vpop.xlane.xlu0 %1496
      %v1498 = vsub.f32 %v1494, %v1497
      %v1499 = vmul.f32 %v1498, 1.442695
      %v1500 = vpow.pop %v1499
      %v1501 = vsel %vm916, %v1500, 0.0
      %1502 = vadd.xlane.f32.xlu0 %v1501
      %v1503 = vpop.xlane.xlu0 %1502
      %v1504 = vrcp.pop %v1503
      %v1505 = vmul.f32 %v1500, %v1504
      %1506 = vrot.lane.b32.xlu0 %v910, 40
      %v1507 = vpop.permute.xlu0 %1506
      %v1510 = vsel %vm916, %v1505, 0
      %1512 = vmatprep.subr.mxu0 0.0
      %1513 = vmatpush1.msra.mxu0 %v1507
      %1514 = vmatprep.subr.mxu0 0.0
      %1515 = vmatpush1.msra.mxu0 0.0
      %1516 = vmatprep.subr.mxu0 0.0
      %1517 = vmatpush1.msra.mxu0 0.0
      %1518 = vmatprep.subr.mxu0 0.0
      %1519 = vmatpush1.msra.mxu0 0.0
      %1520 = vmatprep.subr.mxu0 0.0
      %1521 = vmatpush1.msra.mxu0 0.0
      %1522 = vmatprep.subr.mxu0 0.0
      %1523 = vmatpush1.msra.mxu0 0.0
      %1524 = vmatprep.subr.mxu0 0.0
      %1525 = vmatpush1.msra.mxu0 0.0
      %1526 = vmatprep.subr.mxu0 0.0
      %1527 = vmatpush1.msra.mxu0 0.0
      %1528 = vmatprep.subr.mxu0 0.0
      %1529 = vmatpush1.msra.mxu0 0.0
      %1530 = vmatprep.subr.mxu0 0.0
      %1531 = vmatpush1.msra.mxu0 0.0
      %1532 = vmatprep.subr.mxu0 0.0
      %1533 = vmatpush1.msra.mxu0 0.0
      %1534 = vmatprep.subr.mxu0 0.0
      %1535 = vmatpush1.msra.mxu0 0.0
      %1536 = vmatprep.subr.mxu0 0.0
      %1537 = vmatpush1.msra.mxu0 0.0
      %1538 = vmatprep.subr.mxu0 0.0
      %1539 = vmatpush1.msra.mxu0 0.0
      %1540 = vmatprep.subr.mxu0 0.0
      %1541 = vmatpush1.msra.mxu0 0.0
      %1542 = vmatprep.subr.mxu0 0.0
      %1543 = vmatpush1.msra.mxu0 0.0
      %1544 = vmatprep.subr.mxu0 0.0
      %1545 = vmatpush1.msra.mxu0 0.0
      %1546 = vmatprep.subr.mxu0 0.0
      %1547 = vmatpush1.msra.mxu0 0.0
      %1548 = vmatprep.subr.mxu0 0.0
      %1549 = vmatpush1.msra.mxu0 0.0
      %1550 = vmatprep.subr.mxu0 0.0
      %1551 = vmatpush1.msra.mxu0 0.0
      %1552 = vmatprep.subr.mxu0 0.0
      %1553 = vmatpush1.msra.mxu0 0.0
      %1554 = vmatprep.subr.mxu0 0.0
      %1555 = vmatpush1.msra.mxu0 0.0
      %1556 = vmatprep.subr.mxu0 0.0
      %1557 = vmatpush1.msra.mxu0 0.0
      %1558 = vmatprep.subr.mxu0 0.0
      %1559 = vmatpush1.msra.mxu0 0.0
      %1560 = vmatprep.subr.mxu0 0.0
      %1561 = vmatpush1.msra.mxu0 0.0
      %1562 = vmatprep.subr.mxu0 0.0
      %1563 = vmatpush1.msra.mxu0 0.0
      %1564 = vmatprep.subr.mxu0 0.0
      %1565 = vmatpush1.msra.mxu0 0.0
      %1566 = vmatprep.subr.mxu0 0.0
      %1567 = vmatpush1.msra.mxu0 0.0
      %1568 = vmatprep.subr.mxu0 0.0
      %1569 = vmatpush1.msra.mxu0 0.0
      %1570 = vmatprep.subr.mxu0 0.0
      %1571 = vmatpush1.msra.mxu0 0.0
      %1572 = vmatprep.subr.mxu0 0.0
      %1573 = vmatpush1.msra.mxu0 0.0
      %1574 = vmatprep.subr.mxu0 0.0
      %1575 = vmatpush1.msra.mxu0 0.0
      %1576 = vmatprep.mubr.f32.mxu0 0.0
      %1577 = vmatmul.mubr.f32.gmra.mrb[0].mxu0 %v1510
      %v1578 = vpop.f32.mrb[0].mxu0
      %v1579 = vadd.f32 0.0, %v1578
      %v1580 = vpop.f32.mrb[0].mxu0
      %1581 = vdwg.mxu0
      %1583 = vrot.lane.b32.xlu0 %v1245, 8
      %v1584 = vpop.permute.xlu0 %1583
      %1587 = vrot.lane.b32.xlu0 %v1412, 16
      %v1588 = vpop.permute.xlu0 %1587
      %1591 = vrot.lane.b32.xlu0 %v1579, 24
      %v1592 = vpop.permute.xlu0 %1591
      %v1594 = vsel %vm916, %v1078, %v1584
      %vm1595 = vcmask 130048
      %v1596 = vsel %vm1595, %v1594, %v1588
      %vm1597 = vcmask 195584
      %v1598 = vsel %vm1597, %v1596, %v1592
      %v1600 = vlaneseq
      %v1601 = vshrl.u32 %v1600, 7
      %v1602 = vsub.s32 0, %v1601
      %v1603 = vrot.slane %v797, %v1602
      %v1606 = vsel %vm839, %v1598, 0
      %1608 = vmatprep.subr.mxu0 0.0
      %1609 = vmatpush1.msra.mxu0 %v793
      %1610 = vmatprep.subr.mxu0 0.0
      %1611 = vmatpush1.msra.mxu0 %v794
      %1612 = vmatprep.subr.mxu0 0.0
      %1613 = vmatpush1.msra.mxu0 %v795
      %1614 = vmatprep.subr.mxu0 0.0
      %1615 = vmatpush1.msra.mxu0 %v796
      %1616 = vmatprep.subr.mxu0 0.0
      %1617 = vmatpush1.msra.mxu0 0.0
      %1618 = vmatprep.subr.mxu0 0.0
      %1619 = vmatpush1.msra.mxu0 0.0
      %1620 = vmatprep.subr.mxu0 0.0
      %1621 = vmatpush1.msra.mxu0 0.0
      %1622 = vmatprep.subr.mxu0 0.0
      %1623 = vmatpush1.msra.mxu0 0.0
      %1624 = vmatprep.subr.mxu0 0.0
      %1625 = vmatpush1.msra.mxu0 0.0
      %1626 = vmatprep.subr.mxu0 0.0
      %1627 = vmatpush1.msra.mxu0 0.0
      %1628 = vmatprep.subr.mxu0 0.0
      %1629 = vmatpush1.msra.mxu0 0.0
      %1630 = vmatprep.subr.mxu0 0.0
      %1631 = vmatpush1.msra.mxu0 0.0
      %1632 = vmatprep.subr.mxu0 0.0
      %1633 = vmatpush1.msra.mxu0 0.0
      %1634 = vmatprep.subr.mxu0 0.0
      %1635 = vmatpush1.msra.mxu0 0.0
      %1636 = vmatprep.subr.mxu0 0.0
      %1637 = vmatpush1.msra.mxu0 0.0
      %1638 = vmatprep.subr.mxu0 0.0
      %1639 = vmatpush1.msra.mxu0 0.0
      %1640 = vmatprep.subr.mxu0 0.0
      %1641 = vmatpush1.msra.mxu0 0.0
      %1642 = vmatprep.subr.mxu0 0.0
      %1643 = vmatpush1.msra.mxu0 0.0
      %1644 = vmatprep.subr.mxu0 0.0
      %1645 = vmatpush1.msra.mxu0 0.0
      %1646 = vmatprep.subr.mxu0 0.0
      %1647 = vmatpush1.msra.mxu0 0.0
      %1648 = vmatprep.subr.mxu0 0.0
      %1649 = vmatpush1.msra.mxu0 0.0
      %1650 = vmatprep.subr.mxu0 0.0
      %1651 = vmatpush1.msra.mxu0 0.0
      %1652 = vmatprep.subr.mxu0 0.0
      %1653 = vmatpush1.msra.mxu0 0.0
      %1654 = vmatprep.subr.mxu0 0.0
      %1655 = vmatpush1.msra.mxu0 0.0
      %1656 = vmatprep.subr.mxu0 0.0
      %1657 = vmatpush1.msra.mxu0 0.0
      %1658 = vmatprep.subr.mxu0 0.0
      %1659 = vmatpush1.msra.mxu0 0.0
      %1660 = vmatprep.subr.mxu0 0.0
      %1661 = vmatpush1.msra.mxu0 0.0
      %1662 = vmatprep.subr.mxu0 0.0
      %1663 = vmatpush1.msra.mxu0 0.0
      %1664 = vmatprep.subr.mxu0 0.0
      %1665 = vmatpush1.msra.mxu0 0.0
      %1666 = vmatprep.subr.mxu0 0.0
      %1667 = vmatpush1.msra.mxu0 0.0
      %1668 = vmatprep.subr.mxu0 0.0
      %1669 = vmatpush1.msra.mxu0 0.0
      %1670 = vmatprep.subr.mxu0 0.0
      %1671 = vmatpush1.msra.mxu0 0.0
      %1672 = vmatprep.mubr.f32.mxu0 0.0
      %1673 = vmatmul.mubr.f32.gmra.mrb[0].mxu0 %v1606
      %v1674 = vpop.f32.mrb[0].mxu0
      %v1675 = vadd.f32 %v1603, %v1674
      %v1676 = vpop.f32.mrb[0].mxu0
      %1677 = vdwg.mxu0
      %v1678 = vadd.f32 %v784, %v1675
      %v1679 = vsel %vm839, %v1678, 0.0
      %1680 = vadd.xlane.f32.xlu0 %v1679
      %v1681 = vpop.xlane.xlu0 %1680
      %v1682 = vrcp.pop 32.0
      %v1683 = vmul.f32 %v1681, %v1682
      %v1684 = vsub.f32 %v1678, %v1683
      %v1685 = vmul.f32 %v1684, %v1684
      %v1686 = vsel %vm839, %v1685, 0.0
      %1687 = vadd.xlane.f32.xlu0 %v1686
      %v1688 = vpop.xlane.xlu0 %1687
      %v1689 = vmul.f32 %v1688, %v1682
      %v1690 = vadd.f32 %v1689, 1e-05
      %v1691 = vrsqrt.pop %v1690
      %v1692 = vmul.f32 %v1684, %v1691
      %v1694 = vlaneseq
      %v1695 = vshrl.u32 %v1694, 7
      %v1696 = vsub.s32 0, %v1695
      %v1697 = vrot.slane %v798, %v1696
      %v1699 = vmul.f32 %v1692, %v1697
      %v1701 = vlaneseq
      %v1702 = vshrl.u32 %v1701, 7
      %v1703 = vsub.s32 0, %v1702
      %v1704 = vrot.slane %v799, %v1703
      %v1706 = vadd.f32 %v1699, %v1704
      %v1708 = vlaneseq
      %v1709 = vshrl.u32 %v1708, 7
      %v1710 = vsub.s32 0, %v1709
      %v1711 = vrot.slane %v804, %v1710
      %v1714 = vsel %vm839, %v1706, 0
      %1716 = vmatprep.subr.mxu0 0.0
      %1717 = vmatpush1.msra.mxu0 %v800
      %1718 = vmatprep.subr.mxu0 0.0
      %1719 = vmatpush1.msra.mxu0 %v801
      %1720 = vmatprep.subr.mxu0 0.0
      %1721 = vmatpush1.msra.mxu0 %v802
      %1722 = vmatprep.subr.mxu0 0.0
      %1723 = vmatpush1.msra.mxu0 %v803
      %1724 = vmatprep.subr.mxu0 0.0
      %1725 = vmatpush1.msra.mxu0 0.0
      %1726 = vmatprep.subr.mxu0 0.0
      %1727 = vmatpush1.msra.mxu0 0.0
      %1728 = vmatprep.subr.mxu0 0.0
      %1729 = vmatpush1.msra.mxu0 0.0
      %1730 = vmatprep.subr.mxu0 0.0
      %1731 = vmatpush1.msra.mxu0 0.0
      %1732 = vmatprep.subr.mxu0 0.0
      %1733 = vmatpush1.msra.mxu0 0.0
      %1734 = vmatprep.subr.mxu0 0.0
      %1735 = vmatpush1.msra.mxu0 0.0
      %1736 = vmatprep.subr.mxu0 0.0
      %1737 = vmatpush1.msra.mxu0 0.0
      %1738 = vmatprep.subr.mxu0 0.0
      %1739 = vmatpush1.msra.mxu0 0.0
      %1740 = vmatprep.subr.mxu0 0.0
      %1741 = vmatpush1.msra.mxu0 0.0
      %1742 = vmatprep.subr.mxu0 0.0
      %1743 = vmatpush1.msra.mxu0 0.0
      %1744 = vmatprep.subr.mxu0 0.0
      %1745 = vmatpush1.msra.mxu0 0.0
      %1746 = vmatprep.subr.mxu0 0.0
      %1747 = vmatpush1.msra.mxu0 0.0
      %1748 = vmatprep.subr.mxu0 0.0
      %1749 = vmatpush1.msra.mxu0 0.0
      %1750 = vmatprep.subr.mxu0 0.0
      %1751 = vmatpush1.msra.mxu0 0.0
      %1752 = vmatprep.subr.mxu0 0.0
      %1753 = vmatpush1.msra.mxu0 0.0
      %1754 = vmatprep.subr.mxu0 0.0
      %1755 = vmatpush1.msra.mxu0 0.0
      %1756 = vmatprep.subr.mxu0 0.0
      %1757 = vmatpush1.msra.mxu0 0.0
      %1758 = vmatprep.subr.mxu0 0.0
      %1759 = vmatpush1.msra.mxu0 0.0
      %1760 = vmatprep.subr.mxu0 0.0
      %1761 = vmatpush1.msra.mxu0 0.0
      %1762 = vmatprep.subr.mxu0 0.0
      %1763 = vmatpush1.msra.mxu0 0.0
      %1764 = vmatprep.subr.mxu0 0.0
      %1765 = vmatpush1.msra.mxu0 0.0
      %1766 = vmatprep.subr.mxu0 0.0
      %1767 = vmatpush1.msra.mxu0 0.0
      %1768 = vmatprep.subr.mxu0 0.0
      %1769 = vmatpush1.msra.mxu0 0.0
      %1770 = vmatprep.subr.mxu0 0.0
      %1771 = vmatpush1.msra.mxu0 0.0
      %1772 = vmatprep.subr.mxu0 0.0
      %1773 = vmatpush1.msra.mxu0 0.0
      %1774 = vmatprep.subr.mxu0 0.0
      %1775 = vmatpush1.msra.mxu0 0.0
      %1776 = vmatprep.subr.mxu0 0.0
      %1777 = vmatpush1.msra.mxu0 0.0
      %1778 = vmatprep.subr.mxu0 0.0
      %1779 = vmatpush1.msra.mxu0 0.0
      %1780 = vmatprep.mubr.f32.mxu0 0.0
      %1781 = vmatmul.mubr.f32.gmra.mrb[0].mxu0 %v1714
      %v1782 = vpop.f32.mrb[0].mxu0
      %v1783 = vadd.f32 %v1711, %v1782
      %v1784 = vpop.f32.mrb[0].mxu0
      %1785 = vdwg.mxu0
      %v1787 = vlaneseq
      %v1788 = vshrl.u32 %v1787, 7
      %v1789 = vsub.s32 0, %v1788
      %v1790 = vrot.slane %v809, %v1789
      %v1793 = vsel %vm839, %v785, 0
      %1795 = vmatprep.subr.mxu0 0.0
      %1796 = vmatpush1.msra.mxu0 %v805
      %1797 = vmatprep.subr.mxu0 0.0
      %1798 = vmatpush1.msra.mxu0 %v806
      %1799 = vmatprep.subr.mxu0 0.0
      %1800 = vmatpush1.msra.mxu0 %v807
      %1801 = vmatprep.subr.mxu0 0.0
      %1802 = vmatpush1.msra.mxu0 %v808
      %1803 = vmatprep.subr.mxu0 0.0
      %1804 = vmatpush1.msra.mxu0 0.0
      %1805 = vmatprep.subr.mxu0 0.0
      %1806 = vmatpush1.msra.mxu0 0.0
      %1807 = vmatprep.subr.mxu0 0.0
      %1808 = vmatpush1.msra.mxu0 0.0
      %1809 = vmatprep.subr.mxu0 0.0
      %1810 = vmatpush1.msra.mxu0 0.0
      %1811 = vmatprep.subr.mxu0 0.0
      %1812 = vmatpush1.msra.mxu0 0.0
      %1813 = vmatprep.subr.mxu0 0.0
      %1814 = vmatpush1.msra.mxu0 0.0
      %1815 = vmatprep.subr.mxu0 0.0
      %1816 = vmatpush1.msra.mxu0 0.0
      %1817 = vmatprep.subr.mxu0 0.0
      %1818 = vmatpush1.msra.mxu0 0.0
      %1819 = vmatprep.subr.mxu0 0.0
      %1820 = vmatpush1.msra.mxu0 0.0
      %1821 = vmatprep.subr.mxu0 0.0
      %1822 = vmatpush1.msra.mxu0 0.0
      %1823 = vmatprep.subr.mxu0 0.0
      %1824 = vmatpush1.msra.mxu0 0.0
      %1825 = vmatprep.subr.mxu0 0.0
      %1826 = vmatpush1.msra.mxu0 0.0
      %1827 = vmatprep.subr.mxu0 0.0
      %1828 = vmatpush1.msra.mxu0 0.0
      %1829 = vmatprep.subr.mxu0 0.0
      %1830 = vmatpush1.msra.mxu0 0.0
      %1831 = vmatprep.subr.mxu0 0.0
      %1832 = vmatpush1.msra.mxu0 0.0
      %1833 = vmatprep.subr.mxu0 0.0
      %1834 = vmatpush1.msra.mxu0 0.0
      %1835 = vmatprep.subr.mxu0 0.0
      %1836 = vmatpush1.msra.mxu0 0.0
      %1837 = vmatprep.subr.mxu0 0.0
      %1838 = vmatpush1.msra.mxu0 0.0
      %1839 = vmatprep.subr.mxu0 0.0
      %1840 = vmatpush1.msra.mxu0 0.0
      %1841 = vmatprep.subr.mxu0 0.0
      %1842 = vmatpush1.msra.mxu0 0.0
      %1843 = vmatprep.subr.mxu0 0.0
      %1844 = vmatpush1.msra.mxu0 0.0
      %1845 = vmatprep.subr.mxu0 0.0
      %1846 = vmatpush1.msra.mxu0 0.0
      %1847 = vmatprep.subr.mxu0 0.0
      %1848 = vmatpush1.msra.mxu0 0.0
      %1849 = vmatprep.subr.mxu0 0.0
      %1850 = vmatpush1.msra.mxu0 0.0
      %1851 = vmatprep.subr.mxu0 0.0
      %1852 = vmatpush1.msra.mxu0 0.0
      %1853 = vmatprep.subr.mxu0 0.0
      %1854 = vmatpush1.msra.mxu0 0.0
      %1855 = vmatprep.subr.mxu0 0.0
      %1856 = vmatpush1.msra.mxu0 0.0
      %1857 = vmatprep.subr.mxu0 0.0
      %1858 = vmatpush1.msra.mxu0 0.0
      %1859 = vmatprep.mubr.f32.mxu0 0.0
      %1860 = vmatmul.mubr.f32.gmra.mrb[0].mxu0 %v1793
      %v1861 = vpop.f32.mrb[0].mxu0
      %v1862 = vadd.f32 %v1790, %v1861
      %v1863 = vpop.f32.mrb[0].mxu0
      %1864 = vdwg.mxu0
      %v1866 = vsel %vm916, %v1783, 0
      %v1869 = vsel %vm916, %v1862, 0
      %1871 = vmatprep.subr.mxu0 0.0
      %1872 = vmatpush1.xpose.msra.mxu0 %v1869
      %1873 = vmatprep.subr.mxu0 0.0
      %1874 = vmatpush1.xpose.msra.mxu0 0.0
      %1875 = vmatprep.subr.mxu0 0.0
      %1876 = vmatpush1.xpose.msra.mxu0 0.0
      %1877 = vmatprep.subr.mxu0 0.0
      %1878 = vmatpush1.xpose.msra.mxu0 0.0
      %1879 = vmatprep.subr.mxu0 0.0
      %1880 = vmatpush1.xpose.msra.mxu0 0.0
      %1881 = vmatprep.subr.mxu0 0.0
      %1882 = vmatpush1.xpose.msra.mxu0 0.0
      %1883 = vmatprep.subr.mxu0 0.0
      %1884 = vmatpush1.xpose.msra.mxu0 0.0
      %1885 = vmatprep.subr.mxu0 0.0
      %1886 = vmatpush1.xpose.msra.mxu0 0.0
      %1887 = vmatprep.subr.mxu0 0.0
      %1888 = vmatpush1.xpose.msra.mxu0 0.0
      %1889 = vmatprep.subr.mxu0 0.0
      %1890 = vmatpush1.xpose.msra.mxu0 0.0
      %1891 = vmatprep.subr.mxu0 0.0
      %1892 = vmatpush1.xpose.msra.mxu0 0.0
      %1893 = vmatprep.subr.mxu0 0.0
      %1894 = vmatpush1.xpose.msra.mxu0 0.0
      %1895 = vmatprep.subr.mxu0 0.0
      %1896 = vmatpush1.xpose.msra.mxu0 0.0
      %1897 = vmatprep.subr.mxu0 0.0
      %1898 = vmatpush1.xpose.msra.mxu0 0.0
      %1899 = vmatprep.subr.mxu0 0.0
      %1900 = vmatpush1.xpose.msra.mxu0 0.0
      %1901 = vmatprep.subr.mxu0 0.0
      %1902 = vmatpush1.xpose.msra.mxu0 0.0
      %1903 = vmatprep.subr.mxu0 0.0
      %1904 = vmatpush1.xpose.msra.mxu0 0.0
      %1905 = vmatprep.subr.mxu0 0.0
      %1906 = vmatpush1.xpose.msra.mxu0 0.0
      %1907 = vmatprep.subr.mxu0 0.0
      %1908 = vmatpush1.xpose.msra.mxu0 0.0
      %1909 = vmatprep.subr.mxu0 0.0
      %1910 = vmatpush1.xpose.msra.mxu0 0.0
      %1911 = vmatprep.subr.mxu0 0.0
      %1912 = vmatpush1.xpose.msra.mxu0 0.0
      %1913 = vmatprep.subr.mxu0 0.0
      %1914 = vmatpush1.xpose.msra.mxu0 0.0
      %1915 = vmatprep.subr.mxu0 0.0
      %1916 = vmatpush1.xpose.msra.mxu0 0.0
      %1917 = vmatprep.subr.mxu0 0.0
      %1918 = vmatpush1.xpose.msra.mxu0 0.0
      %1919 = vmatprep.subr.mxu0 0.0
      %1920 = vmatpush1.xpose.msra.mxu0 0.0
      %1921 = vmatprep.subr.mxu0 0.0
      %1922 = vmatpush1.xpose.msra.mxu0 0.0
      %1923 = vmatprep.subr.mxu0 0.0
      %1924 = vmatpush1.xpose.msra.mxu0 0.0
      %1925 = vmatprep.subr.mxu0 0.0
      %1926 = vmatpush1.xpose.msra.mxu0 0.0
      %1927 = vmatprep.subr.mxu0 0.0
      %1928 = vmatpush1.xpose.msra.mxu0 0.0
      %1929 = vmatprep.subr.mxu0 0.0
      %1930 = vmatpush1.xpose.msra.mxu0 0.0
      %1931 = vmatprep.subr.mxu0 0.0
      %1932 = vmatpush1.xpose.msra.mxu0 0.0
      %1933 = vmatprep.subr.mxu0 0.0
      %1934 = vmatpush1.xpose.msra.mxu0 0.0
      %1935 = vmatprep.mubr.f32.mxu0 0.0
      %1936 = vmatmul.mubr.f32.gmra.mrb[0].mxu0 %v1866
      %v1937 = vpop.f32.mrb[0].mxu0
      %v1938 = vadd.f32 0.0, %v1937
      %v1939 = vpop.f32.mrb[0].mxu0
      %1940 = vdwg.mxu0
      %v1941 = vmul.f32 %v1938, 0.35355338
      %vm1942 = vcmp.ne.f32.partialorder %v787, 0.0
      %v1943 = vsel %vm1942, %v1941, -1e+10
      %v1944 = vsel %vm916, %v1943, -inf
      %1945 = vmax.xlane.f32.xlu0 %v1944
      %v1946 = vpop.xlane.xlu0 %1945
      %v1947 = vsub.f32 %v1943, %v1946
      %v1948 = vmul.f32 %v1947, 1.442695
      %v1949 = vpow.pop %v1948
      %v1950 = vsel %vm916, %v1949, 0.0
      %1951 = vadd.xlane.f32.xlu0 %v1950
      %v1952 = vpop.xlane.xlu0 %1951
      %v1953 = vrcp.pop %v1952
      %v1954 = vmul.f32 %v1949, %v1953
      %1955 = vrot.lane.b32.xlu0 %v1862, 96
      %v1956 = vpop.permute.xlu0 %1955
      %v1959 = vsel %vm916, %v1954, 0
      %1961 = vmatprep.subr.mxu0 0.0
      %1962 = vmatpush1.msra.mxu0 %v1956
      %1963 = vmatprep.subr.mxu0 0.0
      %1964 = vmatpush1.msra.mxu0 0.0
      %1965 = vmatprep.subr.mxu0 0.0
      %1966 = vmatpush1.msra.mxu0 0.0
      %1967 = vmatprep.subr.mxu0 0.0
      %1968 = vmatpush1.msra.mxu0 0.0
      %1969 = vmatprep.subr.mxu0 0.0
      %1970 = vmatpush1.msra.mxu0 0.0
      %1971 = vmatprep.subr.mxu0 0.0
      %1972 = vmatpush1.msra.mxu0 0.0
      %1973 = vmatprep.subr.mxu0 0.0
      %1974 = vmatpush1.msra.mxu0 0.0
      %1975 = vmatprep.subr.mxu0 0.0
      %1976 = vmatpush1.msra.mxu0 0.0
      %1977 = vmatprep.subr.mxu0 0.0
      %1978 = vmatpush1.msra.mxu0 0.0
      %1979 = vmatprep.subr.mxu0 0.0
      %1980 = vmatpush1.msra.mxu0 0.0
      %1981 = vmatprep.subr.mxu0 0.0
      %1982 = vmatpush1.msra.mxu0 0.0
      %1983 = vmatprep.subr.mxu0 0.0
      %1984 = vmatpush1.msra.mxu0 0.0
      %1985 = vmatprep.subr.mxu0 0.0
      %1986 = vmatpush1.msra.mxu0 0.0
      %1987 = vmatprep.subr.mxu0 0.0
      %1988 = vmatpush1.msra.mxu0 0.0
      %1989 = vmatprep.subr.mxu0 0.0
      %1990 = vmatpush1.msra.mxu0 0.0
      %1991 = vmatprep.subr.mxu0 0.0
      %1992 = vmatpush1.msra.mxu0 0.0
      %1993 = vmatprep.subr.mxu0 0.0
      %1994 = vmatpush1.msra.mxu0 0.0
      %1995 = vmatprep.subr.mxu0 0.0
      %1996 = vmatpush1.msra.mxu0 0.0
      %1997 = vmatprep.subr.mxu0 0.0
      %1998 = vmatpush1.msra.mxu0 0.0
      %1999 = vmatprep.subr.mxu0 0.0
      %2000 = vmatpush1.msra.mxu0 0.0
      %2001 = vmatprep.subr.mxu0 0.0
      %2002 = vmatpush1.msra.mxu0 0.0
      %2003 = vmatprep.subr.mxu0 0.0
      %2004 = vmatpush1.msra.mxu0 0.0
      %2005 = vmatprep.subr.mxu0 0.0
      %2006 = vmatpush1.msra.mxu0 0.0
      %2007 = vmatprep.subr.mxu0 0.0
      %2008 = vmatpush1.msra.mxu0 0.0
      %2009 = vmatprep.subr.mxu0 0.0
      %2010 = vmatpush1.msra.mxu0 0.0
      %2011 = vmatprep.subr.mxu0 0.0
      %2012 = vmatpush1.msra.mxu0 0.0
      %2013 = vmatprep.subr.mxu0 0.0
      %2014 = vmatpush1.msra.mxu0 0.0
      %2015 = vmatprep.subr.mxu0 0.0
      %2016 = vmatpush1.msra.mxu0 0.0
      %2017 = vmatprep.subr.mxu0 0.0
      %2018 = vmatpush1.msra.mxu0 0.0
      %2019 = vmatprep.subr.mxu0 0.0
      %2020 = vmatpush1.msra.mxu0 0.0
      %2021 = vmatprep.subr.mxu0 0.0
      %2022 = vmatpush1.msra.mxu0 0.0
      %2023 = vmatprep.subr.mxu0 0.0
      %2024 = vmatpush1.msra.mxu0 0.0
      %2025 = vmatprep.mubr.f32.mxu0 0.0
      %2026 = vmatmul.mubr.f32.gmra.mrb[0].mxu0 %v1959
      %v2027 = vpop.f32.mrb[0].mxu0
      %v2028 = vadd.f32 0.0, %v2027
      %v2029 = vpop.f32.mrb[0].mxu0
      %2030 = vdwg.mxu0
      %2031 = vrot.lane.b32.xlu0 %v1783, 120
      %v2032 = vpop.permute.xlu0 %2031
      %2033 = vrot.lane.b32.xlu0 %v1862, 120
      %v2034 = vpop.permute.xlu0 %2033
      %v2035 = vsel %vm916, %v2032, 0
      %v2037 = vsel %vm916, %v2034, 0
      %2039 = vmatprep.subr.mxu0 0.0
      %2040 = vmatpush1.xpose.msra.mxu0 %v2037
      %2041 = vmatprep.subr.mxu0 0.0
      %2042 = vmatpush1.xpose.msra.mxu0 0.0
      %2043 = vmatprep.subr.mxu0 0.0
      %2044 = vmatpush1.xpose.msra.mxu0 0.0
      %2045 = vmatprep.subr.mxu0 0.0
      %2046 = vmatpush1.xpose.msra.mxu0 0.0
      %2047 = vmatprep.subr.mxu0 0.0
      %2048 = vmatpush1.xpose.msra.mxu0 0.0
      %2049 = vmatprep.subr.mxu0 0.0
      %2050 = vmatpush1.xpose.msra.mxu0 0.0
      %2051 = vmatprep.subr.mxu0 0.0
      %2052 = vmatpush1.xpose.msra.mxu0 0.0
      %2053 = vmatprep.subr.mxu0 0.0
      %2054 = vmatpush1.xpose.msra.mxu0 0.0
      %2055 = vmatprep.subr.mxu0 0.0
      %2056 = vmatpush1.xpose.msra.mxu0 0.0
      %2057 = vmatprep.subr.mxu0 0.0
      %2058 = vmatpush1.xpose.msra.mxu0 0.0
      %2059 = vmatprep.subr.mxu0 0.0
      %2060 = vmatpush1.xpose.msra.mxu0 0.0
      %2061 = vmatprep.subr.mxu0 0.0
      %2062 = vmatpush1.xpose.msra.mxu0 0.0
      %2063 = vmatprep.subr.mxu0 0.0
      %2064 = vmatpush1.xpose.msra.mxu0 0.0
      %2065 = vmatprep.subr.mxu0 0.0
      %2066 = vmatpush1.xpose.msra.mxu0 0.0
      %2067 = vmatprep.subr.mxu0 0.0
      %2068 = vmatpush1.xpose.msra.mxu0 0.0
      %2069 = vmatprep.subr.mxu0 0.0
      %2070 = vmatpush1.xpose.msra.mxu0 0.0
      %2071 = vmatprep.subr.mxu0 0.0
      %2072 = vmatpush1.xpose.msra.mxu0 0.0
      %2073 = vmatprep.subr.mxu0 0.0
      %2074 = vmatpush1.xpose.msra.mxu0 0.0
      %2075 = vmatprep.subr.mxu0 0.0
      %2076 = vmatpush1.xpose.msra.mxu0 0.0
      %2077 = vmatprep.subr.mxu0 0.0
      %2078 = vmatpush1.xpose.msra.mxu0 0.0
      %2079 = vmatprep.subr.mxu0 0.0
      %2080 = vmatpush1.xpose.msra.mxu0 0.0
      %2081 = vmatprep.subr.mxu0 0.0
      %2082 = vmatpush1.xpose.msra.mxu0 0.0
      %2083 = vmatprep.subr.mxu0 0.0
      %2084 = vmatpush1.xpose.msra.mxu0 0.0
      %2085 = vmatprep.subr.mxu0 0.0
      %2086 = vmatpush1.xpose.msra.mxu0 0.0
      %2087 = vmatprep.subr.mxu0 0.0
      %2088 = vmatpush1.xpose.msra.mxu0 0.0
      %2089 = vmatprep.subr.mxu0 0.0
      %2090 = vmatpush1.xpose.msra.mxu0 0.0
      %2091 = vmatprep.subr.mxu0 0.0
      %2092 = vmatpush1.xpose.msra.mxu0 0.0
      %2093 = vmatprep.subr.mxu0 0.0
      %2094 = vmatpush1.xpose.msra.mxu0 0.0
      %2095 = vmatprep.subr.mxu0 0.0
      %2096 = vmatpush1.xpose.msra.mxu0 0.0
      %2097 = vmatprep.subr.mxu0 0.0
      %2098 = vmatpush1.xpose.msra.mxu0 0.0
      %2099 = vmatprep.subr.mxu0 0.0
      %2100 = vmatpush1.xpose.msra.mxu0 0.0
      %2101 = vmatprep.subr.mxu0 0.0
      %2102 = vmatpush1.xpose.msra.mxu0 0.0
      %2103 = vmatprep.mubr.f32.mxu0 0.0
      %2104 = vmatmul.mubr.f32.gmra.mrb[0].mxu0 %v2035
      %v2105 = vpop.f32.mrb[0].mxu0
      %v2106 = vadd.f32 0.0, %v2105
      %v2107 = vpop.f32.mrb[0].mxu0
      %2108 = vdwg.mxu0
      %v2109 = vmul.f32 %v2106, 0.35355338
      %v2110 = vsel %vm1942, %v2109, -1e+10
      %v2111 = vsel %vm916, %v2110, -inf
      %2112 = vmax.xlane.f32.xlu0 %v2111
      %v2113 = vpop.xlane.xlu0 %2112
      %v2114 = vsub.f32 %v2110, %v2113
      %v2115 = vmul.f32 %v2114, 1.442695
      %v2116 = vpow.pop %v2115
      %v2117 = vsel %vm916, %v2116, 0.0
      %2118 = vadd.xlane.f32.xlu0 %v2117
      %v2119 = vpop.xlane.xlu0 %2118
      %v2120 = vrcp.pop %v2119
      %v2121 = vmul.f32 %v2116, %v2120
      %2122 = vrot.lane.b32.xlu0 %v1862, 88
      %v2123 = vpop.permute.xlu0 %2122
      %v2126 = vsel %vm916, %v2121, 0
      %2128 = vmatprep.subr.mxu0 0.0
      %2129 = vmatpush1.msra.mxu0 %v2123
      %2130 = vmatprep.subr.mxu0 0.0
      %2131 = vmatpush1.msra.mxu0 0.0
      %2132 = vmatprep.subr.mxu0 0.0
      %2133 = vmatpush1.msra.mxu0 0.0
      %2134 = vmatprep.subr.mxu0 0.0
      %2135 = vmatpush1.msra.mxu0 0.0
      %2136 = vmatprep.subr.mxu0 0.0
      %2137 = vmatpush1.msra.mxu0 0.0
      %2138 = vmatprep.subr.mxu0 0.0
      %2139 = vmatpush1.msra.mxu0 0.0
      %2140 = vmatprep.subr.mxu0 0.0
      %2141 = vmatpush1.msra.mxu0 0.0
      %2142 = vmatprep.subr.mxu0 0.0
      %2143 = vmatpush1.msra.mxu0 0.0
      %2144 = vmatprep.subr.mxu0 0.0
      %2145 = vmatpush1.msra.mxu0 0.0
      %2146 = vmatprep.subr.mxu0 0.0
      %2147 = vmatpush1.msra.mxu0 0.0
      %2148 = vmatprep.subr.mxu0 0.0
      %2149 = vmatpush1.msra.mxu0 0.0
      %2150 = vmatprep.subr.mxu0 0.0
      %2151 = vmatpush1.msra.mxu0 0.0
      %2152 = vmatprep.subr.mxu0 0.0
      %2153 = vmatpush1.msra.mxu0 0.0
      %2154 = vmatprep.subr.mxu0 0.0
      %2155 = vmatpush1.msra.mxu0 0.0
      %2156 = vmatprep.subr.mxu0 0.0
      %2157 = vmatpush1.msra.mxu0 0.0
      %2158 = vmatprep.subr.mxu0 0.0
      %2159 = vmatpush1.msra.mxu0 0.0
      %2160 = vmatprep.subr.mxu0 0.0
      %2161 = vmatpush1.msra.mxu0 0.0
      %2162 = vmatprep.subr.mxu0 0.0
      %2163 = vmatpush1.msra.mxu0 0.0
      %2164 = vmatprep.subr.mxu0 0.0
      %2165 = vmatpush1.msra.mxu0 0.0
      %2166 = vmatprep.subr.mxu0 0.0
      %2167 = vmatpush1.msra.mxu0 0.0
      %2168 = vmatprep.subr.mxu0 0.0
      %2169 = vmatpush1.msra.mxu0 0.0
      %2170 = vmatprep.subr.mxu0 0.0
      %2171 = vmatpush1.msra.mxu0 0.0
      %2172 = vmatprep.subr.mxu0 0.0
      %2173 = vmatpush1.msra.mxu0 0.0
      %2174 = vmatprep.subr.mxu0 0.0
      %2175 = vmatpush1.msra.mxu0 0.0
      %2176 = vmatprep.subr.mxu0 0.0
      %2177 = vmatpush1.msra.mxu0 0.0
      %2178 = vmatprep.subr.mxu0 0.0
      %2179 = vmatpush1.msra.mxu0 0.0
      %2180 = vmatprep.subr.mxu0 0.0
      %2181 = vmatpush1.msra.mxu0 0.0
      %2182 = vmatprep.subr.mxu0 0.0
      %2183 = vmatpush1.msra.mxu0 0.0
      %2184 = vmatprep.subr.mxu0 0.0
      %2185 = vmatpush1.msra.mxu0 0.0
      %2186 = vmatprep.subr.mxu0 0.0
      %2187 = vmatpush1.msra.mxu0 0.0
      %2188 = vmatprep.subr.mxu0 0.0
      %2189 = vmatpush1.msra.mxu0 0.0
      %2190 = vmatprep.subr.mxu0 0.0
      %2191 = vmatpush1.msra.mxu0 0.0
      %2192 = vmatprep.mubr.f32.mxu0 0.0
      %2193 = vmatmul.mubr.f32.gmra.mrb[0].mxu0 %v2126
      %v2194 = vpop.f32.mrb[0].mxu0
      %v2195 = vadd.f32 0.0, %v2194
      %v2196 = vpop.f32.mrb[0].mxu0
      %2197 = vdwg.mxu0
      %2198 = vrot.lane.b32.xlu0 %v1783, 112
      %v2199 = vpop.permute.xlu0 %2198
      %2200 = vrot.lane.b32.xlu0 %v1862, 112
      %v2201 = vpop.permute.xlu0 %2200
      %v2202 = vsel %vm916, %v2199, 0
      %v2204 = vsel %vm916, %v2201, 0
      %2206 = vmatprep.subr.mxu0 0.0
      %2207 = vmatpush1.xpose.msra.mxu0 %v2204
      %2208 = vmatprep.subr.mxu0 0.0
      %2209 = vmatpush1.xpose.msra.mxu0 0.0
      %2210 = vmatprep.subr.mxu0 0.0
      %2211 = vmatpush1.xpose.msra.mxu0 0.0
      %2212 = vmatprep.subr.mxu0 0.0
      %2213 = vmatpush1.xpose.msra.mxu0 0.0
      %2214 = vmatprep.subr.mxu0 0.0
      %2215 = vmatpush1.xpose.msra.mxu0 0.0
      %2216 = vmatprep.subr.mxu0 0.0
      %2217 = vmatpush1.xpose.msra.mxu0 0.0
      %2218 = vmatprep.subr.mxu0 0.0
      %2219 = vmatpush1.xpose.msra.mxu0 0.0
      %2220 = vmatprep.subr.mxu0 0.0
      %2221 = vmatpush1.xpose.msra.mxu0 0.0
      %2222 = vmatprep.subr.mxu0 0.0
      %2223 = vmatpush1.xpose.msra.mxu0 0.0
      %2224 = vmatprep.subr.mxu0 0.0
      %2225 = vmatpush1.xpose.msra.mxu0 0.0
      %2226 = vmatprep.subr.mxu0 0.0
      %2227 = vmatpush1.xpose.msra.mxu0 0.0
      %2228 = vmatprep.subr.mxu0 0.0
      %2229 = vmatpush1.xpose.msra.mxu0 0.0
      %2230 = vmatprep.subr.mxu0 0.0
      %2231 = vmatpush1.xpose.msra.mxu0 0.0
      %2232 = vmatprep.subr.mxu0 0.0
      %2233 = vmatpush1.xpose.msra.mxu0 0.0
      %2234 = vmatprep.subr.mxu0 0.0
      %2235 = vmatpush1.xpose.msra.mxu0 0.0
      %2236 = vmatprep.subr.mxu0 0.0
      %2237 = vmatpush1.xpose.msra.mxu0 0.0
      %2238 = vmatprep.subr.mxu0 0.0
      %2239 = vmatpush1.xpose.msra.mxu0 0.0
      %2240 = vmatprep.subr.mxu0 0.0
      %2241 = vmatpush1.xpose.msra.mxu0 0.0
      %2242 = vmatprep.subr.mxu0 0.0
      %2243 = vmatpush1.xpose.msra.mxu0 0.0
      %2244 = vmatprep.subr.mxu0 0.0
      %2245 = vmatpush1.xpose.msra.mxu0 0.0
      %2246 = vmatprep.subr.mxu0 0.0
      %2247 = vmatpush1.xpose.msra.mxu0 0.0
      %2248 = vmatprep.subr.mxu0 0.0
      %2249 = vmatpush1.xpose.msra.mxu0 0.0
      %2250 = vmatprep.subr.mxu0 0.0
      %2251 = vmatpush1.xpose.msra.mxu0 0.0
      %2252 = vmatprep.subr.mxu0 0.0
      %2253 = vmatpush1.xpose.msra.mxu0 0.0
      %2254 = vmatprep.subr.mxu0 0.0
      %2255 = vmatpush1.xpose.msra.mxu0 0.0
      %2256 = vmatprep.subr.mxu0 0.0
      %2257 = vmatpush1.xpose.msra.mxu0 0.0
      %2258 = vmatprep.subr.mxu0 0.0
      %2259 = vmatpush1.xpose.msra.mxu0 0.0
      %2260 = vmatprep.subr.mxu0 0.0
      %2261 = vmatpush1.xpose.msra.mxu0 0.0
      %2262 = vmatprep.subr.mxu0 0.0
      %2263 = vmatpush1.xpose.msra.mxu0 0.0
      %2264 = vmatprep.subr.mxu0 0.0
      %2265 = vmatpush1.xpose.msra.mxu0 0.0
      %2266 = vmatprep.subr.mxu0 0.0
      %2267 = vmatpush1.xpose.msra.mxu0 0.0
      %2268 = vmatprep.subr.mxu0 0.0
      %2269 = vmatpush1.xpose.msra.mxu0 0.0
      %2270 = vmatprep.mubr.f32.mxu0 0.0
      %2271 = vmatmul.mubr.f32.gmra.mrb[0].mxu0 %v2202
      %v2272 = vpop.f32.mrb[0].mxu0
      %v2273 = vadd.f32 0.0, %v2272
      %v2274 = vpop.f32.mrb[0].mxu0
      %2275 = vdwg.mxu0
      %v2276 = vmul.f32 %v2273, 0.35355338
      %v2277 = vsel %vm1942, %v2276, -1e+10
      %v2278 = vsel %vm916, %v2277, -inf
      %2279 = vmax.xlane.f32.xlu0 %v2278
      %v2280 = vpop.xlane.xlu0 %2279
      %v2281 = vsub.f32 %v2277, %v2280
      %v2282 = vmul.f32 %v2281, 1.442695
      %v2283 = vpow.pop %v2282
      %v2284 = vsel %vm916, %v2283, 0.0
      %2285 = vadd.xlane.f32.xlu0 %v2284
      %v2286 = vpop.xlane.xlu0 %2285
      %v2287 = vrcp.pop %v2286
      %v2288 = vmul.f32 %v2283, %v2287
      %2289 = vrot.lane.b32.xlu0 %v1862, 80
      %v2290 = vpop.permute.xlu0 %2289
      %v2293 = vsel %vm916, %v2288, 0
      %2295 = vmatprep.subr.mxu0 0.0
      %2296 = vmatpush1.msra.mxu0 %v2290
      %2297 = vmatprep.subr.mxu0 0.0
      %2298 = vmatpush1.msra.mxu0 0.0
      %2299 = vmatprep.subr.mxu0 0.0
      %2300 = vmatpush1.msra.mxu0 0.0
      %2301 = vmatprep.subr.mxu0 0.0
      %2302 = vmatpush1.msra.mxu0 0.0
      %2303 = vmatprep.subr.mxu0 0.0
      %2304 = vmatpush1.msra.mxu0 0.0
      %2305 = vmatprep.subr.mxu0 0.0
      %2306 = vmatpush1.msra.mxu0 0.0
      %2307 = vmatprep.subr.mxu0 0.0
      %2308 = vmatpush1.msra.mxu0 0.0
      %2309 = vmatprep.subr.mxu0 0.0
      %2310 = vmatpush1.msra.mxu0 0.0
      %2311 = vmatprep.subr.mxu0 0.0
      %2312 = vmatpush1.msra.mxu0 0.0
      %2313 = vmatprep.subr.mxu0 0.0
      %2314 = vmatpush1.msra.mxu0 0.0
      %2315 = vmatprep.subr.mxu0 0.0
      %2316 = vmatpush1.msra.mxu0 0.0
      %2317 = vmatprep.subr.mxu0 0.0
      %2318 = vmatpush1.msra.mxu0 0.0
      %2319 = vmatprep.subr.mxu0 0.0
      %2320 = vmatpush1.msra.mxu0 0.0
      %2321 = vmatprep.subr.mxu0 0.0
      %2322 = vmatpush1.msra.mxu0 0.0
      %2323 = vmatprep.subr.mxu0 0.0
      %2324 = vmatpush1.msra.mxu0 0.0
      %2325 = vmatprep.subr.mxu0 0.0
      %2326 = vmatpush1.msra.mxu0 0.0
      %2327 = vmatprep.subr.mxu0 0.0
      %2328 = vmatpush1.msra.mxu0 0.0
      %2329 = vmatprep.subr.mxu0 0.0
      %2330 = vmatpush1.msra.mxu0 0.0
      %2331 = vmatprep.subr.mxu0 0.0
      %2332 = vmatpush1.msra.mxu0 0.0
      %2333 = vmatprep.subr.mxu0 0.0
      %2334 = vmatpush1.msra.mxu0 0.0
      %2335 = vmatprep.subr.mxu0 0.0
      %2336 = vmatpush1.msra.mxu0 0.0
      %2337 = vmatprep.subr.mxu0 0.0
      %2338 = vmatpush1.msra.mxu0 0.0
      %2339 = vmatprep.subr.mxu0 0.0
      %2340 = vmatpush1.msra.mxu0 0.0
      %2341 = vmatprep.subr.mxu0 0.0
      %2342 = vmatpush1.msra.mxu0 0.0
      %2343 = vmatprep.subr.mxu0 0.0
      %2344 = vmatpush1.msra.mxu0 0.0
      %2345 = vmatprep.subr.mxu0 0.0
      %2346 = vmatpush1.msra.mxu0 0.0
      %2347 = vmatprep.subr.mxu0 0.0
      %2348 = vmatpush1.msra.mxu0 0.0
      %2349 = vmatprep.subr.mxu0 0.0
      %2350 = vmatpush1.msra.mxu0 0.0
      %2351 = vmatprep.subr.mxu0 0.0
      %2352 = vmatpush1.msra.mxu0 0.0
      %2353 = vmatprep.subr.mxu0 0.0
      %2354 = vmatpush1.msra.mxu0 0.0
      %2355 = vmatprep.subr.mxu0 0.0
      %2356 = vmatpush1.msra.mxu0 0.0
      %2357 = vmatprep.subr.mxu0 0.0
      %2358 = vmatpush1.msra.mxu0 0.0
      %2359 = vmatprep.mubr.f32.mxu0 0.0
      %2360 = vmatmul.mubr.f32.gmra.mrb[0].mxu0 %v2293
      %v2361 = vpop.f32.mrb[0].mxu0
      %v2362 = vadd.f32 0.0, %v2361
      %v2363 = vpop.f32.mrb[0].mxu0
      %2364 = vdwg.mxu0
      %2365 = vrot.lane.b32.xlu0 %v1783, 104
      %v2366 = vpop.permute.xlu0 %2365
      %2367 = vrot.lane.b32.xlu0 %v1862, 104
      %v2368 = vpop.permute.xlu0 %2367
      %v2369 = vsel %vm916, %v2366, 0
      %v2371 = vsel %vm916, %v2368, 0
      %2373 = vmatprep.subr.mxu0 0.0
      %2374 = vmatpush1.xpose.msra.mxu0 %v2371
      %2375 = vmatprep.subr.mxu0 0.0
      %2376 = vmatpush1.xpose.msra.mxu0 0.0
      %2377 = vmatprep.subr.mxu0 0.0
      %2378 = vmatpush1.xpose.msra.mxu0 0.0
      %2379 = vmatprep.subr.mxu0 0.0
      %2380 = vmatpush1.xpose.msra.mxu0 0.0
      %2381 = vmatprep.subr.mxu0 0.0
      %2382 = vmatpush1.xpose.msra.mxu0 0.0
      %2383 = vmatprep.subr.mxu0 0.0
      %2384 = vmatpush1.xpose.msra.mxu0 0.0
      %2385 = vmatprep.subr.mxu0 0.0
      %2386 = vmatpush1.xpose.msra.mxu0 0.0
      %2387 = vmatprep.subr.mxu0 0.0
      %2388 = vmatpush1.xpose.msra.mxu0 0.0
      %2389 = vmatprep.subr.mxu0 0.0
      %2390 = vmatpush1.xpose.msra.mxu0 0.0
      %2391 = vmatprep.subr.mxu0 0.0
      %2392 = vmatpush1.xpose.msra.mxu0 0.0
      %2393 = vmatprep.subr.mxu0 0.0
      %2394 = vmatpush1.xpose.msra.mxu0 0.0
      %2395 = vmatprep.subr.mxu0 0.0
      %2396 = vmatpush1.xpose.msra.mxu0 0.0
      %2397 = vmatprep.subr.mxu0 0.0
      %2398 = vmatpush1.xpose.msra.mxu0 0.0
      %2399 = vmatprep.subr.mxu0 0.0
      %2400 = vmatpush1.xpose.msra.mxu0 0.0
      %2401 = vmatprep.subr.mxu0 0.0
      %2402 = vmatpush1.xpose.msra.mxu0 0.0
      %2403 = vmatprep.subr.mxu0 0.0
      %2404 = vmatpush1.xpose.msra.mxu0 0.0
      %2405 = vmatprep.subr.mxu0 0.0
      %2406 = vmatpush1.xpose.msra.mxu0 0.0
      %2407 = vmatprep.subr.mxu0 0.0
      %2408 = vmatpush1.xpose.msra.mxu0 0.0
      %2409 = vmatprep.subr.mxu0 0.0
      %2410 = vmatpush1.xpose.msra.mxu0 0.0
      %2411 = vmatprep.subr.mxu0 0.0
      %2412 = vmatpush1.xpose.msra.mxu0 0.0
      %2413 = vmatprep.subr.mxu0 0.0
      %2414 = vmatpush1.xpose.msra.mxu0 0.0
      %2415 = vmatprep.subr.mxu0 0.0
      %2416 = vmatpush1.xpose.msra.mxu0 0.0
      %2417 = vmatprep.subr.mxu0 0.0
      %2418 = vmatpush1.xpose.msra.mxu0 0.0
      %2419 = vmatprep.subr.mxu0 0.0
      %2420 = vmatpush1.xpose.msra.mxu0 0.0
      %2421 = vmatprep.subr.mxu0 0.0
      %2422 = vmatpush1.xpose.msra.mxu0 0.0
      %2423 = vmatprep.subr.mxu0 0.0
      %2424 = vmatpush1.xpose.msra.mxu0 0.0
      %2425 = vmatprep.subr.mxu0 0.0
      %2426 = vmatpush1.xpose.msra.mxu0 0.0
      %2427 = vmatprep.subr.mxu0 0.0
      %2428 = vmatpush1.xpose.msra.mxu0 0.0
      %2429 = vmatprep.subr.mxu0 0.0
      %2430 = vmatpush1.xpose.msra.mxu0 0.0
      %2431 = vmatprep.subr.mxu0 0.0
      %2432 = vmatpush1.xpose.msra.mxu0 0.0
      %2433 = vmatprep.subr.mxu0 0.0
      %2434 = vmatpush1.xpose.msra.mxu0 0.0
      %2435 = vmatprep.subr.mxu0 0.0
      %2436 = vmatpush1.xpose.msra.mxu0 0.0
      %2437 = vmatprep.mubr.f32.mxu0 0.0
      %2438 = vmatmul.mubr.f32.gmra.mrb[0].mxu0 %v2369
      %v2439 = vpop.f32.mrb[0].mxu0
      %v2440 = vadd.f32 0.0, %v2439
      %v2441 = vpop.f32.mrb[0].mxu0
      %2442 = vdwg.mxu0
      %v2443 = vmul.f32 %v2440, 0.35355338
      %v2444 = vsel %vm1942, %v2443, -1e+10
      %v2445 = vsel %vm916, %v2444, -inf
      %2446 = vmax.xlane.f32.xlu0 %v2445
      %v2447 = vpop.xlane.xlu0 %2446
      %v2448 = vsub.f32 %v2444, %v2447
      %v2449 = vmul.f32 %v2448, 1.442695
      %v2450 = vpow.pop %v2449
      %v2451 = vsel %vm916, %v2450, 0.0
      %2452 = vadd.xlane.f32.xlu0 %v2451
      %v2453 = vpop.xlane.xlu0 %2452
      %v2454 = vrcp.pop %v2453
      %v2455 = vmul.f32 %v2450, %v2454
      %2456 = vrot.lane.b32.xlu0 %v1862, 72
      %v2457 = vpop.permute.xlu0 %2456
      %v2460 = vsel %vm916, %v2455, 0
      %2462 = vmatprep.subr.mxu0 0.0
      %2463 = vmatpush1.msra.mxu0 %v2457
      %2464 = vmatprep.subr.mxu0 0.0
      %2465 = vmatpush1.msra.mxu0 0.0
      %2466 = vmatprep.subr.mxu0 0.0
      %2467 = vmatpush1.msra.mxu0 0.0
      %2468 = vmatprep.subr.mxu0 0.0
      %2469 = vmatpush1.msra.mxu0 0.0
      %2470 = vmatprep.subr.mxu0 0.0
      %2471 = vmatpush1.msra.mxu0 0.0
      %2472 = vmatprep.subr.mxu0 0.0
      %2473 = vmatpush1.msra.mxu0 0.0
      %2474 = vmatprep.subr.mxu0 0.0
      %2475 = vmatpush1.msra.mxu0 0.0
      %2476 = vmatprep.subr.mxu0 0.0
      %2477 = vmatpush1.msra.mxu0 0.0
      %2478 = vmatprep.subr.mxu0 0.0
      %2479 = vmatpush1.msra.mxu0 0.0
      %2480 = vmatprep.subr.mxu0 0.0
      %2481 = vmatpush1.msra.mxu0 0.0
      %2482 = vmatprep.subr.mxu0 0.0
      %2483 = vmatpush1.msra.mxu0 0.0
      %2484 = vmatprep.subr.mxu0 0.0
      %2485 = vmatpush1.msra.mxu0 0.0
      %2486 = vmatprep.subr.mxu0 0.0
      %2487 = vmatpush1.msra.mxu0 0.0
      %2488 = vmatprep.subr.mxu0 0.0
      %2489 = vmatpush1.msra.mxu0 0.0
      %2490 = vmatprep.subr.mxu0 0.0
      %2491 = vmatpush1.msra.mxu0 0.0
      %2492 = vmatprep.subr.mxu0 0.0
      %2493 = vmatpush1.msra.mxu0 0.0
      %2494 = vmatprep.subr.mxu0 0.0
      %2495 = vmatpush1.msra.mxu0 0.0
      %2496 = vmatprep.subr.mxu0 0.0
      %2497 = vmatpush1.msra.mxu0 0.0
      %2498 = vmatprep.subr.mxu0 0.0
      %2499 = vmatpush1.msra.mxu0 0.0
      %2500 = vmatprep.subr.mxu0 0.0
      %2501 = vmatpush1.msra.mxu0 0.0
      %2502 = vmatprep.subr.mxu0 0.0
      %2503 = vmatpush1.msra.mxu0 0.0
      %2504 = vmatprep.subr.mxu0 0.0
      %2505 = vmatpush1.msra.mxu0 0.0
      %2506 = vmatprep.subr.mxu0 0.0
      %2507 = vmatpush1.msra.mxu0 0.0
      %2508 = vmatprep.subr.mxu0 0.0
      %2509 = vmatpush1.msra.mxu0 0.0
      %2510 = vmatprep.subr.mxu0 0.0
      %2511 = vmatpush1.msra.mxu0 0.0
      %2512 = vmatprep.subr.mxu0 0.0
      %2513 = vmatpush1.msra.mxu0 0.0
      %2514 = vmatprep.subr.mxu0 0.0
      %2515 = vmatpush1.msra.mxu0 0.0
      %2516 = vmatprep.subr.mxu0 0.0
      %2517 = vmatpush1.msra.mxu0 0.0
      %2518 = vmatprep.subr.mxu0 0.0
      %2519 = vmatpush1.msra.mxu0 0.0
      %2520 = vmatprep.subr.mxu0 0.0
      %2521 = vmatpush1.msra.mxu0 0.0
      %2522 = vmatprep.subr.mxu0 0.0
      %2523 = vmatpush1.msra.mxu0 0.0
      %2524 = vmatprep.subr.mxu0 0.0
      %2525 = vmatpush1.msra.mxu0 0.0
      %2526 = vmatprep.mubr.f32.mxu0 0.0
      %2527 = vmatmul.mubr.f32.gmra.mrb[0].mxu0 %v2460
      %v2528 = vpop.f32.mrb[0].mxu0
      %v2529 = vadd.f32 0.0, %v2528
      %v2530 = vpop.f32.mrb[0].mxu0
      %2531 = vdwg.mxu0
      %2533 = vrot.lane.b32.xlu0 %v2195, 8
      %v2534 = vpop.permute.xlu0 %2533
      %2537 = vrot.lane.b32.xlu0 %v2362, 16
      %v2538 = vpop.permute.xlu0 %2537
      %2541 = vrot.lane.b32.xlu0 %v2529, 24
      %v2542 = vpop.permute.xlu0 %2541
      %v2544 = vsel %vm916, %v2028, %v2534
      %v2545 = vsel %vm1595, %v2544, %v2538
      %v2546 = vsel %vm1597, %v2545, %v2542
      %v2548 = vlaneseq
      %v2549 = vshrl.u32 %v2548, 7
      %v2550 = vsub.s32 0, %v2549
      %v2551 = vrot.slane %v814, %v2550
      %v2554 = vsel %vm839, %v2546, 0
      %2556 = vmatprep.subr.mxu0 0.0
      %2557 = vmatpush1.msra.mxu0 %v810
      %2558 = vmatprep.subr.mxu0 0.0
      %2559 = vmatpush1.msra.mxu0 %v811
      %2560 = vmatprep.subr.mxu0 0.0
      %2561 = vmatpush1.msra.mxu0 %v812
      %2562 = vmatprep.subr.mxu0 0.0
      %2563 = vmatpush1.msra.mxu0 %v813
      %2564 = vmatprep.subr.mxu0 0.0
      %2565 = vmatpush1.msra.mxu0 0.0
      %2566 = vmatprep.subr.mxu0 0.0
      %2567 = vmatpush1.msra.mxu0 0.0
      %2568 = vmatprep.subr.mxu0 0.0
      %2569 = vmatpush1.msra.mxu0 0.0
      %2570 = vmatprep.subr.mxu0 0.0
      %2571 = vmatpush1.msra.mxu0 0.0
      %2572 = vmatprep.subr.mxu0 0.0
      %2573 = vmatpush1.msra.mxu0 0.0
      %2574 = vmatprep.subr.mxu0 0.0
      %2575 = vmatpush1.msra.mxu0 0.0
      %2576 = vmatprep.subr.mxu0 0.0
      %2577 = vmatpush1.msra.mxu0 0.0
      %2578 = vmatprep.subr.mxu0 0.0
      %2579 = vmatpush1.msra.mxu0 0.0
      %2580 = vmatprep.subr.mxu0 0.0
      %2581 = vmatpush1.msra.mxu0 0.0
      %2582 = vmatprep.subr.mxu0 0.0
      %2583 = vmatpush1.msra.mxu0 0.0
      %2584 = vmatprep.subr.mxu0 0.0
      %2585 = vmatpush1.msra.mxu0 0.0
      %2586 = vmatprep.subr.mxu0 0.0
      %2587 = vmatpush1.msra.mxu0 0.0
      %2588 = vmatprep.subr.mxu0 0.0
      %2589 = vmatpush1.msra.mxu0 0.0
      %2590 = vmatprep.subr.mxu0 0.0
      %2591 = vmatpush1.msra.mxu0 0.0
      %2592 = vmatprep.subr.mxu0 0.0
      %2593 = vmatpush1.msra.mxu0 0.0
      %2594 = vmatprep.subr.mxu0 0.0
      %2595 = vmatpush1.msra.mxu0 0.0
      %2596 = vmatprep.subr.mxu0 0.0
      %2597 = vmatpush1.msra.mxu0 0.0
      %2598 = vmatprep.subr.mxu0 0.0
      %2599 = vmatpush1.msra.mxu0 0.0
      %2600 = vmatprep.subr.mxu0 0.0
      %2601 = vmatpush1.msra.mxu0 0.0
      %2602 = vmatprep.subr.mxu0 0.0
      %2603 = vmatpush1.msra.mxu0 0.0
      %2604 = vmatprep.subr.mxu0 0.0
      %2605 = vmatpush1.msra.mxu0 0.0
      %2606 = vmatprep.subr.mxu0 0.0
      %2607 = vmatpush1.msra.mxu0 0.0
      %2608 = vmatprep.subr.mxu0 0.0
      %2609 = vmatpush1.msra.mxu0 0.0
      %2610 = vmatprep.subr.mxu0 0.0
      %2611 = vmatpush1.msra.mxu0 0.0
      %2612 = vmatprep.subr.mxu0 0.0
      %2613 = vmatpush1.msra.mxu0 0.0
      %2614 = vmatprep.subr.mxu0 0.0
      %2615 = vmatpush1.msra.mxu0 0.0
      %2616 = vmatprep.subr.mxu0 0.0
      %2617 = vmatpush1.msra.mxu0 0.0
      %2618 = vmatprep.subr.mxu0 0.0
      %2619 = vmatpush1.msra.mxu0 0.0
      %2620 = vmatprep.mubr.f32.mxu0 0.0
      %2621 = vmatmul.mubr.f32.gmra.mrb[0].mxu0 %v2554
      %v2622 = vpop.f32.mrb[0].mxu0
      %v2623 = vadd.f32 %v2551, %v2622
      %v2624 = vpop.f32.mrb[0].mxu0
      %2625 = vdwg.mxu0
      %v2626 = vadd.f32 %v1706, %v2623
      %v2627 = vsel %vm839, %v2626, 0.0
      %2628 = vadd.xlane.f32.xlu0 %v2627
      %v2629 = vpop.xlane.xlu0 %2628
      %v2630 = vmul.f32 %v2629, %v1682
      %v2631 = vsub.f32 %v2626, %v2630
      %v2632 = vmul.f32 %v2631, %v2631
      %v2633 = vsel %vm839, %v2632, 0.0
      %2634 = vadd.xlane.f32.xlu0 %v2633
      %v2635 = vpop.xlane.xlu0 %2634
      %v2636 = vmul.f32 %v2635, %v1682
      %v2637 = vadd.f32 %v2636, 1e-05
      %v2638 = vrsqrt.pop %v2637
      %v2639 = vmul.f32 %v2631, %v2638
      %v2641 = vlaneseq
      %v2642 = vshrl.u32 %v2641, 7
      %v2643 = vsub.s32 0, %v2642
      %v2644 = vrot.slane %v815, %v2643
      %v2646 = vmul.f32 %v2639, %v2644
      %v2648 = vlaneseq
      %v2649 = vshrl.u32 %v2648, 7
      %v2650 = vsub.s32 0, %v2649
      %v2651 = vrot.slane %v816, %v2650
      %v2653 = vadd.f32 %v2646, %v2651
      %v2655 = vlaneseq
      %v2656 = vshrl.u32 %v2655, 7
      %v2657 = vsub.s32 0, %v2656
      %v2658 = vrot.slane %v821, %v2657
      %v2661 = vsel %vm839, %v2653, 0
      %2663 = vmatprep.subr.mxu0 0.0
      %2664 = vmatpush1.msra.mxu0 %v817
      %2665 = vmatprep.subr.mxu0 0.0
      %2666 = vmatpush1.msra.mxu0 %v818
      %2667 = vmatprep.subr.mxu0 0.0
      %2668 = vmatpush1.msra.mxu0 %v819
      %2669 = vmatprep.subr.mxu0 0.0
      %2670 = vmatpush1.msra.mxu0 %v820
      %2671 = vmatprep.subr.mxu0 0.0
      %2672 = vmatpush1.msra.mxu0 0.0
      %2673 = vmatprep.subr.mxu0 0.0
      %2674 = vmatpush1.msra.mxu0 0.0
      %2675 = vmatprep.subr.mxu0 0.0
      %2676 = vmatpush1.msra.mxu0 0.0
      %2677 = vmatprep.subr.mxu0 0.0
      %2678 = vmatpush1.msra.mxu0 0.0
      %2679 = vmatprep.subr.mxu0 0.0
      %2680 = vmatpush1.msra.mxu0 0.0
      %2681 = vmatprep.subr.mxu0 0.0
      %2682 = vmatpush1.msra.mxu0 0.0
      %2683 = vmatprep.subr.mxu0 0.0
      %2684 = vmatpush1.msra.mxu0 0.0
      %2685 = vmatprep.subr.mxu0 0.0
      %2686 = vmatpush1.msra.mxu0 0.0
      %2687 = vmatprep.subr.mxu0 0.0
      %2688 = vmatpush1.msra.mxu0 0.0
      %2689 = vmatprep.subr.mxu0 0.0
      %2690 = vmatpush1.msra.mxu0 0.0
      %2691 = vmatprep.subr.mxu0 0.0
      %2692 = vmatpush1.msra.mxu0 0.0
      %2693 = vmatprep.subr.mxu0 0.0
      %2694 = vmatpush1.msra.mxu0 0.0
      %2695 = vmatprep.subr.mxu0 0.0
      %2696 = vmatpush1.msra.mxu0 0.0
      %2697 = vmatprep.subr.mxu0 0.0
      %2698 = vmatpush1.msra.mxu0 0.0
      %2699 = vmatprep.subr.mxu0 0.0
      %2700 = vmatpush1.msra.mxu0 0.0
      %2701 = vmatprep.subr.mxu0 0.0
      %2702 = vmatpush1.msra.mxu0 0.0
      %2703 = vmatprep.subr.mxu0 0.0
      %2704 = vmatpush1.msra.mxu0 0.0
      %2705 = vmatprep.subr.mxu0 0.0
      %2706 = vmatpush1.msra.mxu0 0.0
      %2707 = vmatprep.subr.mxu0 0.0
      %2708 = vmatpush1.msra.mxu0 0.0
      %2709 = vmatprep.subr.mxu0 0.0
      %2710 = vmatpush1.msra.mxu0 0.0
      %2711 = vmatprep.subr.mxu0 0.0
      %2712 = vmatpush1.msra.mxu0 0.0
      %2713 = vmatprep.subr.mxu0 0.0
      %2714 = vmatpush1.msra.mxu0 0.0
      %2715 = vmatprep.subr.mxu0 0.0
      %2716 = vmatpush1.msra.mxu0 0.0
      %2717 = vmatprep.subr.mxu0 0.0
      %2718 = vmatpush1.msra.mxu0 0.0
      %2719 = vmatprep.subr.mxu0 0.0
      %2720 = vmatpush1.msra.mxu0 0.0
      %2721 = vmatprep.subr.mxu0 0.0
      %2722 = vmatpush1.msra.mxu0 0.0
      %2723 = vmatprep.subr.mxu0 0.0
      %2724 = vmatpush1.msra.mxu0 0.0
      %2725 = vmatprep.subr.mxu0 0.0
      %2726 = vmatpush1.msra.mxu0 0.0
      %2727 = vmatprep.mubr.f32.mxu0 0.0
      %2728 = vmatmul.mubr.f32.gmra.mrb[0].mxu0 %v2661
      %v2729 = vpop.f32.mrb[0].mxu0
      %v2730 = vadd.f32 %v2658, %v2729
      %v2731 = vpop.f32.mrb[0].mxu0
      %2732 = vdwg.mxu0
      %v2733 = vmax.f32 %v2730, 0.0
      %v2735 = vlaneseq
      %v2736 = vshrl.u32 %v2735, 7
      %v2737 = vsub.s32 0, %v2736
      %v2738 = vrot.slane %v830, %v2737
      %vm2740 = vcmask 523264
      %v2742 = vsel %vm2740, %v2733, 0
      %2744 = vmatprep.subr.mxu0 0.0
      %2745 = vmatpush1.msra.mxu0 %v822
      %2746 = vmatprep.subr.mxu0 0.0
      %2747 = vmatpush1.msra.mxu0 %v823
      %2748 = vmatprep.subr.mxu0 0.0
      %2749 = vmatpush1.msra.mxu0 %v824
      %2750 = vmatprep.subr.mxu0 0.0
      %2751 = vmatpush1.msra.mxu0 %v825
      %2752 = vmatprep.subr.mxu0 0.0
      %2753 = vmatpush1.msra.mxu0 %v826
      %2754 = vmatprep.subr.mxu0 0.0
      %2755 = vmatpush1.msra.mxu0 %v827
      %2756 = vmatprep.subr.mxu0 0.0
      %2757 = vmatpush1.msra.mxu0 %v828
      %2758 = vmatprep.subr.mxu0 0.0
      %2759 = vmatpush1.msra.mxu0 %v829
      %2760 = vmatprep.subr.mxu0 0.0
      %2761 = vmatpush1.msra.mxu0 0.0
      %2762 = vmatprep.subr.mxu0 0.0
      %2763 = vmatpush1.msra.mxu0 0.0
      %2764 = vmatprep.subr.mxu0 0.0
      %2765 = vmatpush1.msra.mxu0 0.0
      %2766 = vmatprep.subr.mxu0 0.0
      %2767 = vmatpush1.msra.mxu0 0.0
      %2768 = vmatprep.subr.mxu0 0.0
      %2769 = vmatpush1.msra.mxu0 0.0
      %2770 = vmatprep.subr.mxu0 0.0
      %2771 = vmatpush1.msra.mxu0 0.0
      %2772 = vmatprep.subr.mxu0 0.0
      %2773 = vmatpush1.msra.mxu0 0.0
      %2774 = vmatprep.subr.mxu0 0.0
      %2775 = vmatpush1.msra.mxu0 0.0
      %2776 = vmatprep.subr.mxu0 0.0
      %2777 = vmatpush1.msra.mxu0 0.0
      %2778 = vmatprep.subr.mxu0 0.0
      %2779 = vmatpush1.msra.mxu0 0.0
      %2780 = vmatprep.subr.mxu0 0.0
      %2781 = vmatpush1.msra.mxu0 0.0
      %2782 = vmatprep.subr.mxu0 0.0
      %2783 = vmatpush1.msra.mxu0 0.0
      %2784 = vmatprep.subr.mxu0 0.0
      %2785 = vmatpush1.msra.mxu0 0.0
      %2786 = vmatprep.subr.mxu0 0.0
      %2787 = vmatpush1.msra.mxu0 0.0
      %2788 = vmatprep.subr.mxu0 0.0
      %2789 = vmatpush1.msra.mxu0 0.0
      %2790 = vmatprep.subr.mxu0 0.0
      %2791 = vmatpush1.msra.mxu0 0.0
      %2792 = vmatprep.subr.mxu0 0.0
      %2793 = vmatpush1.msra.mxu0 0.0
      %2794 = vmatprep.subr.mxu0 0.0
      %2795 = vmatpush1.msra.mxu0 0.0
      %2796 = vmatprep.subr.mxu0 0.0
      %2797 = vmatpush1.msra.mxu0 0.0
      %2798 = vmatprep.subr.mxu0 0.0
      %2799 = vmatpush1.msra.mxu0 0.0
      %2800 = vmatprep.subr.mxu0 0.0
      %2801 = vmatpush1.msra.mxu0 0.0
      %2802 = vmatprep.subr.mxu0 0.0
      %2803 = vmatpush1.msra.mxu0 0.0
      %2804 = vmatprep.subr.mxu0 0.0
      %2805 = vmatpush1.msra.mxu0 0.0
      %2806 = vmatprep.subr.mxu0 0.0
      %2807 = vmatpush1.msra.mxu0 0.0
      %2808 = vmatprep.mubr.f32.mxu0 0.0
      %2809 = vmatmul.mubr.f32.gmra.mrb[0].mxu0 %v2742
      %v2810 = vpop.f32.mrb[0].mxu0
      %v2811 = vadd.f32 %v2738, %v2810
      %v2812 = vpop.f32.mrb[0].mxu0
      %2813 = vdwg.mxu0
      %v2814 = vadd.f32 %v2653, %v2811
      %v2815 = vsel %vm839, %v2814, 0.0
      %2816 = vadd.xlane.f32.xlu0 %v2815
      %v2817 = vpop.xlane.xlu0 %2816
      %v2818 = vmul.f32 %v2817, %v1682
      %v2819 = vsub.f32 %v2814, %v2818
      %v2820 = vmul.f32 %v2819, %v2819
      %v2821 = vsel %vm839, %v2820, 0.0
      %2822 = vadd.xlane.f32.xlu0 %v2821
      %v2823 = vpop.xlane.xlu0 %2822
      %v2824 = vmul.f32 %v2823, %v1682
      %v2825 = vadd.f32 %v2824, 1e-05
      %v2826 = vrsqrt.pop %v2825
      %v2827 = vmul.f32 %v2819, %v2826
      %v2829 = vlaneseq
      %v2830 = vshrl.u32 %v2829, 7
      %v2831 = vsub.s32 0, %v2830
      %v2832 = vrot.slane %v831, %v2831
      %v2834 = vmul.f32 %v2827, %v2832
      %v2836 = vlaneseq
      %v2837 = vshrl.u32 %v2836, 7
      %v2838 = vsub.s32 0, %v2837
      %v2839 = vrot.slane %v832, %v2838
      %v2841 = vadd.f32 %v2834, %v2839
      %2842 = vst.msk [vmem:[%s783] sm:$0xff] %vm839, %v2841
      %p2843 = scmp.lt.s32.totalorder %s35, 1
      %s2844 = scalar_select %p2843, %s35, 1
      %s2845 = smul.addr %s2844, 8
      %s2846 = scalar_lea.vmem %s24, %s2845
      // Predicated region
      $region117: #{seq2seq_forward.6} parent=115 // pred_check
        %p2847 = pneg %p577
      $region118: #{seq2seq_forward.6} parent=115 // pred_check_branch
        %2849 = sbr.rel (%p2847) target = $region120
      $region119: #{seq2seq_forward.6} parent=115 // pred_region
        _
      $region120: #{seq2seq_forward.6} parent=115 // pred_fallthru
        _
    $region116: #{seq2seq_forward.6} parent=5 // pred_fallthru
      _
    %p2850 = scmp.le.s32.totalorder 2, %s30
    // Predicated region
    $region121: #{seq2seq_forward.6} parent=5 // pred_check
      %p2851 = pneg %p2850
    $region122: #{seq2seq_forward.6} parent=5 // pred_check_branch
      %2853 = sbr.rel (%p2851) target = $region124
    $region123: #{seq2seq_forward.6} parent=5 // pred_region
      %s2854 = ssub.s32 %s30, 2
      // Predicated region
      $region125: #{seq2seq_forward.6} parent=123 // pred_check
        %p2855 = pneg %p583
      $region126: #{seq2seq_forward.6} parent=123 // pred_check_branch
        %2857 = sbr.rel (%p2855) target = $region128
      $region127: #{seq2seq_forward.6} parent=123 // pred_region
        %p2858 = scmp.lt.s32.totalorder %s36, 1
        %s2859 = scalar_select %p2858, %s36, 1
        %s2860 = smul.addr %s2859, 8
        %s2861 = scalar_lea.vmem %s24, %s2860
      $region128: #{seq2seq_forward.6} parent=123 // pred_fallthru
        _
    $region124: #{seq2seq_forward.6} parent=5 // pred_fallthru
      _
  $region6: #{seq2seq_forward.6} parent=0 // loop_footer
    %s34 = sadd.s32 1, %s30
  $region7: #{seq2seq_forward.6} parent=0 // loop_footer_branch
    %29 = sbr.rel target = $region3
  $region8: #{seq2seq_forward.6} parent=0 // loop_exit
    _

// kernel: seq2seq_forward.7
$region0: #{seq2seq_forward.7}
  #allocation0 [shape = 'u32[]', space=smem, size = 0x4, offset = 0x4, fixed_abs, tag = 'smem constant byte address 0x4 - core index']
  #allocation1 [shape = 'u32[144,128]{1,0:T(1,128)}', space=vmem, size = 0x12000, scoped, tag = 'internal scratch']
  %s0 = inlined_call_operand.vmem [shape: f32[2,8,32], index: 0, kind: input, shape index: {}]
  %s1 = inlined_call_operand.vmem [shape: f32[2,8,32], index: 1, kind: input, shape index: {}]
  %s2 = inlined_call_operand.vmem [shape: f32[2,8,8], index: 2, kind: input, shape index: {}]
  %s3 = inlined_call_operand.vmem [shape: f32[2,8,8], index: 3, kind: input, shape index: {}]
  %s4 = inlined_call_operand.vmem [shape: f32[32,96], index: 4, kind: input, shape index: {}]
  %s5 = inlined_call_operand.vmem [shape: f32[1,96], index: 5, kind: input, shape index: {}]
  %s6 = inlined_call_operand.vmem [shape: f32[32,32], index: 6, kind: input, shape index: {}]
  %s7 = inlined_call_operand.vmem [shape: f32[1,32], index: 7, kind: input, shape index: {}]
  %s8 = inlined_call_operand.vmem [shape: f32[1,32], index: 8, kind: input, shape index: {}]
  %s9 = inlined_call_operand.vmem [shape: f32[1,32], index: 9, kind: input, shape index: {}]
  %s10 = inlined_call_operand.vmem [shape: f32[32,32], index: 10, kind: input, shape index: {}]
  %s11 = inlined_call_operand.vmem [shape: f32[1,32], index: 11, kind: input, shape index: {}]
  %s12 = inlined_call_operand.vmem [shape: f32[32,64], index: 12, kind: input, shape index: {}]
  %s13 = inlined_call_operand.vmem [shape: f32[1,64], index: 13, kind: input, shape index: {}]
  %s14 = inlined_call_operand.vmem [shape: f32[32,32], index: 14, kind: input, shape index: {}]
  %s15 = inlined_call_operand.vmem [shape: f32[1,32], index: 15, kind: input, shape index: {}]
  %s16 = inlined_call_operand.vmem [shape: f32[1,32], index: 16, kind: input, shape index: {}]
  %s17 = inlined_call_operand.vmem [shape: f32[1,32], index: 17, kind: input, shape index: {}]
  %s18 = inlined_call_operand.vmem [shape: f32[32,64], index: 18, kind: input, shape index: {}]
  %s19 = inlined_call_operand.vmem [shape: f32[1,64], index: 19, kind: input, shape index: {}]
  %s20 = inlined_call_operand.vmem [shape: f32[64,32], index: 20, kind: input, shape index: {}]
  %s21 = inlined_call_operand.vmem [shape: f32[1,32], index: 21, kind: input, shape index: {}]
  %s22 = inlined_call_operand.vmem [shape: f32[1,32], index: 22, kind: input, shape index: {}]
  %s23 = inlined_call_operand.hbm [shape: f32[1,32], index: 23, kind: input, shape index: {}]
  %s24 = inlined_call_operand.vmem [shape: f32[32,128], index: 24, kind: input, shape index: {}]
  %s25 = inlined_call_operand.hbm [shape: f32[1,128], index: 25, kind: input, shape index: {}]
  %s26 = inlined_call_operand.hbm [shape: f32[2,8,128], index: 26, kind: output, shape index: {0}]
  %s27 = inlined_call_operand.hbm [shape: f32[2,4,8,8], index: 27, kind: output, shape index: {1}]
  %28 = xla_tuple %s26, %s27
  %s29 = sld [smem:[#allocation0]]
  $region153: #{seq2seq_forward.7} parent=0
    _
  %s31 = ssub.s32 1, %s29
  %s32 = scalar_select 0, %s31, %s29
  $region1: #{seq2seq_forward.7} parent=0
    #allocation2 [shape = 'u8[512]{0}', space=vmem, size = 0x400, scoped, tag = 'input window, operand 23, single buffered']
    #allocation3 [shape = 's32[2]{0}', space=sflag, size = 0x8, scoped, tag = 'scoped memory for seq2seq_forward.7']
    #allocation4 [shape = 's32[2]{0}', space=sflag, size = 0x8, scoped, tag = 'scoped memory for seq2seq_forward.7']
    #allocation5 [shape = 'u8[512]{0}', space=vmem, size = 0x400, scoped, tag = 'input window, operand 25, single buffered']
    #allocation6 [shape = 's32[1]{0}', space=sflag, size = 0x4, scoped, tag = 'scoped memory for seq2seq_forward.7']
    #allocation7 [shape = 'u8[8192]{0}', space=vmem, size = 0x2000, scoped, tag = 'output window, operand 0']
    #allocation8 [shape = 'u8[32768]{0}', space=vmem, size = 0x8000, scoped, tag = 'output window, operand 1']
    #allocation9 [shape = 's32[2]{0}', space=sflag, size = 0x8, scoped, tag = 'scoped memory for seq2seq_forward.7']
    %33 = vsyncpa [#allocation3], 0
    %34 = vsyncpa [#allocation6], 0
    %35 = vsyncpa [#allocation4], 0
    %s36 = scalar_lea.sflag [#allocation4], 1
    %37 = vsyncpa %s36, 0
    %38 = vsyncpa [#allocation9], 0
    %s39 = scalar_lea.sflag [#allocation9], 1
    %40 = vsyncpa %s39, 0
    loop: start=0, step=1, limit=4
    $region2: #{seq2seq_forward.7} parent=1 // loop_pre_header
      _
    $region3: #{seq2seq_forward.7} parent=1 // loop_header
      %s42 = sphi 0, %s46
      %p43 = scmp.ge.s32.totalorder %s42, 4
      %s52 = sphi 0, %s54
      %s55 = sphi 0, %s52
      %s56 = sphi 0, %s55
      %s72 = sphi 0, %s56
      %s78 = sphi 0, %s80
      %s81 = sphi 0, %s78
      %s82 = sphi 0, %s81
      %s98 = sphi 0, %s82
      %s104 = sphi 0, %s106
      %s107 = sphi 0, %s104
      %s108 = sphi 0, %s107
      %s124 = sphi 0, %s108
      %s130 = sphi 0, %s132
      %s133 = sphi 0, %s130
      %s134 = sphi 0, %s133
      %s150 = sphi 0, %s134
      %s154 = sphi 0, %s154
      %s156 = sphi 0, %s154
      %s157 = sphi 0, %s156
      %s171 = sphi 0, %s157
      %s175 = sphi 0, %s175
      %s177 = sphi 0, %s175
      %s178 = sphi 0, %s177
      %s192 = sphi 0, %s178
      %s196 = sphi 0, %s196
      %s198 = sphi 0, %s196
      %s199 = sphi 0, %s198
      %s213 = sphi 0, %s199
      %s217 = sphi 0, %s217
      %s219 = sphi 0, %s217
      %s220 = sphi 0, %s219
      %s234 = sphi 0, %s220
      %s238 = sphi 0, %s238
      %s240 = sphi 0, %s238
      %s241 = sphi 0, %s240
      %s255 = sphi 0, %s241
      %s259 = sphi 0, %s259
      %s261 = sphi 0, %s259
      %s262 = sphi 0, %s261
      %s276 = sphi 0, %s262
      %s280 = sphi 0, %s280
      %s282 = sphi 0, %s280
      %s283 = sphi 0, %s282
      %s297 = sphi 0, %s283
      %s301 = sphi 0, %s301
      %s303 = sphi 0, %s301
      %s304 = sphi 0, %s303
      %s318 = sphi 0, %s304
      %s322 = sphi 0, %s322
      %s324 = sphi 0, %s322
      %s325 = sphi 0, %s324
      %s339 = sphi 0, %s325
      %s343 = sphi 0, %s343
      %s345 = sphi 0, %s343
      %s346 = sphi 0, %s345
      %s360 = sphi 0, %s346
      %s364 = sphi 0, %s364
      %s366 = sphi 0, %s364
      %s367 = sphi 0, %s366
      %s381 = sphi 0, %s367
      %s385 = sphi 0, %s385
      %s387 = sphi 0, %s385
      %s388 = sphi 0, %s387
      %s402 = sphi 0, %s388
      %s406 = sphi 0, %s406
      %s408 = sphi 0, %s406
      %s409 = sphi 0, %s408
      %s423 = sphi 0, %s409
      %s427 = sphi 0, %s427
      %s429 = sphi 0, %s427
      %s430 = sphi 0, %s429
      %s444 = sphi 0, %s430
      %s448 = sphi 0, %s448
      %s450 = sphi 0, %s448
      %s451 = sphi 0, %s450
      %s465 = sphi 0, %s451
      %s469 = sphi 0, %s469
      %s471 = sphi 0, %s469
      %s472 = sphi 0, %s471
      %s486 = sphi 0, %s472
      %s490 = sphi 0, %s490
      %s492 = sphi 0, %s490
      %s493 = sphi 0, %s492
      %s507 = sphi 0, %s493
      %s511 = sphi 0, %s511
      %s513 = sphi 0, %s511
      %s514 = sphi 0, %s513
      %s528 = sphi 0, %s514
      %s532 = sphi 0, %s532
      %s534 = sphi 0, %s532
      %s535 = sphi 0, %s534
      %s549 = sphi 0, %s535
      %s553 = sphi 0, %s553
      %s555 = sphi 0, %s553
      %s556 = sphi 0, %s555
      %s570 = sphi 0, %s556
      %s574 = sphi 0, %s574
      %s576 = sphi 0, %s574
      %s577 = sphi 0, %s576
      %s591 = sphi 0, %s577
      %s595 = sphi 0, %s595
      %s597 = sphi 0, %s595
      %s598 = sphi 0, %s597
      %s612 = sphi 0, %s598
      %s618 = sphi 0, %s620
      %s621 = sphi 0, %s618
      %s622 = sphi 0, %s621
      %s638 = sphi 0, %s622
      %s644 = sphi 0, %s646
      %s647 = sphi 0, %s644
      %s648 = sphi 0, %s647
      %s664 = sphi 0, %s648
    $region4: #{seq2seq_forward.7} parent=1 // loop_header_branch
      %45 = sbr.rel (%p43) target = $region8
    $region5: #{seq2seq_forward.7} parent=1 // loop_body
      %s47 = ssub.s32 %s42, 1
      %s48 = ssub.s32 %s42, 2
      %s49 = sadd.s32 %s42, 1
      %s50 = ssub.s32 %s42, %s49
      %p51 = scmp.eq.s32.totalorder %s50, 0
      %s53 = sadd.s32 %s52, 1
      %s54 = scalar_select %p51, %s52, %s53
      %p57 = pneg %p51
      %p58 = scmp.eq.s32.totalorder %s42, 1
      %p59 = por %p57, %p58
      %p60 = scmp.ne.s32.totalorder %s52, %s55
      %p61 = scmp.eq.s32.totalorder %s42, 0
      %p62 = por %p60, %p61
      %p63 = scmp.ne.s32.totalorder %s52, %s55
      %p64 = scmp.eq.s32.totalorder %s47, 1
      %p65 = por %p63, %p64
      %p66 = scmp.ne.s32.totalorder %s55, %s56
      %p67 = scmp.eq.s32.totalorder %s47, 0
      %p68 = por %p66, %p67
      %p69 = scmp.ne.s32.totalorder %s55, %s56
      %p70 = scmp.eq.s32.totalorder %s48, 1
      %p71 = por %p69, %p70
      %p73 = scmp.ne.s32.totalorder %s56, %s72
      %p74 = scmp.eq.s32.totalorder %s48, 0
      %p75 = por %p73, %p74
      %s76 = ssub.s32 %s42, %s49
      %p77 = scmp.eq.s32.totalorder %s76, 0
      %s79 = sadd.s32 %s78, 1
      %s80 = scalar_select %p77, %s78, %s79
      %p83 = pneg %p77
      %p84 = scmp.eq.s32.totalorder %s42, 1
      %p85 = por %p83, %p84
      %p86 = scmp.ne.s32.totalorder %s78, %s81
      %p87 = scmp.eq.s32.totalorder %s42, 0
      %p88 = por %p86, %p87
      %p89 = scmp.ne.s32.totalorder %s78, %s81
      %p90 = scmp.eq.s32.totalorder %s47, 1
      %p91 = por %p89, %p90
      %p92 = scmp.ne.s32.totalorder %s81, %s82
      %p93 = scmp.eq.s32.totalorder %s47, 0
      %p94 = por %p92, %p93
      %p95 = scmp.ne.s32.totalorder %s81, %s82
      %p96 = scmp.eq.s32.totalorder %s48, 1
      %p97 = por %p95, %p96
      %p99 = scmp.ne.s32.totalorder %s82, %s98
      %p100 = scmp.eq.s32.totalorder %s48, 0
      %p101 = por %p99, %p100
      %s102 = ssub.s32 %s42, %s49
      %p103 = scmp.eq.s32.totalorder %s102, 0
      %s105 = sadd.s32 %s104, 1
      %s106 = scalar_select %p103, %s104, %s105
      %p109 = pneg %p103
      %p110 = scmp.eq.s32.totalorder %s42, 1
      %p111 = por %p109, %p110
      %p112 = scmp.ne.s32.totalorder %s104, %s107
      %p113 = scmp.eq.s32.totalorder %s42, 0
      %p114 = por %p112, %p113
      %p115 = scmp.ne.s32.totalorder %s104, %s107
      %p116 = scmp.eq.s32.totalorder %s47, 1
      %p117 = por %p115, %p116
      %p118 = scmp.ne.s32.totalorder %s107, %s108
      %p119 = scmp.eq.s32.totalorder %s47, 0
      %p120 = por %p118, %p119
      %p121 = scmp.ne.s32.totalorder %s107, %s108
      %p122 = scmp.eq.s32.totalorder %s48, 1
      %p123 = por %p121, %p122
      %p125 = scmp.ne.s32.totalorder %s108, %s124
      %p126 = scmp.eq.s32.totalorder %s48, 0
      %p127 = por %p125, %p126
      %s128 = ssub.s32 %s42, %s49
      %p129 = scmp.eq.s32.totalorder %s128, 0
      %s131 = sadd.s32 %s130, 1
      %s132 = scalar_select %p129, %s130, %s131
      %p135 = pneg %p129
      %p136 = scmp.eq.s32.totalorder %s42, 1
      %p137 = por %p135, %p136
      %p138 = scmp.ne.s32.totalorder %s130, %s133
      %p139 = scmp.eq.s32.totalorder %s42, 0
      %p140 = por %p138, %p139
      %p141 = scmp.ne.s32.totalorder %s130, %s133
      %p142 = scmp.eq.s32.totalorder %s47, 1
      %p143 = por %p141, %p142
      %p144 = scmp.ne.s32.totalorder %s133, %s134
      %p145 = scmp.eq.s32.totalorder %s47, 0
      %p146 = por %p144, %p145
      %p147 = scmp.ne.s32.totalorder %s133, %s134
      %p148 = scmp.eq.s32.totalorder %s48, 1
      %p149 = por %p147, %p148
      %p151 = scmp.ne.s32.totalorder %s134, %s150
      %p152 = scmp.eq.s32.totalorder %s48, 0
      %p153 = por %p151, %p152
      %s155 = sadd.s32 %s154, 1
      %p158 = scmp.eq.s32.totalorder %s42, 1
      %p159 = scmp.ne.s32.totalorder %s154, %s156
      %p160 = scmp.eq.s32.totalorder %s42, 0
      %p161 = por %p159, %p160
      %p162 = scmp.ne.s32.totalorder %s154, %s156
      %p163 = scmp.eq.s32.totalorder %s47, 1
      %p164 = por %p162, %p163
      %p165 = scmp.ne.s32.totalorder %s156, %s157
      %p166 = scmp.eq.s32.totalorder %s47, 0
      %p167 = por %p165, %p166
      %p168 = scmp.ne.s32.totalorder %s156, %s157
      %p169 = scmp.eq.s32.totalorder %s48, 1
      %p170 = por %p168, %p169
      %p172 = scmp.ne.s32.totalorder %s157, %s171
      %p173 = scmp.eq.s32.totalorder %s48, 0
      %p174 = por %p172, %p173
      %s176 = sadd.s32 %s175, 1
      %p179 = scmp.eq.s32.totalorder %s42, 1
      %p180 = scmp.ne.s32.totalorder %s175, %s177
      %p181 = scmp.eq.s32.totalorder %s42, 0
      %p182 = por %p180, %p181
      %p183 = scmp.ne.s32.totalorder %s175, %s177
      %p184 = scmp.eq.s32.totalorder %s47, 1
      %p185 = por %p183, %p184
      %p186 = scmp.ne.s32.totalorder %s177, %s178
      %p187 = scmp.eq.s32.totalorder %s47, 0
      %p188 = por %p186, %p187
      %p189 = scmp.ne.s32.totalorder %s177, %s178
      %p190 = scmp.eq.s32.totalorder %s48, 1
      %p191 = por %p189, %p190
      %p193 = scmp.ne.s32.totalorder %s178, %s192
      %p194 = scmp.eq.s32.totalorder %s48, 0
      %p195 = por %p193, %p194
      %s197 = sadd.s32 %s196, 1
      %p200 = scmp.eq.s32.totalorder %s42, 1
      %p201 = scmp.ne.s32.totalorder %s196, %s198
      %p202 = scmp.eq.s32.totalorder %s42, 0
      %p203 = por %p201, %p202
      %p204 = scmp.ne.s32.totalorder %s196, %s198
      %p205 = scmp.eq.s32.totalorder %s47, 1
      %p206 = por %p204, %p205
      %p207 = scmp.ne.s32.totalorder %s198, %s199
      %p208 = scmp.eq.s32.totalorder %s47, 0
      %p209 = por %p207, %p208
      %p210 = scmp.ne.s32.totalorder %s198, %s199
      %p211 = scmp.eq.s32.totalorder %s48, 1
      %p212 = por %p210, %p211
      %p214 = scmp.ne.s32.totalorder %s199, %s213
      %p215 = scmp.eq.s32.totalorder %s48, 0
      %p216 = por %p214, %p215
      %s218 = sadd.s32 %s217, 1
      %p221 = scmp.eq.s32.totalorder %s42, 1
      %p222 = scmp.ne.s32.totalorder %s217, %s219
      %p223 = scmp.eq.s32.totalorder %s42, 0
      %p224 = por %p222, %p223
      %p225 = scmp.ne.s32.totalorder %s217, %s219
      %p226 = scmp.eq.s32.totalorder %s47, 1
      %p227 = por %p225, %p226
      %p228 = scmp.ne.s32.totalorder %s219, %s220
      %p229 = scmp.eq.s32.totalorder %s47, 0
      %p230 = por %p228, %p229
      %p231 = scmp.ne.s32.totalorder %s219, %s220
      %p232 = scmp.eq.s32.totalorder %s48, 1
      %p233 = por %p231, %p232
      %p235 = scmp.ne.s32.totalorder %s220, %s234
      %p236 = scmp.eq.s32.totalorder %s48, 0
      %p237 = por %p235, %p236
      %s239 = sadd.s32 %s238, 1
      %p242 = scmp.eq.s32.totalorder %s42, 1
      %p243 = scmp.ne.s32.totalorder %s238, %s240
      %p244 = scmp.eq.s32.totalorder %s42, 0
      %p245 = por %p243, %p244
      %p246 = scmp.ne.s32.totalorder %s238, %s240
      %p247 = scmp.eq.s32.totalorder %s47, 1
      %p248 = por %p246, %p247
      %p249 = scmp.ne.s32.totalorder %s240, %s241
      %p250 = scmp.eq.s32.totalorder %s47, 0
      %p251 = por %p249, %p250
      %p252 = scmp.ne.s32.totalorder %s240, %s241
      %p253 = scmp.eq.s32.totalorder %s48, 1
      %p254 = por %p252, %p253
      %p256 = scmp.ne.s32.totalorder %s241, %s255
      %p257 = scmp.eq.s32.totalorder %s48, 0
      %p258 = por %p256, %p257
      %s260 = sadd.s32 %s259, 1
      %p263 = scmp.eq.s32.totalorder %s42, 1
      %p264 = scmp.ne.s32.totalorder %s259, %s261
      %p265 = scmp.eq.s32.totalorder %s42, 0
      %p266 = por %p264, %p265
      %p267 = scmp.ne.s32.totalorder %s259, %s261
      %p268 = scmp.eq.s32.totalorder %s47, 1
      %p269 = por %p267, %p268
      %p270 = scmp.ne.s32.totalorder %s261, %s262
      %p271 = scmp.eq.s32.totalorder %s47, 0
      %p272 = por %p270, %p271
      %p273 = scmp.ne.s32.totalorder %s261, %s262
      %p274 = scmp.eq.s32.totalorder %s48, 1
      %p275 = por %p273, %p274
      %p277 = scmp.ne.s32.totalorder %s262, %s276
      %p278 = scmp.eq.s32.totalorder %s48, 0
      %p279 = por %p277, %p278
      %s281 = sadd.s32 %s280, 1
      %p284 = scmp.eq.s32.totalorder %s42, 1
      %p285 = scmp.ne.s32.totalorder %s280, %s282
      %p286 = scmp.eq.s32.totalorder %s42, 0
      %p287 = por %p285, %p286
      %p288 = scmp.ne.s32.totalorder %s280, %s282
      %p289 = scmp.eq.s32.totalorder %s47, 1
      %p290 = por %p288, %p289
      %p291 = scmp.ne.s32.totalorder %s282, %s283
      %p292 = scmp.eq.s32.totalorder %s47, 0
      %p293 = por %p291, %p292
      %p294 = scmp.ne.s32.totalorder %s282, %s283
      %p295 = scmp.eq.s32.totalorder %s48, 1
      %p296 = por %p294, %p295
      %p298 = scmp.ne.s32.totalorder %s283, %s297
      %p299 = scmp.eq.s32.totalorder %s48, 0
      %p300 = por %p298, %p299
      %s302 = sadd.s32 %s301, 1
      %p305 = scmp.eq.s32.totalorder %s42, 1
      %p306 = scmp.ne.s32.totalorder %s301, %s303
      %p307 = scmp.eq.s32.totalorder %s42, 0
      %p308 = por %p306, %p307
      %p309 = scmp.ne.s32.totalorder %s301, %s303
      %p310 = scmp.eq.s32.totalorder %s47, 1
      %p311 = por %p309, %p310
      %p312 = scmp.ne.s32.totalorder %s303, %s304
      %p313 = scmp.eq.s32.totalorder %s47, 0
      %p314 = por %p312, %p313
      %p315 = scmp.ne.s32.totalorder %s303, %s304
      %p316 = scmp.eq.s32.totalorder %s48, 1
      %p317 = por %p315, %p316
      %p319 = scmp.ne.s32.totalorder %s304, %s318
      %p320 = scmp.eq.s32.totalorder %s48, 0
      %p321 = por %p319, %p320
      %s323 = sadd.s32 %s322, 1
      %p326 = scmp.eq.s32.totalorder %s42, 1
      %p327 = scmp.ne.s32.totalorder %s322, %s324
      %p328 = scmp.eq.s32.totalorder %s42, 0
      %p329 = por %p327, %p328
      %p330 = scmp.ne.s32.totalorder %s322, %s324
      %p331 = scmp.eq.s32.totalorder %s47, 1
      %p332 = por %p330, %p331
      %p333 = scmp.ne.s32.totalorder %s324, %s325
      %p334 = scmp.eq.s32.totalorder %s47, 0
      %p335 = por %p333, %p334
      %p336 = scmp.ne.s32.totalorder %s324, %s325
      %p337 = scmp.eq.s32.totalorder %s48, 1
      %p338 = por %p336, %p337
      %p340 = scmp.ne.s32.totalorder %s325, %s339
      %p341 = scmp.eq.s32.totalorder %s48, 0
      %p342 = por %p340, %p341
      %s344 = sadd.s32 %s343, 1
      %p347 = scmp.eq.s32.totalorder %s42, 1
      %p348 = scmp.ne.s32.totalorder %s343, %s345
      %p349 = scmp.eq.s32.totalorder %s42, 0
      %p350 = por %p348, %p349
      %p351 = scmp.ne.s32.totalorder %s343, %s345
      %p352 = scmp.eq.s32.totalorder %s47, 1
      %p353 = por %p351, %p352
      %p354 = scmp.ne.s32.totalorder %s345, %s346
      %p355 = scmp.eq.s32.totalorder %s47, 0
      %p356 = por %p354, %p355
      %p357 = scmp.ne.s32.totalorder %s345, %s346
      %p358 = scmp.eq.s32.totalorder %s48, 1
      %p359 = por %p357, %p358
      %p361 = scmp.ne.s32.totalorder %s346, %s360
      %p362 = scmp.eq.s32.totalorder %s48, 0
      %p363 = por %p361, %p362
      %s365 = sadd.s32 %s364, 1
      %p368 = scmp.eq.s32.totalorder %s42, 1
      %p369 = scmp.ne.s32.totalorder %s364, %s366
      %p370 = scmp.eq.s32.totalorder %s42, 0
      %p371 = por %p369, %p370
      %p372 = scmp.ne.s32.totalorder %s364, %s366
      %p373 = scmp.eq.s32.totalorder %s47, 1
      %p374 = por %p372, %p373
      %p375 = scmp.ne.s32.totalorder %s366, %s367
      %p376 = scmp.eq.s32.totalorder %s47, 0
      %p377 = por %p375, %p376
      %p378 = scmp.ne.s32.totalorder %s366, %s367
      %p379 = scmp.eq.s32.totalorder %s48, 1
      %p380 = por %p378, %p379
      %p382 = scmp.ne.s32.totalorder %s367, %s381
      %p383 = scmp.eq.s32.totalorder %s48, 0
      %p384 = por %p382, %p383
      %s386 = sadd.s32 %s385, 1
      %p389 = scmp.eq.s32.totalorder %s42, 1
      %p390 = scmp.ne.s32.totalorder %s385, %s387
      %p391 = scmp.eq.s32.totalorder %s42, 0
      %p392 = por %p390, %p391
      %p393 = scmp.ne.s32.totalorder %s385, %s387
      %p394 = scmp.eq.s32.totalorder %s47, 1
      %p395 = por %p393, %p394
      %p396 = scmp.ne.s32.totalorder %s387, %s388
      %p397 = scmp.eq.s32.totalorder %s47, 0
      %p398 = por %p396, %p397
      %p399 = scmp.ne.s32.totalorder %s387, %s388
      %p400 = scmp.eq.s32.totalorder %s48, 1
      %p401 = por %p399, %p400
      %p403 = scmp.ne.s32.totalorder %s388, %s402
      %p404 = scmp.eq.s32.totalorder %s48, 0
      %p405 = por %p403, %p404
      %s407 = sadd.s32 %s406, 1
      %p410 = scmp.eq.s32.totalorder %s42, 1
      %p411 = scmp.ne.s32.totalorder %s406, %s408
      %p412 = scmp.eq.s32.totalorder %s42, 0
      %p413 = por %p411, %p412
      %p414 = scmp.ne.s32.totalorder %s406, %s408
      %p415 = scmp.eq.s32.totalorder %s47, 1
      %p416 = por %p414, %p415
      %p417 = scmp.ne.s32.totalorder %s408, %s409
      %p418 = scmp.eq.s32.totalorder %s47, 0
      %p419 = por %p417, %p418
      %p420 = scmp.ne.s32.totalorder %s408, %s409
      %p421 = scmp.eq.s32.totalorder %s48, 1
      %p422 = por %p420, %p421
      %p424 = scmp.ne.s32.totalorder %s409, %s423
      %p425 = scmp.eq.s32.totalorder %s48, 0
      %p426 = por %p424, %p425
      %s428 = sadd.s32 %s427, 1
      %p431 = scmp.eq.s32.totalorder %s42, 1
      %p432 = scmp.ne.s32.totalorder %s427, %s429
      %p433 = scmp.eq.s32.totalorder %s42, 0
      %p434 = por %p432, %p433
      %p435 = scmp.ne.s32.totalorder %s427, %s429
      %p436 = scmp.eq.s32.totalorder %s47, 1
      %p437 = por %p435, %p436
      %p438 = scmp.ne.s32.totalorder %s429, %s430
      %p439 = scmp.eq.s32.totalorder %s47, 0
      %p440 = por %p438, %p439
      %p441 = scmp.ne.s32.totalorder %s429, %s430
      %p442 = scmp.eq.s32.totalorder %s48, 1
      %p443 = por %p441, %p442
      %p445 = scmp.ne.s32.totalorder %s430, %s444
      %p446 = scmp.eq.s32.totalorder %s48, 0
      %p447 = por %p445, %p446
      %s449 = sadd.s32 %s448, 1
      %p452 = scmp.eq.s32.totalorder %s42, 1
      %p453 = scmp.ne.s32.totalorder %s448, %s450
      %p454 = scmp.eq.s32.totalorder %s42, 0
      %p455 = por %p453, %p454
      %p456 = scmp.ne.s32.totalorder %s448, %s450
      %p457 = scmp.eq.s32.totalorder %s47, 1
      %p458 = por %p456, %p457
      %p459 = scmp.ne.s32.totalorder %s450, %s451
      %p460 = scmp.eq.s32.totalorder %s47, 0
      %p461 = por %p459, %p460
      %p462 = scmp.ne.s32.totalorder %s450, %s451
      %p463 = scmp.eq.s32.totalorder %s48, 1
      %p464 = por %p462, %p463
      %p466 = scmp.ne.s32.totalorder %s451, %s465
      %p467 = scmp.eq.s32.totalorder %s48, 0
      %p468 = por %p466, %p467
      %s470 = sadd.s32 %s469, 1
      %p473 = scmp.eq.s32.totalorder %s42, 1
      %p474 = scmp.ne.s32.totalorder %s469, %s471
      %p475 = scmp.eq.s32.totalorder %s42, 0
      %p476 = por %p474, %p475
      %p477 = scmp.ne.s32.totalorder %s469, %s471
      %p478 = scmp.eq.s32.totalorder %s47, 1
      %p479 = por %p477, %p478
      %p480 = scmp.ne.s32.totalorder %s471, %s472
      %p481 = scmp.eq.s32.totalorder %s47, 0
      %p482 = por %p480, %p481
      %p483 = scmp.ne.s32.totalorder %s471, %s472
      %p484 = scmp.eq.s32.totalorder %s48, 1
      %p485 = por %p483, %p484
      %p487 = scmp.ne.s32.totalorder %s472, %s486
      %p488 = scmp.eq.s32.totalorder %s48, 0
      %p489 = por %p487, %p488
      %s491 = sadd.s32 %s490, 1
      %p494 = scmp.eq.s32.totalorder %s42, 1
      %p495 = scmp.ne.s32.totalorder %s490, %s492
      %p496 = scmp.eq.s32.totalorder %s42, 0
      %p497 = por %p495, %p496
      %p498 = scmp.ne.s32.totalorder %s490, %s492
      %p499 = scmp.eq.s32.totalorder %s47, 1
      %p500 = por %p498, %p499
      %p501 = scmp.ne.s32.totalorder %s492, %s493
      %p502 = scmp.eq.s32.totalorder %s47, 0
      %p503 = por %p501, %p502
      %p504 = scmp.ne.s32.totalorder %s492, %s493
      %p505 = scmp.eq.s32.totalorder %s48, 1
      %p506 = por %p504, %p505
      %p508 = scmp.ne.s32.totalorder %s493, %s507
      %p509 = scmp.eq.s32.totalorder %s48, 0
      %p510 = por %p508, %p509
      %s512 = sadd.s32 %s511, 1
      %p515 = scmp.eq.s32.totalorder %s42, 1
      %p516 = scmp.ne.s32.totalorder %s511, %s513
      %p517 = scmp.eq.s32.totalorder %s42, 0
      %p518 = por %p516, %p517
      %p519 = scmp.ne.s32.totalorder %s511, %s513
      %p520 = scmp.eq.s32.totalorder %s47, 1
      %p521 = por %p519, %p520
      %p522 = scmp.ne.s32.totalorder %s513, %s514
      %p523 = scmp.eq.s32.totalorder %s47, 0
      %p524 = por %p522, %p523
      %p525 = scmp.ne.s32.totalorder %s513, %s514
      %p526 = scmp.eq.s32.totalorder %s48, 1
      %p527 = por %p525, %p526
      %p529 = scmp.ne.s32.totalorder %s514, %s528
      %p530 = scmp.eq.s32.totalorder %s48, 0
      %p531 = por %p529, %p530
      %s533 = sadd.s32 %s532, 1
      %p536 = scmp.eq.s32.totalorder %s42, 1
      %p537 = scmp.ne.s32.totalorder %s532, %s534
      %p538 = scmp.eq.s32.totalorder %s42, 0
      %p539 = por %p537, %p538
      %p540 = scmp.ne.s32.totalorder %s532, %s534
      %p541 = scmp.eq.s32.totalorder %s47, 1
      %p542 = por %p540, %p541
      %p543 = scmp.ne.s32.totalorder %s534, %s535
      %p544 = scmp.eq.s32.totalorder %s47, 0
      %p545 = por %p543, %p544
      %p546 = scmp.ne.s32.totalorder %s534, %s535
      %p547 = scmp.eq.s32.totalorder %s48, 1
      %p548 = por %p546, %p547
      %p550 = scmp.ne.s32.totalorder %s535, %s549
      %p551 = scmp.eq.s32.totalorder %s48, 0
      %p552 = por %p550, %p551
      %s554 = sadd.s32 %s553, 1
      %p557 = scmp.eq.s32.totalorder %s42, 1
      %p558 = scmp.ne.s32.totalorder %s553, %s555
      %p559 = scmp.eq.s32.totalorder %s42, 0
      %p560 = por %p558, %p559
      %p561 = scmp.ne.s32.totalorder %s553, %s555
      %p562 = scmp.eq.s32.totalorder %s47, 1
      %p563 = por %p561, %p562
      %p564 = scmp.ne.s32.totalorder %s555, %s556
      %p565 = scmp.eq.s32.totalorder %s47, 0
      %p566 = por %p564, %p565
      %p567 = scmp.ne.s32.totalorder %s555, %s556
      %p568 = scmp.eq.s32.totalorder %s48, 1
      %p569 = por %p567, %p568
      %p571 = scmp.ne.s32.totalorder %s556, %s570
      %p572 = scmp.eq.s32.totalorder %s48, 0
      %p573 = por %p571, %p572
      %s575 = sadd.s32 %s574, 1
      %p578 = scmp.eq.s32.totalorder %s42, 1
      %p579 = scmp.ne.s32.totalorder %s574, %s576
      %p580 = scmp.eq.s32.totalorder %s42, 0
      %p581 = por %p579, %p580
      %p582 = scmp.ne.s32.totalorder %s574, %s576
      %p583 = scmp.eq.s32.totalorder %s47, 1
      %p584 = por %p582, %p583
      %p585 = scmp.ne.s32.totalorder %s576, %s577
      %p586 = scmp.eq.s32.totalorder %s47, 0
      %p587 = por %p585, %p586
      %p588 = scmp.ne.s32.totalorder %s576, %s577
      %p589 = scmp.eq.s32.totalorder %s48, 1
      %p590 = por %p588, %p589
      %p592 = scmp.ne.s32.totalorder %s577, %s591
      %p593 = scmp.eq.s32.totalorder %s48, 0
      %p594 = por %p592, %p593
      %s596 = sadd.s32 %s595, 1
      %p599 = scmp.eq.s32.totalorder %s42, 1
      %p600 = scmp.ne.s32.totalorder %s595, %s597
      %p601 = scmp.eq.s32.totalorder %s42, 0
      %p602 = por %p600, %p601
      %p603 = scmp.ne.s32.totalorder %s595, %s597
      %p604 = scmp.eq.s32.totalorder %s47, 1
      %p605 = por %p603, %p604
      %p606 = scmp.ne.s32.totalorder %s597, %s598
      %p607 = scmp.eq.s32.totalorder %s47, 0
      %p608 = por %p606, %p607
      %p609 = scmp.ne.s32.totalorder %s597, %s598
      %p610 = scmp.eq.s32.totalorder %s48, 1
      %p611 = por %p609, %p610
      %p613 = scmp.ne.s32.totalorder %s598, %s612
      %p614 = scmp.eq.s32.totalorder %s48, 0
      %p615 = por %p613, %p614
      %s616 = ssub.s32 %s42, %s49
      %p617 = scmp.eq.s32.totalorder %s616, 0
      %s619 = sadd.s32 %s618, 1
      %s620 = scalar_select %p617, %s618, %s619
      %p623 = pneg %p617
      %p624 = scmp.eq.s32.totalorder %s42, 1
      %p625 = por %p623, %p624
      %p626 = scmp.ne.s32.totalorder %s618, %s621
      %p627 = scmp.eq.s32.totalorder %s42, 0
      %p628 = por %p626, %p627
      %p629 = scmp.ne.s32.totalorder %s618, %s621
      %p630 = scmp.eq.s32.totalorder %s47, 1
      %p631 = por %p629, %p630
      %p632 = scmp.ne.s32.totalorder %s621, %s622
      %p633 = scmp.eq.s32.totalorder %s47, 0
      %p634 = por %p632, %p633
      %p635 = scmp.ne.s32.totalorder %s621, %s622
      %p636 = scmp.eq.s32.totalorder %s48, 1
      %p637 = por %p635, %p636
      %p639 = scmp.ne.s32.totalorder %s622, %s638
      %p640 = scmp.eq.s32.totalorder %s48, 0
      %p641 = por %p639, %p640
      %s642 = ssub.s32 %s42, %s49
      %p643 = scmp.eq.s32.totalorder %s642, 0
      %s645 = sadd.s32 %s644, 1
      %s646 = scalar_select %p643, %s644, %s645
      %p649 = pneg %p643
      %p650 = scmp.eq.s32.totalorder %s42, 1
      %p651 = por %p649, %p650
      %p652 = scmp.ne.s32.totalorder %s644, %s647
      %p653 = scmp.eq.s32.totalorder %s42, 0
      %p654 = por %p652, %p653
      %p655 = scmp.ne.s32.totalorder %s644, %s647
      %p656 = scmp.eq.s32.totalorder %s47, 1
      %p657 = por %p655, %p656
      %p658 = scmp.ne.s32.totalorder %s647, %s648
      %p659 = scmp.eq.s32.totalorder %s47, 0
      %p660 = por %p658, %p659
      %p661 = scmp.ne.s32.totalorder %s647, %s648
      %p662 = scmp.eq.s32.totalorder %s48, 1
      %p663 = por %p661, %p662
      %p665 = scmp.ne.s32.totalorder %s648, %s664
      %p666 = scmp.eq.s32.totalorder %s48, 0
      %p667 = por %p665, %p666
      %p668 = scmp.le.s32.totalorder 1, %s42
      %p669 = scmp.lt.s32.totalorder %s42, 3
      %p670 = pnand %p668, %p669
      %p671 = pneg %p670
      // Predicated region
      $region9: #{seq2seq_forward.7} parent=5 // pred_check
        _
      $region10: #{seq2seq_forward.7} parent=5 // pred_check_branch
        %673 = sbr.rel (%p670) target = $region12
      $region11: #{seq2seq_forward.7} parent=5 // pred_region
        %s674 = ssub.s32 %s42, 1
        // Predicated region
        $region13: #{seq2seq_forward.7} parent=11 // pred_check
          %p675 = pneg %p167
        $region14: #{seq2seq_forward.7} parent=11 // pred_check_branch
          %677 = sbr.rel (%p675) target = $region16
        $region15: #{seq2seq_forward.7} parent=11 // pred_region
          _
        $region16: #{seq2seq_forward.7} parent=11 // pred_fallthru
          _
        // Predicated region
        $region17: #{seq2seq_forward.7} parent=11 // pred_check
          %p678 = pneg %p188
        $region18: #{seq2seq_forward.7} parent=11 // pred_check_branch
          %680 = sbr.rel (%p678) target = $region20
        $region19: #{seq2seq_forward.7} parent=11 // pred_region
          _
        $region20: #{seq2seq_forward.7} parent=11 // pred_fallthru
          _
        // Predicated region
        $region21: #{seq2seq_forward.7} parent=11 // pred_check
          %p681 = pneg %p209
        $region22: #{seq2seq_forward.7} parent=11 // pred_check_branch
          %683 = sbr.rel (%p681) target = $region24
        $region23: #{seq2seq_forward.7} parent=11 // pred_region
          _
        $region24: #{seq2seq_forward.7} parent=11 // pred_fallthru
          _
        // Predicated region
        $region25: #{seq2seq_forward.7} parent=11 // pred_check
          %p684 = pneg %p230
        $region26: #{seq2seq_forward.7} parent=11 // pred_check_branch
          %686 = sbr.rel (%p684) target = $region28
        $region27: #{seq2seq_forward.7} parent=11 // pred_region
          _
        $region28: #{seq2seq_forward.7} parent=11 // pred_fallthru
          _
        // Predicated region
        $region29: #{seq2seq_forward.7} parent=11 // pred_check
          %p687 = pneg %p251
        $region30: #{seq2seq_forward.7} parent=11 // pred_check_branch
          %689 = sbr.rel (%p687) target = $region32
        $region31: #{seq2seq_forward.7} parent=11 // pred_region
          _
        $region32: #{seq2seq_forward.7} parent=11 // pred_fallthru
          _
        // Predicated region
        $region33: #{seq2seq_forward.7} parent=11 // pred_check
          %p690 = pneg %p272
        $region34: #{seq2seq_forward.7} parent=11 // pred_check_branch
          %692 = sbr.rel (%p690) target = $region36
        $region35: #{seq2seq_forward.7} parent=11 // pred_region
          _
        $region36: #{seq2seq_forward.7} parent=11 // pred_fallthru
          _
        // Predicated region
        $region37: #{seq2seq_forward.7} parent=11 // pred_check
          %p693 = pneg %p293
        $region38: #{seq2seq_forward.7} parent=11 // pred_check_branch
          %695 = sbr.rel (%p693) target = $region40
        $region39: #{seq2seq_forward.7} parent=11 // pred_region
          _
        $region40: #{seq2seq_forward.7} parent=11 // pred_fallthru
          _
        // Predicated region
        $region41: #{seq2seq_forward.7} parent=11 // pred_check
          %p696 = pneg %p314
        $region42: #{seq2seq_forward.7} parent=11 // pred_check_branch
          %698 = sbr.rel (%p696) target = $region44
        $region43: #{seq2seq_forward.7} parent=11 // pred_region
          _
        $region44: #{seq2seq_forward.7} parent=11 // pred_fallthru
          _
        // Predicated region
        $region45: #{seq2seq_forward.7} parent=11 // pred_check
          %p699 = pneg %p335
        $region46: #{seq2seq_forward.7} parent=11 // pred_check_branch
          %701 = sbr.rel (%p699) target = $region48
        $region47: #{seq2seq_forward.7} parent=11 // pred_region
          _
        $region48: #{seq2seq_forward.7} parent=11 // pred_fallthru
          _
        // Predicated region
        $region49: #{seq2seq_forward.7} parent=11 // pred_check
          %p702 = pneg %p356
        $region50: #{seq2seq_forward.7} parent=11 // pred_check_branch
          %704 = sbr.rel (%p702) target = $region52
        $region51: #{seq2seq_forward.7} parent=11 // pred_region
          _
        $region52: #{seq2seq_forward.7} parent=11 // pred_fallthru
          _
        // Predicated region
        $region53: #{seq2seq_forward.7} parent=11 // pred_check
          %p705 = pneg %p377
        $region54: #{seq2seq_forward.7} parent=11 // pred_check_branch
          %707 = sbr.rel (%p705) target = $region56
        $region55: #{seq2seq_forward.7} parent=11 // pred_region
          _
        $region56: #{seq2seq_forward.7} parent=11 // pred_fallthru
          _
        // Predicated region
        $region57: #{seq2seq_forward.7} parent=11 // pred_check
          %p708 = pneg %p398
        $region58: #{seq2seq_forward.7} parent=11 // pred_check_branch
          %710 = sbr.rel (%p708) target = $region60
        $region59: #{seq2seq_forward.7} parent=11 // pred_region
          _
        $region60: #{seq2seq_forward.7} parent=11 // pred_fallthru
          _
        // Predicated region
        $region61: #{seq2seq_forward.7} parent=11 // pred_check
          %p711 = pneg %p419
        $region62: #{seq2seq_forward.7} parent=11 // pred_check_branch
          %713 = sbr.rel (%p711) target = $region64
        $region63: #{seq2seq_forward.7} parent=11 // pred_region
          _
        $region64: #{seq2seq_forward.7} parent=11 // pred_fallthru
          _
        // Predicated region
        $region65: #{seq2seq_forward.7} parent=11 // pred_check
          %p714 = pneg %p440
        $region66: #{seq2seq_forward.7} parent=11 // pred_check_branch
          %716 = sbr.rel (%p714) target = $region68
        $region67: #{seq2seq_forward.7} parent=11 // pred_region
          _
        $region68: #{seq2seq_forward.7} parent=11 // pred_fallthru
          _
        // Predicated region
        $region69: #{seq2seq_forward.7} parent=11 // pred_check
          %p717 = pneg %p461
        $region70: #{seq2seq_forward.7} parent=11 // pred_check_branch
          %719 = sbr.rel (%p717) target = $region72
        $region71: #{seq2seq_forward.7} parent=11 // pred_region
          _
        $region72: #{seq2seq_forward.7} parent=11 // pred_fallthru
          _
        // Predicated region
        $region73: #{seq2seq_forward.7} parent=11 // pred_check
          %p720 = pneg %p482
        $region74: #{seq2seq_forward.7} parent=11 // pred_check_branch
          %722 = sbr.rel (%p720) target = $region76
        $region75: #{seq2seq_forward.7} parent=11 // pred_region
          _
        $region76: #{seq2seq_forward.7} parent=11 // pred_fallthru
          _
        // Predicated region
        $region77: #{seq2seq_forward.7} parent=11 // pred_check
          %p723 = pneg %p503
        $region78: #{seq2seq_forward.7} parent=11 // pred_check_branch
          %725 = sbr.rel (%p723) target = $region80
        $region79: #{seq2seq_forward.7} parent=11 // pred_region
          _
        $region80: #{seq2seq_forward.7} parent=11 // pred_fallthru
          _
        // Predicated region
        $region81: #{seq2seq_forward.7} parent=11 // pred_check
          %p726 = pneg %p524
        $region82: #{seq2seq_forward.7} parent=11 // pred_check_branch
          %728 = sbr.rel (%p726) target = $region84
        $region83: #{seq2seq_forward.7} parent=11 // pred_region
          _
        $region84: #{seq2seq_forward.7} parent=11 // pred_fallthru
          _
        // Predicated region
        $region85: #{seq2seq_forward.7} parent=11 // pred_check
          %p729 = pneg %p545
        $region86: #{seq2seq_forward.7} parent=11 // pred_check_branch
          %731 = sbr.rel (%p729) target = $region88
        $region87: #{seq2seq_forward.7} parent=11 // pred_region
          _
        $region88: #{seq2seq_forward.7} parent=11 // pred_fallthru
          _
        // Predicated region
        $region89: #{seq2seq_forward.7} parent=11 // pred_check
          %p732 = pneg %p566
        $region90: #{seq2seq_forward.7} parent=11 // pred_check_branch
          %734 = sbr.rel (%p732) target = $region92
        $region91: #{seq2seq_forward.7} parent=11 // pred_region
          %s736 = ssub.s32 16, 16
          %737 = vsyncadd [#allocation3], %s736
          %s739 = sshll.u32 [#allocation2], 4
          %s740 = int_to_ptr.vmem [resolvable:$true] %s739
          %742 = dma.hbm_to_vmem [thread:$0]  %s23, 16, %s740, [#allocation3]
        $region92: #{seq2seq_forward.7} parent=11 // pred_fallthru
          _
        // Predicated region
        $region93: #{seq2seq_forward.7} parent=11 // pred_check
          %p743 = pneg %p587
        $region94: #{seq2seq_forward.7} parent=11 // pred_check_branch
          %745 = sbr.rel (%p743) target = $region96
        $region95: #{seq2seq_forward.7} parent=11 // pred_region
          _
        $region96: #{seq2seq_forward.7} parent=11 // pred_fallthru
          _
        // Predicated region
        $region97: #{seq2seq_forward.7} parent=11 // pred_check
          %p746 = pneg %p608
        $region98: #{seq2seq_forward.7} parent=11 // pred_check_branch
          %748 = sbr.rel (%p746) target = $region100
        $region99: #{seq2seq_forward.7} parent=11 // pred_region
          %s750 = ssub.s32 16, 16
          %751 = vsyncadd [#allocation6], %s750
          %s753 = sshll.u32 [#allocation5], 4
          %s754 = int_to_ptr.vmem [resolvable:$true] %s753
          %756 = dma.hbm_to_vmem [thread:$0]  %s25, 16, %s754, [#allocation6]
        $region100: #{seq2seq_forward.7} parent=11 // pred_fallthru
          _
      $region12: #{seq2seq_forward.7} parent=5 // pred_fallthru
        _
      %p757 = scmp.lt.s32.totalorder %s42, 2
      // Predicated region
      $region101: #{seq2seq_forward.7} parent=5 // pred_check
        %p758 = pneg %p757
      $region102: #{seq2seq_forward.7} parent=5 // pred_check_branch
        %760 = sbr.rel (%p758) target = $region104
      $region103: #{seq2seq_forward.7} parent=5 // pred_region
        // Predicated region
        $region105: #{seq2seq_forward.7} parent=103 // pred_check
          %p761 = pneg %p62
        $region106: #{seq2seq_forward.7} parent=103 // pred_check_branch
          %763 = sbr.rel (%p761) target = $region108
        $region107: #{seq2seq_forward.7} parent=103 // pred_region
          %p764 = scmp.lt.s32.totalorder %s42, 1
          %s765 = scalar_select %p764, %s42, 1
          %s766 = smul.addr %s765, 8
          %s767 = scalar_lea.vmem %s0, %s766
        $region108: #{seq2seq_forward.7} parent=103 // pred_fallthru
          _
        // Predicated region
        $region109: #{seq2seq_forward.7} parent=103 // pred_check
          %p768 = pneg %p88
        $region110: #{seq2seq_forward.7} parent=103 // pred_check_branch
          %770 = sbr.rel (%p768) target = $region112
        $region111: #{seq2seq_forward.7} parent=103 // pred_region
          %p771 = scmp.lt.s32.totalorder %s42, 1
          %s772 = scalar_select %p771, %s42, 1
          %s773 = smul.addr %s772, 8
          %s774 = scalar_lea.vmem %s1, %s773
        $region112: #{seq2seq_forward.7} parent=103 // pred_fallthru
          _
        // Predicated region
        $region113: #{seq2seq_forward.7} parent=103 // pred_check
          %p775 = pneg %p114
        $region114: #{seq2seq_forward.7} parent=103 // pred_check_branch
          %777 = sbr.rel (%p775) target = $region116
        $region115: #{seq2seq_forward.7} parent=103 // pred_region
          %p778 = scmp.lt.s32.totalorder %s42, 1
          %s779 = scalar_select %p778, %s42, 1
          %s780 = smul.addr %s779, 8
          %s781 = scalar_lea.vmem %s2, %s780
        $region116: #{seq2seq_forward.7} parent=103 // pred_fallthru
          _
        // Predicated region
        $region117: #{seq2seq_forward.7} parent=103 // pred_check
          %p782 = pneg %p140
        $region118: #{seq2seq_forward.7} parent=103 // pred_check_branch
          %784 = sbr.rel (%p782) target = $region120
        $region119: #{seq2seq_forward.7} parent=103 // pred_region
          %p785 = scmp.lt.s32.totalorder %s42, 1
          %s786 = scalar_select %p785, %s42, 1
          %s787 = smul.addr %s786, 8
          %s788 = scalar_lea.vmem %s3, %s787
        $region120: #{seq2seq_forward.7} parent=103 // pred_fallthru
          _
      $region104: #{seq2seq_forward.7} parent=5 // pred_fallthru
        _
      %p789 = scmp.le.s32.totalorder 1, %s42
      %p790 = scmp.lt.s32.totalorder %s42, 3
      %p791 = pnand %p789, %p790
      %p792 = pneg %p791
      // Predicated region
      $region121: #{seq2seq_forward.7} parent=5 // pred_check
        _
      $region122: #{seq2seq_forward.7} parent=5 // pred_check_branch
        %794 = sbr.rel (%p791) target = $region124
      $region123: #{seq2seq_forward.7} parent=5 // pred_region
        %s795 = ssub.s32 %s42, 1
        // Predicated region
        $region125: #{seq2seq_forward.7} parent=123 // pred_check
          %p796 = pneg %p566
        $region126: #{seq2seq_forward.7} parent=123 // pred_check_branch
          %798 = sbr.rel (%p796) target = $region128
        $region127: #{seq2seq_forward.7} parent=123 // pred_region
          %799 = dma.done [#allocation3], 16
        $region128: #{seq2seq_forward.7} parent=123 // pred_fallthru
          _
        // Predicated region
        $region129: #{seq2seq_forward.7} parent=123 // pred_check
          %p800 = pneg %p608
        $region130: #{seq2seq_forward.7} parent=123 // pred_check_branch
          %802 = sbr.rel (%p800) target = $region132
        $region131: #{seq2seq_forward.7} parent=123 // pred_region
          %803 = dma.done [#allocation6], 16
        $region132: #{seq2seq_forward.7} parent=123 // pred_fallthru
          _
        %p804 = scmp.lt.s32.totalorder %s47, 1
        %s805 = scalar_select %p804, %s47, 1
        %s806 = smul.addr %s805, 8
        %s807 = scalar_lea.vmem %s0, %s806
        %p808 = pneg %p68
        %p809 = pneg %p65
        %p810 = scmp.lt.s32.totalorder %s47, 1
        %s811 = scalar_select %p810, %s47, 1
        %s812 = smul.addr %s811, 8
        %s813 = scalar_lea.vmem %s1, %s812
        %p814 = pneg %p94
        %p815 = pneg %p91
        %p816 = scmp.lt.s32.totalorder %s47, 1
        %s817 = scalar_select %p816, %s47, 1
        %s818 = smul.addr %s817, 8
        %s819 = scalar_lea.vmem %s2, %s818
        %p820 = pneg %p120
        %p821 = pneg %p117
        %p822 = scmp.lt.s32.totalorder %s47, 1
        %s823 = scalar_select %p822, %s47, 1
        %s824 = smul.addr %s823, 8
        %s825 = scalar_lea.vmem %s3, %s824
        %p826 = pneg %p146
        %p827 = pneg %p143
        %p828 = pneg %p167
        %p829 = pneg %p164
        %p830 = pneg %p188
        %p831 = pneg %p185
        %p832 = pneg %p209
        %p833 = pneg %p206
        %p834 = pneg %p230
        %p835 = pneg %p227
        %p836 = pneg %p251
        %p837 = pneg %p248
        %p838 = pneg %p272
        %p839 = pneg %p269
        %p840 = pneg %p293
        %p841 = pneg %p290
        %p842 = pneg %p314
        %p843 = pneg %p311
        %p844 = pneg %p335
        %p845 = pneg %p332
        %p846 = pneg %p356
        %p847 = pneg %p353
        %p848 = pneg %p377
        %p849 = pneg %p374
        %p850 = pneg %p398
        %p851 = pneg %p395
        %p852 = pneg %p419
        %p853 = pneg %p416
        %p854 = pneg %p440
        %p855 = pneg %p437
        %p856 = pneg %p461
        %p857 = pneg %p458
        %p858 = pneg %p482
        %p859 = pneg %p479
        %p860 = pneg %p503
        %p861 = pneg %p500
        %p862 = pneg %p524
        %p863 = pneg %p521
        %p864 = pneg %p545
        %p865 = pneg %p542
        %p866 = pneg %p566
        %p867 = pneg %p563
        %p868 = pneg %p587
        %p869 = pneg %p584
        %p870 = pneg %p608
        %p871 = pneg %p605
        %p872 = pneg %p634
        %p873 = pneg %p631
        %s874 = sand.u32 %s621, 1
        %s875 = scalar_lea.sflag [#allocation4], %s874
        %s876 = sand.u32 %s621, 1
        %s877 = smul.addr %s876, 8
        %s878 = scalar_lea.vmem [#allocation7], %s877
        %p879 = pneg %p660
        %p880 = pneg %p657
        %s881 = sand.u32 %s647, 1
        %s882 = scalar_lea.sflag [#allocation9], %s881
        %s883 = sand.u32 %s647, 1
        %s884 = smul.addr %s883, 32
        %s885 = scalar_lea.vmem [#allocation8], %s884
        %p886 = scmp.lt.s32.totalorder %s47, 1
        %s887 = scalar_select %p886, %s47, 1
        %s888 = smul.addr %s887, 8
        %s889 = scalar_lea.vmem %s0, %s888
        %p890 = scmp.lt.s32.totalorder %s47, 1
        %s891 = scalar_select %p890, %s47, 1
        %s892 = smul.addr %s891, 8
        %s893 = scalar_lea.vmem %s1, %s892
        %p894 = scmp.lt.s32.totalorder %s47, 1
        %s895 = scalar_select %p894, %s47, 1
        %s896 = smul.addr %s895, 8
        %s897 = scalar_lea.vmem %s2, %s896
        %p898 = scmp.lt.s32.totalorder %s47, 1
        %s899 = scalar_select %p898, %s47, 1
        %s900 = smul.addr %s899, 8
        %s901 = scalar_lea.vmem %s3, %s900
        %v902 = vld [vmem:[%s889] sm:$0xff]
        %v903 = vld [vmem:[%s893] sm:$0xff]
        %v904 = vld [vmem:[%s897] sm:$0xff]
        %v905 = vld [vmem:[%s901] sm:$0xff]
        %v906 = vld [vmem:[%s4] sm:$0xff]
        %v907 = vld [vmem:[%s4 + $0x8] sm:$0xff]
        %v908 = vld [vmem:[%s4 + $0x10] sm:$0xff]
        %v909 = vld [vmem:[%s4 + $0x18] sm:$0xff]
        %v910 = vld [vmem:[%s5] sm:$0x1]
        %v911 = vld [vmem:[%s6] sm:$0xff]
        %v912 = vld [vmem:[%s6 + $0x8] sm:$0xff]
        %v913 = vld [vmem:[%s6 + $0x10] sm:$0xff]
        %v914 = vld [vmem:[%s6 + $0x18] sm:$0xff]
        %v915 = vld [vmem:[%s7] sm:$0x1]
        %v916 = vld [vmem:[%s8] sm:$0x1]
        %v917 = vld [vmem:[%s9] sm:$0x1]
        %v918 = vld [vmem:[%s10] sm:$0xff]
        %v919 = vld [vmem:[%s10 + $0x8] sm:$0xff]
        %v920 = vld [vmem:[%s10 + $0x10] sm:$0xff]
        %v921 = vld [vmem:[%s10 + $0x18] sm:$0xff]
        %v922 = vld [vmem:[%s11] sm:$0x1]
        %v923 = vld [vmem:[%s12] sm:$0xff]
        %v924 = vld [vmem:[%s12 + $0x8] sm:$0xff]
        %v925 = vld [vmem:[%s12 + $0x10] sm:$0xff]
        %v926 = vld [vmem:[%s12 + $0x18] sm:$0xff]
        %v927 = vld [vmem:[%s13] sm:$0x1]
        %v928 = vld [vmem:[%s14] sm:$0xff]
        %v929 = vld [vmem:[%s14 + $0x8] sm:$0xff]
        %v930 = vld [vmem:[%s14 + $0x10] sm:$0xff]
        %v931 = vld [vmem:[%s14 + $0x18] sm:$0xff]
        %v932 = vld [vmem:[%s15] sm:$0x1]
        %v933 = vld [vmem:[%s16] sm:$0x1]
        %v934 = vld [vmem:[%s17] sm:$0x1]
        %v935 = vld [vmem:[%s18] sm:$0xff]
        %v936 = vld [vmem:[%s18 + $0x8] sm:$0xff]
        %v937 = vld [vmem:[%s18 + $0x10] sm:$0xff]
        %v938 = vld [vmem:[%s18 + $0x18] sm:$0xff]
        %v939 = vld [vmem:[%s19] sm:$0x1]
        %v940 = vld [vmem:[%s20] sm:$0xff]
        %v941 = vld [vmem:[%s20 + $0x8] sm:$0xff]
        %v942 = vld [vmem:[%s20 + $0x10] sm:$0xff]
        %v943 = vld [vmem:[%s20 + $0x18] sm:$0xff]
        %v944 = vld [vmem:[%s20 + $0x20] sm:$0xff]
        %v945 = vld [vmem:[%s20 + $0x28] sm:$0xff]
        %v946 = vld [vmem:[%s20 + $0x30] sm:$0xff]
        %v947 = vld [vmem:[%s20 + $0x38] sm:$0xff]
        %v948 = vld [vmem:[%s21] sm:$0x1]
        %v949 = vld [vmem:[%s22] sm:$0x1]
        %v950 = vld [vmem:[#allocation2] sm:$0x1]
        %v952 = vlaneseq
        %v953 = vshrl.u32 %v952, 7
        %v954 = vsub.s32 0, %v953
        %v955 = vrot.slane %v910, %v954
        %vm957 = vcmask 261120
        %v959 = vsel %vm957, %v902, 0
        %961 = vmatprep.subr.mxu0 0.0
        %962 = vmatpush1.msra.mxu0 %v906
        %963 = vmatprep.subr.mxu0 0.0
        %964 = vmatpush1.msra.mxu0 %v907
        %965 = vmatprep.subr.mxu0 0.0
        %966 = vmatpush1.msra.mxu0 %v908
        %967 = vmatprep.subr.mxu0 0.0
        %968 = vmatpush1.msra.mxu0 %v909
        %969 = vmatprep.subr.mxu0 0.0
        %970 = vmatpush1.msra.mxu0 0.0
        %971 = vmatprep.subr.mxu0 0.0
        %972 = vmatpush1.msra.mxu0 0.0
        %973 = vmatprep.subr.mxu0 0.0
        %974 = vmatpush1.msra.mxu0 0.0
        %975 = vmatprep.subr.mxu0 0.0
        %976 = vmatpush1.msra.mxu0 0.0
        %977 = vmatprep.subr.mxu0 0.0
        %978 = vmatpush1.msra.mxu0 0.0
        %979 = vmatprep.subr.mxu0 0.0
        %980 = vmatpush1.msra.mxu0 0.0
        %981 = vmatprep.subr.mxu0 0.0
        %982 = vmatpush1.msra.mxu0 0.0
        %983 = vmatprep.subr.mxu0 0.0
        %984 = vmatpush1.msra.mxu0 0.0
        %985 = vmatprep.subr.mxu0 0.0
        %986 = vmatpush1.msra.mxu0 0.0
        %987 = vmatprep.subr.mxu0 0.0
        %988 = vmatpush1.msra.mxu0 0.0
        %989 = vmatprep.subr.mxu0 0.0
        %990 = vmatpush1.msra.mxu0 0.0
        %991 = vmatprep.subr.mxu0 0.0
        %992 = vmatpush1.msra.mxu0 0.0
        %993 = vmatprep.subr.mxu0 0.0
        %994 = vmatpush1.msra.mxu0 0.0
        %995 = vmatprep.subr.mxu0 0.0
        %996 = vmatpush1.msra.mxu0 0.0
        %997 = vmatprep.subr.mxu0 0.0
        %998 = vmatpush1.msra.mxu0 0.0
        %999 = vmatprep.subr.mxu0 0.0
        %1000 = vmatpush1.msra.mxu0 0.0
        %1001 = vmatprep.subr.mxu0 0.0
        %1002 = vmatpush1.msra.mxu0 0.0
        %1003 = vmatprep.subr.mxu0 0.0
        %1004 = vmatpush1.msra.mxu0 0.0
        %1005 = vmatprep.subr.mxu0 0.0
        %1006 = vmatpush1.msra.mxu0 0.0
        %1007 = vmatprep.subr.mxu0 0.0
        %1008 = vmatpush1.msra.mxu0 0.0
        %1009 = vmatprep.subr.mxu0 0.0
        %1010 = vmatpush1.msra.mxu0 0.0
        %1011 = vmatprep.subr.mxu0 0.0
        %1012 = vmatpush1.msra.mxu0 0.0
        %1013 = vmatprep.subr.mxu0 0.0
        %1014 = vmatpush1.msra.mxu0 0.0
        %1015 = vmatprep.subr.mxu0 0.0
        %1016 = vmatpush1.msra.mxu0 0.0
        %1017 = vmatprep.subr.mxu0 0.0
        %1018 = vmatpush1.msra.mxu0 0.0
        %1019 = vmatprep.subr.mxu0 0.0
        %1020 = vmatpush1.msra.mxu0 0.0
        %1021 = vmatprep.subr.mxu0 0.0
        %1022 = vmatpush1.msra.mxu0 0.0
        %1023 = vmatprep.subr.mxu0 0.0
        %1024 = vmatpush1.msra.mxu0 0.0
        %1025 = vmatprep.mubr.f32.mxu0 0.0
        %1026 = vmatmul.mubr.f32.gmra.mrb[0].mxu0 %v959
        %v1027 = vpop.f32.mrb[0].mxu0
        %v1028 = vadd.f32 %v955, %v1027
        %v1029 = vpop.f32.mrb[0].mxu0
        %1030 = vdwg.mxu0
        %1032 = vrot.lane.b32.xlu0 %v1028, 96
        %v1033 = vpop.permute.xlu0 %1032
        %vm1034 = vcmask 64512
        %v1035 = vsel %vm1034, %v1028, 0
        %v1037 = vsel %vm1034, %v1033, 0
        %1039 = vmatprep.subr.mxu0 0.0
        %1040 = vmatpush1.xpose.msra.mxu0 %v1037
        %1041 = vmatprep.subr.mxu0 0.0
        %1042 = vmatpush1.xpose.msra.mxu0 0.0
        %1043 = vmatprep.subr.mxu0 0.0
        %1044 = vmatpush1.xpose.msra.mxu0 0.0
        %1045 = vmatprep.subr.mxu0 0.0
        %1046 = vmatpush1.xpose.msra.mxu0 0.0
        %1047 = vmatprep.subr.mxu0 0.0
        %1048 = vmatpush1.xpose.msra.mxu0 0.0
        %1049 = vmatprep.subr.mxu0 0.0
        %1050 = vmatpush1.xpose.msra.mxu0 0.0
        %1051 = vmatprep.subr.mxu0 0.0
        %1052 = vmatpush1.xpose.msra.mxu0 0.0
        %1053 = vmatprep.subr.mxu0 0.0
        %1054 = vmatpush1.xpose.msra.mxu0 0.0
        %1055 = vmatprep.subr.mxu0 0.0
        %1056 = vmatpush1.xpose.msra.mxu0 0.0
        %1057 = vmatprep.subr.mxu0 0.0
        %1058 = vmatpush1.xpose.msra.mxu0 0.0
        %1059 = vmatprep.subr.mxu0 0.0
        %1060 = vmatpush1.xpose.msra.mxu0 0.0
        %1061 = vmatprep.subr.mxu0 0.0
        %1062 = vmatpush1.xpose.msra.mxu0 0.0
        %1063 = vmatprep.subr.mxu0 0.0
        %1064 = vmatpush1.xpose.msra.mxu0 0.0
        %1065 = vmatprep.subr.mxu0 0.0
        %1066 = vmatpush1.xpose.msra.mxu0 0.0
        %1067 = vmatprep.subr.mxu0 0.0
        %1068 = vmatpush1.xpose.msra.mxu0 0.0
        %1069 = vmatprep.subr.mxu0 0.0
        %1070 = vmatpush1.xpose.msra.mxu0 0.0
        %1071 = vmatprep.subr.mxu0 0.0
        %1072 = vmatpush1.xpose.msra.mxu0 0.0
        %1073 = vmatprep.subr.mxu0 0.0
        %1074 = vmatpush1.xpose.msra.mxu0 0.0
        %1075 = vmatprep.subr.mxu0 0.0
        %1076 = vmatpush1.xpose.msra.mxu0 0.0
        %1077 = vmatprep.subr.mxu0 0.0
        %1078 = vmatpush1.xpose.msra.mxu0 0.0
        %1079 = vmatprep.subr.mxu0 0.0
        %1080 = vmatpush1.xpose.msra.mxu0 0.0
        %1081 = vmatprep.subr.mxu0 0.0
        %1082 = vmatpush1.xpose.msra.mxu0 0.0
        %1083 = vmatprep.subr.mxu0 0.0
        %1084 = vmatpush1.xpose.msra.mxu0 0.0
        %1085 = vmatprep.subr.mxu0 0.0
        %1086 = vmatpush1.xpose.msra.mxu0 0.0
        %1087 = vmatprep.subr.mxu0 0.0
        %1088 = vmatpush1.xpose.msra.mxu0 0.0
        %1089 = vmatprep.subr.mxu0 0.0
        %1090 = vmatpush1.xpose.msra.mxu0 0.0
        %1091 = vmatprep.subr.mxu0 0.0
        %1092 = vmatpush1.xpose.msra.mxu0 0.0
        %1093 = vmatprep.subr.mxu0 0.0
        %1094 = vmatpush1.xpose.msra.mxu0 0.0
        %1095 = vmatprep.subr.mxu0 0.0
        %1096 = vmatpush1.xpose.msra.mxu0 0.0
        %1097 = vmatprep.subr.mxu0 0.0
        %1098 = vmatpush1.xpose.msra.mxu0 0.0
        %1099 = vmatprep.subr.mxu0 0.0
        %1100 = vmatpush1.xpose.msra.mxu0 0.0
        %1101 = vmatprep.subr.mxu0 0.0
        %1102 = vmatpush1.xpose.msra.mxu0 0.0
        %1103 = vmatprep.mubr.f32.mxu0 0.0
        %1104 = vmatmul.mubr.f32.gmra.mrb[0].mxu0 %v1035
        %v1105 = vpop.f32.mrb[0].mxu0
        %v1106 = vadd.f32 0.0, %v1105
        %v1107 = vpop.f32.mrb[0].mxu0
        %1108 = vdwg.mxu0
        %v1109 = vmul.f32 %v1106, 0.35355338
        %vm1110 = vcmp.ne.f32.partialorder %v904, 0.0
        %v1111 = vsel %vm1110, %v1109, -1e+10
        %v1112 = vsel %vm1034, %v1111, -inf
        %1113 = vmax.xlane.f32.xlu0 %v1112
        %v1114 = vpop.xlane.xlu0 %1113
        %v1115 = vsub.f32 %v1111, %v1114
        %v1116 = vmul.f32 %v1115, 1.442695
        %v1117 = vpow.pop %v1116
        %v1118 = vsel %vm1034, %v1117, 0.0
        %1119 = vadd.xlane.f32.xlu0 %v1118
        %v1120 = vpop.xlane.xlu0 %1119
        %v1121 = vrcp.pop %v1120
        %v1122 = vmul.f32 %v1117, %v1121
        %1123 = vrot.lane.b32.xlu0 %v1028, 64
        %v1124 = vpop.permute.xlu0 %1123
        %v1127 = vsel %vm1034, %v1122, 0
        %1129 = vmatprep.subr.mxu0 0.0
        %1130 = vmatpush1.msra.mxu0 %v1124
        %1131 = vmatprep.subr.mxu0 0.0
        %1132 = vmatpush1.msra.mxu0 0.0
        %1133 = vmatprep.subr.mxu0 0.0
        %1134 = vmatpush1.msra.mxu0 0.0
        %1135 = vmatprep.subr.mxu0 0.0
        %1136 = vmatpush1.msra.mxu0 0.0
        %1137 = vmatprep.subr.mxu0 0.0
        %1138 = vmatpush1.msra.mxu0 0.0
        %1139 = vmatprep.subr.mxu0 0.0
        %1140 = vmatpush1.msra.mxu0 0.0
        %1141 = vmatprep.subr.mxu0 0.0
        %1142 = vmatpush1.msra.mxu0 0.0
        %1143 = vmatprep.subr.mxu0 0.0
        %1144 = vmatpush1.msra.mxu0 0.0
        %1145 = vmatprep.subr.mxu0 0.0
        %1146 = vmatpush1.msra.mxu0 0.0
        %1147 = vmatprep.subr.mxu0 0.0
        %1148 = vmatpush1.msra.mxu0 0.0
        %1149 = vmatprep.subr.mxu0 0.0
        %1150 = vmatpush1.msra.mxu0 0.0
        %1151 = vmatprep.subr.mxu0 0.0
        %1152 = vmatpush1.msra.mxu0 0.0
        %1153 = vmatprep.subr.mxu0 0.0
        %1154 = vmatpush1.msra.mxu0 0.0
        %1155 = vmatprep.subr.mxu0 0.0
        %1156 = vmatpush1.msra.mxu0 0.0
        %1157 = vmatprep.subr.mxu0 0.0
        %1158 = vmatpush1.msra.mxu0 0.0
        %1159 = vmatprep.subr.mxu0 0.0
        %1160 = vmatpush1.msra.mxu0 0.0
        %1161 = vmatprep.subr.mxu0 0.0
        %1162 = vmatpush1.msra.mxu0 0.0
        %1163 = vmatprep.subr.mxu0 0.0
        %1164 = vmatpush1.msra.mxu0 0.0
        %1165 = vmatprep.subr.mxu0 0.0
        %1166 = vmatpush1.msra.mxu0 0.0
        %1167 = vmatprep.subr.mxu0 0.0
        %1168 = vmatpush1.msra.mxu0 0.0
        %1169 = vmatprep.subr.mxu0 0.0
        %1170 = vmatpush1.msra.mxu0 0.0
        %1171 = vmatprep.subr.mxu0 0.0
        %1172 = vmatpush1.msra.mxu0 0.0
        %1173 = vmatprep.subr.mxu0 0.0
        %1174 = vmatpush1.msra.mxu0 0.0
        %1175 = vmatprep.subr.mxu0 0.0
        %1176 = vmatpush1.msra.mxu0 0.0
        %1177 = vmatprep.subr.mxu0 0.0
        %1178 = vmatpush1.msra.mxu0 0.0
        %1179 = vmatprep.subr.mxu0 0.0
        %1180 = vmatpush1.msra.mxu0 0.0
        %1181 = vmatprep.subr.mxu0 0.0
        %1182 = vmatpush1.msra.mxu0 0.0
        %1183 = vmatprep.subr.mxu0 0.0
        %1184 = vmatpush1.msra.mxu0 0.0
        %1185 = vmatprep.subr.mxu0 0.0
        %1186 = vmatpush1.msra.mxu0 0.0
        %1187 = vmatprep.subr.mxu0 0.0
        %1188 = vmatpush1.msra.mxu0 0.0
        %1189 = vmatprep.subr.mxu0 0.0
        %1190 = vmatpush1.msra.mxu0 0.0
        %1191 = vmatprep.subr.mxu0 0.0
        %1192 = vmatpush1.msra.mxu0 0.0
        %1193 = vmatprep.mubr.f32.mxu0 0.0
        %1194 = vmatmul.mubr.f32.gmra.mrb[0].mxu0 %v1127
        %v1195 = vpop.f32.mrb[0].mxu0
        %v1196 = vadd.f32 0.0, %v1195
        %v1197 = vpop.f32.mrb[0].mxu0
        %1198 = vdwg.mxu0
        %1199 = vrot.lane.b32.xlu0 %v1028, 120
        %v1200 = vpop.permute.xlu0 %1199
        %1201 = vrot.lane.b32.xlu0 %v1028, 88
        %v1202 = vpop.permute.xlu0 %1201
        %v1203 = vsel %vm1034, %v1200, 0
        %v1205 = vsel %vm1034, %v1202, 0
        %1207 = vmatprep.subr.mxu0 0.0
        %1208 = vmatpush1.xpose.msra.mxu0 %v1205
        %1209 = vmatprep.subr.mxu0 0.0
        %1210 = vmatpush1.xpose.msra.mxu0 0.0
        %1211 = vmatprep.subr.mxu0 0.0
        %1212 = vmatpush1.xpose.msra.mxu0 0.0
        %1213 = vmatprep.subr.mxu0 0.0
        %1214 = vmatpush1.xpose.msra.mxu0 0.0
        %1215 = vmatprep.subr.mxu0 0.0
        %1216 = vmatpush1.xpose.msra.mxu0 0.0
        %1217 = vmatprep.subr.mxu0 0.0
        %1218 = vmatpush1.xpose.msra.mxu0 0.0
        %1219 = vmatprep.subr.mxu0 0.0
        %1220 = vmatpush1.xpose.msra.mxu0 0.0
        %1221 = vmatprep.subr.mxu0 0.0
        %1222 = vmatpush1.xpose.msra.mxu0 0.0
        %1223 = vmatprep.subr.mxu0 0.0
        %1224 = vmatpush1.xpose.msra.mxu0 0.0
        %1225 = vmatprep.subr.mxu0 0.0
        %1226 = vmatpush1.xpose.msra.mxu0 0.0
        %1227 = vmatprep.subr.mxu0 0.0
        %1228 = vmatpush1.xpose.msra.mxu0 0.0
        %1229 = vmatprep.subr.mxu0 0.0
        %1230 = vmatpush1.xpose.msra.mxu0 0.0
        %1231 = vmatprep.subr.mxu0 0.0
        %1232 = vmatpush1.xpose.msra.mxu0 0.0
        %1233 = vmatprep.subr.mxu0 0.0
        %1234 = vmatpush1.xpose.msra.mxu0 0.0
        %1235 = vmatprep.subr.mxu0 0.0
        %1236 = vmatpush1.xpose.msra.mxu0 0.0
        %1237 = vmatprep.subr.mxu0 0.0
        %1238 = vmatpush1.xpose.msra.mxu0 0.0
        %1239 = vmatprep.subr.mxu0 0.0
        %1240 = vmatpush1.xpose.msra.mxu0 0.0
        %1241 = vmatprep.subr.mxu0 0.0
        %1242 = vmatpush1.xpose.msra.mxu0 0.0
        %1243 = vmatprep.subr.mxu0 0.0
        %1244 = vmatpush1.xpose.msra.mxu0 0.0
        %1245 = vmatprep.subr.mxu0 0.0
        %1246 = vmatpush1.xpose.msra.mxu0 0.0
        %1247 = vmatprep.subr.mxu0 0.0
        %1248 = vmatpush1.xpose.msra.mxu0 0.0
        %1249 = vmatprep.subr.mxu0 0.0
        %1250 = vmatpush1.xpose.msra.mxu0 0.0
        %1251 = vmatprep.subr.mxu0 0.0
        %1252 = vmatpush1.xpose.msra.mxu0 0.0
        %1253 = vmatprep.subr.mxu0 0.0
        %1254 = vmatpush1.xpose.msra.mxu0 0.0
        %1255 = vmatprep.subr.mxu0 0.0
        %1256 = vmatpush1.xpose.msra.mxu0 0.0
        %1257 = vmatprep.subr.mxu0 0.0
        %1258 = vmatpush1.xpose.msra.mxu0 0.0
        %1259 = vmatprep.subr.mxu0 0.0
        %1260 = vmatpush1.xpose.msra.mxu0 0.0
        %1261 = vmatprep.subr.mxu0 0.0
        %1262 = vmatpush1.xpose.msra.mxu0 0.0
        %1263 = vmatprep.subr.mxu0 0.0
        %1264 = vmatpush1.xpose.msra.mxu0 0.0
        %1265 = vmatprep.subr.mxu0 0.0
        %1266 = vmatpush1.xpose.msra.mxu0 0.0
        %1267 = vmatprep.subr.mxu0 0.0
        %1268 = vmatpush1.xpose.msra.mxu0 0.0
        %1269 = vmatprep.subr.mxu0 0.0
        %1270 = vmatpush1.xpose.msra.mxu0 0.0
        %1271 = vmatprep.mubr.f32.mxu0 0.0
        %1272 = vmatmul.mubr.f32.gmra.mrb[0].mxu0 %v1203
        %v1273 = vpop.f32.mrb[0].mxu0
        %v1274 = vadd.f32 0.0, %v1273
        %v1275 = vpop.f32.mrb[0].mxu0
        %1276 = vdwg.mxu0
        %v1277 = vmul.f32 %v1274, 0.35355338
        %v1278 = vsel %vm1110, %v1277, -1e+10
        %v1279 = vsel %vm1034, %v1278, -inf
        %1280 = vmax.xlane.f32.xlu0 %v1279
        %v1281 = vpop.xlane.xlu0 %1280
        %v1282 = vsub.f32 %v1278, %v1281
        %v1283 = vmul.f32 %v1282, 1.442695
        %v1284 = vpow.pop %v1283
        %v1285 = vsel %vm1034, %v1284, 0.0
        %1286 = vadd.xlane.f32.xlu0 %v1285
        %v1287 = vpop.xlane.xlu0 %1286
        %v1288 = vrcp.pop %v1287
        %v1289 = vmul.f32 %v1284, %v1288
        %1290 = vrot.lane.b32.xlu0 %v1028, 56
        %v1291 = vpop.permute.xlu0 %1290
        %v1294 = vsel %vm1034, %v1289, 0
        %1296 = vmatprep.subr.mxu0 0.0
        %1297 = vmatpush1.msra.mxu0 %v1291
        %1298 = vmatprep.subr.mxu0 0.0
        %1299 = vmatpush1.msra.mxu0 0.0
        %1300 = vmatprep.subr.mxu0 0.0
        %1301 = vmatpush1.msra.mxu0 0.0
        %1302 = vmatprep.subr.mxu0 0.0
        %1303 = vmatpush1.msra.mxu0 0.0
        %1304 = vmatprep.subr.mxu0 0.0
        %1305 = vmatpush1.msra.mxu0 0.0
        %1306 = vmatprep.subr.mxu0 0.0
        %1307 = vmatpush1.msra.mxu0 0.0
        %1308 = vmatprep.subr.mxu0 0.0
        %1309 = vmatpush1.msra.mxu0 0.0
        %1310 = vmatprep.subr.mxu0 0.0
        %1311 = vmatpush1.msra.mxu0 0.0
        %1312 = vmatprep.subr.mxu0 0.0
        %1313 = vmatpush1.msra.mxu0 0.0
        %1314 = vmatprep.subr.mxu0 0.0
        %1315 = vmatpush1.msra.mxu0 0.0
        %1316 = vmatprep.subr.mxu0 0.0
        %1317 = vmatpush1.msra.mxu0 0.0
        %1318 = vmatprep.subr.mxu0 0.0
        %1319 = vmatpush1.msra.mxu0 0.0
        %1320 = vmatprep.subr.mxu0 0.0
        %1321 = vmatpush1.msra.mxu0 0.0
        %1322 = vmatprep.subr.mxu0 0.0
        %1323 = vmatpush1.msra.mxu0 0.0
        %1324 = vmatprep.subr.mxu0 0.0
        %1325 = vmatpush1.msra.mxu0 0.0
        %1326 = vmatprep.subr.mxu0 0.0
        %1327 = vmatpush1.msra.mxu0 0.0
        %1328 = vmatprep.subr.mxu0 0.0
        %1329 = vmatpush1.msra.mxu0 0.0
        %1330 = vmatprep.subr.mxu0 0.0
        %1331 = vmatpush1.msra.mxu0 0.0
        %1332 = vmatprep.subr.mxu0 0.0
        %1333 = vmatpush1.msra.mxu0 0.0
        %1334 = vmatprep.subr.mxu0 0.0
        %1335 = vmatpush1.msra.mxu0 0.0
        %1336 = vmatprep.subr.mxu0 0.0
        %1337 = vmatpush1.msra.mxu0 0.0
        %1338 = vmatprep.subr.mxu0 0.0
        %1339 = vmatpush1.msra.mxu0 0.0
        %1340 = vmatprep.subr.mxu0 0.0
        %1341 = vmatpush1.msra.mxu0 0.0
        %1342 = vmatprep.subr.mxu0 0.0
        %1343 = vmatpush1.msra.mxu0 0.0
        %1344 = vmatprep.subr.mxu0 0.0
        %1345 = vmatpush1.msra.mxu0 0.0
        %1346 = vmatprep.subr.mxu0 0.0
        %1347 = vmatpush1.msra.mxu0 0.0
        %1348 = vmatprep.subr.mxu0 0.0
        %1349 = vmatpush1.msra.mxu0 0.0
        %1350 = vmatprep.subr.mxu0 0.0
        %1351 = vmatpush1.msra.mxu0 0.0
        %1352 = vmatprep.subr.mxu0 0.0
        %1353 = vmatpush1.msra.mxu0 0.0
        %1354 = vmatprep.subr.mxu0 0.0
        %1355 = vmatpush1.msra.mxu0 0.0
        %1356 = vmatprep.subr.mxu0 0.0
        %1357 = vmatpush1.msra.mxu0 0.0
        %1358 = vmatprep.subr.mxu0 0.0
        %1359 = vmatpush1.msra.mxu0 0.0
        %1360 = vmatprep.mubr.f32.mxu0 0.0
        %1361 = vmatmul.mubr.f32.gmra.mrb[0].mxu0 %v1294
        %v1362 = vpop.f32.mrb[0].mxu0
        %v1363 = vadd.f32 0.0, %v1362
        %v1364 = vpop.f32.mrb[0].mxu0
        %1365 = vdwg.mxu0
        %1366 = vrot.lane.b32.xlu0 %v1028, 112
        %v1367 = vpop.permute.xlu0 %1366
        %1368 = vrot.lane.b32.xlu0 %v1028, 80
        %v1369 = vpop.permute.xlu0 %1368
        %v1370 = vsel %vm1034, %v1367, 0
        %v1372 = vsel %vm1034, %v1369, 0
        %1374 = vmatprep.subr.mxu0 0.0
        %1375 = vmatpush1.xpose.msra.mxu0 %v1372
        %1376 = vmatprep.subr.mxu0 0.0
        %1377 = vmatpush1.xpose.msra.mxu0 0.0
        %1378 = vmatprep.subr.mxu0 0.0
        %1379 = vmatpush1.xpose.msra.mxu0 0.0
        %1380 = vmatprep.subr.mxu0 0.0
        %1381 = vmatpush1.xpose.msra.mxu0 0.0
        %1382 = vmatprep.subr.mxu0 0.0
        %1383 = vmatpush1.xpose.msra.mxu0 0.0
        %1384 = vmatprep.subr.mxu0 0.0
        %1385 = vmatpush1.xpose.msra.mxu0 0.0
        %1386 = vmatprep.subr.mxu0 0.0
        %1387 = vmatpush1.xpose.msra.mxu0 0.0
        %1388 = vmatprep.subr.mxu0 0.0
        %1389 = vmatpush1.xpose.msra.mxu0 0.0
        %1390 = vmatprep.subr.mxu0 0.0
        %1391 = vmatpush1.xpose.msra.mxu0 0.0
        %1392 = vmatprep.subr.mxu0 0.0
        %1393 = vmatpush1.xpose.msra.mxu0 0.0
        %1394 = vmatprep.subr.mxu0 0.0
        %1395 = vmatpush1.xpose.msra.mxu0 0.0
        %1396 = vmatprep.subr.mxu0 0.0
        %1397 = vmatpush1.xpose.msra.mxu0 0.0
        %1398 = vmatprep.subr.mxu0 0.0
        %1399 = vmatpush1.xpose.msra.mxu0 0.0
        %1400 = vmatprep.subr.mxu0 0.0
        %1401 = vmatpush1.xpose.msra.mxu0 0.0
        %1402 = vmatprep.subr.mxu0 0.0
        %1403 = vmatpush1.xpose.msra.mxu0 0.0
        %1404 = vmatprep.subr.mxu0 0.0
        %1405 = vmatpush1.xpose.msra.mxu0 0.0
        %1406 = vmatprep.subr.mxu0 0.0
        %1407 = vmatpush1.xpose.msra.mxu0 0.0
        %1408 = vmatprep.subr.mxu0 0.0
        %1409 = vmatpush1.xpose.msra.mxu0 0.0
        %1410 = vmatprep.subr.mxu0 0.0
        %1411 = vmatpush1.xpose.msra.mxu0 0.0
        %1412 = vmatprep.subr.mxu0 0.0
        %1413 = vmatpush1.xpose.msra.mxu0 0.0
        %1414 = vmatprep.subr.mxu0 0.0
        %1415 = vmatpush1.xpose.msra.mxu0 0.0
        %1416 = vmatprep.subr.mxu0 0.0
        %1417 = vmatpush1.xpose.msra.mxu0 0.0
        %1418 = vmatprep.subr.mxu0 0.0
        %1419 = vmatpush1.xpose.msra.mxu0 0.0
        %1420 = vmatprep.subr.mxu0 0.0
        %1421 = vmatpush1.xpose.msra.mxu0 0.0
        %1422 = vmatprep.subr.mxu0 0.0
        %1423 = vmatpush1.xpose.msra.mxu0 0.0
        %1424 = vmatprep.subr.mxu0 0.0
        %1425 = vmatpush1.xpose.msra.mxu0 0.0
        %1426 = vmatprep.subr.mxu0 0.0
        %1427 = vmatpush1.xpose.msra.mxu0 0.0
        %1428 = vmatprep.subr.mxu0 0.0
        %1429 = vmatpush1.xpose.msra.mxu0 0.0
        %1430 = vmatprep.subr.mxu0 0.0
        %1431 = vmatpush1.xpose.msra.mxu0 0.0
        %1432 = vmatprep.subr.mxu0 0.0
        %1433 = vmatpush1.xpose.msra.mxu0 0.0
        %1434 = vmatprep.subr.mxu0 0.0
        %1435 = vmatpush1.xpose.msra.mxu0 0.0
        %1436 = vmatprep.subr.mxu0 0.0
        %1437 = vmatpush1.xpose.msra.mxu0 0.0
        %1438 = vmatprep.mubr.f32.mxu0 0.0
        %1439 = vmatmul.mubr.f32.gmra.mrb[0].mxu0 %v1370
        %v1440 = vpop.f32.mrb[0].mxu0
        %v1441 = vadd.f32 0.0, %v1440
        %v1442 = vpop.f32.mrb[0].mxu0
        %1443 = vdwg.mxu0
        %v1444 = vmul.f32 %v1441, 0.35355338
        %v1445 = vsel %vm1110, %v1444, -1e+10
        %v1446 = vsel %vm1034, %v1445, -inf
        %1447 = vmax.xlane.f32.xlu0 %v1446
        %v1448 = vpop.xlane.xlu0 %1447
        %v1449 = vsub.f32 %v1445, %v1448
        %v1450 = vmul.f32 %v1449, 1.442695
        %v1451 = vpow.pop %v1450
        %v1452 = vsel %vm1034, %v1451, 0.0
        %1453 = vadd.xlane.f32.xlu0 %v1452
        %v1454 = vpop.xlane.xlu0 %1453
        %v1455 = vrcp.pop %v1454
        %v1456 = vmul.f32 %v1451, %v1455
        %1457 = vrot.lane.b32.xlu0 %v1028, 48
        %v1458 = vpop.permute.xlu0 %1457
        %v1461 = vsel %vm1034, %v1456, 0
        %1463 = vmatprep.subr.mxu0 0.0
        %1464 = vmatpush1.msra.mxu0 %v1458
        %1465 = vmatprep.subr.mxu0 0.0
        %1466 = vmatpush1.msra.mxu0 0.0
        %1467 = vmatprep.subr.mxu0 0.0
        %1468 = vmatpush1.msra.mxu0 0.0
        %1469 = vmatprep.subr.mxu0 0.0
        %1470 = vmatpush1.msra.mxu0 0.0
        %1471 = vmatprep.subr.mxu0 0.0
        %1472 = vmatpush1.msra.mxu0 0.0
        %1473 = vmatprep.subr.mxu0 0.0
        %1474 = vmatpush1.msra.mxu0 0.0
        %1475 = vmatprep.subr.mxu0 0.0
        %1476 = vmatpush1.msra.mxu0 0.0
        %1477 = vmatprep.subr.mxu0 0.0
        %1478 = vmatpush1.msra.mxu0 0.0
        %1479 = vmatprep.subr.mxu0 0.0
        %1480 = vmatpush1.msra.mxu0 0.0
        %1481 = vmatprep.subr.mxu0 0.0
        %1482 = vmatpush1.msra.mxu0 0.0
        %1483 = vmatprep.subr.mxu0 0.0
        %1484 = vmatpush1.msra.mxu0 0.0
        %1485 = vmatprep.subr.mxu0 0.0
        %1486 = vmatpush1.msra.mxu0 0.0
        %1487 = vmatprep.subr.mxu0 0.0
        %1488 = vmatpush1.msra.mxu0 0.0
        %1489 = vmatprep.subr.mxu0 0.0
        %1490 = vmatpush1.msra.mxu0 0.0
        %1491 = vmatprep.subr.mxu0 0.0
        %1492 = vmatpush1.msra.mxu0 0.0
        %1493 = vmatprep.subr.mxu0 0.0
        %1494 = vmatpush1.msra.mxu0 0.0
        %1495 = vmatprep.subr.mxu0 0.0
        %1496 = vmatpush1.msra.mxu0 0.0
        %1497 = vmatprep.subr.mxu0 0.0
        %1498 = vmatpush1.msra.mxu0 0.0
        %1499 = vmatprep.subr.mxu0 0.0
        %1500 = vmatpush1.msra.mxu0 0.0
        %1501 = vmatprep.subr.mxu0 0.0
        %1502 = vmatpush1.msra.mxu0 0.0
        %1503 = vmatprep.subr.mxu0 0.0
        %1504 = vmatpush1.msra.mxu0 0.0
        %1505 = vmatprep.subr.mxu0 0.0
        %1506 = vmatpush1.msra.mxu0 0.0
        %1507 = vmatprep.subr.mxu0 0.0
        %1508 = vmatpush1.msra.mxu0 0.0
        %1509 = vmatprep.subr.mxu0 0.0
        %1510 = vmatpush1.msra.mxu0 0.0
        %1511 = vmatprep.subr.mxu0 0.0
        %1512 = vmatpush1.msra.mxu0 0.0
        %1513 = vmatprep.subr.mxu0 0.0
        %1514 = vmatpush1.msra.mxu0 0.0
        %1515 = vmatprep.subr.mxu0 0.0
        %1516 = vmatpush1.msra.mxu0 0.0
        %1517 = vmatprep.subr.mxu0 0.0
        %1518 = vmatpush1.msra.mxu0 0.0
        %1519 = vmatprep.subr.mxu0 0.0
        %1520 = vmatpush1.msra.mxu0 0.0
        %1521 = vmatprep.subr.mxu0 0.0
        %1522 = vmatpush1.msra.mxu0 0.0
        %1523 = vmatprep.subr.mxu0 0.0
        %1524 = vmatpush1.msra.mxu0 0.0
        %1525 = vmatprep.subr.mxu0 0.0
        %1526 = vmatpush1.msra.mxu0 0.0
        %1527 = vmatprep.mubr.f32.mxu0 0.0
        %1528 = vmatmul.mubr.f32.gmra.mrb[0].mxu0 %v1461
        %v1529 = vpop.f32.mrb[0].mxu0
        %v1530 = vadd.f32 0.0, %v1529
        %v1531 = vpop.f32.mrb[0].mxu0
        %1532 = vdwg.mxu0
        %1533 = vrot.lane.b32.xlu0 %v1028, 104
        %v1534 = vpop.permute.xlu0 %1533
        %1535 = vrot.lane.b32.xlu0 %v1028, 72
        %v1536 = vpop.permute.xlu0 %1535
        %v1537 = vsel %vm1034, %v1534, 0
        %v1539 = vsel %vm1034, %v1536, 0
        %1541 = vmatprep.subr.mxu0 0.0
        %1542 = vmatpush1.xpose.msra.mxu0 %v1539
        %1543 = vmatprep.subr.mxu0 0.0
        %1544 = vmatpush1.xpose.msra.mxu0 0.0
        %1545 = vmatprep.subr.mxu0 0.0
        %1546 = vmatpush1.xpose.msra.mxu0 0.0
        %1547 = vmatprep.subr.mxu0 0.0
        %1548 = vmatpush1.xpose.msra.mxu0 0.0
        %1549 = vmatprep.subr.mxu0 0.0
        %1550 = vmatpush1.xpose.msra.mxu0 0.0
        %1551 = vmatprep.subr.mxu0 0.0
        %1552 = vmatpush1.xpose.msra.mxu0 0.0
        %1553 = vmatprep.subr.mxu0 0.0
        %1554 = vmatpush1.xpose.msra.mxu0 0.0
        %1555 = vmatprep.subr.mxu0 0.0
        %1556 = vmatpush1.xpose.msra.mxu0 0.0
        %1557 = vmatprep.subr.mxu0 0.0
        %1558 = vmatpush1.xpose.msra.mxu0 0.0
        %1559 = vmatprep.subr.mxu0 0.0
        %1560 = vmatpush1.xpose.msra.mxu0 0.0
        %1561 = vmatprep.subr.mxu0 0.0
        %1562 = vmatpush1.xpose.msra.mxu0 0.0
        %1563 = vmatprep.subr.mxu0 0.0
        %1564 = vmatpush1.xpose.msra.mxu0 0.0
        %1565 = vmatprep.subr.mxu0 0.0
        %1566 = vmatpush1.xpose.msra.mxu0 0.0
        %1567 = vmatprep.subr.mxu0 0.0
        %1568 = vmatpush1.xpose.msra.mxu0 0.0
        %1569 = vmatprep.subr.mxu0 0.0
        %1570 = vmatpush1.xpose.msra.mxu0 0.0
        %1571 = vmatprep.subr.mxu0 0.0
        %1572 = vmatpush1.xpose.msra.mxu0 0.0
        %1573 = vmatprep.subr.mxu0 0.0
        %1574 = vmatpush1.xpose.msra.mxu0 0.0
        %1575 = vmatprep.subr.mxu0 0.0
        %1576 = vmatpush1.xpose.msra.mxu0 0.0
        %1577 = vmatprep.subr.mxu0 0.0
        %1578 = vmatpush1.xpose.msra.mxu0 0.0
        %1579 = vmatprep.subr.mxu0 0.0
        %1580 = vmatpush1.xpose.msra.mxu0 0.0
        %1581 = vmatprep.subr.mxu0 0.0
        %1582 = vmatpush1.xpose.msra.mxu0 0.0
        %1583 = vmatprep.subr.mxu0 0.0
        %1584 = vmatpush1.xpose.msra.mxu0 0.0
        %1585 = vmatprep.subr.mxu0 0.0
        %1586 = vmatpush1.xpose.msra.mxu0 0.0
        %1587 = vmatprep.subr.mxu0 0.0
        %1588 = vmatpush1.xpose.msra.mxu0 0.0
        %1589 = vmatprep.subr.mxu0 0.0
        %1590 = vmatpush1.xpose.msra.mxu0 0.0
        %1591 = vmatprep.subr.mxu0 0.0
        %1592 = vmatpush1.xpose.msra.mxu0 0.0
        %1593 = vmatprep.subr.mxu0 0.0
        %1594 = vmatpush1.xpose.msra.mxu0 0.0
        %1595 = vmatprep.subr.mxu0 0.0
        %1596 = vmatpush1.xpose.msra.mxu0 0.0
        %1597 = vmatprep.subr.mxu0 0.0
        %1598 = vmatpush1.xpose.msra.mxu0 0.0
        %1599 = vmatprep.subr.mxu0 0.0
        %1600 = vmatpush1.xpose.msra.mxu0 0.0
        %1601 = vmatprep.subr.mxu0 0.0
        %1602 = vmatpush1.xpose.msra.mxu0 0.0
        %1603 = vmatprep.subr.mxu0 0.0
        %1604 = vmatpush1.xpose.msra.mxu0 0.0
        %1605 = vmatprep.mubr.f32.mxu0 0.0
        %1606 = vmatmul.mubr.f32.gmra.mrb[0].mxu0 %v1537
        %v1607 = vpop.f32.mrb[0].mxu0
        %v1608 = vadd.f32 0.0, %v1607
        %v1609 = vpop.f32.mrb[0].mxu0
        %1610 = vdwg.mxu0
        %v1611 = vmul.f32 %v1608, 0.35355338
        %v1612 = vsel %vm1110, %v1611, -1e+10
        %v1613 = vsel %vm1034, %v1612, -inf
        %1614 = vmax.xlane.f32.xlu0 %v1613
        %v1615 = vpop.xlane.xlu0 %1614
        %v1616 = vsub.f32 %v1612, %v1615
        %v1617 = vmul.f32 %v1616, 1.442695
        %v1618 = vpow.pop %v1617
        %v1619 = vsel %vm1034, %v1618, 0.0
        %1620 = vadd.xlane.f32.xlu0 %v1619
        %v1621 = vpop.xlane.xlu0 %1620
        %v1622 = vrcp.pop %v1621
        %v1623 = vmul.f32 %v1618, %v1622
        %1624 = vrot.lane.b32.xlu0 %v1028, 40
        %v1625 = vpop.permute.xlu0 %1624
        %v1628 = vsel %vm1034, %v1623, 0
        %1630 = vmatprep.subr.mxu0 0.0
        %1631 = vmatpush1.msra.mxu0 %v1625
        %1632 = vmatprep.subr.mxu0 0.0
        %1633 = vmatpush1.msra.mxu0 0.0
        %1634 = vmatprep.subr.mxu0 0.0
        %1635 = vmatpush1.msra.mxu0 0.0
        %1636 = vmatprep.subr.mxu0 0.0
        %1637 = vmatpush1.msra.mxu0 0.0
        %1638 = vmatprep.subr.mxu0 0.0
        %1639 = vmatpush1.msra.mxu0 0.0
        %1640 = vmatprep.subr.mxu0 0.0
        %1641 = vmatpush1.msra.mxu0 0.0
        %1642 = vmatprep.subr.mxu0 0.0
        %1643 = vmatpush1.msra.mxu0 0.0
        %1644 = vmatprep.subr.mxu0 0.0
        %1645 = vmatpush1.msra.mxu0 0.0
        %1646 = vmatprep.subr.mxu0 0.0
        %1647 = vmatpush1.msra.mxu0 0.0
        %1648 = vmatprep.subr.mxu0 0.0
        %1649 = vmatpush1.msra.mxu0 0.0
        %1650 = vmatprep.subr.mxu0 0.0
        %1651 = vmatpush1.msra.mxu0 0.0
        %1652 = vmatprep.subr.mxu0 0.0
        %1653 = vmatpush1.msra.mxu0 0.0
        %1654 = vmatprep.subr.mxu0 0.0
        %1655 = vmatpush1.msra.mxu0 0.0
        %1656 = vmatprep.subr.mxu0 0.0
        %1657 = vmatpush1.msra.mxu0 0.0
        %1658 = vmatprep.subr.mxu0 0.0
        %1659 = vmatpush1.msra.mxu0 0.0
        %1660 = vmatprep.subr.mxu0 0.0
        %1661 = vmatpush1.msra.mxu0 0.0
        %1662 = vmatprep.subr.mxu0 0.0
        %1663 = vmatpush1.msra.mxu0 0.0
        %1664 = vmatprep.subr.mxu0 0.0
        %1665 = vmatpush1.msra.mxu0 0.0
        %1666 = vmatprep.subr.mxu0 0.0
        %1667 = vmatpush1.msra.mxu0 0.0
        %1668 = vmatprep.subr.mxu0 0.0
        %1669 = vmatpush1.msra.mxu0 0.0
        %1670 = vmatprep.subr.mxu0 0.0
        %1671 = vmatpush1.msra.mxu0 0.0
        %1672 = vmatprep.subr.mxu0 0.0
        %1673 = vmatpush1.msra.mxu0 0.0
        %1674 = vmatprep.subr.mxu0 0.0
        %1675 = vmatpush1.msra.mxu0 0.0
        %1676 = vmatprep.subr.mxu0 0.0
        %1677 = vmatpush1.msra.mxu0 0.0
        %1678 = vmatprep.subr.mxu0 0.0
        %1679 = vmatpush1.msra.mxu0 0.0
        %1680 = vmatprep.subr.mxu0 0.0
        %1681 = vmatpush1.msra.mxu0 0.0
        %1682 = vmatprep.subr.mxu0 0.0
        %1683 = vmatpush1.msra.mxu0 0.0
        %1684 = vmatprep.subr.mxu0 0.0
        %1685 = vmatpush1.msra.mxu0 0.0
        %1686 = vmatprep.subr.mxu0 0.0
        %1687 = vmatpush1.msra.mxu0 0.0
        %1688 = vmatprep.subr.mxu0 0.0
        %1689 = vmatpush1.msra.mxu0 0.0
        %1690 = vmatprep.subr.mxu0 0.0
        %1691 = vmatpush1.msra.mxu0 0.0
        %1692 = vmatprep.subr.mxu0 0.0
        %1693 = vmatpush1.msra.mxu0 0.0
        %1694 = vmatprep.mubr.f32.mxu0 0.0
        %1695 = vmatmul.mubr.f32.gmra.mrb[0].mxu0 %v1628
        %v1696 = vpop.f32.mrb[0].mxu0
        %v1697 = vadd.f32 0.0, %v1696
        %v1698 = vpop.f32.mrb[0].mxu0
        %1699 = vdwg.mxu0
        %1701 = vrot.lane.b32.xlu0 %v1363, 8
        %v1702 = vpop.permute.xlu0 %1701
        %1705 = vrot.lane.b32.xlu0 %v1530, 16
        %v1706 = vpop.permute.xlu0 %1705
        %1709 = vrot.lane.b32.xlu0 %v1697, 24
        %v1710 = vpop.permute.xlu0 %1709
        %v1712 = vsel %vm1034, %v1196, %v1702
        %vm1713 = vcmask 130048
        %v1714 = vsel %vm1713, %v1712, %v1706
        %vm1715 = vcmask 195584
        %v1716 = vsel %vm1715, %v1714, %v1710
        %v1718 = vlaneseq
        %v1719 = vshrl.u32 %v1718, 7
        %v1720 = vsub.s32 0, %v1719
        %v1721 = vrot.slane %v915, %v1720
        %v1724 = vsel %vm957, %v1716, 0
        %1726 = vmatprep.subr.mxu0 0.0
        %1727 = vmatpush1.msra.mxu0 %v911
        %1728 = vmatprep.subr.mxu0 0.0
        %1729 = vmatpush1.msra.mxu0 %v912
        %1730 = vmatprep.subr.mxu0 0.0
        %1731 = vmatpush1.msra.mxu0 %v913
        %1732 = vmatprep.subr.mxu0 0.0
        %1733 = vmatpush1.msra.mxu0 %v914
        %1734 = vmatprep.subr.mxu0 0.0
        %1735 = vmatpush1.msra.mxu0 0.0
        %1736 = vmatprep.subr.mxu0 0.0
        %1737 = vmatpush1.msra.mxu0 0.0
        %1738 = vmatprep.subr.mxu0 0.0
        %1739 = vmatpush1.msra.mxu0 0.0
        %1740 = vmatprep.subr.mxu0 0.0
        %1741 = vmatpush1.msra.mxu0 0.0
        %1742 = vmatprep.subr.mxu0 0.0
        %1743 = vmatpush1.msra.mxu0 0.0
        %1744 = vmatprep.subr.mxu0 0.0
        %1745 = vmatpush1.msra.mxu0 0.0
        %1746 = vmatprep.subr.mxu0 0.0
        %1747 = vmatpush1.msra.mxu0 0.0
        %1748 = vmatprep.subr.mxu0 0.0
        %1749 = vmatpush1.msra.mxu0 0.0
        %1750 = vmatprep.subr.mxu0 0.0
        %1751 = vmatpush1.msra.mxu0 0.0
        %1752 = vmatprep.subr.mxu0 0.0
        %1753 = vmatpush1.msra.mxu0 0.0
        %1754 = vmatprep.subr.mxu0 0.0
        %1755 = vmatpush1.msra.mxu0 0.0
        %1756 = vmatprep.subr.mxu0 0.0
        %1757 = vmatpush1.msra.mxu0 0.0
        %1758 = vmatprep.subr.mxu0 0.0
        %1759 = vmatpush1.msra.mxu0 0.0
        %1760 = vmatprep.subr.mxu0 0.0
        %1761 = vmatpush1.msra.mxu0 0.0
        %1762 = vmatprep.subr.mxu0 0.0
        %1763 = vmatpush1.msra.mxu0 0.0
        %1764 = vmatprep.subr.mxu0 0.0
        %1765 = vmatpush1.msra.mxu0 0.0
        %1766 = vmatprep.subr.mxu0 0.0
        %1767 = vmatpush1.msra.mxu0 0.0
        %1768 = vmatprep.subr.mxu0 0.0
        %1769 = vmatpush1.msra.mxu0 0.0
        %1770 = vmatprep.subr.mxu0 0.0
        %1771 = vmatpush1.msra.mxu0 0.0
        %1772 = vmatprep.subr.mxu0 0.0
        %1773 = vmatpush1.msra.mxu0 0.0
        %1774 = vmatprep.subr.mxu0 0.0
        %1775 = vmatpush1.msra.mxu0 0.0
        %1776 = vmatprep.subr.mxu0 0.0
        %1777 = vmatpush1.msra.mxu0 0.0
        %1778 = vmatprep.subr.mxu0 0.0
        %1779 = vmatpush1.msra.mxu0 0.0
        %1780 = vmatprep.subr.mxu0 0.0
        %1781 = vmatpush1.msra.mxu0 0.0
        %1782 = vmatprep.subr.mxu0 0.0
        %1783 = vmatpush1.msra.mxu0 0.0
        %1784 = vmatprep.subr.mxu0 0.0
        %1785 = vmatpush1.msra.mxu0 0.0
        %1786 = vmatprep.subr.mxu0 0.0
        %1787 = vmatpush1.msra.mxu0 0.0
        %1788 = vmatprep.subr.mxu0 0.0
        %1789 = vmatpush1.msra.mxu0 0.0
        %1790 = vmatprep.mubr.f32.mxu0 0.0
        %1791 = vmatmul.mubr.f32.gmra.mrb[0].mxu0 %v1724
        %v1792 = vpop.f32.mrb[0].mxu0
        %v1793 = vadd.f32 %v1721, %v1792
        %v1794 = vpop.f32.mrb[0].mxu0
        %1795 = vdwg.mxu0
        %v1796 = vadd.f32 %v902, %v1793
        %v1797 = vsel %vm957, %v1796, 0.0
        %1798 = vadd.xlane.f32.xlu0 %v1797
        %v1799 = vpop.xlane.xlu0 %1798
        %v1800 = vrcp.pop 32.0
        %v1801 = vmul.f32 %v1799, %v1800
        %v1802 = vsub.f32 %v1796, %v1801
        %v1803 = vmul.f32 %v1802, %v1802
        %v1804 = vsel %vm957, %v1803, 0.0
        %1805 = vadd.xlane.f32.xlu0 %v1804
        %v1806 = vpop.xlane.xlu0 %1805
        %v1807 = vmul.f32 %v1806, %v1800
        %v1808 = vadd.f32 %v1807, 1e-05
        %v1809 = vrsqrt.pop %v1808
        %v1810 = vmul.f32 %v1802, %v1809
        %v1812 = vlaneseq
        %v1813 = vshrl.u32 %v1812, 7
        %v1814 = vsub.s32 0, %v1813
        %v1815 = vrot.slane %v916, %v1814
        %v1817 = vmul.f32 %v1810, %v1815
        %v1819 = vlaneseq
        %v1820 = vshrl.u32 %v1819, 7
        %v1821 = vsub.s32 0, %v1820
        %v1822 = vrot.slane %v917, %v1821
        %v1824 = vadd.f32 %v1817, %v1822
        %v1826 = vlaneseq
        %v1827 = vshrl.u32 %v1826, 7
        %v1828 = vsub.s32 0, %v1827
        %v1829 = vrot.slane %v922, %v1828
        %v1832 = vsel %vm957, %v1824, 0
        %1834 = vmatprep.subr.mxu0 0.0
        %1835 = vmatpush1.msra.mxu0 %v918
        %1836 = vmatprep.subr.mxu0 0.0
        %1837 = vmatpush1.msra.mxu0 %v919
        %1838 = vmatprep.subr.mxu0 0.0
        %1839 = vmatpush1.msra.mxu0 %v920
        %1840 = vmatprep.subr.mxu0 0.0
        %1841 = vmatpush1.msra.mxu0 %v921
        %1842 = vmatprep.subr.mxu0 0.0
        %1843 = vmatpush1.msra.mxu0 0.0
        %1844 = vmatprep.subr.mxu0 0.0
        %1845 = vmatpush1.msra.mxu0 0.0
        %1846 = vmatprep.subr.mxu0 0.0
        %1847 = vmatpush1.msra.mxu0 0.0
        %1848 = vmatprep.subr.mxu0 0.0
        %1849 = vmatpush1.msra.mxu0 0.0
        %1850 = vmatprep.subr.mxu0 0.0
        %1851 = vmatpush1.msra.mxu0 0.0
        %1852 = vmatprep.subr.mxu0 0.0
        %1853 = vmatpush1.msra.mxu0 0.0
        %1854 = vmatprep.subr.mxu0 0.0
        %1855 = vmatpush1.msra.mxu0 0.0
        %1856 = vmatprep.subr.mxu0 0.0
        %1857 = vmatpush1.msra.mxu0 0.0
        %1858 = vmatprep.subr.mxu0 0.0
        %1859 = vmatpush1.msra.mxu0 0.0
        %1860 = vmatprep.subr.mxu0 0.0
        %1861 = vmatpush1.msra.mxu0 0.0
        %1862 = vmatprep.subr.mxu0 0.0
        %1863 = vmatpush1.msra.mxu0 0.0
        %1864 = vmatprep.subr.mxu0 0.0
        %1865 = vmatpush1.msra.mxu0 0.0
        %1866 = vmatprep.subr.mxu0 0.0
        %1867 = vmatpush1.msra.mxu0 0.0
        %1868 = vmatprep.subr.mxu0 0.0
        %1869 = vmatpush1.msra.mxu0 0.0
        %1870 = vmatprep.subr.mxu0 0.0
        %1871 = vmatpush1.msra.mxu0 0.0
        %1872 = vmatprep.subr.mxu0 0.0
        %1873 = vmatpush1.msra.mxu0 0.0
        %1874 = vmatprep.subr.mxu0 0.0
        %1875 = vmatpush1.msra.mxu0 0.0
        %1876 = vmatprep.subr.mxu0 0.0
        %1877 = vmatpush1.msra.mxu0 0.0
        %1878 = vmatprep.subr.mxu0 0.0
        %1879 = vmatpush1.msra.mxu0 0.0
        %1880 = vmatprep.subr.mxu0 0.0
        %1881 = vmatpush1.msra.mxu0 0.0
        %1882 = vmatprep.subr.mxu0 0.0
        %1883 = vmatpush1.msra.mxu0 0.0
        %1884 = vmatprep.subr.mxu0 0.0
        %1885 = vmatpush1.msra.mxu0 0.0
        %1886 = vmatprep.subr.mxu0 0.0
        %1887 = vmatpush1.msra.mxu0 0.0
        %1888 = vmatprep.subr.mxu0 0.0
        %1889 = vmatpush1.msra.mxu0 0.0
        %1890 = vmatprep.subr.mxu0 0.0
        %1891 = vmatpush1.msra.mxu0 0.0
        %1892 = vmatprep.subr.mxu0 0.0
        %1893 = vmatpush1.msra.mxu0 0.0
        %1894 = vmatprep.subr.mxu0 0.0
        %1895 = vmatpush1.msra.mxu0 0.0
        %1896 = vmatprep.subr.mxu0 0.0
        %1897 = vmatpush1.msra.mxu0 0.0
        %1898 = vmatprep.mubr.f32.mxu0 0.0
        %1899 = vmatmul.mubr.f32.gmra.mrb[0].mxu0 %v1832
        %v1900 = vpop.f32.mrb[0].mxu0
        %v1901 = vadd.f32 %v1829, %v1900
        %v1902 = vpop.f32.mrb[0].mxu0
        %1903 = vdwg.mxu0
        %v1905 = vlaneseq
        %v1906 = vshrl.u32 %v1905, 7
        %v1907 = vsub.s32 0, %v1906
        %v1908 = vrot.slane %v927, %v1907
        %v1911 = vsel %vm957, %v903, 0
        %1913 = vmatprep.subr.mxu0 0.0
        %1914 = vmatpush1.msra.mxu0 %v923
        %1915 = vmatprep.subr.mxu0 0.0
        %1916 = vmatpush1.msra.mxu0 %v924
        %1917 = vmatprep.subr.mxu0 0.0
        %1918 = vmatpush1.msra.mxu0 %v925
        %1919 = vmatprep.subr.mxu0 0.0
        %1920 = vmatpush1.msra.mxu0 %v926
        %1921 = vmatprep.subr.mxu0 0.0
        %1922 = vmatpush1.msra.mxu0 0.0
        %1923 = vmatprep.subr.mxu0 0.0
        %1924 = vmatpush1.msra.mxu0 0.0
        %1925 = vmatprep.subr.mxu0 0.0
        %1926 = vmatpush1.msra.mxu0 0.0
        %1927 = vmatprep.subr.mxu0 0.0
        %1928 = vmatpush1.msra.mxu0 0.0
        %1929 = vmatprep.subr.mxu0 0.0
        %1930 = vmatpush1.msra.mxu0 0.0
        %1931 = vmatprep.subr.mxu0 0.0
        %1932 = vmatpush1.msra.mxu0 0.0
        %1933 = vmatprep.subr.mxu0 0.0
        %1934 = vmatpush1.msra.mxu0 0.0
        %1935 = vmatprep.subr.mxu0 0.0
        %1936 = vmatpush1.msra.mxu0 0.0
        %1937 = vmatprep.subr.mxu0 0.0
        %1938 = vmatpush1.msra.mxu0 0.0
        %1939 = vmatprep.subr.mxu0 0.0
        %1940 = vmatpush1.msra.mxu0 0.0
        %1941 = vmatprep.subr.mxu0 0.0
        %1942 = vmatpush1.msra.mxu0 0.0
        %1943 = vmatprep.subr.mxu0 0.0
        %1944 = vmatpush1.msra.mxu0 0.0
        %1945 = vmatprep.subr.mxu0 0.0
        %1946 = vmatpush1.msra.mxu0 0.0
        %1947 = vmatprep.subr.mxu0 0.0
        %1948 = vmatpush1.msra.mxu0 0.0
        %1949 = vmatprep.subr.mxu0 0.0
        %1950 = vmatpush1.msra.mxu0 0.0
        %1951 = vmatprep.subr.mxu0 0.0
        %1952 = vmatpush1.msra.mxu0 0.0
        %1953 = vmatprep.subr.mxu0 0.0
        %1954 = vmatpush1.msra.mxu0 0.0
        %1955 = vmatprep.subr.mxu0 0.0
        %1956 = vmatpush1.msra.mxu0 0.0
        %1957 = vmatprep.subr.mxu0 0.0
        %1958 = vmatpush1.msra.mxu0 0.0
        %1959 = vmatprep.subr.mxu0 0.0
        %1960 = vmatpush1.msra.mxu0 0.0
        %1961 = vmatprep.subr.mxu0 0.0
        %1962 = vmatpush1.msra.mxu0 0.0
        %1963 = vmatprep.subr.mxu0 0.0
        %1964 = vmatpush1.msra.mxu0 0.0
        %1965 = vmatprep.subr.mxu0 0.0
        %1966 = vmatpush1.msra.mxu0 0.0
        %1967 = vmatprep.subr.mxu0 0.0
        %1968 = vmatpush1.msra.mxu0 0.0
        %1969 = vmatprep.subr.mxu0 0.0
        %1970 = vmatpush1.msra.mxu0 0.0
        %1971 = vmatprep.subr.mxu0 0.0
        %1972 = vmatpush1.msra.mxu0 0.0
        %1973 = vmatprep.subr.mxu0 0.0
        %1974 = vmatpush1.msra.mxu0 0.0
        %1975 = vmatprep.subr.mxu0 0.0
        %1976 = vmatpush1.msra.mxu0 0.0
        %1977 = vmatprep.mubr.f32.mxu0 0.0
        %1978 = vmatmul.mubr.f32.gmra.mrb[0].mxu0 %v1911
        %v1979 = vpop.f32.mrb[0].mxu0
        %v1980 = vadd.f32 %v1908, %v1979
        %v1981 = vpop.f32.mrb[0].mxu0
        %1982 = vdwg.mxu0
        %v1984 = vsel %vm1034, %v1901, 0
        %v1987 = vsel %vm1034, %v1980, 0
        %1989 = vmatprep.subr.mxu0 0.0
        %1990 = vmatpush1.xpose.msra.mxu0 %v1987
        %1991 = vmatprep.subr.mxu0 0.0
        %1992 = vmatpush1.xpose.msra.mxu0 0.0
        %1993 = vmatprep.subr.mxu0 0.0
        %1994 = vmatpush1.xpose.msra.mxu0 0.0
        %1995 = vmatprep.subr.mxu0 0.0
        %1996 = vmatpush1.xpose.msra.mxu0 0.0
        %1997 = vmatprep.subr.mxu0 0.0
        %1998 = vmatpush1.xpose.msra.mxu0 0.0
        %1999 = vmatprep.subr.mxu0 0.0
        %2000 = vmatpush1.xpose.msra.mxu0 0.0
        %2001 = vmatprep.subr.mxu0 0.0
        %2002 = vmatpush1.xpose.msra.mxu0 0.0
        %2003 = vmatprep.subr.mxu0 0.0
        %2004 = vmatpush1.xpose.msra.mxu0 0.0
        %2005 = vmatprep.subr.mxu0 0.0
        %2006 = vmatpush1.xpose.msra.mxu0 0.0
        %2007 = vmatprep.subr.mxu0 0.0
        %2008 = vmatpush1.xpose.msra.mxu0 0.0
        %2009 = vmatprep.subr.mxu0 0.0
        %2010 = vmatpush1.xpose.msra.mxu0 0.0
        %2011 = vmatprep.subr.mxu0 0.0
        %2012 = vmatpush1.xpose.msra.mxu0 0.0
        %2013 = vmatprep.subr.mxu0 0.0
        %2014 = vmatpush1.xpose.msra.mxu0 0.0
        %2015 = vmatprep.subr.mxu0 0.0
        %2016 = vmatpush1.xpose.msra.mxu0 0.0
        %2017 = vmatprep.subr.mxu0 0.0
        %2018 = vmatpush1.xpose.msra.mxu0 0.0
        %2019 = vmatprep.subr.mxu0 0.0
        %2020 = vmatpush1.xpose.msra.mxu0 0.0
        %2021 = vmatprep.subr.mxu0 0.0
        %2022 = vmatpush1.xpose.msra.mxu0 0.0
        %2023 = vmatprep.subr.mxu0 0.0
        %2024 = vmatpush1.xpose.msra.mxu0 0.0
        %2025 = vmatprep.subr.mxu0 0.0
        %2026 = vmatpush1.xpose.msra.mxu0 0.0
        %2027 = vmatprep.subr.mxu0 0.0
        %2028 = vmatpush1.xpose.msra.mxu0 0.0
        %2029 = vmatprep.subr.mxu0 0.0
        %2030 = vmatpush1.xpose.msra.mxu0 0.0
        %2031 = vmatprep.subr.mxu0 0.0
        %2032 = vmatpush1.xpose.msra.mxu0 0.0
        %2033 = vmatprep.subr.mxu0 0.0
        %2034 = vmatpush1.xpose.msra.mxu0 0.0
        %2035 = vmatprep.subr.mxu0 0.0
        %2036 = vmatpush1.xpose.msra.mxu0 0.0
        %2037 = vmatprep.subr.mxu0 0.0
        %2038 = vmatpush1.xpose.msra.mxu0 0.0
        %2039 = vmatprep.subr.mxu0 0.0
        %2040 = vmatpush1.xpose.msra.mxu0 0.0
        %2041 = vmatprep.subr.mxu0 0.0
        %2042 = vmatpush1.xpose.msra.mxu0 0.0
        %2043 = vmatprep.subr.mxu0 0.0
        %2044 = vmatpush1.xpose.msra.mxu0 0.0
        %2045 = vmatprep.subr.mxu0 0.0
        %2046 = vmatpush1.xpose.msra.mxu0 0.0
        %2047 = vmatprep.subr.mxu0 0.0
        %2048 = vmatpush1.xpose.msra.mxu0 0.0
        %2049 = vmatprep.subr.mxu0 0.0
        %2050 = vmatpush1.xpose.msra.mxu0 0.0
        %2051 = vmatprep.subr.mxu0 0.0
        %2052 = vmatpush1.xpose.msra.mxu0 0.0
        %2053 = vmatprep.mubr.f32.mxu0 0.0
        %2054 = vmatmul.mubr.f32.gmra.mrb[0].mxu0 %v1984
        %v2055 = vpop.f32.mrb[0].mxu0
        %v2056 = vadd.f32 0.0, %v2055
        %v2057 = vpop.f32.mrb[0].mxu0
        %2058 = vdwg.mxu0
        %v2059 = vmul.f32 %v2056, 0.35355338
        %vm2060 = vcmp.ne.f32.partialorder %v905, 0.0
        %v2061 = vsel %vm2060, %v2059, -1e+10
        %v2062 = vsel %vm1034, %v2061, -inf
        %2063 = vmax.xlane.f32.xlu0 %v2062
        %v2064 = vpop.xlane.xlu0 %2063
        %v2065 = vsub.f32 %v2061, %v2064
        %v2066 = vmul.f32 %v2065, 1.442695
        %v2067 = vpow.pop %v2066
        %v2068 = vsel %vm1034, %v2067, 0.0
        %2069 = vadd.xlane.f32.xlu0 %v2068
        %v2070 = vpop.xlane.xlu0 %2069
        %v2071 = vrcp.pop %v2070
        %v2072 = vmul.f32 %v2067, %v2071
        %2073 = vrot.lane.b32.xlu0 %v1980, 96
        %v2074 = vpop.permute.xlu0 %2073
        %v2077 = vsel %vm1034, %v2072, 0
        %2079 = vmatprep.subr.mxu0 0.0
        %2080 = vmatpush1.msra.mxu0 %v2074
        %2081 = vmatprep.subr.mxu0 0.0
        %2082 = vmatpush1.msra.mxu0 0.0
        %2083 = vmatprep.subr.mxu0 0.0
        %2084 = vmatpush1.msra.mxu0 0.0
        %2085 = vmatprep.subr.mxu0 0.0
        %2086 = vmatpush1.msra.mxu0 0.0
        %2087 = vmatprep.subr.mxu0 0.0
        %2088 = vmatpush1.msra.mxu0 0.0
        %2089 = vmatprep.subr.mxu0 0.0
        %2090 = vmatpush1.msra.mxu0 0.0
        %2091 = vmatprep.subr.mxu0 0.0
        %2092 = vmatpush1.msra.mxu0 0.0
        %2093 = vmatprep.subr.mxu0 0.0
        %2094 = vmatpush1.msra.mxu0 0.0
        %2095 = vmatprep.subr.mxu0 0.0
        %2096 = vmatpush1.msra.mxu0 0.0
        %2097 = vmatprep.subr.mxu0 0.0
        %2098 = vmatpush1.msra.mxu0 0.0
        %2099 = vmatprep.subr.mxu0 0.0
        %2100 = vmatpush1.msra.mxu0 0.0
        %2101 = vmatprep.subr.mxu0 0.0
        %2102 = vmatpush1.msra.mxu0 0.0
        %2103 = vmatprep.subr.mxu0 0.0
        %2104 = vmatpush1.msra.mxu0 0.0
        %2105 = vmatprep.subr.mxu0 0.0
        %2106 = vmatpush1.msra.mxu0 0.0
        %2107 = vmatprep.subr.mxu0 0.0
        %2108 = vmatpush1.msra.mxu0 0.0
        %2109 = vmatprep.subr.mxu0 0.0
        %2110 = vmatpush1.msra.mxu0 0.0
        %2111 = vmatprep.subr.mxu0 0.0
        %2112 = vmatpush1.msra.mxu0 0.0
        %2113 = vmatprep.subr.mxu0 0.0
        %2114 = vmatpush1.msra.mxu0 0.0
        %2115 = vmatprep.subr.mxu0 0.0
        %2116 = vmatpush1.msra.mxu0 0.0
        %2117 = vmatprep.subr.mxu0 0.0
        %2118 = vmatpush1.msra.mxu0 0.0
        %2119 = vmatprep.subr.mxu0 0.0
        %2120 = vmatpush1.msra.mxu0 0.0
        %2121 = vmatprep.subr.mxu0 0.0
        %2122 = vmatpush1.msra.mxu0 0.0
        %2123 = vmatprep.subr.mxu0 0.0
        %2124 = vmatpush1.msra.mxu0 0.0
        %2125 = vmatprep.subr.mxu0 0.0
        %2126 = vmatpush1.msra.mxu0 0.0
        %2127 = vmatprep.subr.mxu0 0.0
        %2128 = vmatpush1.msra.mxu0 0.0
        %2129 = vmatprep.subr.mxu0 0.0
        %2130 = vmatpush1.msra.mxu0 0.0
        %2131 = vmatprep.subr.mxu0 0.0
        %2132 = vmatpush1.msra.mxu0 0.0
        %2133 = vmatprep.subr.mxu0 0.0
        %2134 = vmatpush1.msra.mxu0 0.0
        %2135 = vmatprep.subr.mxu0 0.0
        %2136 = vmatpush1.msra.mxu0 0.0
        %2137 = vmatprep.subr.mxu0 0.0
        %2138 = vmatpush1.msra.mxu0 0.0
        %2139 = vmatprep.subr.mxu0 0.0
        %2140 = vmatpush1.msra.mxu0 0.0
        %2141 = vmatprep.subr.mxu0 0.0
        %2142 = vmatpush1.msra.mxu0 0.0
        %2143 = vmatprep.mubr.f32.mxu0 0.0
        %2144 = vmatmul.mubr.f32.gmra.mrb[0].mxu0 %v2077
        %v2145 = vpop.f32.mrb[0].mxu0
        %v2146 = vadd.f32 0.0, %v2145
        %v2147 = vpop.f32.mrb[0].mxu0
        %2148 = vdwg.mxu0
        %2149 = vrot.lane.b32.xlu0 %v1901, 120
        %v2150 = vpop.permute.xlu0 %2149
        %2151 = vrot.lane.b32.xlu0 %v1980, 120
        %v2152 = vpop.permute.xlu0 %2151
        %v2153 = vsel %vm1034, %v2150, 0
        %v2155 = vsel %vm1034, %v2152, 0
        %2157 = vmatprep.subr.mxu0 0.0
        %2158 = vmatpush1.xpose.msra.mxu0 %v2155
        %2159 = vmatprep.subr.mxu0 0.0
        %2160 = vmatpush1.xpose.msra.mxu0 0.0
        %2161 = vmatprep.subr.mxu0 0.0
        %2162 = vmatpush1.xpose.msra.mxu0 0.0
        %2163 = vmatprep.subr.mxu0 0.0
        %2164 = vmatpush1.xpose.msra.mxu0 0.0
        %2165 = vmatprep.subr.mxu0 0.0
        %2166 = vmatpush1.xpose.msra.mxu0 0.0
        %2167 = vmatprep.subr.mxu0 0.0
        %2168 = vmatpush1.xpose.msra.mxu0 0.0
        %2169 = vmatprep.subr.mxu0 0.0
        %2170 = vmatpush1.xpose.msra.mxu0 0.0
        %2171 = vmatprep.subr.mxu0 0.0
        %2172 = vmatpush1.xpose.msra.mxu0 0.0
        %2173 = vmatprep.subr.mxu0 0.0
        %2174 = vmatpush1.xpose.msra.mxu0 0.0
        %2175 = vmatprep.subr.mxu0 0.0
        %2176 = vmatpush1.xpose.msra.mxu0 0.0
        %2177 = vmatprep.subr.mxu0 0.0
        %2178 = vmatpush1.xpose.msra.mxu0 0.0
        %2179 = vmatprep.subr.mxu0 0.0
        %2180 = vmatpush1.xpose.msra.mxu0 0.0
        %2181 = vmatprep.subr.mxu0 0.0
        %2182 = vmatpush1.xpose.msra.mxu0 0.0
        %2183 = vmatprep.subr.mxu0 0.0
        %2184 = vmatpush1.xpose.msra.mxu0 0.0
        %2185 = vmatprep.subr.mxu0 0.0
        %2186 = vmatpush1.xpose.msra.mxu0 0.0
        %2187 = vmatprep.subr.mxu0 0.0
        %2188 = vmatpush1.xpose.msra.mxu0 0.0
        %2189 = vmatprep.subr.mxu0 0.0
        %2190 = vmatpush1.xpose.msra.mxu0 0.0
        %2191 = vmatprep.subr.mxu0 0.0
        %2192 = vmatpush1.xpose.msra.mxu0 0.0
        %2193 = vmatprep.subr.mxu0 0.0
        %2194 = vmatpush1.xpose.msra.mxu0 0.0
        %2195 = vmatprep.subr.mxu0 0.0
        %2196 = vmatpush1.xpose.msra.mxu0 0.0
        %2197 = vmatprep.subr.mxu0 0.0
        %2198 = vmatpush1.xpose.msra.mxu0 0.0
        %2199 = vmatprep.subr.mxu0 0.0
        %2200 = vmatpush1.xpose.msra.mxu0 0.0
        %2201 = vmatprep.subr.mxu0 0.0
        %2202 = vmatpush1.xpose.msra.mxu0 0.0
        %2203 = vmatprep.subr.mxu0 0.0
        %2204 = vmatpush1.xpose.msra.mxu0 0.0
        %2205 = vmatprep.subr.mxu0 0.0
        %2206 = vmatpush1.xpose.msra.mxu0 0.0
        %2207 = vmatprep.subr.mxu0 0.0
        %2208 = vmatpush1.xpose.msra.mxu0 0.0
        %2209 = vmatprep.subr.mxu0 0.0
        %2210 = vmatpush1.xpose.msra.mxu0 0.0
        %2211 = vmatprep.subr.mxu0 0.0
        %2212 = vmatpush1.xpose.msra.mxu0 0.0
        %2213 = vmatprep.subr.mxu0 0.0
        %2214 = vmatpush1.xpose.msra.mxu0 0.0
        %2215 = vmatprep.subr.mxu0 0.0
        %2216 = vmatpush1.xpose.msra.mxu0 0.0
        %2217 = vmatprep.subr.mxu0 0.0
        %2218 = vmatpush1.xpose.msra.mxu0 0.0
        %2219 = vmatprep.subr.mxu0 0.0
        %2220 = vmatpush1.xpose.msra.mxu0 0.0
        %2221 = vmatprep.mubr.f32.mxu0 0.0
        %2222 = vmatmul.mubr.f32.gmra.mrb[0].mxu0 %v2153
        %v2223 = vpop.f32.mrb[0].mxu0
        %v2224 = vadd.f32 0.0, %v2223
        %v2225 = vpop.f32.mrb[0].mxu0
        %2226 = vdwg.mxu0
        %v2227 = vmul.f32 %v2224, 0.35355338
        %v2228 = vsel %vm2060, %v2227, -1e+10
        %v2229 = vsel %vm1034, %v2228, -inf
        %2230 = vmax.xlane.f32.xlu0 %v2229
        %v2231 = vpop.xlane.xlu0 %2230
        %v2232 = vsub.f32 %v2228, %v2231
        %v2233 = vmul.f32 %v2232, 1.442695
        %v2234 = vpow.pop %v2233
        %v2235 = vsel %vm1034, %v2234, 0.0
        %2236 = vadd.xlane.f32.xlu0 %v2235
        %v2237 = vpop.xlane.xlu0 %2236
        %v2238 = vrcp.pop %v2237
        %v2239 = vmul.f32 %v2234, %v2238
        %2240 = vrot.lane.b32.xlu0 %v1980, 88
        %v2241 = vpop.permute.xlu0 %2240
        %v2244 = vsel %vm1034, %v2239, 0
        %2246 = vmatprep.subr.mxu0 0.0
        %2247 = vmatpush1.msra.mxu0 %v2241
        %2248 = vmatprep.subr.mxu0 0.0
        %2249 = vmatpush1.msra.mxu0 0.0
        %2250 = vmatprep.subr.mxu0 0.0
        %2251 = vmatpush1.msra.mxu0 0.0
        %2252 = vmatprep.subr.mxu0 0.0
        %2253 = vmatpush1.msra.mxu0 0.0
        %2254 = vmatprep.subr.mxu0 0.0
        %2255 = vmatpush1.msra.mxu0 0.0
        %2256 = vmatprep.subr.mxu0 0.0
        %2257 = vmatpush1.msra.mxu0 0.0
        %2258 = vmatprep.subr.mxu0 0.0
        %2259 = vmatpush1.msra.mxu0 0.0
        %2260 = vmatprep.subr.mxu0 0.0
        %2261 = vmatpush1.msra.mxu0 0.0
        %2262 = vmatprep.subr.mxu0 0.0
        %2263 = vmatpush1.msra.mxu0 0.0
        %2264 = vmatprep.subr.mxu0 0.0
        %2265 = vmatpush1.msra.mxu0 0.0
        %2266 = vmatprep.subr.mxu0 0.0
        %2267 = vmatpush1.msra.mxu0 0.0
        %2268 = vmatprep.subr.mxu0 0.0
        %2269 = vmatpush1.msra.mxu0 0.0
        %2270 = vmatprep.subr.mxu0 0.0
        %2271 = vmatpush1.msra.mxu0 0.0
        %2272 = vmatprep.subr.mxu0 0.0
        %2273 = vmatpush1.msra.mxu0 0.0
        %2274 = vmatprep.subr.mxu0 0.0
        %2275 = vmatpush1.msra.mxu0 0.0
        %2276 = vmatprep.subr.mxu0 0.0
        %2277 = vmatpush1.msra.mxu0 0.0
        %2278 = vmatprep.subr.mxu0 0.0
        %2279 = vmatpush1.msra.mxu0 0.0
        %2280 = vmatprep.subr.mxu0 0.0
        %2281 = vmatpush1.msra.mxu0 0.0
        %2282 = vmatprep.subr.mxu0 0.0
        %2283 = vmatpush1.msra.mxu0 0.0
        %2284 = vmatprep.subr.mxu0 0.0
        %2285 = vmatpush1.msra.mxu0 0.0
        %2286 = vmatprep.subr.mxu0 0.0
        %2287 = vmatpush1.msra.mxu0 0.0
        %2288 = vmatprep.subr.mxu0 0.0
        %2289 = vmatpush1.msra.mxu0 0.0
        %2290 = vmatprep.subr.mxu0 0.0
        %2291 = vmatpush1.msra.mxu0 0.0
        %2292 = vmatprep.subr.mxu0 0.0
        %2293 = vmatpush1.msra.mxu0 0.0
        %2294 = vmatprep.subr.mxu0 0.0
        %2295 = vmatpush1.msra.mxu0 0.0
        %2296 = vmatprep.subr.mxu0 0.0
        %2297 = vmatpush1.msra.mxu0 0.0
        %2298 = vmatprep.subr.mxu0 0.0
        %2299 = vmatpush1.msra.mxu0 0.0
        %2300 = vmatprep.subr.mxu0 0.0
        %2301 = vmatpush1.msra.mxu0 0.0
        %2302 = vmatprep.subr.mxu0 0.0
        %2303 = vmatpush1.msra.mxu0 0.0
        %2304 = vmatprep.subr.mxu0 0.0
        %2305 = vmatpush1.msra.mxu0 0.0
        %2306 = vmatprep.subr.mxu0 0.0
        %2307 = vmatpush1.msra.mxu0 0.0
        %2308 = vmatprep.subr.mxu0 0.0
        %2309 = vmatpush1.msra.mxu0 0.0
        %2310 = vmatprep.mubr.f32.mxu0 0.0
        %2311 = vmatmul.mubr.f32.gmra.mrb[0].mxu0 %v2244
        %v2312 = vpop.f32.mrb[0].mxu0
        %v2313 = vadd.f32 0.0, %v2312
        %v2314 = vpop.f32.mrb[0].mxu0
        %2315 = vdwg.mxu0
        %2316 = vrot.lane.b32.xlu0 %v1901, 112
        %v2317 = vpop.permute.xlu0 %2316
        %2318 = vrot.lane.b32.xlu0 %v1980, 112
        %v2319 = vpop.permute.xlu0 %2318
        %v2320 = vsel %vm1034, %v2317, 0
        %v2322 = vsel %vm1034, %v2319, 0
        %2324 = vmatprep.subr.mxu0 0.0
        %2325 = vmatpush1.xpose.msra.mxu0 %v2322
        %2326 = vmatprep.subr.mxu0 0.0
        %2327 = vmatpush1.xpose.msra.mxu0 0.0
        %2328 = vmatprep.subr.mxu0 0.0
        %2329 = vmatpush1.xpose.msra.mxu0 0.0
        %2330 = vmatprep.subr.mxu0 0.0
        %2331 = vmatpush1.xpose.msra.mxu0 0.0
        %2332 = vmatprep.subr.mxu0 0.0
        %2333 = vmatpush1.xpose.msra.mxu0 0.0
        %2334 = vmatprep.subr.mxu0 0.0
        %2335 = vmatpush1.xpose.msra.mxu0 0.0
        %2336 = vmatprep.subr.mxu0 0.0
        %2337 = vmatpush1.xpose.msra.mxu0 0.0
        %2338 = vmatprep.subr.mxu0 0.0
        %2339 = vmatpush1.xpose.msra.mxu0 0.0
        %2340 = vmatprep.subr.mxu0 0.0
        %2341 = vmatpush1.xpose.msra.mxu0 0.0
        %2342 = vmatprep.subr.mxu0 0.0
        %2343 = vmatpush1.xpose.msra.mxu0 0.0
        %2344 = vmatprep.subr.mxu0 0.0
        %2345 = vmatpush1.xpose.msra.mxu0 0.0
        %2346 = vmatprep.subr.mxu0 0.0
        %2347 = vmatpush1.xpose.msra.mxu0 0.0
        %2348 = vmatprep.subr.mxu0 0.0
        %2349 = vmatpush1.xpose.msra.mxu0 0.0
        %2350 = vmatprep.subr.mxu0 0.0
        %2351 = vmatpush1.xpose.msra.mxu0 0.0
        %2352 = vmatprep.subr.mxu0 0.0
        %2353 = vmatpush1.xpose.msra.mxu0 0.0
        %2354 = vmatprep.subr.mxu0 0.0
        %2355 = vmatpush1.xpose.msra.mxu0 0.0
        %2356 = vmatprep.subr.mxu0 0.0
        %2357 = vmatpush1.xpose.msra.mxu0 0.0
        %2358 = vmatprep.subr.mxu0 0.0
        %2359 = vmatpush1.xpose.msra.mxu0 0.0
        %2360 = vmatprep.subr.mxu0 0.0
        %2361 = vmatpush1.xpose.msra.mxu0 0.0
        %2362 = vmatprep.subr.mxu0 0.0
        %2363 = vmatpush1.xpose.msra.mxu0 0.0
        %2364 = vmatprep.subr.mxu0 0.0
        %2365 = vmatpush1.xpose.msra.mxu0 0.0
        %2366 = vmatprep.subr.mxu0 0.0
        %2367 = vmatpush1.xpose.msra.mxu0 0.0
        %2368 = vmatprep.subr.mxu0 0.0
        %2369 = vmatpush1.xpose.msra.mxu0 0.0
        %2370 = vmatprep.subr.mxu0 0.0
        %2371 = vmatpush1.xpose.msra.mxu0 0.0
        %2372 = vmatprep.subr.mxu0 0.0
        %2373 = vmatpush1.xpose.msra.mxu0 0.0
        %2374 = vmatprep.subr.mxu0 0.0
        %2375 = vmatpush1.xpose.msra.mxu0 0.0
        %2376 = vmatprep.subr.mxu0 0.0
        %2377 = vmatpush1.xpose.msra.mxu0 0.0
        %2378 = vmatprep.subr.mxu0 0.0
        %2379 = vmatpush1.xpose.msra.mxu0 0.0
        %2380 = vmatprep.subr.mxu0 0.0
        %2381 = vmatpush1.xpose.msra.mxu0 0.0
        %2382 = vmatprep.subr.mxu0 0.0
        %2383 = vmatpush1.xpose.msra.mxu0 0.0
        %2384 = vmatprep.subr.mxu0 0.0
        %2385 = vmatpush1.xpose.msra.mxu0 0.0
        %2386 = vmatprep.subr.mxu0 0.0
        %2387 = vmatpush1.xpose.msra.mxu0 0.0
        %2388 = vmatprep.mubr.f32.mxu0 0.0
        %2389 = vmatmul.mubr.f32.gmra.mrb[0].mxu0 %v2320
        %v2390 = vpop.f32.mrb[0].mxu0
        %v2391 = vadd.f32 0.0, %v2390
        %v2392 = vpop.f32.mrb[0].mxu0
        %2393 = vdwg.mxu0
        %v2394 = vmul.f32 %v2391, 0.35355338
        %v2395 = vsel %vm2060, %v2394, -1e+10
        %v2396 = vsel %vm1034, %v2395, -inf
        %2397 = vmax.xlane.f32.xlu0 %v2396
        %v2398 = vpop.xlane.xlu0 %2397
        %v2399 = vsub.f32 %v2395, %v2398
        %v2400 = vmul.f32 %v2399, 1.442695
        %v2401 = vpow.pop %v2400
        %v2402 = vsel %vm1034, %v2401, 0.0
        %2403 = vadd.xlane.f32.xlu0 %v2402
        %v2404 = vpop.xlane.xlu0 %2403
        %v2405 = vrcp.pop %v2404
        %v2406 = vmul.f32 %v2401, %v2405
        %2407 = vrot.lane.b32.xlu0 %v1980, 80
        %v2408 = vpop.permute.xlu0 %2407
        %v2411 = vsel %vm1034, %v2406, 0
        %2413 = vmatprep.subr.mxu0 0.0
        %2414 = vmatpush1.msra.mxu0 %v2408
        %2415 = vmatprep.subr.mxu0 0.0
        %2416 = vmatpush1.msra.mxu0 0.0
        %2417 = vmatprep.subr.mxu0 0.0
        %2418 = vmatpush1.msra.mxu0 0.0
        %2419 = vmatprep.subr.mxu0 0.0
        %2420 = vmatpush1.msra.mxu0 0.0
        %2421 = vmatprep.subr.mxu0 0.0
        %2422 = vmatpush1.msra.mxu0 0.0
        %2423 = vmatprep.subr.mxu0 0.0
        %2424 = vmatpush1.msra.mxu0 0.0
        %2425 = vmatprep.subr.mxu0 0.0
        %2426 = vmatpush1.msra.mxu0 0.0
        %2427 = vmatprep.subr.mxu0 0.0
        %2428 = vmatpush1.msra.mxu0 0.0
        %2429 = vmatprep.subr.mxu0 0.0
        %2430 = vmatpush1.msra.mxu0 0.0
        %2431 = vmatprep.subr.mxu0 0.0
        %2432 = vmatpush1.msra.mxu0 0.0
        %2433 = vmatprep.subr.mxu0 0.0
        %2434 = vmatpush1.msra.mxu0 0.0
        %2435 = vmatprep.subr.mxu0 0.0
        %2436 = vmatpush1.msra.mxu0 0.0
        %2437 = vmatprep.subr.mxu0 0.0
        %2438 = vmatpush1.msra.mxu0 0.0
        %2439 = vmatprep.subr.mxu0 0.0
        %2440 = vmatpush1.msra.mxu0 0.0
        %2441 = vmatprep.subr.mxu0 0.0
        %2442 = vmatpush1.msra.mxu0 0.0
        %2443 = vmatprep.subr.mxu0 0.0
        %2444 = vmatpush1.msra.mxu0 0.0
        %2445 = vmatprep.subr.mxu0 0.0
        %2446 = vmatpush1.msra.mxu0 0.0
        %2447 = vmatprep.subr.mxu0 0.0
        %2448 = vmatpush1.msra.mxu0 0.0
        %2449 = vmatprep.subr.mxu0 0.0
        %2450 = vmatpush1.msra.mxu0 0.0
        %2451 = vmatprep.subr.mxu0 0.0
        %2452 = vmatpush1.msra.mxu0 0.0
        %2453 = vmatprep.subr.mxu0 0.0
        %2454 = vmatpush1.msra.mxu0 0.0
        %2455 = vmatprep.subr.mxu0 0.0
        %2456 = vmatpush1.msra.mxu0 0.0
        %2457 = vmatprep.subr.mxu0 0.0
        %2458 = vmatpush1.msra.mxu0 0.0
        %2459 = vmatprep.subr.mxu0 0.0
        %2460 = vmatpush1.msra.mxu0 0.0
        %2461 = vmatprep.subr.mxu0 0.0
        %2462 = vmatpush1.msra.mxu0 0.0
        %2463 = vmatprep.subr.mxu0 0.0
        %2464 = vmatpush1.msra.mxu0 0.0
        %2465 = vmatprep.subr.mxu0 0.0
        %2466 = vmatpush1.msra.mxu0 0.0
        %2467 = vmatprep.subr.mxu0 0.0
        %2468 = vmatpush1.msra.mxu0 0.0
        %2469 = vmatprep.subr.mxu0 0.0
        %2470 = vmatpush1.msra.mxu0 0.0
        %2471 = vmatprep.subr.mxu0 0.0
        %2472 = vmatpush1.msra.mxu0 0.0
        %2473 = vmatprep.subr.mxu0 0.0
        %2474 = vmatpush1.msra.mxu0 0.0
        %2475 = vmatprep.subr.mxu0 0.0
        %2476 = vmatpush1.msra.mxu0 0.0
        %2477 = vmatprep.mubr.f32.mxu0 0.0
        %2478 = vmatmul.mubr.f32.gmra.mrb[0].mxu0 %v2411
        %v2479 = vpop.f32.mrb[0].mxu0
        %v2480 = vadd.f32 0.0, %v2479
        %v2481 = vpop.f32.mrb[0].mxu0
        %2482 = vdwg.mxu0
        %2483 = vrot.lane.b32.xlu0 %v1901, 104
        %v2484 = vpop.permute.xlu0 %2483
        %2485 = vrot.lane.b32.xlu0 %v1980, 104
        %v2486 = vpop.permute.xlu0 %2485
        %v2487 = vsel %vm1034, %v2484, 0
        %v2489 = vsel %vm1034, %v2486, 0
        %2491 = vmatprep.subr.mxu0 0.0
        %2492 = vmatpush1.xpose.msra.mxu0 %v2489
        %2493 = vmatprep.subr.mxu0 0.0
        %2494 = vmatpush1.xpose.msra.mxu0 0.0
        %2495 = vmatprep.subr.mxu0 0.0
        %2496 = vmatpush1.xpose.msra.mxu0 0.0
        %2497 = vmatprep.subr.mxu0 0.0
        %2498 = vmatpush1.xpose.msra.mxu0 0.0
        %2499 = vmatprep.subr.mxu0 0.0
        %2500 = vmatpush1.xpose.msra.mxu0 0.0
        %2501 = vmatprep.subr.mxu0 0.0
        %2502 = vmatpush1.xpose.msra.mxu0 0.0
        %2503 = vmatprep.subr.mxu0 0.0
        %2504 = vmatpush1.xpose.msra.mxu0 0.0
        %2505 = vmatprep.subr.mxu0 0.0
        %2506 = vmatpush1.xpose.msra.mxu0 0.0
        %2507 = vmatprep.subr.mxu0 0.0
        %2508 = vmatpush1.xpose.msra.mxu0 0.0
        %2509 = vmatprep.subr.mxu0 0.0
        %2510 = vmatpush1.xpose.msra.mxu0 0.0
        %2511 = vmatprep.subr.mxu0 0.0
        %2512 = vmatpush1.xpose.msra.mxu0 0.0
        %2513 = vmatprep.subr.mxu0 0.0
        %2514 = vmatpush1.xpose.msra.mxu0 0.0
        %2515 = vmatprep.subr.mxu0 0.0
        %2516 = vmatpush1.xpose.msra.mxu0 0.0
        %2517 = vmatprep.subr.mxu0 0.0
        %2518 = vmatpush1.xpose.msra.mxu0 0.0
        %2519 = vmatprep.subr.mxu0 0.0
        %2520 = vmatpush1.xpose.msra.mxu0 0.0
        %2521 = vmatprep.subr.mxu0 0.0
        %2522 = vmatpush1.xpose.msra.mxu0 0.0
        %2523 = vmatprep.subr.mxu0 0.0
        %2524 = vmatpush1.xpose.msra.mxu0 0.0
        %2525 = vmatprep.subr.mxu0 0.0
        %2526 = vmatpush1.xpose.msra.mxu0 0.0
        %2527 = vmatprep.subr.mxu0 0.0
        %2528 = vmatpush1.xpose.msra.mxu0 0.0
        %2529 = vmatprep.subr.mxu0 0.0
        %2530 = vmatpush1.xpose.msra.mxu0 0.0
        %2531 = vmatprep.subr.mxu0 0.0
        %2532 = vmatpush1.xpose.msra.mxu0 0.0
        %2533 = vmatprep.subr.mxu0 0.0
        %2534 = vmatpush1.xpose.msra.mxu0 0.0
        %2535 = vmatprep.subr.mxu0 0.0
        %2536 = vmatpush1.xpose.msra.mxu0 0.0
        %2537 = vmatprep.subr.mxu0 0.0
        %2538 = vmatpush1.xpose.msra.mxu0 0.0
        %2539 = vmatprep.subr.mxu0 0.0
        %2540 = vmatpush1.xpose.msra.mxu0 0.0
        %2541 = vmatprep.subr.mxu0 0.0
        %2542 = vmatpush1.xpose.msra.mxu0 0.0
        %2543 = vmatprep.subr.mxu0 0.0
        %2544 = vmatpush1.xpose.msra.mxu0 0.0
        %2545 = vmatprep.subr.mxu0 0.0
        %2546 = vmatpush1.xpose.msra.mxu0 0.0
        %2547 = vmatprep.subr.mxu0 0.0
        %2548 = vmatpush1.xpose.msra.mxu0 0.0
        %2549 = vmatprep.subr.mxu0 0.0
        %2550 = vmatpush1.xpose.msra.mxu0 0.0
        %2551 = vmatprep.subr.mxu0 0.0
        %2552 = vmatpush1.xpose.msra.mxu0 0.0
        %2553 = vmatprep.subr.mxu0 0.0
        %2554 = vmatpush1.xpose.msra.mxu0 0.0
        %2555 = vmatprep.mubr.f32.mxu0 0.0
        %2556 = vmatmul.mubr.f32.gmra.mrb[0].mxu0 %v2487
        %v2557 = vpop.f32.mrb[0].mxu0
        %v2558 = vadd.f32 0.0, %v2557
        %v2559 = vpop.f32.mrb[0].mxu0
        %2560 = vdwg.mxu0
        %v2561 = vmul.f32 %v2558, 0.35355338
        %v2562 = vsel %vm2060, %v2561, -1e+10
        %v2563 = vsel %vm1034, %v2562, -inf
        %2564 = vmax.xlane.f32.xlu0 %v2563
        %v2565 = vpop.xlane.xlu0 %2564
        %v2566 = vsub.f32 %v2562, %v2565
        %v2567 = vmul.f32 %v2566, 1.442695
        %v2568 = vpow.pop %v2567
        %v2569 = vsel %vm1034, %v2568, 0.0
        %2570 = vadd.xlane.f32.xlu0 %v2569
        %v2571 = vpop.xlane.xlu0 %2570
        %v2572 = vrcp.pop %v2571
        %v2573 = vmul.f32 %v2568, %v2572
        %2574 = vrot.lane.b32.xlu0 %v1980, 72
        %v2575 = vpop.permute.xlu0 %2574
        %v2578 = vsel %vm1034, %v2573, 0
        %2580 = vmatprep.subr.mxu0 0.0
        %2581 = vmatpush1.msra.mxu0 %v2575
        %2582 = vmatprep.subr.mxu0 0.0
        %2583 = vmatpush1.msra.mxu0 0.0
        %2584 = vmatprep.subr.mxu0 0.0
        %2585 = vmatpush1.msra.mxu0 0.0
        %2586 = vmatprep.subr.mxu0 0.0
        %2587 = vmatpush1.msra.mxu0 0.0
        %2588 = vmatprep.subr.mxu0 0.0
        %2589 = vmatpush1.msra.mxu0 0.0
        %2590 = vmatprep.subr.mxu0 0.0
        %2591 = vmatpush1.msra.mxu0 0.0
        %2592 = vmatprep.subr.mxu0 0.0
        %2593 = vmatpush1.msra.mxu0 0.0
        %2594 = vmatprep.subr.mxu0 0.0
        %2595 = vmatpush1.msra.mxu0 0.0
        %2596 = vmatprep.subr.mxu0 0.0
        %2597 = vmatpush1.msra.mxu0 0.0
        %2598 = vmatprep.subr.mxu0 0.0
        %2599 = vmatpush1.msra.mxu0 0.0
        %2600 = vmatprep.subr.mxu0 0.0
        %2601 = vmatpush1.msra.mxu0 0.0
        %2602 = vmatprep.subr.mxu0 0.0
        %2603 = vmatpush1.msra.mxu0 0.0
        %2604 = vmatprep.subr.mxu0 0.0
        %2605 = vmatpush1.msra.mxu0 0.0
        %2606 = vmatprep.subr.mxu0 0.0
        %2607 = vmatpush1.msra.mxu0 0.0
        %2608 = vmatprep.subr.mxu0 0.0
        %2609 = vmatpush1.msra.mxu0 0.0
        %2610 = vmatprep.subr.mxu0 0.0
        %2611 = vmatpush1.msra.mxu0 0.0
        %2612 = vmatprep.subr.mxu0 0.0
        %2613 = vmatpush1.msra.mxu0 0.0
        %2614 = vmatprep.subr.mxu0 0.0
        %2615 = vmatpush1.msra.mxu0 0.0
        %2616 = vmatprep.subr.mxu0 0.0
        %2617 = vmatpush1.msra.mxu0 0.0
        %2618 = vmatprep.subr.mxu0 0.0
        %2619 = vmatpush1.msra.mxu0 0.0
        %2620 = vmatprep.subr.mxu0 0.0
        %2621 = vmatpush1.msra.mxu0 0.0
        %2622 = vmatprep.subr.mxu0 0.0
        %2623 = vmatpush1.msra.mxu0 0.0
        %2624 = vmatprep.subr.mxu0 0.0
        %2625 = vmatpush1.msra.mxu0 0.0
        %2626 = vmatprep.subr.mxu0 0.0
        %2627 = vmatpush1.msra.mxu0 0.0
        %2628 = vmatprep.subr.mxu0 0.0
        %2629 = vmatpush1.msra.mxu0 0.0
        %2630 = vmatprep.subr.mxu0 0.0
        %2631 = vmatpush1.msra.mxu0 0.0
        %2632 = vmatprep.subr.mxu0 0.0
        %2633 = vmatpush1.msra.mxu0 0.0
        %2634 = vmatprep.subr.mxu0 0.0
        %2635 = vmatpush1.msra.mxu0 0.0
        %2636 = vmatprep.subr.mxu0 0.0
        %2637 = vmatpush1.msra.mxu0 0.0
        %2638 = vmatprep.subr.mxu0 0.0
        %2639 = vmatpush1.msra.mxu0 0.0
        %2640 = vmatprep.subr.mxu0 0.0
        %2641 = vmatpush1.msra.mxu0 0.0
        %2642 = vmatprep.subr.mxu0 0.0
        %2643 = vmatpush1.msra.mxu0 0.0
        %2644 = vmatprep.mubr.f32.mxu0 0.0
        %2645 = vmatmul.mubr.f32.gmra.mrb[0].mxu0 %v2578
        %v2646 = vpop.f32.mrb[0].mxu0
        %v2647 = vadd.f32 0.0, %v2646
        %v2648 = vpop.f32.mrb[0].mxu0
        %2649 = vdwg.mxu0
        %2651 = vrot.lane.b32.xlu0 %v2313, 8
        %v2652 = vpop.permute.xlu0 %2651
        %2655 = vrot.lane.b32.xlu0 %v2480, 16
        %v2656 = vpop.permute.xlu0 %2655
        %2659 = vrot.lane.b32.xlu0 %v2647, 24
        %v2660 = vpop.permute.xlu0 %2659
        %v2662 = vsel %vm1034, %v2146, %v2652
        %v2663 = vsel %vm1713, %v2662, %v2656
        %v2664 = vsel %vm1715, %v2663, %v2660
        %v2666 = vlaneseq
        %v2667 = vshrl.u32 %v2666, 7
        %v2668 = vsub.s32 0, %v2667
        %v2669 = vrot.slane %v932, %v2668
        %v2672 = vsel %vm957, %v2664, 0
        %2674 = vmatprep.subr.mxu0 0.0
        %2675 = vmatpush1.msra.mxu0 %v928
        %2676 = vmatprep.subr.mxu0 0.0
        %2677 = vmatpush1.msra.mxu0 %v929
        %2678 = vmatprep.subr.mxu0 0.0
        %2679 = vmatpush1.msra.mxu0 %v930
        %2680 = vmatprep.subr.mxu0 0.0
        %2681 = vmatpush1.msra.mxu0 %v931
        %2682 = vmatprep.subr.mxu0 0.0
        %2683 = vmatpush1.msra.mxu0 0.0
        %2684 = vmatprep.subr.mxu0 0.0
        %2685 = vmatpush1.msra.mxu0 0.0
        %2686 = vmatprep.subr.mxu0 0.0
        %2687 = vmatpush1.msra.mxu0 0.0
        %2688 = vmatprep.subr.mxu0 0.0
        %2689 = vmatpush1.msra.mxu0 0.0
        %2690 = vmatprep.subr.mxu0 0.0
        %2691 = vmatpush1.msra.mxu0 0.0
        %2692 = vmatprep.subr.mxu0 0.0
        %2693 = vmatpush1.msra.mxu0 0.0
        %2694 = vmatprep.subr.mxu0 0.0
        %2695 = vmatpush1.msra.mxu0 0.0
        %2696 = vmatprep.subr.mxu0 0.0
        %2697 = vmatpush1.msra.mxu0 0.0
        %2698 = vmatprep.subr.mxu0 0.0
        %2699 = vmatpush1.msra.mxu0 0.0
        %2700 = vmatprep.subr.mxu0 0.0
        %2701 = vmatpush1.msra.mxu0 0.0
        %2702 = vmatprep.subr.mxu0 0.0
        %2703 = vmatpush1.msra.mxu0 0.0
        %2704 = vmatprep.subr.mxu0 0.0
        %2705 = vmatpush1.msra.mxu0 0.0
        %2706 = vmatprep.subr.mxu0 0.0
        %2707 = vmatpush1.msra.mxu0 0.0
        %2708 = vmatprep.subr.mxu0 0.0
        %2709 = vmatpush1.msra.mxu0 0.0
        %2710 = vmatprep.subr.mxu0 0.0
        %2711 = vmatpush1.msra.mxu0 0.0
        %2712 = vmatprep.subr.mxu0 0.0
        %2713 = vmatpush1.msra.mxu0 0.0
        %2714 = vmatprep.subr.mxu0 0.0
        %2715 = vmatpush1.msra.mxu0 0.0
        %2716 = vmatprep.subr.mxu0 0.0
        %2717 = vmatpush1.msra.mxu0 0.0
        %2718 = vmatprep.subr.mxu0 0.0
        %2719 = vmatpush1.msra.mxu0 0.0
        %2720 = vmatprep.subr.mxu0 0.0
        %2721 = vmatpush1.msra.mxu0 0.0
        %2722 = vmatprep.subr.mxu0 0.0
        %2723 = vmatpush1.msra.mxu0 0.0
        %2724 = vmatprep.subr.mxu0 0.0
        %2725 = vmatpush1.msra.mxu0 0.0
        %2726 = vmatprep.subr.mxu0 0.0
        %2727 = vmatpush1.msra.mxu0 0.0
        %2728 = vmatprep.subr.mxu0 0.0
        %2729 = vmatpush1.msra.mxu0 0.0
        %2730 = vmatprep.subr.mxu0 0.0
        %2731 = vmatpush1.msra.mxu0 0.0
        %2732 = vmatprep.subr.mxu0 0.0
        %2733 = vmatpush1.msra.mxu0 0.0
        %2734 = vmatprep.subr.mxu0 0.0
        %2735 = vmatpush1.msra.mxu0 0.0
        %2736 = vmatprep.subr.mxu0 0.0
        %2737 = vmatpush1.msra.mxu0 0.0
        %2738 = vmatprep.mubr.f32.mxu0 0.0
        %2739 = vmatmul.mubr.f32.gmra.mrb[0].mxu0 %v2672
        %v2740 = vpop.f32.mrb[0].mxu0
        %v2741 = vadd.f32 %v2669, %v2740
        %v2742 = vpop.f32.mrb[0].mxu0
        %2743 = vdwg.mxu0
        %v2744 = vadd.f32 %v1824, %v2741
        %v2745 = vsel %vm957, %v2744, 0.0
        %2746 = vadd.xlane.f32.xlu0 %v2745
        %v2747 = vpop.xlane.xlu0 %2746
        %v2748 = vmul.f32 %v2747, %v1800
        %v2749 = vsub.f32 %v2744, %v2748
        %v2750 = vmul.f32 %v2749, %v2749
        %v2751 = vsel %vm957, %v2750, 0.0
        %2752 = vadd.xlane.f32.xlu0 %v2751
        %v2753 = vpop.xlane.xlu0 %2752
        %v2754 = vmul.f32 %v2753, %v1800
        %v2755 = vadd.f32 %v2754, 1e-05
        %v2756 = vrsqrt.pop %v2755
        %v2757 = vmul.f32 %v2749, %v2756
        %v2759 = vlaneseq
        %v2760 = vshrl.u32 %v2759, 7
        %v2761 = vsub.s32 0, %v2760
        %v2762 = vrot.slane %v933, %v2761
        %v2764 = vmul.f32 %v2757, %v2762
        %v2766 = vlaneseq
        %v2767 = vshrl.u32 %v2766, 7
        %v2768 = vsub.s32 0, %v2767
        %v2769 = vrot.slane %v934, %v2768
        %v2771 = vadd.f32 %v2764, %v2769
        %v2773 = vlaneseq
        %v2774 = vshrl.u32 %v2773, 7
        %v2775 = vsub.s32 0, %v2774
        %v2776 = vrot.slane %v939, %v2775
        %v2779 = vsel %vm957, %v2771, 0
        %2781 = vmatprep.subr.mxu0 0.0
        %2782 = vmatpush1.msra.mxu0 %v935
        %2783 = vmatprep.subr.mxu0 0.0
        %2784 = vmatpush1.msra.mxu0 %v936
        %2785 = vmatprep.subr.mxu0 0.0
        %2786 = vmatpush1.msra.mxu0 %v937
        %2787 = vmatprep.subr.mxu0 0.0
        %2788 = vmatpush1.msra.mxu0 %v938
        %2789 = vmatprep.subr.mxu0 0.0
        %2790 = vmatpush1.msra.mxu0 0.0
        %2791 = vmatprep.subr.mxu0 0.0
        %2792 = vmatpush1.msra.mxu0 0.0
        %2793 = vmatprep.subr.mxu0 0.0
        %2794 = vmatpush1.msra.mxu0 0.0
        %2795 = vmatprep.subr.mxu0 0.0
        %2796 = vmatpush1.msra.mxu0 0.0
        %2797 = vmatprep.subr.mxu0 0.0
        %2798 = vmatpush1.msra.mxu0 0.0
        %2799 = vmatprep.subr.mxu0 0.0
        %2800 = vmatpush1.msra.mxu0 0.0
        %2801 = vmatprep.subr.mxu0 0.0
        %2802 = vmatpush1.msra.mxu0 0.0
        %2803 = vmatprep.subr.mxu0 0.0
        %2804 = vmatpush1.msra.mxu0 0.0
        %2805 = vmatprep.subr.mxu0 0.0
        %2806 = vmatpush1.msra.mxu0 0.0
        %2807 = vmatprep.subr.mxu0 0.0
        %2808 = vmatpush1.msra.mxu0 0.0
        %2809 = vmatprep.subr.mxu0 0.0
        %2810 = vmatpush1.msra.mxu0 0.0
        %2811 = vmatprep.subr.mxu0 0.0
        %2812 = vmatpush1.msra.mxu0 0.0
        %2813 = vmatprep.subr.mxu0 0.0
        %2814 = vmatpush1.msra.mxu0 0.0
        %2815 = vmatprep.subr.mxu0 0.0
        %2816 = vmatpush1.msra.mxu0 0.0
        %2817 = vmatprep.subr.mxu0 0.0
        %2818 = vmatpush1.msra.mxu0 0.0
        %2819 = vmatprep.subr.mxu0 0.0
        %2820 = vmatpush1.msra.mxu0 0.0
        %2821 = vmatprep.subr.mxu0 0.0
        %2822 = vmatpush1.msra.mxu0 0.0
        %2823 = vmatprep.subr.mxu0 0.0
        %2824 = vmatpush1.msra.mxu0 0.0
        %2825 = vmatprep.subr.mxu0 0.0
        %2826 = vmatpush1.msra.mxu0 0.0
        %2827 = vmatprep.subr.mxu0 0.0
        %2828 = vmatpush1.msra.mxu0 0.0
        %2829 = vmatprep.subr.mxu0 0.0
        %2830 = vmatpush1.msra.mxu0 0.0
        %2831 = vmatprep.subr.mxu0 0.0
        %2832 = vmatpush1.msra.mxu0 0.0
        %2833 = vmatprep.subr.mxu0 0.0
        %2834 = vmatpush1.msra.mxu0 0.0
        %2835 = vmatprep.subr.mxu0 0.0
        %2836 = vmatpush1.msra.mxu0 0.0
        %2837 = vmatprep.subr.mxu0 0.0
        %2838 = vmatpush1.msra.mxu0 0.0
        %2839 = vmatprep.subr.mxu0 0.0
        %2840 = vmatpush1.msra.mxu0 0.0
        %2841 = vmatprep.subr.mxu0 0.0
        %2842 = vmatpush1.msra.mxu0 0.0
        %2843 = vmatprep.subr.mxu0 0.0
        %2844 = vmatpush1.msra.mxu0 0.0
        %2845 = vmatprep.mubr.f32.mxu0 0.0
        %2846 = vmatmul.mubr.f32.gmra.mrb[0].mxu0 %v2779
        %v2847 = vpop.f32.mrb[0].mxu0
        %v2848 = vadd.f32 %v2776, %v2847
        %v2849 = vpop.f32.mrb[0].mxu0
        %2850 = vdwg.mxu0
        %v2851 = vmax.f32 %v2848, 0.0
        %v2853 = vlaneseq
        %v2854 = vshrl.u32 %v2853, 7
        %v2855 = vsub.s32 0, %v2854
        %v2856 = vrot.slane %v948, %v2855
        %vm2858 = vcmask 523264
        %v2860 = vsel %vm2858, %v2851, 0
        %2862 = vmatprep.subr.mxu0 0.0
        %2863 = vmatpush1.msra.mxu0 %v940
        %2864 = vmatprep.subr.mxu0 0.0
        %2865 = vmatpush1.msra.mxu0 %v941
        %2866 = vmatprep.subr.mxu0 0.0
        %2867 = vmatpush1.msra.mxu0 %v942
        %2868 = vmatprep.subr.mxu0 0.0
        %2869 = vmatpush1.msra.mxu0 %v943
        %2870 = vmatprep.subr.mxu0 0.0
        %2871 = vmatpush1.msra.mxu0 %v944
        %2872 = vmatprep.subr.mxu0 0.0
        %2873 = vmatpush1.msra.mxu0 %v945
        %2874 = vmatprep.subr.mxu0 0.0
        %2875 = vmatpush1.msra.mxu0 %v946
        %2876 = vmatprep.subr.mxu0 0.0
        %2877 = vmatpush1.msra.mxu0 %v947
        %2878 = vmatprep.subr.mxu0 0.0
        %2879 = vmatpush1.msra.mxu0 0.0
        %2880 = vmatprep.subr.mxu0 0.0
        %2881 = vmatpush1.msra.mxu0 0.0
        %2882 = vmatprep.subr.mxu0 0.0
        %2883 = vmatpush1.msra.mxu0 0.0
        %2884 = vmatprep.subr.mxu0 0.0
        %2885 = vmatpush1.msra.mxu0 0.0
        %2886 = vmatprep.subr.mxu0 0.0
        %2887 = vmatpush1.msra.mxu0 0.0
        %2888 = vmatprep.subr.mxu0 0.0
        %2889 = vmatpush1.msra.mxu0 0.0
        %2890 = vmatprep.subr.mxu0 0.0
        %2891 = vmatpush1.msra.mxu0 0.0
        %2892 = vmatprep.subr.mxu0 0.0
        %2893 = vmatpush1.msra.mxu0 0.0
        %2894 = vmatprep.subr.mxu0 0.0
        %2895 = vmatpush1.msra.mxu0 0.0
        %2896 = vmatprep.subr.mxu0 0.0
        %2897 = vmatpush1.msra.mxu0 0.0
        %2898 = vmatprep.subr.mxu0 0.0
        %2899 = vmatpush1.msra.mxu0 0.0
        %2900 = vmatprep.subr.mxu0 0.0
        %2901 = vmatpush1.msra.mxu0 0.0
        %2902 = vmatprep.subr.mxu0 0.0
        %2903 = vmatpush1.msra.mxu0 0.0
        %2904 = vmatprep.subr.mxu0 0.0
        %2905 = vmatpush1.msra.mxu0 0.0
        %2906 = vmatprep.subr.mxu0 0.0
        %2907 = vmatpush1.msra.mxu0 0.0
        %2908 = vmatprep.subr.mxu0 0.0
        %2909 = vmatpush1.msra.mxu0 0.0
        %2910 = vmatprep.subr.mxu0 0.0
        %2911 = vmatpush1.msra.mxu0 0.0
        %2912 = vmatprep.subr.mxu0 0.0
        %2913 = vmatpush1.msra.mxu0 0.0
        %2914 = vmatprep.subr.mxu0 0.0
        %2915 = vmatpush1.msra.mxu0 0.0
        %2916 = vmatprep.subr.mxu0 0.0
        %2917 = vmatpush1.msra.mxu0 0.0
        %2918 = vmatprep.subr.mxu0 0.0
        %2919 = vmatpush1.msra.mxu0 0.0
        %2920 = vmatprep.subr.mxu0 0.0
        %2921 = vmatpush1.msra.mxu0 0.0
        %2922 = vmatprep.subr.mxu0 0.0
        %2923 = vmatpush1.msra.mxu0 0.0
        %2924 = vmatprep.subr.mxu0 0.0
        %2925 = vmatpush1.msra.mxu0 0.0
        %2926 = vmatprep.mubr.f32.mxu0 0.0
        %2927 = vmatmul.mubr.f32.gmra.mrb[0].mxu0 %v2860
        %v2928 = vpop.f32.mrb[0].mxu0
        %v2929 = vadd.f32 %v2856, %v2928
        %v2930 = vpop.f32.mrb[0].mxu0
        %2931 = vdwg.mxu0
        %v2932 = vadd.f32 %v2771, %v2929
        %v2933 = vsel %vm957, %v2932, 0.0
        %2934 = vadd.xlane.f32.xlu0 %v2933
        %v2935 = vpop.xlane.xlu0 %2934
        %v2936 = vmul.f32 %v2935, %v1800
        %v2937 = vsub.f32 %v2932, %v2936
        %v2938 = vmul.f32 %v2937, %v2937
        %v2939 = vsel %vm957, %v2938, 0.0
        %2940 = vadd.xlane.f32.xlu0 %v2939
        %v2941 = vpop.xlane.xlu0 %2940
        %v2942 = vmul.f32 %v2941, %v1800
        %v2943 = vadd.f32 %v2942, 1e-05
        %v2944 = vrsqrt.pop %v2943
        %v2945 = vmul.f32 %v2937, %v2944
        %v2947 = vlaneseq
        %v2948 = vshrl.u32 %v2947, 7
        %v2949 = vsub.s32 0, %v2948
        %v2950 = vrot.slane %v949, %v2949
        %v2952 = vmul.f32 %v2945, %v2950
        %v2954 = vlaneseq
        %v2955 = vshrl.u32 %v2954, 7
        %v2956 = vsub.s32 0, %v2955
        %v2957 = vrot.slane %v950, %v2956
        %v2959 = vadd.f32 %v2952, %v2957
        %v2960 = vld [vmem:[%s24] sm:$0xff]
        %v2961 = vld [vmem:[%s24 + $0x8] sm:$0xff]
        %v2962 = vld [vmem:[%s24 + $0x10] sm:$0xff]
        %v2963 = vld [vmem:[%s24 + $0x18] sm:$0xff]
        %v2964 = vld [vmem:[#allocation5] sm:$0x1]
        %v2966 = vlaneseq
        %v2967 = vshrl.u32 %v2966, 7
        %v2968 = vsub.s32 0, %v2967
        %v2969 = vrot.slane %v2964, %v2968
        %v2972 = vsel %vm957, %v2959, 0
        %2974 = vmatprep.subr.mxu0 0.0
        %2975 = vmatpush1.msra.mxu0 %v2960
        %2976 = vmatprep.subr.mxu0 0.0
        %2977 = vmatpush1.msra.mxu0 %v2961
        %2978 = vmatprep.subr.mxu0 0.0
        %2979 = vmatpush1.msra.mxu0 %v2962
        %2980 = vmatprep.subr.mxu0 0.0
        %2981 = vmatpush1.msra.mxu0 %v2963
        %2982 = vmatprep.subr.mxu0 0.0
        %2983 = vmatpush1.msra.mxu0 0.0
        %2984 = vmatprep.subr.mxu0 0.0
        %2985 = vmatpush1.msra.mxu0 0.0
        %2986 = vmatprep.subr.mxu0 0.0
        %2987 = vmatpush1.msra.mxu0 0.0
        %2988 = vmatprep.subr.mxu0 0.0
        %2989 = vmatpush1.msra.mxu0 0.0
        %2990 = vmatprep.subr.mxu0 0.0
        %2991 = vmatpush1.msra.mxu0 0.0
        %2992 = vmatprep.subr.mxu0 0.0
        %2993 = vmatpush1.msra.mxu0 0.0
        %2994 = vmatprep.subr.mxu0 0.0
        %2995 = vmatpush1.msra.mxu0 0.0
        %2996 = vmatprep.subr.mxu0 0.0
        %2997 = vmatpush1.msra.mxu0 0.0
        %2998 = vmatprep.subr.mxu0 0.0
        %2999 = vmatpush1.msra.mxu0 0.0
        %3000 = vmatprep.subr.mxu0 0.0
        %3001 = vmatpush1.msra.mxu0 0.0
        %3002 = vmatprep.subr.mxu0 0.0
        %3003 = vmatpush1.msra.mxu0 0.0
        %3004 = vmatprep.subr.mxu0 0.0
        %3005 = vmatpush1.msra.mxu0 0.0
        %3006 = vmatprep.subr.mxu0 0.0
        %3007 = vmatpush1.msra.mxu0 0.0
        %3008 = vmatprep.subr.mxu0 0.0
        %3009 = vmatpush1.msra.mxu0 0.0
        %3010 = vmatprep.subr.mxu0 0.0
        %3011 = vmatpush1.msra.mxu0 0.0
        %3012 = vmatprep.subr.mxu0 0.0
        %3013 = vmatpush1.msra.mxu0 0.0
        %3014 = vmatprep.subr.mxu0 0.0
        %3015 = vmatpush1.msra.mxu0 0.0
        %3016 = vmatprep.subr.mxu0 0.0
        %3017 = vmatpush1.msra.mxu0 0.0
        %3018 = vmatprep.subr.mxu0 0.0
        %3019 = vmatpush1.msra.mxu0 0.0
        %3020 = vmatprep.subr.mxu0 0.0
        %3021 = vmatpush1.msra.mxu0 0.0
        %3022 = vmatprep.subr.mxu0 0.0
        %3023 = vmatpush1.msra.mxu0 0.0
        %3024 = vmatprep.subr.mxu0 0.0
        %3025 = vmatpush1.msra.mxu0 0.0
        %3026 = vmatprep.subr.mxu0 0.0
        %3027 = vmatpush1.msra.mxu0 0.0
        %3028 = vmatprep.subr.mxu0 0.0
        %3029 = vmatpush1.msra.mxu0 0.0
        %3030 = vmatprep.subr.mxu0 0.0
        %3031 = vmatpush1.msra.mxu0 0.0
        %3032 = vmatprep.subr.mxu0 0.0
        %3033 = vmatpush1.msra.mxu0 0.0
        %3034 = vmatprep.subr.mxu0 0.0
        %3035 = vmatpush1.msra.mxu0 0.0
        %3036 = vmatprep.subr.mxu0 0.0
        %3037 = vmatpush1.msra.mxu0 0.0
        %3038 = vmatprep.mubr.f32.mxu0 0.0
        %3039 = vmatmul.mubr.f32.gmra.mrb[0].mxu0 %v2972
        %v3040 = vpop.f32.mrb[0].mxu0
        %v3041 = vadd.f32 %v2969, %v3040
        %v3042 = vpop.f32.mrb[0].mxu0
        %3043 = vdwg.mxu0
        %3044 = vst [vmem:[%s878] sm:$0xff] %v3041
        %3045 = vst.msk [vmem:[%s885] sm:$0xff] %vm1034, %v2072
        %s3046 = scalar_lea.vmem %s885, 8 [#allocation8]
        %3047 = vst.msk [vmem:[%s3046] sm:$0xff] %vm1034, %v2239
        %s3048 = scalar_lea.vmem %s885, 16 [#allocation8]
        %3049 = vst.msk [vmem:[%s3048] sm:$0xff] %vm1034, %v2406
        %s3050 = scalar_lea.vmem %s885, 24 [#allocation8]
        %3051 = vst.msk [vmem:[%s3050] sm:$0xff] %vm1034, %v2573
        %s3052 = sand.u32 %s621, 1
        %s3053 = scalar_lea.sflag [#allocation4], %s3052
        %s3054 = sand.u32 %s621, 1
        %s3055 = smul.addr %s3054, 8
        %s3056 = scalar_lea.vmem [#allocation7], %s3055
        %s3057 = sand.u32 %s647, 1
        %s3058 = scalar_lea.sflag [#allocation9], %s3057
        %s3059 = sand.u32 %s647, 1
        %s3060 = smul.addr %s3059, 32
        %s3061 = scalar_lea.vmem [#allocation8], %s3060
        // Predicated region
        $region133: #{seq2seq_forward.7} parent=123 // pred_check
          %p3062 = pneg %p631
        $region134: #{seq2seq_forward.7} parent=123 // pred_check_branch
          %3064 = sbr.rel (%p3062) target = $region136
        $region135: #{seq2seq_forward.7} parent=123 // pred_region
          %s3066 = ssub.s32 128, 128
          %3067 = vsyncadd %s3053, %s3066
          %s3068 = smul.addr %s47, 128
          %s3069 = scalar_lea.hbm %s26, %s3068
          %s3071 = sshll.u32 %s3056, 4
          %s3072 = int_to_ptr.vmem [resolvable:$true] %s3071
          %3074 = dma.vmem_to_hbm [thread:$0]  %s3072, 128, %s3069, %s3053
        $region136: #{seq2seq_forward.7} parent=123 // pred_fallthru
          _
        // Predicated region
        $region137: #{seq2seq_forward.7} parent=123 // pred_check
          %p3075 = pneg %p657
        $region138: #{seq2seq_forward.7} parent=123 // pred_check_branch
          %3077 = sbr.rel (%p3075) target = $region140
        $region139: #{seq2seq_forward.7} parent=123 // pred_region
          %s3079 = ssub.s32 512, 512
          %3080 = vsyncadd %s3058, %s3079
          %s3081 = smul.addr %s47, 4
          %s3082 = smul.addr %s3081, 128
          %s3083 = scalar_lea.hbm %s27, %s3082
          %s3084 = sshll.u32 %s3061, 4
          %s3085 = int_to_ptr.vmem [resolvable:$true] %s3084
          %3090 = dma.vmem_to_hbm [thread:$0]  %s3085, 512, %s3083, %s3058, 128, 128, 8
        $region140: #{seq2seq_forward.7} parent=123 // pred_fallthru
          _
      $region124: #{seq2seq_forward.7} parent=5 // pred_fallthru
        _
      %p3091 = scmp.le.s32.totalorder 2, %s42
      // Predicated region
      $region141: #{seq2seq_forward.7} parent=5 // pred_check
        %p3092 = pneg %p3091
      $region142: #{seq2seq_forward.7} parent=5 // pred_check_branch
        %3094 = sbr.rel (%p3092) target = $region144
      $region143: #{seq2seq_forward.7} parent=5 // pred_region
        %s3095 = ssub.s32 %s42, 2
        // Predicated region
        $region145: #{seq2seq_forward.7} parent=143 // pred_check
          %p3096 = pneg %p637
        $region146: #{seq2seq_forward.7} parent=143 // pred_check_branch
          %3098 = sbr.rel (%p3096) target = $region148
        $region147: #{seq2seq_forward.7} parent=143 // pred_region
          %s3099 = sand.u32 %s622, 1
          %s3100 = scalar_lea.sflag [#allocation4], %s3099
          %s3101 = sand.u32 %s622, 1
          %s3102 = smul.addr %s3101, 8
          %s3103 = scalar_lea.vmem [#allocation7], %s3102
          %3104 = dma.done %s3100, 128
        $region148: #{seq2seq_forward.7} parent=143 // pred_fallthru
          _
        // Predicated region
        $region149: #{seq2seq_forward.7} parent=143 // pred_check
          %p3105 = pneg %p663
        $region150: #{seq2seq_forward.7} parent=143 // pred_check_branch
          %3107 = sbr.rel (%p3105) target = $region152
        $region151: #{seq2seq_forward.7} parent=143 // pred_region
          %s3108 = sand.u32 %s648, 1
          %s3109 = scalar_lea.sflag [#allocation9], %s3108
          %s3110 = sand.u32 %s648, 1
          %s3111 = smul.addr %s3110, 32
          %s3112 = scalar_lea.vmem [#allocation8], %s3111
          %3113 = dma.done %s3109, 512
        $region152: #{seq2seq_forward.7} parent=143 // pred_fallthru
          _
      $region144: #{seq2seq_forward.7} parent=5 // pred_fallthru
        _
    $region6: #{seq2seq_forward.7} parent=1 // loop_footer
      %s46 = sadd.s32 1, %s42
    $region7: #{seq2seq_forward.7} parent=1 // loop_footer_branch
      %41 = sbr.rel target = $region3
    $region8: #{seq2seq_forward.7} parent=1 // loop_exit
      _
    %3114 = vsyncpa [#allocation3], 1
    %s3115 = scalar_lea.sflag [#allocation3], 1
    %3116 = vsyncpa %s3115, 1
    %3117 = vsyncpa [#allocation6], 1
    %3118 = vsyncpa [#allocation4], 1
    %s3119 = scalar_lea.sflag [#allocation4], 1
    %3120 = vsyncpa %s3119, 1
    %3121 = vsyncpa [#allocation9], 1
    %s3122 = scalar_lea.sflag [#allocation9], 1
    %3123 = vsyncpa %s3122, 1

</llo_original>
